<compile_context>
chip_gen: v7x
topology: tpu7x:2x2x1
jax: 0.10.0
libtpu: 0.0.40
codegen_flags: <defaults>
</compile_context>

<pallas_src>
import functools

import numpy as np
import jax
import jax.numpy as jnp
from jax.experimental import pallas as pl
from jax.experimental.pallas import tpu as pltpu

EPS = 1e-5                        # nn.BatchNorm2d default eps
_LANES = 128                      # channel padding granularity (TPU lane width)
_VMEM_LIMIT = 64 * 1024 * 1024    # scoped-VMEM limit (v5e/v6e: 128 MiB phys, v7x: 64)
_MAX_CHUNK_ROWS = 1024            # flattened rows per 3x3-stage grid step


def _round_up(x, m):
    return (x + m - 1) // m * m


def _row_tile(rows, bytes_per_row, budget=_VMEM_LIMIT // 2):
    """Largest preferred row tile dividing `rows` that fits the VMEM budget.

    512 / 1024 row tiles sit at ~85% of the HBM roofline for the mem-bound stages."""
    for t in (512, 1024, 256, 128, 64, 32, 16, 8):
        if rows % t == 0 and 2 * t * bytes_per_row <= budget:
            return t
    return rows     # tiny / odd shapes: single block (equals the full extent)


def _h_tile(h, w):
    """Image-row chunk for the 3x3 stage; keeps per-step VMEM independent of H*W."""
    best = None
    for th in range(1, h + 1):
        if h % th:
            continue
        if (th * w) % 8 and th != h:          # (8,128) block constraint
            continue
        if th * w <= _MAX_CHUNK_ROWS:
            best = th
    return best if best is not None else h


# --------------------------------------------------------------------------------------
# kernels
# --------------------------------------------------------------------------------------

def _write_stats(st_ref, y):
    """Per-tile partial BN statistics: row 0 = sum, row 1 = sum of squares (f32)."""
    s = jnp.sum(y, axis=0, keepdims=True)
    q = jnp.sum(y * y, axis=0, keepdims=True)
    st_ref[...] = jnp.concatenate([s, q], axis=0).reshape(st_ref.shape)


def _conv1_kernel(x_ref, w1_ref, y_ref, st_ref):
    """1x1 ConvTranspose (pointwise matmul) + BN1 partial batch statistics."""
    y = jnp.dot(x_ref[...].astype(jnp.bfloat16), w1_ref[...],
                preferred_element_type=jnp.float32)            # bf16 MXU, f32 acc
    y_ref[...] = y.astype(y_ref.dtype)                          # bf16 intermediate
    _write_stats(st_ref, y)                                     # stats from f32 acc


def _conv2_kernel(mid_ref, top_ref, bot_ref, s1_ref, t1_ref, w2_ref,
                  y2_ref, st_ref, scr_ref, *, width, pad):
    """BN1(apply)+ReLU -> 3x3 ConvTranspose (stride 1, pad 1) on one image-row chunk.

    The chunk plus one explicitly loaded halo row above/below is BN+ReLU'd into a
    lane-dense flattened bf16 scratch.  Each of the 9 kernel taps is a static shifted
    window of that scratch feeding its own accumulated (rows, C) @ (C, C) MXU matmul,
    so no (rows, 9C) im2col operand is ever materialized.
    """
    _, rows, c = mid_ref.shape
    w = width
    i = pl.program_id(1)
    last = pl.num_programs(1) - 1

    s1 = s1_ref[...]
    t1 = t1_ref[...]

    def bn_relu(r):
        return jnp.maximum(r.reshape(-1, c).astype(jnp.float32) * s1 + t1, 0.0)

    # Halo rows outside the image (first / last chunk) are the conv's zero padding.
    top = jnp.where(i > 0, bn_relu(top_ref[...]), 0.0).astype(jnp.bfloat16)
    bot = jnp.where(i < last, bn_relu(bot_ref[...]), 0.0).astype(jnp.bfloat16)
    mid = bn_relu(mid_ref[...]).astype(jnp.bfloat16)

    scr_ref[pl.ds(pad, w), :] = top
    scr_ref[pl.ds(pad + w, rows), :] = mid
    scr_ref[pl.ds(pad + w + rows, w), :] = bot

    # dw = +/-1 taps must not wrap across an image-row boundary (cheap (rows,1) mask).
    col = jax.lax.broadcasted_iota(jnp.int32, (rows, 1), 0) % w
    left_ok = col >= 1
    right_ok = col <= w - 2

    acc = jnp.zeros((rows, c), jnp.float32)
    t = 0
    for dh in (-1, 0, 1):
        for dw in (-1, 0, 1):
            tap = scr_ref[pl.ds(pad + w + dh * w + dw, rows), :]
            if dw == -1:
                tap = jnp.where(left_ok, tap, 0.0)
            elif dw == 1:
                tap = jnp.where(right_ok, tap, 0.0)
            acc = acc + jnp.dot(tap, w2_ref[t], preferred_element_type=jnp.float32)
            t += 1

    y2_ref[...] = acc.astype(y2_ref.dtype).reshape(y2_ref.shape)   # bf16 intermediate
    _write_stats(st_ref, acc)


def _conv3_kernel(y2_ref, s2_ref, t2_ref, w3_ref, y3_ref, st_ref):
    """BN2(apply)+ReLU -> 1x1 ConvTranspose + BN3 partial batch statistics."""
    y = jnp.maximum(y2_ref[...].astype(jnp.float32) * s2_ref[...] + t2_ref[...], 0.0)
    y3 = jnp.dot(y.astype(jnp.bfloat16), w3_ref[...],
                 preferred_element_type=jnp.float32)
    y3_ref[...] = y3.astype(y3_ref.dtype)
    _write_stats(st_ref, y3)


def _finalize_kernel(y3_ref, s3_ref, t3_ref, x_ref, out_ref):
    """BN3(apply) + identity residual + ReLU (i_upsample is None, dropout p = 0)."""
    out_ref[...] = jnp.maximum(
        y3_ref[...].astype(jnp.float32) * s3_ref[...] + t3_ref[...] + x_ref[...], 0.0)


# --------------------------------------------------------------------------------------
# host-side glue
# --------------------------------------------------------------------------------------

def _bn_scale_shift(stats, gamma, beta, count):
    """Fold training-mode BN (biased batch stats) into per-channel scale / shift.

    `stats` holds per-tile partial (sum, sumsq) rows; reducing them here keeps every
    kernel grid axis "parallel" and improves var = E[x^2] - E[x]^2 numerics.
    """
    c = stats.shape[-1]
    parts = stats.reshape(-1, 2, c)
    s_sum = jnp.sum(parts[:, 0, :], axis=0)
    s_sq = jnp.sum(parts[:, 1, :], axis=0)
    mean = s_sum / count
    var = s_sq / count - mean * mean
    scale = gamma.reshape(-1) * jax.lax.rsqrt(jnp.maximum(var, 0.0) + EPS)
    shift = beta.reshape(-1) - mean * scale
    return scale.reshape(1, c), shift.reshape(1, c)


def _pad_to(a, axis, size):
    pad = size - a.shape[axis]
    if pad == 0:
        return a
    widths = [(0, 0)] * a.ndim
    widths[axis] = (0, pad)
    return jnp.pad(a, widths)


def make_torch_params(key, in_channels, out_channels):
    """Synthetic parameters with the exact shapes the nn.Module would hold."""
    c4 = in_channels // 4
    ks = jax.random.split(key, 12)
    s = 0.1
    return dict(
        w1_pt=s * jax.random.normal(ks[0], (in_channels, c4, 1, 1), jnp.float32),
        b1=s * jax.random.normal(ks[1], (c4,), jnp.float32),
        w2_pt=s * jax.random.normal(ks[2], (c4, c4, 3, 3), jnp.float32),
        b2=s * jax.random.normal(ks[3], (c4,), jnp.float32),
        w3_pt=s * jax.random.normal(ks[4], (c4, out_channels, 1, 1), jnp.float32),
        b3=s * jax.random.normal(ks[5], (out_channels,), jnp.float32),
        g1=1.0 + s * jax.random.normal(ks[6], (c4,), jnp.float32),
        be1=s * jax.random.normal(ks[7], (c4,), jnp.float32),
        g2=1.0 + s * jax.random.normal(ks[8], (c4,), jnp.float32),
        be2=s * jax.random.normal(ks[9], (c4,), jnp.float32),
        g3=1.0 + s * jax.random.normal(ks[10], (out_channels,), jnp.float32),
        be3=s * jax.random.normal(ks[11], (out_channels,), jnp.float32),
    )


def prepare_kernel_params(tp):
    """Pad the bottleneck channel dim to 128 lanes, pre-flip w2, cast weights to bf16.

    Conv biases are dropped (cancelled exactly by training-mode BN).  Padded weight /
    gamma / beta entries are zero, so padded lanes stay identically zero end to end.
    """
    cin, c4 = tp["w1_pt"].shape[0], tp["w1_pt"].shape[1]
    cout = tp["w3_pt"].shape[1]
    c4_p = _round_up(c4, _LANES)

    w1 = _pad_to(tp["w1_pt"][:, :, 0, 0], 1, c4_p)                       # (cin, c4_p)
    # ConvTranspose2d(k=3, s=1, p=1) == correlation with the spatially flipped kernel:
    w2 = jnp.transpose(tp["w2_pt"][:, :, ::-1, ::-1], (2, 3, 0, 1))      # (3,3,c4,c4) HWIO
    w2 = _pad_to(_pad_to(w2, 2, c4_p), 3, c4_p).reshape(9, c4_p, c4_p)
    w3 = _pad_to(tp["w3_pt"][:, :, 0, 0], 0, c4_p)                        # (c4_p, cout)

    def row(v, cp=None):
        v = v.reshape(1, -1)
        return _pad_to(v, 1, cp) if cp else v

    return dict(
        w1=w1.astype(jnp.bfloat16), w2=w2.astype(jnp.bfloat16),
        w3=w3.astype(jnp.bfloat16),
        g1=row(tp["g1"], c4_p), be1=row(tp["be1"], c4_p),
        g2=row(tp["g2"], c4_p), be2=row(tp["be2"], c4_p),
        g3=row(tp["g3"]), be3=row(tp["be3"]),
        channels=(cin, cout), c4_p=c4_p,
    )


def bottleneck_decoder(x_nchw, kp):
    """BottleneckDecoder forward (stride=1, dropout=0.0, i_upsample=None). NCHW in/out.

    Four chained pallas_calls (chained calls give the two-phase, globally-correct
    training-mode BN while each kernel streams lane-dense tiles):
      1) conv1 (1x1)                + BN1 partial stats   grid=(row tiles)   parallel
      2) BN1+ReLU, conv2 (3x3)      + BN2 partial stats   grid=(N, H/TH)     parallel
      3) BN2+ReLU, conv3 (1x1)      + BN3 partial stats   grid=(row tiles)   parallel
      4) BN3 + identity + ReLU                            grid=(row tiles)   parallel
    """
    n, cin, h, w = x_nchw.shape
    cin_chk, cout = kp["channels"]
    c4_p = kp["c4_p"]
    assert cin == cin_chk
    assert cin == cout, \
        "identity add requires in_channels == out_channels when i_upsample is None"
    # TODO(synk): W not a multiple of 8 needs an 8-row-aligned halo BlockSpec.
    assert w % 8 == 0 or h == 1

    hw = h * w
    rows = n * hw

    # One row tile shared by the 1x1 / elementwise stages, sized for the VMEM budget.
    bpr = max(cin * 4 + c4_p * 2,                 # stage 1: x (f32) + y1 (bf16)
              (c4_p + cout) * 2,                  # stage 3: y2 + y3 (bf16)
              cout * 2 + cin * 4 + cout * 4)      # stage 4: y3 + x + out
    tr = _row_tile(rows, bpr)
    n_tiles = rows // tr

    th = _h_tile(h, w)                            # image rows per 3x3-stage step
    n_h = h // th
    chunk = th * w
    guard = 16                                    # scratch guard rows for the +/-1 taps

    params = pltpu.CompilerParams(
        dimension_semantics=("parallel",), vmem_limit_bytes=_VMEM_LIMIT)

    # TODO(synk): keep NHWC end-to-end when the surrounding model allows; these two
    # transposes are the only remaining wrapper-side HBM passes.
    x2 = jnp.transpose(x_nchw, (0, 2, 3, 1)).astype(jnp.float32).reshape(rows, cin)

    # ---- stage 1: conv1 (1x1) + BN1 partial stats ------------------------------------
    y1, st1 = pl.pallas_call(
        _conv1_kernel,
        grid=(n_tiles,),
        in_specs=[pl.BlockSpec((tr, cin), lambda i: (i, 0)),
                  pl.BlockSpec((cin, c4_p), lambda i: (0, 0))],
        out_specs=[pl.BlockSpec((tr, c4_p), lambda i: (i, 0)),
                   pl.BlockSpec((1, 2, c4_p), lambda i: (i, 0, 0))],
        out_shape=[jax.ShapeDtypeStruct((rows, c4_p), jnp.bfloat16),
                   jax.ShapeDtypeStruct((n_tiles, 2, c4_p), jnp.float32)],
        compiler_params=params,
        cost_estimate=pl.CostEstimate(
            flops=2 * rows * cin * c4_p, transcendentals=0,
            bytes_accessed=rows * (4 * cin + 2 * c4_p) + 2 * cin * c4_p),
    )(x2, kp["w1"])
    s1, t1 = _bn_scale_shift(st1, kp["g1"], kp["be1"], rows)

    # ---- stage 2: BN1+ReLU -> conv2 (3x3) + BN2 partial stats ------------------------
    y1r = y1.reshape(n, hw, c4_p)
    y2, st2 = pl.pallas_call(
        functools.partial(_conv2_kernel, width=w, pad=guard),
        grid=(n, n_h),
        in_specs=[pl.BlockSpec((1, chunk, c4_p), lambda b, i: (b, i, 0)),
                  pl.BlockSpec((1, w, c4_p),
                               lambda b, i: (b, jnp.maximum(i * th - 1, 0), 0)),
                  pl.BlockSpec((1, w, c4_p),
                               lambda b, i: (b, jnp.minimum((i + 1) * th, h - 1), 0)),
                  pl.BlockSpec((1, c4_p), lambda b, i: (0, 0)),
                  pl.BlockSpec((1, c4_p), lambda b, i: (0, 0)),
                  pl.BlockSpec((9, c4_p, c4_p), lambda b, i: (0, 0, 0))],
        out_specs=[pl.BlockSpec((1, chunk, c4_p), lambda b, i: (b, i, 0)),
                   pl.BlockSpec((1, 1, 2, c4_p), lambda b, i: (b, i, 0, 0))],
        out_shape=[jax.ShapeDtypeStruct((n, hw, c4_p), jnp.bfloat16),
                   jax.ShapeDtypeStruct((n, n_h, 2, c4_p), jnp.float32)],
        scratch_shapes=[pltpu.VMEM((2 * guard + chunk + 2 * w, c4_p), jnp.bfloat16)],
        compiler_params=pltpu.CompilerParams(
            dimension_semantics=("parallel", "parallel"),
            vmem_limit_bytes=_VMEM_LIMIT),
        cost_estimate=pl.CostEstimate(
            flops=2 * rows * 9 * c4_p * c4_p, transcendentals=0,
            bytes_accessed=4 * rows * c4_p + 2 * 9 * c4_p * c4_p),
    )(y1r, y1r, y1r, s1, t1, kp["w2"])
    s2, t2 = _bn_scale_shift(st2, kp["g2"], kp["be2"], rows)

    # ---- stage 3: BN2+ReLU -> conv3 (1x1) + BN3 partial stats ------------------------
    y3, st3 = pl.pallas_call(
        _conv3_kernel,
        grid=(n_tiles,),
        in_specs=[pl.BlockSpec((tr, c4_p), lambda i: (i, 0)),
                  pl.BlockSpec((1, c4_p), lambda i: (0, 0)),
                  pl.BlockSpec((1, c4_p), lambda i: (0, 0)),
                  pl.BlockSpec((c4_p, cout), lambda i: (0, 0))],
        out_specs=[pl.BlockSpec((tr, cout), lambda i: (i, 0)),
                   pl.BlockSpec((1, 2, cout), lambda i: (i, 0, 0))],
        out_shape=[jax.ShapeDtypeStruct((rows, cout), jnp.bfloat16),
                   jax.ShapeDtypeStruct((n_tiles, 2, cout), jnp.float32)],
        compiler_params=params,
        cost_estimate=pl.CostEstimate(
            flops=2 * rows * c4_p * cout, transcendentals=0,
            bytes_accessed=2 * rows * (c4_p + cout) + 2 * c4_p * cout),
    )(y2.reshape(rows, c4_p), s2, t2, kp["w3"])
    s3, t3 = _bn_scale_shift(st3, kp["g3"], kp["be3"], rows)

    # ---- stage 4: BN3 + identity residual + ReLU -------------------------------------
    out = pl.pallas_call(
        _finalize_kernel,
        grid=(n_tiles,),
        in_specs=[pl.BlockSpec((tr, cout), lambda i: (i, 0)),
                  pl.BlockSpec((1, cout), lambda i: (0, 0)),
                  pl.BlockSpec((1, cout), lambda i: (0, 0)),
                  pl.BlockSpec((tr, cin), lambda i: (i, 0))],
        out_specs=pl.BlockSpec((tr, cout), lambda i: (i, 0)),
        out_shape=jax.ShapeDtypeStruct((rows, cout), jnp.float32),
        compiler_params=params,
    )(y3, s3, t3, x2)

    return jnp.transpose(out.reshape(n, h, w, cout), (0, 3, 1, 2))


# --------------------------------------------------------------------------------------
# reference & test
# --------------------------------------------------------------------------------------

def reference(x_nchw, tp, mirror_bf16=True):
    """Pure-JAX forward of the PyTorch module (training-mode BN, conv biases kept).

    With mirror_bf16=True the matmul/conv operands and the stored intermediates are
    rounded to bf16 (f32 accumulation) to match the kernel's precision, so the
    comparison isolates structural correctness rather than bf16 rounding.
    """
    cast = (lambda a: a.astype(jnp.bfloat16)) if mirror_bf16 else (lambda a: a)
    quant = (lambda a: a.astype(jnp.bfloat16).astype(jnp.float32)) if mirror_bf16 \
        else (lambda a: a)
    x = jnp.transpose(x_nchw, (0, 2, 3, 1)).astype(jnp.float32)

    def bn(y, g, b):
        mu = jnp.mean(y, axis=(0, 1, 2), keepdims=True)
        var = jnp.mean(jnp.square(y - mu), axis=(0, 1, 2), keepdims=True)
        return (y - mu) * jax.lax.rsqrt(var + EPS) * g.reshape(1, 1, 1, -1) \
            + b.reshape(1, 1, 1, -1)

    y = jnp.einsum("nhwc,cd->nhwd", cast(x), cast(tp["w1_pt"][:, :, 0, 0]),
                   preferred_element_type=jnp.float32) + tp["b1"].reshape(1, 1, 1, -1)
    y = jax.nn.relu(bn(quant(y), tp["g1"], tp["be1"]))
    w2_hwio = jnp.transpose(tp["w2_pt"][:, :, ::-1, ::-1], (2, 3, 0, 1))
    y = jax.lax.conv_general_dilated(
        cast(y), cast(w2_hwio), window_strides=(1, 1), padding=((1, 1), (1, 1)),
        dimension_numbers=("NHWC", "HWIO", "NHWC"),
        preferred_element_type=jnp.float32) + tp["b2"].reshape(1, 1, 1, -1)
    y = jax.nn.relu(bn(quant(y), tp["g2"], tp["be2"]))
    y = jnp.einsum("nhwc,cd->nhwd", cast(y), cast(tp["w3_pt"][:, :, 0, 0]),
                   preferred_element_type=jnp.float32) + tp["b3"].reshape(1, 1, 1, -1)
    y = bn(quant(y), tp["g3"], tp["be3"])
    y = jax.nn.relu(y + x)
    return jnp.transpose(y, (0, 3, 1, 2))


if __name__ == "__main__":
    N, CIN, H, W = 2, 16, 16, 16
    COUT = CIN   # identity add requires in_channels == out_channels (i_upsample=None)

    key = jax.random.PRNGKey(0)
    kx, kparam = jax.random.split(key)
    torch_params = make_torch_params(kparam, CIN, COUT)
    kernel_params = prepare_kernel_params(torch_params)
    x = jax.random.normal(kx, (N, CIN, H, W), jnp.float32)

    fwd = jax.jit(lambda xx: bottleneck_decoder(xx, kernel_params))
    out = jax.block_until_ready(fwd(x))
    assert out.shape == (N, COUT, H, W), out.shape

    ref = reference(x, torch_params, mirror_bf16=True)
    err = float(jnp.max(jnp.abs(out - ref)))
    if not np.allclose(np.asarray(out), np.asarray(ref), rtol=3e-2, atol=3e-2):
        raise SystemExit(f"mismatch vs reference: max abs err = {err:g}")
    print("KERNEL_OK")
</pallas_src>

<mosaic_0001>
module attributes {stable_mosaic.version = 11 : i64} {
  func.func @_conv1_kernel(%arg0: i32, %arg1: memref<512x16xf32, #tpu.memory_space<vmem>>, %arg2: memref<16x128xbf16, #tpu.memory_space<vmem>>, %arg3: memref<512x128xbf16, #tpu.memory_space<vmem>>, %arg4: memref<1x2x128xf32, #tpu.memory_space<vmem>>) attributes {dimension_semantics = [#tpu.dimension_semantics<parallel>], iteration_bounds = array<i64: 1>, scalar_prefetch = 0 : i64, scratch_operands = 0 : i64, tpu.core_type = #tpu.core_type<tc>, window_params = [{transform_indices = @transform_0, window_bounds = array<i64: 512, 16>}, {pipeline_mode = #tpu.pipeline_mode<synchronous>, transform_indices = @transform_1, window_bounds = array<i64: 16, 128>}, {transform_indices = @transform_2, window_bounds = array<i64: 512, 128>}, {transform_indices = @transform_3, window_bounds = array<i64: 1, 2, 128>}]} {
    %c0 = arith.constant 0 : index
    %c0_0 = arith.constant 0 : index
    %0 = vector.load %arg1[%c0, %c0_0] : memref<512x16xf32, #tpu.memory_space<vmem>>, vector<512x16xf32>
    %1 = arith.truncf %0 : vector<512x16xf32> to vector<512x16xbf16>
    %c0_1 = arith.constant 0 : index
    %c0_2 = arith.constant 0 : index
    %2 = vector.load %arg2[%c0_1, %c0_2] : memref<16x128xbf16, #tpu.memory_space<vmem>>, vector<16x128xbf16>
    %cst = arith.constant dense<0.000000e+00> : vector<512x128xf32>
    %3 = tpu.matmul %1, %2, %cst {dimension_numbers = #tpu.dot_dimension_numbers<[1], [0], [0], [1], [0, 0, 1, 1], [], []>} : vector<512x16xbf16>, vector<16x128xbf16>, vector<512x128xf32> -> vector<512x128xf32>
    %4 = arith.truncf %3 : vector<512x128xf32> to vector<512x128xbf16>
    %c0_3 = arith.constant 0 : index
    %c0_4 = arith.constant 0 : index
    %5 = vector.load %arg3[%c0_3, %c0_4] : memref<512x128xbf16, #tpu.memory_space<vmem>>, vector<512x128xbf16>
    tpu.vector_store %arg3[%c0_3, %c0_4], %4 {strides = array<i32>} : memref<512x128xbf16, #tpu.memory_space<vmem>>, vector<512x128xbf16>,
    %cst_5 = arith.constant dense<0.000000e+00> : vector<128xf32>
    %6 = vector.multi_reduction <add>, %3, %cst_5 [0] : vector<512x128xf32> to vector<128xf32>
    %7 = vector.shape_cast %6 : vector<128xf32> to vector<1x128xf32>
    %8 = arith.mulf %3, %3 : vector<512x128xf32>
    %cst_6 = arith.constant dense<0.000000e+00> : vector<128xf32>
    %9 = vector.multi_reduction <add>, %8, %cst_6 [0] : vector<512x128xf32> to vector<128xf32>
    %10 = vector.shape_cast %9 : vector<128xf32> to vector<1x128xf32>
    %11 = tpu.concatenate %7, %10 in 0 : vector<1x128xf32>, vector<1x128xf32> -> vector<2x128xf32>
    %12 = vector.shape_cast %11 : vector<2x128xf32> to vector<1x2x128xf32>
    %c0_7 = arith.constant 0 : index
    %c0_8 = arith.constant 0 : index
    %c0_9 = arith.constant 0 : index
    %13 = vector.load %arg4[%c0_7, %c0_8, %c0_9] : memref<1x2x128xf32, #tpu.memory_space<vmem>>, vector<1x2x128xf32>
    tpu.vector_store %arg4[%c0_7, %c0_8, %c0_9], %12 {strides = array<i32>} : memref<1x2x128xf32, #tpu.memory_space<vmem>>, vector<1x2x128xf32>,
    return
  }
  func.func @transform_0(%arg0: i32) -> (i32, i32) {
    %c0_i32 = arith.constant 0 : i32
    %c0_i32_0 = arith.constant 0 : i32
    return %arg0, %c0_i32 : i32, i32
  }
  func.func @transform_1(%arg0: i32) -> (i32, i32) {
    %c0_i32 = arith.constant 0 : i32
    %c0_i32_0 = arith.constant 0 : i32
    %c0_i32_1 = arith.constant 0 : i32
    return %c0_i32, %c0_i32_0 : i32, i32
  }
  func.func @transform_2(%arg0: i32) -> (i32, i32) {
    %c0_i32 = arith.constant 0 : i32
    %c0_i32_0 = arith.constant 0 : i32
    return %arg0, %c0_i32 : i32, i32
  }
  func.func @transform_3(%arg0: i32) -> (i32, i32, i32) {
    %c0_i32 = arith.constant 0 : i32
    %c0_i32_0 = arith.constant 0 : i32
    %c0_i32_1 = arith.constant 0 : i32
    return %arg0, %c0_i32, %c0_i32_0 : i32, i32, i32
  }
}

module attributes {stable_mosaic.version = 11 : i64} {
  func.func @_conv2_kernel(%arg0: i32, %arg1: i32, %arg2: memref<1x256x128xbf16, #tpu.memory_space<vmem>>, %arg3: memref<1x16x128xbf16, #tpu.memory_space<vmem>>, %arg4: memref<1x16x128xbf16, #tpu.memory_space<vmem>>, %arg5: memref<1x128xf32, #tpu.memory_space<vmem>>, %arg6: memref<1x128xf32, #tpu.memory_space<vmem>>, %arg7: memref<9x128x128xbf16, #tpu.memory_space<vmem>>, %arg8: memref<1x256x128xbf16, #tpu.memory_space<vmem>>, %arg9: memref<1x1x2x128xf32, #tpu.memory_space<vmem>>, %arg10: memref<320x128xbf16, #tpu.memory_space<vmem>>) attributes {dimension_semantics = [#tpu.dimension_semantics<parallel>, #tpu.dimension_semantics<parallel>], iteration_bounds = array<i64: 2, 1>, scalar_prefetch = 0 : i64, scratch_operands = 1 : i64, tpu.core_type = #tpu.core_type<tc>, window_params = [{transform_indices = @transform_0, window_bounds = array<i64: 1, 256, 128>}, {transform_indices = @transform_1, window_bounds = array<i64: 1, 16, 128>}, {transform_indices = @transform_2, window_bounds = array<i64: 1, 16, 128>}, {pipeline_mode = #tpu.pipeline_mode<synchronous>, transform_indices = @transform_3, window_bounds = array<i64: 1, 128>}, {pipeline_mode = #tpu.pipeline_mode<synchronous>, transform_indices = @transform_4, window_bounds = array<i64: 1, 128>}, {pipeline_mode = #tpu.pipeline_mode<synchronous>, transform_indices = @transform_5, window_bounds = array<i64: 9, 128, 128>}, {transform_indices = @transform_6, window_bounds = array<i64: 1, 256, 128>}, {transform_indices = @transform_7, window_bounds = array<i64: 1, 1, 2, 128>}]} {
    %c0 = arith.constant 0 : index
    %c0_0 = arith.constant 0 : index
    %0 = vector.load %arg5[%c0, %c0_0] : memref<1x128xf32, #tpu.memory_space<vmem>>, vector<1x128xf32>
    %c0_1 = arith.constant 0 : index
    %c0_2 = arith.constant 0 : index
    %1 = vector.load %arg6[%c0_1, %c0_2] : memref<1x128xf32, #tpu.memory_space<vmem>>, vector<1x128xf32>
    %c0_i32 = arith.constant 0 : i32
    %2 = arith.cmpi sgt, %arg1, %c0_i32 : i32
    %c0_3 = arith.constant 0 : index
    %c0_4 = arith.constant 0 : index
    %c0_5 = arith.constant 0 : index
    %3 = vector.load %arg3[%c0_3, %c0_4, %c0_5] : memref<1x16x128xbf16, #tpu.memory_space<vmem>>, vector<1x16x128xbf16>
    %4 = vector.shape_cast %3 : vector<1x16x128xbf16> to vector<16x128xbf16>
    %5 = arith.extf %4 : vector<16x128xbf16> to vector<16x128xf32>
    %6 = vector.broadcast %0 : vector<1x128xf32> to vector<16x128xf32>
    %7 = arith.mulf %5, %6 : vector<16x128xf32>
    %8 = vector.broadcast %1 : vector<1x128xf32> to vector<16x128xf32>
    %9 = arith.addf %7, %8 : vector<16x128xf32>
    %cst = arith.constant 0.000000e+00 : f32
    %10 = vector.broadcast %cst : f32 to vector<16x128xf32>
    %11 = arith.maximumf %9, %10 : vector<16x128xf32>
    %cst_6 = arith.constant 0.000000e+00 : f32
    %12 = vector.broadcast %cst_6 : f32 to vector<16x128xf32>
    %13 = arith.select %2, %11, %12 : vector<16x128xf32>
    %14 = arith.truncf %13 : vector<16x128xf32> to vector<16x128xbf16>
    %c0_i32_7 = arith.constant 0 : i32
    %15 = arith.cmpi slt, %arg1, %c0_i32_7 : i32
    %c0_8 = arith.constant 0 : index
    %c0_9 = arith.constant 0 : index
    %c0_10 = arith.constant 0 : index
    %16 = vector.load %arg4[%c0_8, %c0_9, %c0_10] : memref<1x16x128xbf16, #tpu.memory_space<vmem>>, vector<1x16x128xbf16>
    %17 = vector.shape_cast %16 : vector<1x16x128xbf16> to vector<16x128xbf16>
    %18 = arith.extf %17 : vector<16x128xbf16> to vector<16x128xf32>
    %19 = vector.broadcast %0 : vector<1x128xf32> to vector<16x128xf32>
    %20 = arith.mulf %18, %19 : vector<16x128xf32>
    %21 = vector.broadcast %1 : vector<1x128xf32> to vector<16x128xf32>
    %22 = arith.addf %20, %21 : vector<16x128xf32>
    %cst_11 = arith.constant 0.000000e+00 : f32
    %23 = vector.broadcast %cst_11 : f32 to vector<16x128xf32>
    %24 = arith.maximumf %22, %23 : vector<16x128xf32>
    %cst_12 = arith.constant 0.000000e+00 : f32
    %25 = vector.broadcast %cst_12 : f32 to vector<16x128xf32>
    %26 = arith.select %15, %24, %25 : vector<16x128xf32>
    %27 = arith.truncf %26 : vector<16x128xf32> to vector<16x128xbf16>
    %c0_13 = arith.constant 0 : index
    %c0_14 = arith.constant 0 : index
    %c0_15 = arith.constant 0 : index
    %28 = vector.load %arg2[%c0_13, %c0_14, %c0_15] : memref<1x256x128xbf16, #tpu.memory_space<vmem>>, vector<1x256x128xbf16>
    %29 = vector.shape_cast %28 : vector<1x256x128xbf16> to vector<256x128xbf16>
    %30 = arith.extf %29 : vector<256x128xbf16> to vector<256x128xf32>
    %31 = vector.broadcast %0 : vector<1x128xf32> to vector<256x128xf32>
    %32 = arith.mulf %30, %31 : vector<256x128xf32>
    %33 = vector.broadcast %1 : vector<1x128xf32> to vector<256x128xf32>
    %34 = arith.addf %32, %33 : vector<256x128xf32>
    %cst_16 = arith.constant 0.000000e+00 : f32
    %35 = vector.broadcast %cst_16 : f32 to vector<256x128xf32>
    %36 = arith.maximumf %34, %35 : vector<256x128xf32>
    %37 = arith.truncf %36 : vector<256x128xf32> to vector<256x128xbf16>
    %c16 = arith.constant 16 : index
    %c0_17 = arith.constant 0 : index
    %38 = vector.load %arg10[%c16, %c0_17] : memref<320x128xbf16, #tpu.memory_space<vmem>>, vector<16x128xbf16>
    tpu.vector_store %arg10[%c16, %c0_17], %14 {strides = array<i32>} : memref<320x128xbf16, #tpu.memory_space<vmem>>, vector<16x128xbf16>,
    %c32 = arith.constant 32 : index
    %c0_18 = arith.constant 0 : index
    %39 = vector.load %arg10[%c32, %c0_18] : memref<320x128xbf16, #tpu.memory_space<vmem>>, vector<256x128xbf16>
    tpu.vector_store %arg10[%c32, %c0_18], %37 {strides = array<i32>} : memref<320x128xbf16, #tpu.memory_space<vmem>>, vector<256x128xbf16>,
    %c288 = arith.constant 288 : index
    %c0_19 = arith.constant 0 : index
    %40 = vector.load %arg10[%c288, %c0_19] : memref<320x128xbf16, #tpu.memory_space<vmem>>, vector<16x128xbf16>
    tpu.vector_store %arg10[%c288, %c0_19], %27 {strides = array<i32>} : memref<320x128xbf16, #tpu.memory_space<vmem>>, vector<16x128xbf16>,
    %41 = tpu.iota {dimensions = array<i32: 0>} : vector<256x1xi32>
    %c16_i32 = arith.constant 16 : i32
    %c0_i32_20 = arith.constant 0 : i32
    %42 = arith.cmpi eq, %c16_i32, %c0_i32_20 : i32
    %c1_i32 = arith.constant 1 : i32
    %43 = arith.select %42, %c1_i32, %c16_i32 : i32
    %44 = vector.broadcast %43 : i32 to vector<256x1xi32>
    %45 = arith.remsi %41, %44 : vector<256x1xi32>
    %c0_i32_21 = arith.constant 0 : i32
    %46 = vector.broadcast %c0_i32_21 : i32 to vector<256x1xi32>
    %47 = arith.cmpi ne, %45, %46 : vector<256x1xi32>
    %c0_i32_22 = arith.constant 0 : i32
    %48 = vector.broadcast %c0_i32_22 : i32 to vector<256x1xi32>
    %49 = arith.cmpi slt, %45, %48 : vector<256x1xi32>
    %c0_i32_23 = arith.constant 0 : i32
    %50 = arith.cmpi slt, %43, %c0_i32_23 : i32
    %51 = vector.broadcast %50 : i1 to vector<256x1xi1>
    %52 = vector.broadcast %51 : vector<256x1xi1> to vector<256x1xi1>
    %53 = arith.xori %49, %52 : vector<256x1xi1>
    %54 = arith.andi %53, %47 : vector<256x1xi1>
    %55 = vector.broadcast %43 : i32 to vector<256x1xi32>
    %56 = arith.addi %45, %55 : vector<256x1xi32>
    %57 = arith.select %54, %56, %45 : vector<256x1xi1>, vector<256x1xi32>
    %c1_i32_24 = arith.constant 1 : i32
    %58 = vector.broadcast %c1_i32_24 : i32 to vector<256x1xi32>
    %59 = arith.cmpi sge, %57, %58 : vector<256x1xi32>
    %c14_i32 = arith.constant 14 : i32
    %60 = vector.broadcast %c14_i32 : i32 to vector<256x1xi32>
    %61 = arith.cmpi sle, %57, %60 : vector<256x1xi32>
    %cst_25 = arith.constant 0.000000e+00 : f32
    %62 = vector.broadcast %cst_25 : f32 to vector<256x128xf32>
    %c15 = arith.constant 15 : index
    %c0_26 = arith.constant 0 : index
    %63 = vector.load %arg10[%c15, %c0_26] : memref<320x128xbf16, #tpu.memory_space<vmem>>, vector<256x128xbf16>
    %cst_27 = arith.constant 0.000000e+00 : f32
    %64 = arith.truncf %cst_27 : f32 to bf16
    %65 = vector.shape_cast %59 : vector<256x1xi1> to vector<256x1xi1>
    %66 = vector.broadcast %65 : vector<256x1xi1> to vector<256x128xi1>
    %67 = vector.broadcast %64 : bf16 to vector<256x128xbf16>
    %68 = arith.select %66, %63, %67 : vector<256x128xi1>, vector<256x128xbf16>
    %c0_28 = arith.constant 0 : index
    %c0_29 = arith.constant 0 : index
    %c0_30 = arith.constant 0 : index
    %69 = vector.load %arg7[%c0_28, %c0_29, %c0_30] : memref<9x128x128xbf16, #tpu.memory_space<vmem>>, vector<1x128x128xbf16>
    %70 = vector.shape_cast %69 : vector<1x128x128xbf16> to vector<128x128xbf16>
    %cst_31 = arith.constant dense<0.000000e+00> : vector<256x128xf32>
    %71 = tpu.matmul %68, %70, %cst_31 {dimension_numbers = #tpu.dot_dimension_numbers<[1], [0], [0], [1], [0, 0, 1, 1], [], []>} : vector<256x128xbf16>, vector<128x128xbf16>, vector<256x128xf32> -> vector<256x128xf32>
    %72 = arith.addf %62, %71 : vector<256x128xf32>
    %c16_32 = arith.constant 16 : index
    %c0_33 = arith.constant 0 : index
    %73 = vector.load %arg10[%c16_32, %c0_33] : memref<320x128xbf16, #tpu.memory_space<vmem>>, vector<256x128xbf16>
    %c1 = arith.constant 1 : index
    %c0_34 = arith.constant 0 : index
    %c0_35 = arith.constant 0 : index
    %74 = vector.load %arg7[%c1, %c0_34, %c0_35] : memref<9x128x128xbf16, #tpu.memory_space<vmem>>, vector<1x128x128xbf16>
    %75 = vector.shape_cast %74 : vector<1x128x128xbf16> to vector<128x128xbf16>
    %cst_36 = arith.constant dense<0.000000e+00> : vector<256x128xf32>
    %76 = tpu.matmul %73, %75, %cst_36 {dimension_numbers = #tpu.dot_dimension_numbers<[1], [0], [0], [1], [0, 0, 1, 1], [], []>} : vector<256x128xbf16>, vector<128x128xbf16>, vector<256x128xf32> -> vector<256x128xf32>
    %77 = arith.addf %72, %76 : vector<256x128xf32>
    %c17 = arith.constant 17 : index
    %c0_37 = arith.constant 0 : index
    %78 = vector.load %arg10[%c17, %c0_37] : memref<320x128xbf16, #tpu.memory_space<vmem>>, vector<256x128xbf16>
    %cst_38 = arith.constant 0.000000e+00 : f32
    %79 = arith.truncf %cst_38 : f32 to bf16
    %80 = vector.shape_cast %61 : vector<256x1xi1> to vector<256x1xi1>
    %81 = vector.broadcast %80 : vector<256x1xi1> to vector<256x128xi1>
    %82 = vector.broadcast %79 : bf16 to vector<256x128xbf16>
    %83 = arith.select %81, %78, %82 : vector<256x128xi1>, vector<256x128xbf16>
    %c2 = arith.constant 2 : index
    %c0_39 = arith.constant 0 : index
    %c0_40 = arith.constant 0 : index
    %84 = vector.load %arg7[%c2, %c0_39, %c0_40] : memref<9x128x128xbf16, #tpu.memory_space<vmem>>, vector<1x128x128xbf16>
    %85 = vector.shape_cast %84 : vector<1x128x128xbf16> to vector<128x128xbf16>
    %cst_41 = arith.constant dense<0.000000e+00> : vector<256x128xf32>
    %86 = tpu.matmul %83, %85, %cst_41 {dimension_numbers = #tpu.dot_dimension_numbers<[1], [0], [0], [1], [0, 0, 1, 1], [], []>} : vector<256x128xbf16>, vector<128x128xbf16>, vector<256x128xf32> -> vector<256x128xf32>
    %87 = arith.addf %77, %86 : vector<256x128xf32>
    %c31 = arith.constant 31 : index
    %c0_42 = arith.constant 0 : index
    %88 = vector.load %arg10[%c31, %c0_42] : memref<320x128xbf16, #tpu.memory_space<vmem>>, vector<256x128xbf16>
    %cst_43 = arith.constant 0.000000e+00 : f32
    %89 = arith.truncf %cst_43 : f32 to bf16
    %90 = vector.shape_cast %59 : vector<256x1xi1> to vector<256x1xi1>
    %91 = vector.broadcast %90 : vector<256x1xi1> to vector<256x128xi1>
    %92 = vector.broadcast %89 : bf16 to vector<256x128xbf16>
    %93 = arith.select %91, %88, %92 : vector<256x128xi1>, vector<256x128xbf16>
    %c3 = arith.constant 3 : index
    %c0_44 = arith.constant 0 : index
    %c0_45 = arith.constant 0 : index
    %94 = vector.load %arg7[%c3, %c0_44, %c0_45] : memref<9x128x128xbf16, #tpu.memory_space<vmem>>, vector<1x128x128xbf16>
    %95 = vector.shape_cast %94 : vector<1x128x128xbf16> to vector<128x128xbf16>
    %cst_46 = arith.constant dense<0.000000e+00> : vector<256x128xf32>
    %96 = tpu.matmul %93, %95, %cst_46 {dimension_numbers = #tpu.dot_dimension_numbers<[1], [0], [0], [1], [0, 0, 1, 1], [], []>} : vector<256x128xbf16>, vector<128x128xbf16>, vector<256x128xf32> -> vector<256x128xf32>
    %97 = arith.addf %87, %96 : vector<256x128xf32>
    %c32_47 = arith.constant 32 : index
    %c0_48 = arith.constant 0 : index
    %98 = vector.load %arg10[%c32_47, %c0_48] : memref<320x128xbf16, #tpu.memory_space<vmem>>, vector<256x128xbf16>
    %c4 = arith.constant 4 : index
    %c0_49 = arith.constant 0 : index
    %c0_50 = arith.constant 0 : index
    %99 = vector.load %arg7[%c4, %c0_49, %c0_50] : memref<9x128x128xbf16, #tpu.memory_space<vmem>>, vector<1x128x128xbf16>
    %100 = vector.shape_cast %99 : vector<1x128x128xbf16> to vector<128x128xbf16>
    %cst_51 = arith.constant dense<0.000000e+00> : vector<256x128xf32>
    %101 = tpu.matmul %98, %100, %cst_51 {dimension_numbers = #tpu.dot_dimension_numbers<[1], [0], [0], [1], [0, 0, 1, 1], [], []>} : vector<256x128xbf16>, vector<128x128xbf16>, vector<256x128xf32> -> vector<256x128xf32>
    %102 = arith.addf %97, %101 : vector<256x128xf32>
    %c33 = arith.constant 33 : index
    %c0_52 = arith.constant 0 : index
    %103 = vector.load %arg10[%c33, %c0_52] : memref<320x128xbf16, #tpu.memory_space<vmem>>, vector<256x128xbf16>
    %cst_53 = arith.constant 0.000000e+00 : f32
    %104 = arith.truncf %cst_53 : f32 to bf16
    %105 = vector.shape_cast %61 : vector<256x1xi1> to vector<256x1xi1>
    %106 = vector.broadcast %105 : vector<256x1xi1> to vector<256x128xi1>
    %107 = vector.broadcast %104 : bf16 to vector<256x128xbf16>
    %108 = arith.select %106, %103, %107 : vector<256x128xi1>, vector<256x128xbf16>
    %c5 = arith.constant 5 : index
    %c0_54 = arith.constant 0 : index
    %c0_55 = arith.constant 0 : index
    %109 = vector.load %arg7[%c5, %c0_54, %c0_55] : memref<9x128x128xbf16, #tpu.memory_space<vmem>>, vector<1x128x128xbf16>
    %110 = vector.shape_cast %109 : vector<1x128x128xbf16> to vector<128x128xbf16>
    %cst_56 = arith.constant dense<0.000000e+00> : vector<256x128xf32>
    %111 = tpu.matmul %108, %110, %cst_56 {dimension_numbers = #tpu.dot_dimension_numbers<[1], [0], [0], [1], [0, 0, 1, 1], [], []>} : vector<256x128xbf16>, vector<128x128xbf16>, vector<256x128xf32> -> vector<256x128xf32>
    %112 = arith.addf %102, %111 : vector<256x128xf32>
    %c47 = arith.constant 47 : index
    %c0_57 = arith.constant 0 : index
    %113 = vector.load %arg10[%c47, %c0_57] : memref<320x128xbf16, #tpu.memory_space<vmem>>, vector<256x128xbf16>
    %cst_58 = arith.constant 0.000000e+00 : f32
    %114 = arith.truncf %cst_58 : f32 to bf16
    %115 = vector.shape_cast %59 : vector<256x1xi1> to vector<256x1xi1>
    %116 = vector.broadcast %115 : vector<256x1xi1> to vector<256x128xi1>
    %117 = vector.broadcast %114 : bf16 to vector<256x128xbf16>
    %118 = arith.select %116, %113, %117 : vector<256x128xi1>, vector<256x128xbf16>
    %c6 = arith.constant 6 : index
    %c0_59 = arith.constant 0 : index
    %c0_60 = arith.constant 0 : index
    %119 = vector.load %arg7[%c6, %c0_59, %c0_60] : memref<9x128x128xbf16, #tpu.memory_space<vmem>>, vector<1x128x128xbf16>
    %120 = vector.shape_cast %119 : vector<1x128x128xbf16> to vector<128x128xbf16>
    %cst_61 = arith.constant dense<0.000000e+00> : vector<256x128xf32>
    %121 = tpu.matmul %118, %120, %cst_61 {dimension_numbers = #tpu.dot_dimension_numbers<[1], [0], [0], [1], [0, 0, 1, 1], [], []>} : vector<256x128xbf16>, vector<128x128xbf16>, vector<256x128xf32> -> vector<256x128xf32>
    %122 = arith.addf %112, %121 : vector<256x128xf32>
    %c48 = arith.constant 48 : index
    %c0_62 = arith.constant 0 : index
    %123 = vector.load %arg10[%c48, %c0_62] : memref<320x128xbf16, #tpu.memory_space<vmem>>, vector<256x128xbf16>
    %c7 = arith.constant 7 : index
    %c0_63 = arith.constant 0 : index
    %c0_64 = arith.constant 0 : index
    %124 = vector.load %arg7[%c7, %c0_63, %c0_64] : memref<9x128x128xbf16, #tpu.memory_space<vmem>>, vector<1x128x128xbf16>
    %125 = vector.shape_cast %124 : vector<1x128x128xbf16> to vector<128x128xbf16>
    %cst_65 = arith.constant dense<0.000000e+00> : vector<256x128xf32>
    %126 = tpu.matmul %123, %125, %cst_65 {dimension_numbers = #tpu.dot_dimension_numbers<[1], [0], [0], [1], [0, 0, 1, 1], [], []>} : vector<256x128xbf16>, vector<128x128xbf16>, vector<256x128xf32> -> vector<256x128xf32>
    %127 = arith.addf %122, %126 : vector<256x128xf32>
    %c49 = arith.constant 49 : index
    %c0_66 = arith.constant 0 : index
    %128 = vector.load %arg10[%c49, %c0_66] : memref<320x128xbf16, #tpu.memory_space<vmem>>, vector<256x128xbf16>
    %cst_67 = arith.constant 0.000000e+00 : f32
    %129 = arith.truncf %cst_67 : f32 to bf16
    %130 = vector.shape_cast %61 : vector<256x1xi1> to vector<256x1xi1>
    %131 = vector.broadcast %130 : vector<256x1xi1> to vector<256x128xi1>
    %132 = vector.broadcast %129 : bf16 to vector<256x128xbf16>
    %133 = arith.select %131, %128, %132 : vector<256x128xi1>, vector<256x128xbf16>
    %c8 = arith.constant 8 : index
    %c0_68 = arith.constant 0 : index
    %c0_69 = arith.constant 0 : index
    %134 = vector.load %arg7[%c8, %c0_68, %c0_69] : memref<9x128x128xbf16, #tpu.memory_space<vmem>>, vector<1x128x128xbf16>
    %135 = vector.shape_cast %134 : vector<1x128x128xbf16> to vector<128x128xbf16>
    %cst_70 = arith.constant dense<0.000000e+00> : vector<256x128xf32>
    %136 = tpu.matmul %133, %135, %cst_70 {dimension_numbers = #tpu.dot_dimension_numbers<[1], [0], [0], [1], [0, 0, 1, 1], [], []>} : vector<256x128xbf16>, vector<128x128xbf16>, vector<256x128xf32> -> vector<256x128xf32>
    %137 = arith.addf %127, %136 : vector<256x128xf32>
    %138 = arith.truncf %137 : vector<256x128xf32> to vector<256x128xbf16>
    %139 = vector.shape_cast %138 : vector<256x128xbf16> to vector<1x256x128xbf16>
    %c0_71 = arith.constant 0 : index
    %c0_72 = arith.constant 0 : index
    %c0_73 = arith.constant 0 : index
    %140 = vector.load %arg8[%c0_71, %c0_72, %c0_73] : memref<1x256x128xbf16, #tpu.memory_space<vmem>>, vector<1x256x128xbf16>
    tpu.vector_store %arg8[%c0_71, %c0_72, %c0_73], %139 {strides = array<i32>} : memref<1x256x128xbf16, #tpu.memory_space<vmem>>, vector<1x256x128xbf16>,
    %cst_74 = arith.constant dense<0.000000e+00> : vector<128xf32>
    %141 = vector.multi_reduction <add>, %137, %cst_74 [0] : vector<256x128xf32> to vector<128xf32>
    %142 = vector.shape_cast %141 : vector<128xf32> to vector<1x128xf32>
    %143 = arith.mulf %137, %137 : vector<256x128xf32>
    %cst_75 = arith.constant dense<0.000000e+00> : vector<128xf32>
    %144 = vector.multi_reduction <add>, %143, %cst_75 [0] : vector<256x128xf32> to vector<128xf32>
    %145 = vector.shape_cast %144 : vector<128xf32> to vector<1x128xf32>
    %146 = tpu.concatenate %142, %145 in 0 : vector<1x128xf32>, vector<1x128xf32> -> vector<2x128xf32>
    %147 = vector.shape_cast %146 : vector<2x128xf32> to vector<1x1x2x128xf32>
    %c0_76 = arith.constant 0 : index
    %c0_77 = arith.constant 0 : index
    %c0_78 = arith.constant 0 : index
    %c0_79 = arith.constant 0 : index
    %148 = vector.load %arg9[%c0_76, %c0_77, %c0_78, %c0_79] : memref<1x1x2x128xf32, #tpu.memory_space<vmem>>, vector<1x1x2x128xf32>
    tpu.vector_store %arg9[%c0_76, %c0_77, %c0_78, %c0_79], %147 {strides = array<i32>} : memref<1x1x2x128xf32, #tpu.memory_space<vmem>>, vector<1x1x2x128xf32>,
    return
  }
  func.func @transform_0(%arg0: i32, %arg1: i32) -> (i32, i32, i32) {
    %c0_i32 = arith.constant 0 : i32
    %c0_i32_0 = arith.constant 0 : i32
    return %arg0, %arg1, %c0_i32 : i32, i32, i32
  }
  func.func @transform_1(%arg0: i32, %arg1: i32) -> (i32, i32, i32) {
    %c16_i32 = arith.constant 16 : i32
    %0 = arith.muli %arg1, %c16_i32 : i32
    %c1_i32 = arith.constant 1 : i32
    %1 = arith.subi %0, %c1_i32 : i32
    %c0_i32 = arith.constant 0 : i32
    %2 = arith.maxsi %1, %c0_i32 : i32
    %c0_i32_0 = arith.constant 0 : i32
    %c0_i32_1 = arith.constant 0 : i32
    return %arg0, %2, %c0_i32_0 : i32, i32, i32
  }
  func.func @transform_2(%arg0: i32, %arg1: i32) -> (i32, i32, i32) {
    %c1_i32 = arith.constant 1 : i32
    %0 = arith.addi %arg1, %c1_i32 : i32
    %c16_i32 = arith.constant 16 : i32
    %1 = arith.muli %0, %c16_i32 : i32
    %c15_i32 = arith.constant 15 : i32
    %2 = arith.minsi %1, %c15_i32 : i32
    %c0_i32 = arith.constant 0 : i32
    %c0_i32_0 = arith.constant 0 : i32
    return %arg0, %2, %c0_i32 : i32, i32, i32
  }
  func.func @transform_3(%arg0: i32, %arg1: i32) -> (i32, i32) {
    %c0_i32 = arith.constant 0 : i32
    %c0_i32_0 = arith.constant 0 : i32
    %c0_i32_1 = arith.constant 0 : i32
    return %c0_i32, %c0_i32_0 : i32, i32
  }
  func.func @transform_4(%arg0: i32, %arg1: i32) -> (i32, i32) {
    %c0_i32 = arith.constant 0 : i32
    %c0_i32_0 = arith.constant 0 : i32
    %c0_i32_1 = arith.constant 0 : i32
    return %c0_i32, %c0_i32_0 : i32, i32
  }
  func.func @transform_5(%arg0: i32, %arg1: i32) -> (i32, i32, i32) {
    %c0_i32 = arith.constant 0 : i32
    %c0_i32_0 = arith.constant 0 : i32
    %c0_i32_1 = arith.constant 0 : i32
    %c0_i32_2 = arith.constant 0 : i32
    return %c0_i32, %c0_i32_0, %c0_i32_1 : i32, i32, i32
  }
  func.func @transform_6(%arg0: i32, %arg1: i32) -> (i32, i32, i32) {
    %c0_i32 = arith.constant 0 : i32
    %c0_i32_0 = arith.constant 0 : i32
    return %arg0, %arg1, %c0_i32 : i32, i32, i32
  }
  func.func @transform_7(%arg0: i32, %arg1: i32) -> (i32, i32, i32, i32) {
    %c0_i32 = arith.constant 0 : i32
    %c0_i32_0 = arith.constant 0 : i32
    %c0_i32_1 = arith.constant 0 : i32
    return %arg0, %arg1, %c0_i32, %c0_i32_0 : i32, i32, i32, i32
  }
}

module attributes {stable_mosaic.version = 11 : i64} {
  func.func @_conv3_kernel(%arg0: i32, %arg1: memref<512x128xbf16, #tpu.memory_space<vmem>>, %arg2: memref<1x128xf32, #tpu.memory_space<vmem>>, %arg3: memref<1x128xf32, #tpu.memory_space<vmem>>, %arg4: memref<128x16xbf16, #tpu.memory_space<vmem>>, %arg5: memref<512x16xbf16, #tpu.memory_space<vmem>>, %arg6: memref<1x2x16xf32, #tpu.memory_space<vmem>>) attributes {dimension_semantics = [#tpu.dimension_semantics<parallel>], iteration_bounds = array<i64: 1>, scalar_prefetch = 0 : i64, scratch_operands = 0 : i64, tpu.core_type = #tpu.core_type<tc>, window_params = [{transform_indices = @transform_0, window_bounds = array<i64: 512, 128>}, {pipeline_mode = #tpu.pipeline_mode<synchronous>, transform_indices = @transform_1, window_bounds = array<i64: 1, 128>}, {pipeline_mode = #tpu.pipeline_mode<synchronous>, transform_indices = @transform_2, window_bounds = array<i64: 1, 128>}, {pipeline_mode = #tpu.pipeline_mode<synchronous>, transform_indices = @transform_3, window_bounds = array<i64: 128, 16>}, {transform_indices = @transform_4, window_bounds = array<i64: 512, 16>}, {transform_indices = @transform_5, window_bounds = array<i64: 1, 2, 16>}]} {
    %c0 = arith.constant 0 : index
    %c0_0 = arith.constant 0 : index
    %0 = vector.load %arg1[%c0, %c0_0] : memref<512x128xbf16, #tpu.memory_space<vmem>>, vector<512x128xbf16>
    %1 = arith.extf %0 : vector<512x128xbf16> to vector<512x128xf32>
    %c0_1 = arith.constant 0 : index
    %c0_2 = arith.constant 0 : index
    %2 = vector.load %arg2[%c0_1, %c0_2] : memref<1x128xf32, #tpu.memory_space<vmem>>, vector<1x128xf32>
    %3 = vector.broadcast %2 : vector<1x128xf32> to vector<512x128xf32>
    %4 = arith.mulf %1, %3 : vector<512x128xf32>
    %c0_3 = arith.constant 0 : index
    %c0_4 = arith.constant 0 : index
    %5 = vector.load %arg3[%c0_3, %c0_4] : memref<1x128xf32, #tpu.memory_space<vmem>>, vector<1x128xf32>
    %6 = vector.broadcast %5 : vector<1x128xf32> to vector<512x128xf32>
    %7 = arith.addf %4, %6 : vector<512x128xf32>
    %cst = arith.constant 0.000000e+00 : f32
    %8 = vector.broadcast %cst : f32 to vector<512x128xf32>
    %9 = arith.maximumf %7, %8 : vector<512x128xf32>
    %10 = arith.truncf %9 : vector<512x128xf32> to vector<512x128xbf16>
    %c0_5 = arith.constant 0 : index
    %c0_6 = arith.constant 0 : index
    %11 = vector.load %arg4[%c0_5, %c0_6] : memref<128x16xbf16, #tpu.memory_space<vmem>>, vector<128x16xbf16>
    %cst_7 = arith.constant dense<0.000000e+00> : vector<512x16xf32>
    %12 = tpu.matmul %10, %11, %cst_7 {dimension_numbers = #tpu.dot_dimension_numbers<[1], [0], [0], [1], [0, 0, 1, 1], [], []>} : vector<512x128xbf16>, vector<128x16xbf16>, vector<512x16xf32> -> vector<512x16xf32>
    %13 = arith.truncf %12 : vector<512x16xf32> to vector<512x16xbf16>
    %c0_8 = arith.constant 0 : index
    %c0_9 = arith.constant 0 : index
    %14 = vector.load %arg5[%c0_8, %c0_9] : memref<512x16xbf16, #tpu.memory_space<vmem>>, vector<512x16xbf16>
    tpu.vector_store %arg5[%c0_8, %c0_9], %13 {strides = array<i32>} : memref<512x16xbf16, #tpu.memory_space<vmem>>, vector<512x16xbf16>,
    %cst_10 = arith.constant dense<0.000000e+00> : vector<16xf32>
    %15 = vector.multi_reduction <add>, %12, %cst_10 [0] : vector<512x16xf32> to vector<16xf32>
    %16 = vector.shape_cast %15 : vector<16xf32> to vector<1x16xf32>
    %17 = arith.mulf %12, %12 : vector<512x16xf32>
    %cst_11 = arith.constant dense<0.000000e+00> : vector<16xf32>
    %18 = vector.multi_reduction <add>, %17, %cst_11 [0] : vector<512x16xf32> to vector<16xf32>
    %19 = vector.shape_cast %18 : vector<16xf32> to vector<1x16xf32>
    %20 = tpu.concatenate %16, %19 in 0 : vector<1x16xf32>, vector<1x16xf32> -> vector<2x16xf32>
    %21 = vector.shape_cast %20 : vector<2x16xf32> to vector<1x2x16xf32>
    %c0_12 = arith.constant 0 : index
    %c0_13 = arith.constant 0 : index
    %c0_14 = arith.constant 0 : index
    %22 = vector.load %arg6[%c0_12, %c0_13, %c0_14] : memref<1x2x16xf32, #tpu.memory_space<vmem>>, vector<1x2x16xf32>
    tpu.vector_store %arg6[%c0_12, %c0_13, %c0_14], %21 {strides = array<i32>} : memref<1x2x16xf32, #tpu.memory_space<vmem>>, vector<1x2x16xf32>,
    return
  }
  func.func @transform_0(%arg0: i32) -> (i32, i32) {
    %c0_i32 = arith.constant 0 : i32
    %c0_i32_0 = arith.constant 0 : i32
    return %arg0, %c0_i32 : i32, i32
  }
  func.func @transform_1(%arg0: i32) -> (i32, i32) {
    %c0_i32 = arith.constant 0 : i32
    %c0_i32_0 = arith.constant 0 : i32
    %c0_i32_1 = arith.constant 0 : i32
    return %c0_i32, %c0_i32_0 : i32, i32
  }
  func.func @transform_2(%arg0: i32) -> (i32, i32) {
    %c0_i32 = arith.constant 0 : i32
    %c0_i32_0 = arith.constant 0 : i32
    %c0_i32_1 = arith.constant 0 : i32
    return %c0_i32, %c0_i32_0 : i32, i32
  }
  func.func @transform_3(%arg0: i32) -> (i32, i32) {
    %c0_i32 = arith.constant 0 : i32
    %c0_i32_0 = arith.constant 0 : i32
    %c0_i32_1 = arith.constant 0 : i32
    return %c0_i32, %c0_i32_0 : i32, i32
  }
  func.func @transform_4(%arg0: i32) -> (i32, i32) {
    %c0_i32 = arith.constant 0 : i32
    %c0_i32_0 = arith.constant 0 : i32
    return %arg0, %c0_i32 : i32, i32
  }
  func.func @transform_5(%arg0: i32) -> (i32, i32, i32) {
    %c0_i32 = arith.constant 0 : i32
    %c0_i32_0 = arith.constant 0 : i32
    %c0_i32_1 = arith.constant 0 : i32
    return %arg0, %c0_i32, %c0_i32_0 : i32, i32, i32
  }
}

module attributes {stable_mosaic.version = 11 : i64} {
  func.func @_finalize_kernel(%arg0: i32, %arg1: memref<512x16xbf16, #tpu.memory_space<vmem>>, %arg2: memref<1x16xf32, #tpu.memory_space<vmem>>, %arg3: memref<1x16xf32, #tpu.memory_space<vmem>>, %arg4: memref<512x16xf32, #tpu.memory_space<vmem>>, %arg5: memref<512x16xf32, #tpu.memory_space<vmem>>) attributes {dimension_semantics = [#tpu.dimension_semantics<parallel>], iteration_bounds = array<i64: 1>, scalar_prefetch = 0 : i64, scratch_operands = 0 : i64, tpu.core_type = #tpu.core_type<tc>, window_params = [{transform_indices = @transform_0, window_bounds = array<i64: 512, 16>}, {pipeline_mode = #tpu.pipeline_mode<synchronous>, transform_indices = @transform_1, window_bounds = array<i64: 1, 16>}, {pipeline_mode = #tpu.pipeline_mode<synchronous>, transform_indices = @transform_2, window_bounds = array<i64: 1, 16>}, {transform_indices = @transform_3, window_bounds = array<i64: 512, 16>}, {transform_indices = @transform_4, window_bounds = array<i64: 512, 16>}]} {
    %c0 = arith.constant 0 : index
    %c0_0 = arith.constant 0 : index
    %0 = vector.load %arg1[%c0, %c0_0] : memref<512x16xbf16, #tpu.memory_space<vmem>>, vector<512x16xbf16>
    %1 = arith.extf %0 : vector<512x16xbf16> to vector<512x16xf32>
    %c0_1 = arith.constant 0 : index
    %c0_2 = arith.constant 0 : index
    %2 = vector.load %arg2[%c0_1, %c0_2] : memref<1x16xf32, #tpu.memory_space<vmem>>, vector<1x16xf32>
    %3 = vector.broadcast %2 : vector<1x16xf32> to vector<512x16xf32>
    %4 = arith.mulf %1, %3 : vector<512x16xf32>
    %c0_3 = arith.constant 0 : index
    %c0_4 = arith.constant 0 : index
    %5 = vector.load %arg3[%c0_3, %c0_4] : memref<1x16xf32, #tpu.memory_space<vmem>>, vector<1x16xf32>
    %6 = vector.broadcast %5 : vector<1x16xf32> to vector<512x16xf32>
    %7 = arith.addf %4, %6 : vector<512x16xf32>
    %c0_5 = arith.constant 0 : index
    %c0_6 = arith.constant 0 : index
    %8 = vector.load %arg4[%c0_5, %c0_6] : memref<512x16xf32, #tpu.memory_space<vmem>>, vector<512x16xf32>
    %9 = arith.addf %7, %8 : vector<512x16xf32>
    %cst = arith.constant 0.000000e+00 : f32
    %10 = vector.broadcast %cst : f32 to vector<512x16xf32>
    %11 = arith.maximumf %9, %10 : vector<512x16xf32>
    %c0_7 = arith.constant 0 : index
    %c0_8 = arith.constant 0 : index
    %12 = vector.load %arg5[%c0_7, %c0_8] : memref<512x16xf32, #tpu.memory_space<vmem>>, vector<512x16xf32>
    tpu.vector_store %arg5[%c0_7, %c0_8], %11 {strides = array<i32>} : memref<512x16xf32, #tpu.memory_space<vmem>>, vector<512x16xf32>,
    return
  }
  func.func @transform_0(%arg0: i32) -> (i32, i32) {
    %c0_i32 = arith.constant 0 : i32
    %c0_i32_0 = arith.constant 0 : i32
    return %arg0, %c0_i32 : i32, i32
  }
  func.func @transform_1(%arg0: i32) -> (i32, i32) {
    %c0_i32 = arith.constant 0 : i32
    %c0_i32_0 = arith.constant 0 : i32
    %c0_i32_1 = arith.constant 0 : i32
    return %c0_i32, %c0_i32_0 : i32, i32
  }
  func.func @transform_2(%arg0: i32) -> (i32, i32) {
    %c0_i32 = arith.constant 0 : i32
    %c0_i32_0 = arith.constant 0 : i32
    %c0_i32_1 = arith.constant 0 : i32
    return %c0_i32, %c0_i32_0 : i32, i32
  }
  func.func @transform_3(%arg0: i32) -> (i32, i32) {
    %c0_i32 = arith.constant 0 : i32
    %c0_i32_0 = arith.constant 0 : i32
    return %arg0, %c0_i32 : i32, i32
  }
  func.func @transform_4(%arg0: i32) -> (i32, i32) {
    %c0_i32 = arith.constant 0 : i32
    %c0_i32_0 = arith.constant 0 : i32
    return %arg0, %c0_i32 : i32, i32
  }
}

</mosaic_0001>

<llo_original>
// kernel: _lambda_.4
$region0: #{_lambda_.4}
  #allocation0 [shape = 'u32[]', space=smem, size = 0x4, offset = 0x4, fixed_abs, tag = 'smem constant byte address 0x4 - core index']
  #allocation1 [shape = 'u32[144,128]{1,0:T(1,128)}', space=vmem, size = 0x12000, scoped, tag = 'internal scratch']
  %s0 = inlined_call_operand.hbm [shape: f32[512,16], index: 0, kind: input, shape index: {}]
  %s1 = inlined_call_operand.hbm [shape: bf16[16,128], index: 1, kind: input, shape index: {}]
  %s2 = inlined_call_operand.hbm [shape: bf16[512,128], index: 2, kind: output, shape index: {0}]
  %s3 = inlined_call_operand.hbm [shape: f32[1,2,128], index: 3, kind: output, shape index: {1}]
  %4 = xla_tuple %s2, %s3
  %s5 = sld [smem:[#allocation0]]
  $region34: #{_lambda_.4} parent=0
    _
  %s7 = ssub.s32 1, %s5
  %s8 = scalar_select 0, %s7, %s5
  $region1: #{_lambda_.4} parent=0
    #allocation2 [shape = 'u8[262144]{0}', space=vmem, size = 0x40000, scoped, tag = 'input window, operand 0, single buffered']
    #allocation3 [shape = 's32[1]{0}', space=sflag, size = 0x4, scoped, tag = 'scoped memory for _lambda_.4']
    #allocation4 [shape = 's32[1]{0}', space=sflag, size = 0x4, scoped, tag = 'scoped memory for _lambda_.4']
    #allocation5 [shape = 'u8[4096]{0}', space=vmem, size = 0x1000, scoped, tag = 'input window, operand 1, single buffered']
    #allocation6 [shape = 's32[1]{0}', space=sflag, size = 0x4, scoped, tag = 'scoped memory for _lambda_.4']
    #allocation7 [shape = 'u8[131072]{0}', space=vmem, size = 0x20000, scoped, tag = 'output window, operand 0, single buffered']
    #allocation8 [shape = 'u8[1024]{0}', space=vmem, size = 0x400, scoped, tag = 'output window, operand 1, single buffered']
    #allocation9 [shape = 's32[1]{0}', space=sflag, size = 0x4, scoped, tag = 'scoped memory for _lambda_.4']
    %9 = vsyncpa [#allocation3], 0
    %10 = vsyncpa [#allocation6], 0
    %11 = vsyncpa [#allocation4], 0
    %12 = vsyncpa [#allocation9], 0
    // Predicated region
    $region2: #{_lambda_.4} parent=1 // pred_check
      _
    $region3: #{_lambda_.4} parent=1 // pred_check_branch
      %14 = sbr.rel (0) target = $region5
    $region4: #{_lambda_.4} parent=1 // pred_region
      %s16 = ssub.s32 8192, 8192
      %17 = vsyncadd [#allocation3], %s16
      %s18 = sshll.u32 [#allocation2], 4
      %s19 = int_to_ptr.vmem [resolvable:$true] %s18
      %24 = dma.hbm_to_vmem [thread:$0]  %s0, 8192, %s19, [#allocation3], 128, 128, 8
    $region5: #{_lambda_.4} parent=1 // pred_fallthru
      _
    // Predicated region
    $region6: #{_lambda_.4} parent=1 // pred_check
      _
    $region7: #{_lambda_.4} parent=1 // pred_check_branch
      %26 = sbr.rel (0) target = $region9
    $region8: #{_lambda_.4} parent=1 // pred_region
      %s28 = ssub.s32 128, 128
      %29 = vsyncadd [#allocation6], %s28
      %s30 = sshll.u32 [#allocation5], 4
      %s31 = int_to_ptr.vmem [resolvable:$true] %s30
      %36 = dma.hbm_to_vmem [thread:$0]  %s1, 128, %s31, [#allocation6], 64, 64, 4
    $region9: #{_lambda_.4} parent=1 // pred_fallthru
      _
    // Predicated region
    $region10: #{_lambda_.4} parent=1 // pred_check
      _
    $region11: #{_lambda_.4} parent=1 // pred_check_branch
      %38 = sbr.rel (0) target = $region13
    $region12: #{_lambda_.4} parent=1 // pred_region
      %39 = dma.done [#allocation3], 8192
    $region13: #{_lambda_.4} parent=1 // pred_fallthru
      _
    // Predicated region
    $region14: #{_lambda_.4} parent=1 // pred_check
      _
    $region15: #{_lambda_.4} parent=1 // pred_check_branch
      %41 = sbr.rel (0) target = $region17
    $region16: #{_lambda_.4} parent=1 // pred_region
      %42 = dma.done [#allocation6], 128
    $region17: #{_lambda_.4} parent=1 // pred_fallthru
      _
    %v44 = vld [vmem:[#allocation2] sm:$0xff]
    %v45 = vld [vmem:[#allocation2 + $0x8] sm:$0xff]
    %v46 = vld [vmem:[#allocation2 + $0x10] sm:$0xff]
    %v47 = vld [vmem:[#allocation2 + $0x18] sm:$0xff]
    %v48 = vld [vmem:[#allocation2 + $0x20] sm:$0xff]
    %v49 = vld [vmem:[#allocation2 + $0x28] sm:$0xff]
    %v50 = vld [vmem:[#allocation2 + $0x30] sm:$0xff]
    %v51 = vld [vmem:[#allocation2 + $0x38] sm:$0xff]
    %v52 = vld [vmem:[#allocation2 + $0x40] sm:$0xff]
    %v53 = vld [vmem:[#allocation2 + $0x48] sm:$0xff]
    %v54 = vld [vmem:[#allocation2 + $0x50] sm:$0xff]
    %v55 = vld [vmem:[#allocation2 + $0x58] sm:$0xff]
    %v56 = vld [vmem:[#allocation2 + $0x60] sm:$0xff]
    %v57 = vld [vmem:[#allocation2 + $0x68] sm:$0xff]
    %v58 = vld [vmem:[#allocation2 + $0x70] sm:$0xff]
    %v59 = vld [vmem:[#allocation2 + $0x78] sm:$0xff]
    %v60 = vld [vmem:[#allocation2 + $0x80] sm:$0xff]
    %v61 = vld [vmem:[#allocation2 + $0x88] sm:$0xff]
    %v62 = vld [vmem:[#allocation2 + $0x90] sm:$0xff]
    %v63 = vld [vmem:[#allocation2 + $0x98] sm:$0xff]
    %v64 = vld [vmem:[#allocation2 + $0xa0] sm:$0xff]
    %v65 = vld [vmem:[#allocation2 + $0xa8] sm:$0xff]
    %v66 = vld [vmem:[#allocation2 + $0xb0] sm:$0xff]
    %v67 = vld [vmem:[#allocation2 + $0xb8] sm:$0xff]
    %v68 = vld [vmem:[#allocation2 + $0xc0] sm:$0xff]
    %v69 = vld [vmem:[#allocation2 + $0xc8] sm:$0xff]
    %v70 = vld [vmem:[#allocation2 + $0xd0] sm:$0xff]
    %v71 = vld [vmem:[#allocation2 + $0xd8] sm:$0xff]
    %v72 = vld [vmem:[#allocation2 + $0xe0] sm:$0xff]
    %v73 = vld [vmem:[#allocation2 + $0xe8] sm:$0xff]
    %v74 = vld [vmem:[#allocation2 + $0xf0] sm:$0xff]
    %v75 = vld [vmem:[#allocation2 + $0xf8] sm:$0xff]
    %v76 = vld [vmem:[#allocation2 + $0x100] sm:$0xff]
    %v77 = vld [vmem:[#allocation2 + $0x108] sm:$0xff]
    %v78 = vld [vmem:[#allocation2 + $0x110] sm:$0xff]
    %v79 = vld [vmem:[#allocation2 + $0x118] sm:$0xff]
    %v80 = vld [vmem:[#allocation2 + $0x120] sm:$0xff]
    %v81 = vld [vmem:[#allocation2 + $0x128] sm:$0xff]
    %v82 = vld [vmem:[#allocation2 + $0x130] sm:$0xff]
    %v83 = vld [vmem:[#allocation2 + $0x138] sm:$0xff]
    %v84 = vld [vmem:[#allocation2 + $0x140] sm:$0xff]
    %v85 = vld [vmem:[#allocation2 + $0x148] sm:$0xff]
    %v86 = vld [vmem:[#allocation2 + $0x150] sm:$0xff]
    %v87 = vld [vmem:[#allocation2 + $0x158] sm:$0xff]
    %v88 = vld [vmem:[#allocation2 + $0x160] sm:$0xff]
    %v89 = vld [vmem:[#allocation2 + $0x168] sm:$0xff]
    %v90 = vld [vmem:[#allocation2 + $0x170] sm:$0xff]
    %v91 = vld [vmem:[#allocation2 + $0x178] sm:$0xff]
    %v92 = vld [vmem:[#allocation2 + $0x180] sm:$0xff]
    %v93 = vld [vmem:[#allocation2 + $0x188] sm:$0xff]
    %v94 = vld [vmem:[#allocation2 + $0x190] sm:$0xff]
    %v95 = vld [vmem:[#allocation2 + $0x198] sm:$0xff]
    %v96 = vld [vmem:[#allocation2 + $0x1a0] sm:$0xff]
    %v97 = vld [vmem:[#allocation2 + $0x1a8] sm:$0xff]
    %v98 = vld [vmem:[#allocation2 + $0x1b0] sm:$0xff]
    %v99 = vld [vmem:[#allocation2 + $0x1b8] sm:$0xff]
    %v100 = vld [vmem:[#allocation2 + $0x1c0] sm:$0xff]
    %v101 = vld [vmem:[#allocation2 + $0x1c8] sm:$0xff]
    %v102 = vld [vmem:[#allocation2 + $0x1d0] sm:$0xff]
    %v103 = vld [vmem:[#allocation2 + $0x1d8] sm:$0xff]
    %v104 = vld [vmem:[#allocation2 + $0x1e0] sm:$0xff]
    %v105 = vld [vmem:[#allocation2 + $0x1e8] sm:$0xff]
    %v106 = vld [vmem:[#allocation2 + $0x1f0] sm:$0xff]
    %v107 = vld [vmem:[#allocation2 + $0x1f8] sm:$0xff]
    %v108 = vpack.c.bf16 %v45, %v44
    %v109 = vpack.c.bf16 %v47, %v46
    %v110 = vpack.c.bf16 %v49, %v48
    %v111 = vpack.c.bf16 %v51, %v50
    %v112 = vpack.c.bf16 %v53, %v52
    %v113 = vpack.c.bf16 %v55, %v54
    %v114 = vpack.c.bf16 %v57, %v56
    %v115 = vpack.c.bf16 %v59, %v58
    %v116 = vpack.c.bf16 %v61, %v60
    %v117 = vpack.c.bf16 %v63, %v62
    %v118 = vpack.c.bf16 %v65, %v64
    %v119 = vpack.c.bf16 %v67, %v66
    %v120 = vpack.c.bf16 %v69, %v68
    %v121 = vpack.c.bf16 %v71, %v70
    %v122 = vpack.c.bf16 %v73, %v72
    %v123 = vpack.c.bf16 %v75, %v74
    %v124 = vpack.c.bf16 %v77, %v76
    %v125 = vpack.c.bf16 %v79, %v78
    %v126 = vpack.c.bf16 %v81, %v80
    %v127 = vpack.c.bf16 %v83, %v82
    %v128 = vpack.c.bf16 %v85, %v84
    %v129 = vpack.c.bf16 %v87, %v86
    %v130 = vpack.c.bf16 %v89, %v88
    %v131 = vpack.c.bf16 %v91, %v90
    %v132 = vpack.c.bf16 %v93, %v92
    %v133 = vpack.c.bf16 %v95, %v94
    %v134 = vpack.c.bf16 %v97, %v96
    %v135 = vpack.c.bf16 %v99, %v98
    %v136 = vpack.c.bf16 %v101, %v100
    %v137 = vpack.c.bf16 %v103, %v102
    %v138 = vpack.c.bf16 %v105, %v104
    %v139 = vpack.c.bf16 %v107, %v106
    %v140 = vld [vmem:[#allocation5] sm:$0xf]
    %v141 = vld [vmem:[#allocation5 + $0x4] sm:$0xf]
    %v144 = vunpack.c.l.b16 %v140
    %v145 = vunpack.c.l.b16 %v141
    %v146 = vpack.c.b16 %v145, %v144
    %vm148 = vcmask 130048
    %v150 = vsel %vm148, %v108, 0
    %v153 = vsel %vm148, %v109, 0
    %v156 = vsel %vm148, %v110, 0
    %v159 = vsel %vm148, %v111, 0
    %v162 = vsel %vm148, %v112, 0
    %v165 = vsel %vm148, %v113, 0
    %v168 = vsel %vm148, %v114, 0
    %v171 = vsel %vm148, %v115, 0
    %v174 = vsel %vm148, %v116, 0
    %v177 = vsel %vm148, %v117, 0
    %v180 = vsel %vm148, %v118, 0
    %v183 = vsel %vm148, %v119, 0
    %v186 = vsel %vm148, %v120, 0
    %v189 = vsel %vm148, %v121, 0
    %v192 = vsel %vm148, %v122, 0
    %v195 = vsel %vm148, %v123, 0
    %v198 = vsel %vm148, %v124, 0
    %v201 = vsel %vm148, %v125, 0
    %v204 = vsel %vm148, %v126, 0
    %v207 = vsel %vm148, %v127, 0
    %v210 = vsel %vm148, %v128, 0
    %v213 = vsel %vm148, %v129, 0
    %v216 = vsel %vm148, %v130, 0
    %v219 = vsel %vm148, %v131, 0
    %v222 = vsel %vm148, %v132, 0
    %v225 = vsel %vm148, %v133, 0
    %v228 = vsel %vm148, %v134, 0
    %v231 = vsel %vm148, %v135, 0
    %v234 = vsel %vm148, %v136, 0
    %v237 = vsel %vm148, %v137, 0
    %v240 = vsel %vm148, %v138, 0
    %v243 = vsel %vm148, %v139, 0
    %245 = vmatprep.subr.bf16.mxu0 0
    %246 = vmatpush1.bf16.msra.mxu0 %v146
    %247 = vmatprep.subr.bf16.mxu0 0
    %248 = vmatpush1.bf16.msra.mxu0 0
    %249 = vmatprep.subr.bf16.mxu0 0
    %250 = vmatpush1.bf16.msra.mxu0 0
    %251 = vmatprep.subr.bf16.mxu0 0
    %252 = vmatpush1.bf16.msra.mxu0 0
    %253 = vmatprep.subr.bf16.mxu0 0
    %254 = vmatpush1.bf16.msra.mxu0 0
    %255 = vmatprep.subr.bf16.mxu0 0
    %256 = vmatpush1.bf16.msra.mxu0 0
    %257 = vmatprep.subr.bf16.mxu0 0
    %258 = vmatpush1.bf16.msra.mxu0 0
    %259 = vmatprep.subr.bf16.mxu0 0
    %260 = vmatpush1.bf16.msra.mxu0 0
    %261 = vmatprep.subr.bf16.mxu0 0
    %262 = vmatpush1.bf16.msra.mxu0 0
    %263 = vmatprep.subr.bf16.mxu0 0
    %264 = vmatpush1.bf16.msra.mxu0 0
    %265 = vmatprep.subr.bf16.mxu0 0
    %266 = vmatpush1.bf16.msra.mxu0 0
    %267 = vmatprep.subr.bf16.mxu0 0
    %268 = vmatpush1.bf16.msra.mxu0 0
    %269 = vmatprep.subr.bf16.mxu0 0
    %270 = vmatpush1.bf16.msra.mxu0 0
    %271 = vmatprep.subr.bf16.mxu0 0
    %272 = vmatpush1.bf16.msra.mxu0 0
    %273 = vmatprep.subr.bf16.mxu0 0
    %274 = vmatpush1.bf16.msra.mxu0 0
    %275 = vmatprep.subr.bf16.mxu0 0
    %276 = vmatpush1.bf16.msra.mxu0 0
    %277 = vmatprep.mubr.bf16.mxu0 0
    %278 = vmatmul.mubr.bf16.gmra.mrb[0].mxu0 %v150
    %v279 = vpop.f32.mrb[0].mxu0
    %v280 = vadd.f32 0.0, %v279
    %v281 = vpop.f32.mrb[0].mxu0
    %v282 = vpop.f32.mrb[0].mxu0
    %v283 = vadd.f32 0.0, %v282
    %v284 = vpop.f32.mrb[0].mxu0
    %285 = vmatprep.mubr.bf16.mxu0 0
    %286 = vmatmul.mubr.bf16.gmra.mrb[0].mxu0 %v153
    %v287 = vpop.f32.mrb[0].mxu0
    %v288 = vadd.f32 0.0, %v287
    %v289 = vpop.f32.mrb[0].mxu0
    %v290 = vpop.f32.mrb[0].mxu0
    %v291 = vadd.f32 0.0, %v290
    %v292 = vpop.f32.mrb[0].mxu0
    %293 = vmatprep.mubr.bf16.mxu0 0
    %294 = vmatmul.mubr.bf16.gmra.mrb[0].mxu0 %v156
    %v295 = vpop.f32.mrb[0].mxu0
    %v296 = vadd.f32 0.0, %v295
    %v297 = vpop.f32.mrb[0].mxu0
    %v298 = vpop.f32.mrb[0].mxu0
    %v299 = vadd.f32 0.0, %v298
    %v300 = vpop.f32.mrb[0].mxu0
    %301 = vmatprep.mubr.bf16.mxu0 0
    %302 = vmatmul.mubr.bf16.gmra.mrb[0].mxu0 %v159
    %v303 = vpop.f32.mrb[0].mxu0
    %v304 = vadd.f32 0.0, %v303
    %v305 = vpop.f32.mrb[0].mxu0
    %v306 = vpop.f32.mrb[0].mxu0
    %v307 = vadd.f32 0.0, %v306
    %v308 = vpop.f32.mrb[0].mxu0
    %309 = vmatprep.mubr.bf16.mxu0 0
    %310 = vmatmul.mubr.bf16.gmra.mrb[0].mxu0 %v162
    %v311 = vpop.f32.mrb[0].mxu0
    %v312 = vadd.f32 0.0, %v311
    %v313 = vpop.f32.mrb[0].mxu0
    %v314 = vpop.f32.mrb[0].mxu0
    %v315 = vadd.f32 0.0, %v314
    %v316 = vpop.f32.mrb[0].mxu0
    %317 = vmatprep.mubr.bf16.mxu0 0
    %318 = vmatmul.mubr.bf16.gmra.mrb[0].mxu0 %v165
    %v319 = vpop.f32.mrb[0].mxu0
    %v320 = vadd.f32 0.0, %v319
    %v321 = vpop.f32.mrb[0].mxu0
    %v322 = vpop.f32.mrb[0].mxu0
    %v323 = vadd.f32 0.0, %v322
    %v324 = vpop.f32.mrb[0].mxu0
    %325 = vmatprep.mubr.bf16.mxu0 0
    %326 = vmatmul.mubr.bf16.gmra.mrb[0].mxu0 %v168
    %v327 = vpop.f32.mrb[0].mxu0
    %v328 = vadd.f32 0.0, %v327
    %v329 = vpop.f32.mrb[0].mxu0
    %v330 = vpop.f32.mrb[0].mxu0
    %v331 = vadd.f32 0.0, %v330
    %v332 = vpop.f32.mrb[0].mxu0
    %333 = vmatprep.mubr.bf16.mxu0 0
    %334 = vmatmul.mubr.bf16.gmra.mrb[0].mxu0 %v171
    %v335 = vpop.f32.mrb[0].mxu0
    %v336 = vadd.f32 0.0, %v335
    %v337 = vpop.f32.mrb[0].mxu0
    %v338 = vpop.f32.mrb[0].mxu0
    %v339 = vadd.f32 0.0, %v338
    %v340 = vpop.f32.mrb[0].mxu0
    %341 = vmatprep.mubr.bf16.mxu0 0
    %342 = vmatmul.mubr.bf16.gmra.mrb[0].mxu0 %v174
    %v343 = vpop.f32.mrb[0].mxu0
    %v344 = vadd.f32 0.0, %v343
    %v345 = vpop.f32.mrb[0].mxu0
    %v346 = vpop.f32.mrb[0].mxu0
    %v347 = vadd.f32 0.0, %v346
    %v348 = vpop.f32.mrb[0].mxu0
    %349 = vmatprep.mubr.bf16.mxu0 0
    %350 = vmatmul.mubr.bf16.gmra.mrb[0].mxu0 %v177
    %v351 = vpop.f32.mrb[0].mxu0
    %v352 = vadd.f32 0.0, %v351
    %v353 = vpop.f32.mrb[0].mxu0
    %v354 = vpop.f32.mrb[0].mxu0
    %v355 = vadd.f32 0.0, %v354
    %v356 = vpop.f32.mrb[0].mxu0
    %357 = vmatprep.mubr.bf16.mxu0 0
    %358 = vmatmul.mubr.bf16.gmra.mrb[0].mxu0 %v180
    %v359 = vpop.f32.mrb[0].mxu0
    %v360 = vadd.f32 0.0, %v359
    %v361 = vpop.f32.mrb[0].mxu0
    %v362 = vpop.f32.mrb[0].mxu0
    %v363 = vadd.f32 0.0, %v362
    %v364 = vpop.f32.mrb[0].mxu0
    %365 = vmatprep.mubr.bf16.mxu0 0
    %366 = vmatmul.mubr.bf16.gmra.mrb[0].mxu0 %v183
    %v367 = vpop.f32.mrb[0].mxu0
    %v368 = vadd.f32 0.0, %v367
    %v369 = vpop.f32.mrb[0].mxu0
    %v370 = vpop.f32.mrb[0].mxu0
    %v371 = vadd.f32 0.0, %v370
    %v372 = vpop.f32.mrb[0].mxu0
    %373 = vmatprep.mubr.bf16.mxu0 0
    %374 = vmatmul.mubr.bf16.gmra.mrb[0].mxu0 %v186
    %v375 = vpop.f32.mrb[0].mxu0
    %v376 = vadd.f32 0.0, %v375
    %v377 = vpop.f32.mrb[0].mxu0
    %v378 = vpop.f32.mrb[0].mxu0
    %v379 = vadd.f32 0.0, %v378
    %v380 = vpop.f32.mrb[0].mxu0
    %381 = vmatprep.mubr.bf16.mxu0 0
    %382 = vmatmul.mubr.bf16.gmra.mrb[0].mxu0 %v189
    %v383 = vpop.f32.mrb[0].mxu0
    %v384 = vadd.f32 0.0, %v383
    %v385 = vpop.f32.mrb[0].mxu0
    %v386 = vpop.f32.mrb[0].mxu0
    %v387 = vadd.f32 0.0, %v386
    %v388 = vpop.f32.mrb[0].mxu0
    %389 = vmatprep.mubr.bf16.mxu0 0
    %390 = vmatmul.mubr.bf16.gmra.mrb[0].mxu0 %v192
    %v391 = vpop.f32.mrb[0].mxu0
    %v392 = vadd.f32 0.0, %v391
    %v393 = vpop.f32.mrb[0].mxu0
    %v394 = vpop.f32.mrb[0].mxu0
    %v395 = vadd.f32 0.0, %v394
    %v396 = vpop.f32.mrb[0].mxu0
    %397 = vmatprep.mubr.bf16.mxu0 0
    %398 = vmatmul.mubr.bf16.gmra.mrb[0].mxu0 %v195
    %v399 = vpop.f32.mrb[0].mxu0
    %v400 = vadd.f32 0.0, %v399
    %v401 = vpop.f32.mrb[0].mxu0
    %v402 = vpop.f32.mrb[0].mxu0
    %v403 = vadd.f32 0.0, %v402
    %v404 = vpop.f32.mrb[0].mxu0
    %405 = vmatprep.mubr.bf16.mxu0 0
    %406 = vmatmul.mubr.bf16.gmra.mrb[0].mxu0 %v198
    %v407 = vpop.f32.mrb[0].mxu0
    %v408 = vadd.f32 0.0, %v407
    %v409 = vpop.f32.mrb[0].mxu0
    %v410 = vpop.f32.mrb[0].mxu0
    %v411 = vadd.f32 0.0, %v410
    %v412 = vpop.f32.mrb[0].mxu0
    %413 = vmatprep.mubr.bf16.mxu0 0
    %414 = vmatmul.mubr.bf16.gmra.mrb[0].mxu0 %v201
    %v415 = vpop.f32.mrb[0].mxu0
    %v416 = vadd.f32 0.0, %v415
    %v417 = vpop.f32.mrb[0].mxu0
    %v418 = vpop.f32.mrb[0].mxu0
    %v419 = vadd.f32 0.0, %v418
    %v420 = vpop.f32.mrb[0].mxu0
    %421 = vmatprep.mubr.bf16.mxu0 0
    %422 = vmatmul.mubr.bf16.gmra.mrb[0].mxu0 %v204
    %v423 = vpop.f32.mrb[0].mxu0
    %v424 = vadd.f32 0.0, %v423
    %v425 = vpop.f32.mrb[0].mxu0
    %v426 = vpop.f32.mrb[0].mxu0
    %v427 = vadd.f32 0.0, %v426
    %v428 = vpop.f32.mrb[0].mxu0
    %429 = vmatprep.mubr.bf16.mxu0 0
    %430 = vmatmul.mubr.bf16.gmra.mrb[0].mxu0 %v207
    %v431 = vpop.f32.mrb[0].mxu0
    %v432 = vadd.f32 0.0, %v431
    %v433 = vpop.f32.mrb[0].mxu0
    %v434 = vpop.f32.mrb[0].mxu0
    %v435 = vadd.f32 0.0, %v434
    %v436 = vpop.f32.mrb[0].mxu0
    %437 = vmatprep.mubr.bf16.mxu0 0
    %438 = vmatmul.mubr.bf16.gmra.mrb[0].mxu0 %v210
    %v439 = vpop.f32.mrb[0].mxu0
    %v440 = vadd.f32 0.0, %v439
    %v441 = vpop.f32.mrb[0].mxu0
    %v442 = vpop.f32.mrb[0].mxu0
    %v443 = vadd.f32 0.0, %v442
    %v444 = vpop.f32.mrb[0].mxu0
    %445 = vmatprep.mubr.bf16.mxu0 0
    %446 = vmatmul.mubr.bf16.gmra.mrb[0].mxu0 %v213
    %v447 = vpop.f32.mrb[0].mxu0
    %v448 = vadd.f32 0.0, %v447
    %v449 = vpop.f32.mrb[0].mxu0
    %v450 = vpop.f32.mrb[0].mxu0
    %v451 = vadd.f32 0.0, %v450
    %v452 = vpop.f32.mrb[0].mxu0
    %453 = vmatprep.mubr.bf16.mxu0 0
    %454 = vmatmul.mubr.bf16.gmra.mrb[0].mxu0 %v216
    %v455 = vpop.f32.mrb[0].mxu0
    %v456 = vadd.f32 0.0, %v455
    %v457 = vpop.f32.mrb[0].mxu0
    %v458 = vpop.f32.mrb[0].mxu0
    %v459 = vadd.f32 0.0, %v458
    %v460 = vpop.f32.mrb[0].mxu0
    %461 = vmatprep.mubr.bf16.mxu0 0
    %462 = vmatmul.mubr.bf16.gmra.mrb[0].mxu0 %v219
    %v463 = vpop.f32.mrb[0].mxu0
    %v464 = vadd.f32 0.0, %v463
    %v465 = vpop.f32.mrb[0].mxu0
    %v466 = vpop.f32.mrb[0].mxu0
    %v467 = vadd.f32 0.0, %v466
    %v468 = vpop.f32.mrb[0].mxu0
    %469 = vmatprep.mubr.bf16.mxu0 0
    %470 = vmatmul.mubr.bf16.gmra.mrb[0].mxu0 %v222
    %v471 = vpop.f32.mrb[0].mxu0
    %v472 = vadd.f32 0.0, %v471
    %v473 = vpop.f32.mrb[0].mxu0
    %v474 = vpop.f32.mrb[0].mxu0
    %v475 = vadd.f32 0.0, %v474
    %v476 = vpop.f32.mrb[0].mxu0
    %477 = vmatprep.mubr.bf16.mxu0 0
    %478 = vmatmul.mubr.bf16.gmra.mrb[0].mxu0 %v225
    %v479 = vpop.f32.mrb[0].mxu0
    %v480 = vadd.f32 0.0, %v479
    %v481 = vpop.f32.mrb[0].mxu0
    %v482 = vpop.f32.mrb[0].mxu0
    %v483 = vadd.f32 0.0, %v482
    %v484 = vpop.f32.mrb[0].mxu0
    %485 = vmatprep.mubr.bf16.mxu0 0
    %486 = vmatmul.mubr.bf16.gmra.mrb[0].mxu0 %v228
    %v487 = vpop.f32.mrb[0].mxu0
    %v488 = vadd.f32 0.0, %v487
    %v489 = vpop.f32.mrb[0].mxu0
    %v490 = vpop.f32.mrb[0].mxu0
    %v491 = vadd.f32 0.0, %v490
    %v492 = vpop.f32.mrb[0].mxu0
    %493 = vmatprep.mubr.bf16.mxu0 0
    %494 = vmatmul.mubr.bf16.gmra.mrb[0].mxu0 %v231
    %v495 = vpop.f32.mrb[0].mxu0
    %v496 = vadd.f32 0.0, %v495
    %v497 = vpop.f32.mrb[0].mxu0
    %v498 = vpop.f32.mrb[0].mxu0
    %v499 = vadd.f32 0.0, %v498
    %v500 = vpop.f32.mrb[0].mxu0
    %501 = vmatprep.mubr.bf16.mxu0 0
    %502 = vmatmul.mubr.bf16.gmra.mrb[0].mxu0 %v234
    %v503 = vpop.f32.mrb[0].mxu0
    %v504 = vadd.f32 0.0, %v503
    %v505 = vpop.f32.mrb[0].mxu0
    %v506 = vpop.f32.mrb[0].mxu0
    %v507 = vadd.f32 0.0, %v506
    %v508 = vpop.f32.mrb[0].mxu0
    %509 = vmatprep.mubr.bf16.mxu0 0
    %510 = vmatmul.mubr.bf16.gmra.mrb[0].mxu0 %v237
    %v511 = vpop.f32.mrb[0].mxu0
    %v512 = vadd.f32 0.0, %v511
    %v513 = vpop.f32.mrb[0].mxu0
    %v514 = vpop.f32.mrb[0].mxu0
    %v515 = vadd.f32 0.0, %v514
    %v516 = vpop.f32.mrb[0].mxu0
    %517 = vmatprep.mubr.bf16.mxu0 0
    %518 = vmatmul.mubr.bf16.gmra.mrb[0].mxu0 %v240
    %v519 = vpop.f32.mrb[0].mxu0
    %v520 = vadd.f32 0.0, %v519
    %v521 = vpop.f32.mrb[0].mxu0
    %v522 = vpop.f32.mrb[0].mxu0
    %v523 = vadd.f32 0.0, %v522
    %v524 = vpop.f32.mrb[0].mxu0
    %525 = vmatprep.mubr.bf16.mxu0 0
    %526 = vmatmul.mubr.bf16.gmra.mrb[0].mxu0 %v243
    %v527 = vpop.f32.mrb[0].mxu0
    %v528 = vadd.f32 0.0, %v527
    %v529 = vpop.f32.mrb[0].mxu0
    %v530 = vpop.f32.mrb[0].mxu0
    %v531 = vadd.f32 0.0, %v530
    %v532 = vpop.f32.mrb[0].mxu0
    %533 = vdwg.mxu0
    %v534 = vpack.c.bf16 %v283, %v280
    %v535 = vpack.c.bf16 %v291, %v288
    %v536 = vpack.c.bf16 %v299, %v296
    %v537 = vpack.c.bf16 %v307, %v304
    %v538 = vpack.c.bf16 %v315, %v312
    %v539 = vpack.c.bf16 %v323, %v320
    %v540 = vpack.c.bf16 %v331, %v328
    %v541 = vpack.c.bf16 %v339, %v336
    %v542 = vpack.c.bf16 %v347, %v344
    %v543 = vpack.c.bf16 %v355, %v352
    %v544 = vpack.c.bf16 %v363, %v360
    %v545 = vpack.c.bf16 %v371, %v368
    %v546 = vpack.c.bf16 %v379, %v376
    %v547 = vpack.c.bf16 %v387, %v384
    %v548 = vpack.c.bf16 %v395, %v392
    %v549 = vpack.c.bf16 %v403, %v400
    %v550 = vpack.c.bf16 %v411, %v408
    %v551 = vpack.c.bf16 %v419, %v416
    %v552 = vpack.c.bf16 %v427, %v424
    %v553 = vpack.c.bf16 %v435, %v432
    %v554 = vpack.c.bf16 %v443, %v440
    %v555 = vpack.c.bf16 %v451, %v448
    %v556 = vpack.c.bf16 %v459, %v456
    %v557 = vpack.c.bf16 %v467, %v464
    %v558 = vpack.c.bf16 %v475, %v472
    %v559 = vpack.c.bf16 %v483, %v480
    %v560 = vpack.c.bf16 %v491, %v488
    %v561 = vpack.c.bf16 %v499, %v496
    %v562 = vpack.c.bf16 %v507, %v504
    %v563 = vpack.c.bf16 %v515, %v512
    %v564 = vpack.c.bf16 %v523, %v520
    %v565 = vpack.c.bf16 %v531, %v528
    %v598 = vunpack.c.l.b16 %v534
    %v599 = vunpack.c.h.b16 %v534
    %v600 = vunpack.c.l.b16 %v535
    %v601 = vunpack.c.h.b16 %v535
    %v602 = vunpack.c.l.b16 %v536
    %v603 = vunpack.c.h.b16 %v536
    %v604 = vunpack.c.l.b16 %v537
    %v605 = vunpack.c.h.b16 %v537
    %v606 = vunpack.c.l.b16 %v538
    %v607 = vunpack.c.h.b16 %v538
    %v608 = vunpack.c.l.b16 %v539
    %v609 = vunpack.c.h.b16 %v539
    %v610 = vunpack.c.l.b16 %v540
    %v611 = vunpack.c.h.b16 %v540
    %v612 = vunpack.c.l.b16 %v541
    %v613 = vunpack.c.h.b16 %v541
    %v614 = vunpack.c.l.b16 %v542
    %v615 = vunpack.c.h.b16 %v542
    %v616 = vunpack.c.l.b16 %v543
    %v617 = vunpack.c.h.b16 %v543
    %v618 = vunpack.c.l.b16 %v544
    %v619 = vunpack.c.h.b16 %v544
    %v620 = vunpack.c.l.b16 %v545
    %v621 = vunpack.c.h.b16 %v545
    %v622 = vunpack.c.l.b16 %v546
    %v623 = vunpack.c.h.b16 %v546
    %v624 = vunpack.c.l.b16 %v547
    %v625 = vunpack.c.h.b16 %v547
    %v626 = vunpack.c.l.b16 %v548
    %v627 = vunpack.c.h.b16 %v548
    %v628 = vunpack.c.l.b16 %v549
    %v629 = vunpack.c.h.b16 %v549
    %v630 = vunpack.c.l.b16 %v550
    %v631 = vunpack.c.h.b16 %v550
    %v632 = vunpack.c.l.b16 %v551
    %v633 = vunpack.c.h.b16 %v551
    %v634 = vunpack.c.l.b16 %v552
    %v635 = vunpack.c.h.b16 %v552
    %v636 = vunpack.c.l.b16 %v553
    %v637 = vunpack.c.h.b16 %v553
    %v638 = vunpack.c.l.b16 %v554
    %v639 = vunpack.c.h.b16 %v554
    %v640 = vunpack.c.l.b16 %v555
    %v641 = vunpack.c.h.b16 %v555
    %v642 = vunpack.c.l.b16 %v556
    %v643 = vunpack.c.h.b16 %v556
    %v644 = vunpack.c.l.b16 %v557
    %v645 = vunpack.c.h.b16 %v557
    %v646 = vunpack.c.l.b16 %v558
    %v647 = vunpack.c.h.b16 %v558
    %v648 = vunpack.c.l.b16 %v559
    %v649 = vunpack.c.h.b16 %v559
    %v650 = vunpack.c.l.b16 %v560
    %v651 = vunpack.c.h.b16 %v560
    %v652 = vunpack.c.l.b16 %v561
    %v653 = vunpack.c.h.b16 %v561
    %v654 = vunpack.c.l.b16 %v562
    %v655 = vunpack.c.h.b16 %v562
    %v656 = vunpack.c.l.b16 %v563
    %v657 = vunpack.c.h.b16 %v563
    %v658 = vunpack.c.l.b16 %v564
    %v659 = vunpack.c.h.b16 %v564
    %v660 = vunpack.c.l.b16 %v565
    %v661 = vunpack.c.h.b16 %v565
    %v662 = vpack.c.b16 %v598, %v598
    %v663 = vpack.c.b16 %v599, %v599
    %v664 = vpack.c.b16 %v600, %v600
    %v665 = vpack.c.b16 %v601, %v601
    %v666 = vpack.c.b16 %v602, %v602
    %v667 = vpack.c.b16 %v603, %v603
    %v668 = vpack.c.b16 %v604, %v604
    %v669 = vpack.c.b16 %v605, %v605
    %v670 = vpack.c.b16 %v606, %v606
    %v671 = vpack.c.b16 %v607, %v607
    %v672 = vpack.c.b16 %v608, %v608
    %v673 = vpack.c.b16 %v609, %v609
    %v674 = vpack.c.b16 %v610, %v610
    %v675 = vpack.c.b16 %v611, %v611
    %v676 = vpack.c.b16 %v612, %v612
    %v677 = vpack.c.b16 %v613, %v613
    %v678 = vpack.c.b16 %v614, %v614
    %v679 = vpack.c.b16 %v615, %v615
    %v680 = vpack.c.b16 %v616, %v616
    %v681 = vpack.c.b16 %v617, %v617
    %v682 = vpack.c.b16 %v618, %v618
    %v683 = vpack.c.b16 %v619, %v619
    %v684 = vpack.c.b16 %v620, %v620
    %v685 = vpack.c.b16 %v621, %v621
    %v686 = vpack.c.b16 %v622, %v622
    %v687 = vpack.c.b16 %v623, %v623
    %v688 = vpack.c.b16 %v624, %v624
    %v689 = vpack.c.b16 %v625, %v625
    %v690 = vpack.c.b16 %v626, %v626
    %v691 = vpack.c.b16 %v627, %v627
    %v692 = vpack.c.b16 %v628, %v628
    %v693 = vpack.c.b16 %v629, %v629
    %v694 = vpack.c.b16 %v630, %v630
    %v695 = vpack.c.b16 %v631, %v631
    %v696 = vpack.c.b16 %v632, %v632
    %v697 = vpack.c.b16 %v633, %v633
    %v698 = vpack.c.b16 %v634, %v634
    %v699 = vpack.c.b16 %v635, %v635
    %v700 = vpack.c.b16 %v636, %v636
    %v701 = vpack.c.b16 %v637, %v637
    %v702 = vpack.c.b16 %v638, %v638
    %v703 = vpack.c.b16 %v639, %v639
    %v704 = vpack.c.b16 %v640, %v640
    %v705 = vpack.c.b16 %v641, %v641
    %v706 = vpack.c.b16 %v642, %v642
    %v707 = vpack.c.b16 %v643, %v643
    %v708 = vpack.c.b16 %v644, %v644
    %v709 = vpack.c.b16 %v645, %v645
    %v710 = vpack.c.b16 %v646, %v646
    %v711 = vpack.c.b16 %v647, %v647
    %v712 = vpack.c.b16 %v648, %v648
    %v713 = vpack.c.b16 %v649, %v649
    %v714 = vpack.c.b16 %v650, %v650
    %v715 = vpack.c.b16 %v651, %v651
    %v716 = vpack.c.b16 %v652, %v652
    %v717 = vpack.c.b16 %v653, %v653
    %v718 = vpack.c.b16 %v654, %v654
    %v719 = vpack.c.b16 %v655, %v655
    %v720 = vpack.c.b16 %v656, %v656
    %v721 = vpack.c.b16 %v657, %v657
    %v722 = vpack.c.b16 %v658, %v658
    %v723 = vpack.c.b16 %v659, %v659
    %v724 = vpack.c.b16 %v660, %v660
    %v725 = vpack.c.b16 %v661, %v661
    %790 = vst [vmem:[#allocation7] sm:$0xf] %v662
    %791 = vst [vmem:[#allocation7 + $0x4] sm:$0xf] %v663
    %792 = vst [vmem:[#allocation7 + $0x8] sm:$0xf] %v664
    %793 = vst [vmem:[#allocation7 + $0xc] sm:$0xf] %v665
    %794 = vst [vmem:[#allocation7 + $0x10] sm:$0xf] %v666
    %795 = vst [vmem:[#allocation7 + $0x14] sm:$0xf] %v667
    %796 = vst [vmem:[#allocation7 + $0x18] sm:$0xf] %v668
    %797 = vst [vmem:[#allocation7 + $0x1c] sm:$0xf] %v669
    %798 = vst [vmem:[#allocation7 + $0x20] sm:$0xf] %v670
    %799 = vst [vmem:[#allocation7 + $0x24] sm:$0xf] %v671
    %800 = vst [vmem:[#allocation7 + $0x28] sm:$0xf] %v672
    %801 = vst [vmem:[#allocation7 + $0x2c] sm:$0xf] %v673
    %802 = vst [vmem:[#allocation7 + $0x30] sm:$0xf] %v674
    %803 = vst [vmem:[#allocation7 + $0x34] sm:$0xf] %v675
    %804 = vst [vmem:[#allocation7 + $0x38] sm:$0xf] %v676
    %805 = vst [vmem:[#allocation7 + $0x3c] sm:$0xf] %v677
    %806 = vst [vmem:[#allocation7 + $0x40] sm:$0xf] %v678
    %807 = vst [vmem:[#allocation7 + $0x44] sm:$0xf] %v679
    %808 = vst [vmem:[#allocation7 + $0x48] sm:$0xf] %v680
    %809 = vst [vmem:[#allocation7 + $0x4c] sm:$0xf] %v681
    %810 = vst [vmem:[#allocation7 + $0x50] sm:$0xf] %v682
    %811 = vst [vmem:[#allocation7 + $0x54] sm:$0xf] %v683
    %812 = vst [vmem:[#allocation7 + $0x58] sm:$0xf] %v684
    %813 = vst [vmem:[#allocation7 + $0x5c] sm:$0xf] %v685
    %814 = vst [vmem:[#allocation7 + $0x60] sm:$0xf] %v686
    %815 = vst [vmem:[#allocation7 + $0x64] sm:$0xf] %v687
    %816 = vst [vmem:[#allocation7 + $0x68] sm:$0xf] %v688
    %817 = vst [vmem:[#allocation7 + $0x6c] sm:$0xf] %v689
    %818 = vst [vmem:[#allocation7 + $0x70] sm:$0xf] %v690
    %819 = vst [vmem:[#allocation7 + $0x74] sm:$0xf] %v691
    %820 = vst [vmem:[#allocation7 + $0x78] sm:$0xf] %v692
    %821 = vst [vmem:[#allocation7 + $0x7c] sm:$0xf] %v693
    %822 = vst [vmem:[#allocation7 + $0x80] sm:$0xf] %v694
    %823 = vst [vmem:[#allocation7 + $0x84] sm:$0xf] %v695
    %824 = vst [vmem:[#allocation7 + $0x88] sm:$0xf] %v696
    %825 = vst [vmem:[#allocation7 + $0x8c] sm:$0xf] %v697
    %826 = vst [vmem:[#allocation7 + $0x90] sm:$0xf] %v698
    %827 = vst [vmem:[#allocation7 + $0x94] sm:$0xf] %v699
    %828 = vst [vmem:[#allocation7 + $0x98] sm:$0xf] %v700
    %829 = vst [vmem:[#allocation7 + $0x9c] sm:$0xf] %v701
    %830 = vst [vmem:[#allocation7 + $0xa0] sm:$0xf] %v702
    %831 = vst [vmem:[#allocation7 + $0xa4] sm:$0xf] %v703
    %832 = vst [vmem:[#allocation7 + $0xa8] sm:$0xf] %v704
    %833 = vst [vmem:[#allocation7 + $0xac] sm:$0xf] %v705
    %834 = vst [vmem:[#allocation7 + $0xb0] sm:$0xf] %v706
    %835 = vst [vmem:[#allocation7 + $0xb4] sm:$0xf] %v707
    %836 = vst [vmem:[#allocation7 + $0xb8] sm:$0xf] %v708
    %837 = vst [vmem:[#allocation7 + $0xbc] sm:$0xf] %v709
    %838 = vst [vmem:[#allocation7 + $0xc0] sm:$0xf] %v710
    %839 = vst [vmem:[#allocation7 + $0xc4] sm:$0xf] %v711
    %840 = vst [vmem:[#allocation7 + $0xc8] sm:$0xf] %v712
    %841 = vst [vmem:[#allocation7 + $0xcc] sm:$0xf] %v713
    %842 = vst [vmem:[#allocation7 + $0xd0] sm:$0xf] %v714
    %843 = vst [vmem:[#allocation7 + $0xd4] sm:$0xf] %v715
    %844 = vst [vmem:[#allocation7 + $0xd8] sm:$0xf] %v716
    %845 = vst [vmem:[#allocation7 + $0xdc] sm:$0xf] %v717
    %846 = vst [vmem:[#allocation7 + $0xe0] sm:$0xf] %v718
    %847 = vst [vmem:[#allocation7 + $0xe4] sm:$0xf] %v719
    %848 = vst [vmem:[#allocation7 + $0xe8] sm:$0xf] %v720
    %849 = vst [vmem:[#allocation7 + $0xec] sm:$0xf] %v721
    %850 = vst [vmem:[#allocation7 + $0xf0] sm:$0xf] %v722
    %851 = vst [vmem:[#allocation7 + $0xf4] sm:$0xf] %v723
    %852 = vst [vmem:[#allocation7 + $0xf8] sm:$0xf] %v724
    %853 = vst [vmem:[#allocation7 + $0xfc] sm:$0xf] %v725
    %v854 = vadd.f32 %v280, %v283
    %v855 = vadd.f32 %v854, %v288
    %v856 = vadd.f32 %v855, %v291
    %v857 = vadd.f32 %v856, %v296
    %v858 = vadd.f32 %v857, %v299
    %v859 = vadd.f32 %v858, %v304
    %v860 = vadd.f32 %v859, %v307
    %v861 = vadd.f32 %v860, %v312
    %v862 = vadd.f32 %v861, %v315
    %v863 = vadd.f32 %v862, %v320
    %v864 = vadd.f32 %v863, %v323
    %v865 = vadd.f32 %v864, %v328
    %v866 = vadd.f32 %v865, %v331
    %v867 = vadd.f32 %v866, %v336
    %v868 = vadd.f32 %v867, %v339
    %v869 = vadd.f32 %v868, %v344
    %v870 = vadd.f32 %v869, %v347
    %v871 = vadd.f32 %v870, %v352
    %v872 = vadd.f32 %v871, %v355
    %v873 = vadd.f32 %v872, %v360
    %v874 = vadd.f32 %v873, %v363
    %v875 = vadd.f32 %v874, %v368
    %v876 = vadd.f32 %v875, %v371
    %v877 = vadd.f32 %v876, %v376
    %v878 = vadd.f32 %v877, %v379
    %v879 = vadd.f32 %v878, %v384
    %v880 = vadd.f32 %v879, %v387
    %v881 = vadd.f32 %v880, %v392
    %v882 = vadd.f32 %v881, %v395
    %v883 = vadd.f32 %v882, %v400
    %v884 = vadd.f32 %v883, %v403
    %v885 = vadd.f32 %v884, %v408
    %v886 = vadd.f32 %v885, %v411
    %v887 = vadd.f32 %v886, %v416
    %v888 = vadd.f32 %v887, %v419
    %v889 = vadd.f32 %v888, %v424
    %v890 = vadd.f32 %v889, %v427
    %v891 = vadd.f32 %v890, %v432
    %v892 = vadd.f32 %v891, %v435
    %v893 = vadd.f32 %v892, %v440
    %v894 = vadd.f32 %v893, %v443
    %v895 = vadd.f32 %v894, %v448
    %v896 = vadd.f32 %v895, %v451
    %v897 = vadd.f32 %v896, %v456
    %v898 = vadd.f32 %v897, %v459
    %v899 = vadd.f32 %v898, %v464
    %v900 = vadd.f32 %v899, %v467
    %v901 = vadd.f32 %v900, %v472
    %v902 = vadd.f32 %v901, %v475
    %v903 = vadd.f32 %v902, %v480
    %v904 = vadd.f32 %v903, %v483
    %v905 = vadd.f32 %v904, %v488
    %v906 = vadd.f32 %v905, %v491
    %v907 = vadd.f32 %v906, %v496
    %v908 = vadd.f32 %v907, %v499
    %v909 = vadd.f32 %v908, %v504
    %v910 = vadd.f32 %v909, %v507
    %v911 = vadd.f32 %v910, %v512
    %v912 = vadd.f32 %v911, %v515
    %v913 = vadd.f32 %v912, %v520
    %v914 = vadd.f32 %v913, %v523
    %v915 = vadd.f32 %v914, %v528
    %v916 = vadd.f32 %v915, %v531
    %v917 = vrot.slane %v916, 4
    %v918 = vadd.f32 %v916, %v917
    %v919 = vrot.slane %v918, 2
    %v920 = vadd.f32 %v918, %v919
    %v921 = vrot.slane %v920, 1
    %v922 = vadd.f32 %v920, %v921
    %v923 = vmul.f32 %v280, %v280
    %v924 = vmul.f32 %v283, %v283
    %v925 = vmul.f32 %v288, %v288
    %v926 = vmul.f32 %v291, %v291
    %v927 = vmul.f32 %v296, %v296
    %v928 = vmul.f32 %v299, %v299
    %v929 = vmul.f32 %v304, %v304
    %v930 = vmul.f32 %v307, %v307
    %v931 = vmul.f32 %v312, %v312
    %v932 = vmul.f32 %v315, %v315
    %v933 = vmul.f32 %v320, %v320
    %v934 = vmul.f32 %v323, %v323
    %v935 = vmul.f32 %v328, %v328
    %v936 = vmul.f32 %v331, %v331
    %v937 = vmul.f32 %v336, %v336
    %v938 = vmul.f32 %v339, %v339
    %v939 = vmul.f32 %v344, %v344
    %v940 = vmul.f32 %v347, %v347
    %v941 = vmul.f32 %v352, %v352
    %v942 = vmul.f32 %v355, %v355
    %v943 = vmul.f32 %v360, %v360
    %v944 = vmul.f32 %v363, %v363
    %v945 = vmul.f32 %v368, %v368
    %v946 = vmul.f32 %v371, %v371
    %v947 = vmul.f32 %v376, %v376
    %v948 = vmul.f32 %v379, %v379
    %v949 = vmul.f32 %v384, %v384
    %v950 = vmul.f32 %v387, %v387
    %v951 = vmul.f32 %v392, %v392
    %v952 = vmul.f32 %v395, %v395
    %v953 = vmul.f32 %v400, %v400
    %v954 = vmul.f32 %v403, %v403
    %v955 = vmul.f32 %v408, %v408
    %v956 = vmul.f32 %v411, %v411
    %v957 = vmul.f32 %v416, %v416
    %v958 = vmul.f32 %v419, %v419
    %v959 = vmul.f32 %v424, %v424
    %v960 = vmul.f32 %v427, %v427
    %v961 = vmul.f32 %v432, %v432
    %v962 = vmul.f32 %v435, %v435
    %v963 = vmul.f32 %v440, %v440
    %v964 = vmul.f32 %v443, %v443
    %v965 = vmul.f32 %v448, %v448
    %v966 = vmul.f32 %v451, %v451
    %v967 = vmul.f32 %v456, %v456
    %v968 = vmul.f32 %v459, %v459
    %v969 = vmul.f32 %v464, %v464
    %v970 = vmul.f32 %v467, %v467
    %v971 = vmul.f32 %v472, %v472
    %v972 = vmul.f32 %v475, %v475
    %v973 = vmul.f32 %v480, %v480
    %v974 = vmul.f32 %v483, %v483
    %v975 = vmul.f32 %v488, %v488
    %v976 = vmul.f32 %v491, %v491
    %v977 = vmul.f32 %v496, %v496
    %v978 = vmul.f32 %v499, %v499
    %v979 = vmul.f32 %v504, %v504
    %v980 = vmul.f32 %v507, %v507
    %v981 = vmul.f32 %v512, %v512
    %v982 = vmul.f32 %v515, %v515
    %v983 = vmul.f32 %v520, %v520
    %v984 = vmul.f32 %v523, %v523
    %v985 = vmul.f32 %v528, %v528
    %v986 = vmul.f32 %v531, %v531
    %v987 = vadd.f32 %v923, %v924
    %v988 = vadd.f32 %v987, %v925
    %v989 = vadd.f32 %v988, %v926
    %v990 = vadd.f32 %v989, %v927
    %v991 = vadd.f32 %v990, %v928
    %v992 = vadd.f32 %v991, %v929
    %v993 = vadd.f32 %v992, %v930
    %v994 = vadd.f32 %v993, %v931
    %v995 = vadd.f32 %v994, %v932
    %v996 = vadd.f32 %v995, %v933
    %v997 = vadd.f32 %v996, %v934
    %v998 = vadd.f32 %v997, %v935
    %v999 = vadd.f32 %v998, %v936
    %v1000 = vadd.f32 %v999, %v937
    %v1001 = vadd.f32 %v1000, %v938
    %v1002 = vadd.f32 %v1001, %v939
    %v1003 = vadd.f32 %v1002, %v940
    %v1004 = vadd.f32 %v1003, %v941
    %v1005 = vadd.f32 %v1004, %v942
    %v1006 = vadd.f32 %v1005, %v943
    %v1007 = vadd.f32 %v1006, %v944
    %v1008 = vadd.f32 %v1007, %v945
    %v1009 = vadd.f32 %v1008, %v946
    %v1010 = vadd.f32 %v1009, %v947
    %v1011 = vadd.f32 %v1010, %v948
    %v1012 = vadd.f32 %v1011, %v949
    %v1013 = vadd.f32 %v1012, %v950
    %v1014 = vadd.f32 %v1013, %v951
    %v1015 = vadd.f32 %v1014, %v952
    %v1016 = vadd.f32 %v1015, %v953
    %v1017 = vadd.f32 %v1016, %v954
    %v1018 = vadd.f32 %v1017, %v955
    %v1019 = vadd.f32 %v1018, %v956
    %v1020 = vadd.f32 %v1019, %v957
    %v1021 = vadd.f32 %v1020, %v958
    %v1022 = vadd.f32 %v1021, %v959
    %v1023 = vadd.f32 %v1022, %v960
    %v1024 = vadd.f32 %v1023, %v961
    %v1025 = vadd.f32 %v1024, %v962
    %v1026 = vadd.f32 %v1025, %v963
    %v1027 = vadd.f32 %v1026, %v964
    %v1028 = vadd.f32 %v1027, %v965
    %v1029 = vadd.f32 %v1028, %v966
    %v1030 = vadd.f32 %v1029, %v967
    %v1031 = vadd.f32 %v1030, %v968
    %v1032 = vadd.f32 %v1031, %v969
    %v1033 = vadd.f32 %v1032, %v970
    %v1034 = vadd.f32 %v1033, %v971
    %v1035 = vadd.f32 %v1034, %v972
    %v1036 = vadd.f32 %v1035, %v973
    %v1037 = vadd.f32 %v1036, %v974
    %v1038 = vadd.f32 %v1037, %v975
    %v1039 = vadd.f32 %v1038, %v976
    %v1040 = vadd.f32 %v1039, %v977
    %v1041 = vadd.f32 %v1040, %v978
    %v1042 = vadd.f32 %v1041, %v979
    %v1043 = vadd.f32 %v1042, %v980
    %v1044 = vadd.f32 %v1043, %v981
    %v1045 = vadd.f32 %v1044, %v982
    %v1046 = vadd.f32 %v1045, %v983
    %v1047 = vadd.f32 %v1046, %v984
    %v1048 = vadd.f32 %v1047, %v985
    %v1049 = vadd.f32 %v1048, %v986
    %v1050 = vrot.slane %v1049, 4
    %v1051 = vadd.f32 %v1049, %v1050
    %v1052 = vrot.slane %v1051, 2
    %v1053 = vadd.f32 %v1051, %v1052
    %v1054 = vrot.slane %v1053, 1
    %v1055 = vadd.f32 %v1053, %v1054
    %vm1056 = vcmask 1040384
    %v1057 = vsel %vm1056, %v922, %v1055
    %1058 = vst [vmem:[#allocation8] sm:$0x3] %v1057
    // Predicated region
    $region18: #{_lambda_.4} parent=1 // pred_check
      _
    $region19: #{_lambda_.4} parent=1 // pred_check_branch
      %1060 = sbr.rel (0) target = $region21
    $region20: #{_lambda_.4} parent=1 // pred_region
      %s1062 = ssub.s32 4096, 4096
      %1063 = vsyncadd [#allocation4], %s1062
      %s1064 = sshll.u32 [#allocation7], 4
      %s1065 = int_to_ptr.vmem [resolvable:$true] %s1064
      %1070 = dma.vmem_to_hbm [thread:$0]  %s1065, 4096, %s2, [#allocation4], 64, 64, 4
    $region21: #{_lambda_.4} parent=1 // pred_fallthru
      _
    // Predicated region
    $region22: #{_lambda_.4} parent=1 // pred_check
      _
    $region23: #{_lambda_.4} parent=1 // pred_check_branch
      %1072 = sbr.rel (0) target = $region25
    $region24: #{_lambda_.4} parent=1 // pred_region
      %s1074 = ssub.s32 32, 32
      %1075 = vsyncadd [#allocation9], %s1074
      %s1077 = sshll.u32 [#allocation8], 4
      %s1078 = int_to_ptr.vmem [resolvable:$true] %s1077
      %1080 = dma.vmem_to_hbm [thread:$0]  %s1078, 32, %s3, [#allocation9]
    $region25: #{_lambda_.4} parent=1 // pred_fallthru
      _
    // Predicated region
    $region26: #{_lambda_.4} parent=1 // pred_check
      _
    $region27: #{_lambda_.4} parent=1 // pred_check_branch
      %1082 = sbr.rel (0) target = $region29
    $region28: #{_lambda_.4} parent=1 // pred_region
      %1083 = dma.done [#allocation4], 4096
    $region29: #{_lambda_.4} parent=1 // pred_fallthru
      _
    // Predicated region
    $region30: #{_lambda_.4} parent=1 // pred_check
      _
    $region31: #{_lambda_.4} parent=1 // pred_check_branch
      %1085 = sbr.rel (0) target = $region33
    $region32: #{_lambda_.4} parent=1 // pred_region
      %1086 = dma.done [#allocation9], 32
    $region33: #{_lambda_.4} parent=1 // pred_fallthru
      _
    %1087 = vsyncpa [#allocation3], 1
    %1088 = vsyncpa [#allocation6], 1
    %1089 = vsyncpa [#allocation4], 1
    %1090 = vsyncpa [#allocation9], 1

// kernel: _lambda_.7
$region0: #{_lambda_.7}
  #allocation0 [shape = 'u32[]', space=smem, size = 0x4, offset = 0x4, fixed_abs, tag = 'smem constant byte address 0x4 - core index']
  #allocation1 [shape = 'u32[144,128]{1,0:T(1,128)}', space=vmem, size = 0x12000, scoped, tag = 'internal scratch']
  %s0 = inlined_call_operand.hbm [shape: bf16[512,16], index: 0, kind: input, shape index: {}]
  %s1 = inlined_call_operand.hbm [shape: f32[1,16], index: 1, kind: input, shape index: {}]
  %s2 = inlined_call_operand.hbm [shape: f32[1,16], index: 2, kind: input, shape index: {}]
  %s3 = inlined_call_operand.hbm [shape: f32[512,16], index: 3, kind: input, shape index: {}]
  %s4 = inlined_call_operand.hbm [shape: f32[512,16], index: 4, kind: output, shape index: {}]
  %s5 = sld [smem:[#allocation0]]
  $region42: #{_lambda_.7} parent=0
    _
  %s7 = ssub.s32 1, %s5
  %s8 = scalar_select 0, %s7, %s5
  $region1: #{_lambda_.7} parent=0
    #allocation2 [shape = 'u8[131072]{0}', space=vmem, size = 0x20000, scoped, tag = 'input window, operand 0, single buffered']
    #allocation3 [shape = 's32[1]{0}', space=sflag, size = 0x4, scoped, tag = 'scoped memory for _lambda_.7']
    #allocation4 [shape = 's32[1]{0}', space=sflag, size = 0x4, scoped, tag = 'scoped memory for _lambda_.7']
    #allocation5 [shape = 'u8[512]{0}', space=vmem, size = 0x400, scoped, tag = 'input window, operand 1, single buffered']
    #allocation6 [shape = 's32[1]{0}', space=sflag, size = 0x4, scoped, tag = 'scoped memory for _lambda_.7']
    #allocation7 [shape = 'u8[512]{0}', space=vmem, size = 0x400, scoped, tag = 'input window, operand 2, single buffered']
    #allocation8 [shape = 'u8[262144]{0}', space=vmem, size = 0x40000, scoped, tag = 'input window, operand 3, single buffered']
    #allocation9 [shape = 's32[1]{0}', space=sflag, size = 0x4, scoped, tag = 'scoped memory for _lambda_.7']
    #allocation10 [shape = 'u8[262144]{0}', space=vmem, size = 0x40000, scoped, tag = 'output window, operand 0, single buffered']
    %9 = vsyncpa [#allocation3], 0
    %10 = vsyncpa [#allocation6], 0
    %11 = vsyncpa [#allocation9], 0
    %12 = vsyncpa [#allocation4], 0
    // Predicated region
    $region2: #{_lambda_.7} parent=1 // pred_check
      _
    $region3: #{_lambda_.7} parent=1 // pred_check_branch
      %14 = sbr.rel (0) target = $region5
    $region4: #{_lambda_.7} parent=1 // pred_region
      %s16 = ssub.s32 4096, 4096
      %17 = vsyncadd [#allocation3], %s16
      %s18 = sshll.u32 [#allocation2], 4
      %s19 = int_to_ptr.vmem [resolvable:$true] %s18
      %24 = dma.hbm_to_vmem [thread:$0]  %s0, 4096, %s19, [#allocation3], 64, 64, 4
    $region5: #{_lambda_.7} parent=1 // pred_fallthru
      _
    // Predicated region
    $region6: #{_lambda_.7} parent=1 // pred_check
      _
    $region7: #{_lambda_.7} parent=1 // pred_check_branch
      %26 = sbr.rel (0) target = $region9
    $region8: #{_lambda_.7} parent=1 // pred_region
      %s28 = ssub.s32 16, 16
      %29 = vsyncadd [#allocation6], %s28
      %s31 = sshll.u32 [#allocation5], 4
      %s32 = int_to_ptr.vmem [resolvable:$true] %s31
      %34 = dma.hbm_to_vmem [thread:$0]  %s1, 16, %s32, [#allocation6]
    $region9: #{_lambda_.7} parent=1 // pred_fallthru
      _
    // Predicated region
    $region10: #{_lambda_.7} parent=1 // pred_check
      _
    $region11: #{_lambda_.7} parent=1 // pred_check_branch
      %36 = sbr.rel (0) target = $region13
    $region12: #{_lambda_.7} parent=1 // pred_region
      %s38 = ssub.s32 16, 16
      %39 = vsyncadd [#allocation6], %s38
      %s41 = sshll.u32 [#allocation7], 4
      %s42 = int_to_ptr.vmem [resolvable:$true] %s41
      %44 = dma.hbm_to_vmem [thread:$0]  %s2, 16, %s42, [#allocation6]
    $region13: #{_lambda_.7} parent=1 // pred_fallthru
      _
    // Predicated region
    $region14: #{_lambda_.7} parent=1 // pred_check
      _
    $region15: #{_lambda_.7} parent=1 // pred_check_branch
      %46 = sbr.rel (0) target = $region17
    $region16: #{_lambda_.7} parent=1 // pred_region
      %s48 = ssub.s32 8192, 8192
      %49 = vsyncadd [#allocation9], %s48
      %s50 = sshll.u32 [#allocation8], 4
      %s51 = int_to_ptr.vmem [resolvable:$true] %s50
      %56 = dma.hbm_to_vmem [thread:$0]  %s3, 8192, %s51, [#allocation9], 128, 128, 8
    $region17: #{_lambda_.7} parent=1 // pred_fallthru
      _
    // Predicated region
    $region18: #{_lambda_.7} parent=1 // pred_check
      _
    $region19: #{_lambda_.7} parent=1 // pred_check_branch
      %58 = sbr.rel (0) target = $region21
    $region20: #{_lambda_.7} parent=1 // pred_region
      %59 = dma.done [#allocation3], 4096
    $region21: #{_lambda_.7} parent=1 // pred_fallthru
      _
    // Predicated region
    $region22: #{_lambda_.7} parent=1 // pred_check
      _
    $region23: #{_lambda_.7} parent=1 // pred_check_branch
      %61 = sbr.rel (0) target = $region25
    $region24: #{_lambda_.7} parent=1 // pred_region
      %62 = dma.done [#allocation6], 16
    $region25: #{_lambda_.7} parent=1 // pred_fallthru
      _
    // Predicated region
    $region26: #{_lambda_.7} parent=1 // pred_check
      _
    $region27: #{_lambda_.7} parent=1 // pred_check_branch
      %64 = sbr.rel (0) target = $region29
    $region28: #{_lambda_.7} parent=1 // pred_region
      %65 = dma.done [#allocation6], 16
    $region29: #{_lambda_.7} parent=1 // pred_fallthru
      _
    // Predicated region
    $region30: #{_lambda_.7} parent=1 // pred_check
      _
    $region31: #{_lambda_.7} parent=1 // pred_check_branch
      %67 = sbr.rel (0) target = $region33
    $region32: #{_lambda_.7} parent=1 // pred_region
      %68 = dma.done [#allocation9], 8192
    $region33: #{_lambda_.7} parent=1 // pred_fallthru
      _
    %v69 = vld [vmem:[#allocation2] sm:$0xf]
    %v70 = vld [vmem:[#allocation2 + $0x4] sm:$0xf]
    %v71 = vld [vmem:[#allocation2 + $0x8] sm:$0xf]
    %v72 = vld [vmem:[#allocation2 + $0xc] sm:$0xf]
    %v73 = vld [vmem:[#allocation2 + $0x10] sm:$0xf]
    %v74 = vld [vmem:[#allocation2 + $0x14] sm:$0xf]
    %v75 = vld [vmem:[#allocation2 + $0x18] sm:$0xf]
    %v76 = vld [vmem:[#allocation2 + $0x1c] sm:$0xf]
    %v77 = vld [vmem:[#allocation2 + $0x20] sm:$0xf]
    %v78 = vld [vmem:[#allocation2 + $0x24] sm:$0xf]
    %v79 = vld [vmem:[#allocation2 + $0x28] sm:$0xf]
    %v80 = vld [vmem:[#allocation2 + $0x2c] sm:$0xf]
    %v81 = vld [vmem:[#allocation2 + $0x30] sm:$0xf]
    %v82 = vld [vmem:[#allocation2 + $0x34] sm:$0xf]
    %v83 = vld [vmem:[#allocation2 + $0x38] sm:$0xf]
    %v84 = vld [vmem:[#allocation2 + $0x3c] sm:$0xf]
    %v85 = vld [vmem:[#allocation2 + $0x40] sm:$0xf]
    %v86 = vld [vmem:[#allocation2 + $0x44] sm:$0xf]
    %v87 = vld [vmem:[#allocation2 + $0x48] sm:$0xf]
    %v88 = vld [vmem:[#allocation2 + $0x4c] sm:$0xf]
    %v89 = vld [vmem:[#allocation2 + $0x50] sm:$0xf]
    %v90 = vld [vmem:[#allocation2 + $0x54] sm:$0xf]
    %v91 = vld [vmem:[#allocation2 + $0x58] sm:$0xf]
    %v92 = vld [vmem:[#allocation2 + $0x5c] sm:$0xf]
    %v93 = vld [vmem:[#allocation2 + $0x60] sm:$0xf]
    %v94 = vld [vmem:[#allocation2 + $0x64] sm:$0xf]
    %v95 = vld [vmem:[#allocation2 + $0x68] sm:$0xf]
    %v96 = vld [vmem:[#allocation2 + $0x6c] sm:$0xf]
    %v97 = vld [vmem:[#allocation2 + $0x70] sm:$0xf]
    %v98 = vld [vmem:[#allocation2 + $0x74] sm:$0xf]
    %v99 = vld [vmem:[#allocation2 + $0x78] sm:$0xf]
    %v100 = vld [vmem:[#allocation2 + $0x7c] sm:$0xf]
    %v101 = vld [vmem:[#allocation2 + $0x80] sm:$0xf]
    %v102 = vld [vmem:[#allocation2 + $0x84] sm:$0xf]
    %v103 = vld [vmem:[#allocation2 + $0x88] sm:$0xf]
    %v104 = vld [vmem:[#allocation2 + $0x8c] sm:$0xf]
    %v105 = vld [vmem:[#allocation2 + $0x90] sm:$0xf]
    %v106 = vld [vmem:[#allocation2 + $0x94] sm:$0xf]
    %v107 = vld [vmem:[#allocation2 + $0x98] sm:$0xf]
    %v108 = vld [vmem:[#allocation2 + $0x9c] sm:$0xf]
    %v109 = vld [vmem:[#allocation2 + $0xa0] sm:$0xf]
    %v110 = vld [vmem:[#allocation2 + $0xa4] sm:$0xf]
    %v111 = vld [vmem:[#allocation2 + $0xa8] sm:$0xf]
    %v112 = vld [vmem:[#allocation2 + $0xac] sm:$0xf]
    %v113 = vld [vmem:[#allocation2 + $0xb0] sm:$0xf]
    %v114 = vld [vmem:[#allocation2 + $0xb4] sm:$0xf]
    %v115 = vld [vmem:[#allocation2 + $0xb8] sm:$0xf]
    %v116 = vld [vmem:[#allocation2 + $0xbc] sm:$0xf]
    %v117 = vld [vmem:[#allocation2 + $0xc0] sm:$0xf]
    %v118 = vld [vmem:[#allocation2 + $0xc4] sm:$0xf]
    %v119 = vld [vmem:[#allocation2 + $0xc8] sm:$0xf]
    %v120 = vld [vmem:[#allocation2 + $0xcc] sm:$0xf]
    %v121 = vld [vmem:[#allocation2 + $0xd0] sm:$0xf]
    %v122 = vld [vmem:[#allocation2 + $0xd4] sm:$0xf]
    %v123 = vld [vmem:[#allocation2 + $0xd8] sm:$0xf]
    %v124 = vld [vmem:[#allocation2 + $0xdc] sm:$0xf]
    %v125 = vld [vmem:[#allocation2 + $0xe0] sm:$0xf]
    %v126 = vld [vmem:[#allocation2 + $0xe4] sm:$0xf]
    %v127 = vld [vmem:[#allocation2 + $0xe8] sm:$0xf]
    %v128 = vld [vmem:[#allocation2 + $0xec] sm:$0xf]
    %v129 = vld [vmem:[#allocation2 + $0xf0] sm:$0xf]
    %v130 = vld [vmem:[#allocation2 + $0xf4] sm:$0xf]
    %v131 = vld [vmem:[#allocation2 + $0xf8] sm:$0xf]
    %v132 = vld [vmem:[#allocation2 + $0xfc] sm:$0xf]
    %v133 = vunpack.c.l.bf16 %v69
    %v134 = vunpack.c.l.bf16 %v70
    %v135 = vunpack.c.l.bf16 %v71
    %v136 = vunpack.c.l.bf16 %v72
    %v137 = vunpack.c.l.bf16 %v73
    %v138 = vunpack.c.l.bf16 %v74
    %v139 = vunpack.c.l.bf16 %v75
    %v140 = vunpack.c.l.bf16 %v76
    %v141 = vunpack.c.l.bf16 %v77
    %v142 = vunpack.c.l.bf16 %v78
    %v143 = vunpack.c.l.bf16 %v79
    %v144 = vunpack.c.l.bf16 %v80
    %v145 = vunpack.c.l.bf16 %v81
    %v146 = vunpack.c.l.bf16 %v82
    %v147 = vunpack.c.l.bf16 %v83
    %v148 = vunpack.c.l.bf16 %v84
    %v149 = vunpack.c.l.bf16 %v85
    %v150 = vunpack.c.l.bf16 %v86
    %v151 = vunpack.c.l.bf16 %v87
    %v152 = vunpack.c.l.bf16 %v88
    %v153 = vunpack.c.l.bf16 %v89
    %v154 = vunpack.c.l.bf16 %v90
    %v155 = vunpack.c.l.bf16 %v91
    %v156 = vunpack.c.l.bf16 %v92
    %v157 = vunpack.c.l.bf16 %v93
    %v158 = vunpack.c.l.bf16 %v94
    %v159 = vunpack.c.l.bf16 %v95
    %v160 = vunpack.c.l.bf16 %v96
    %v161 = vunpack.c.l.bf16 %v97
    %v162 = vunpack.c.l.bf16 %v98
    %v163 = vunpack.c.l.bf16 %v99
    %v164 = vunpack.c.l.bf16 %v100
    %v165 = vunpack.c.l.bf16 %v101
    %v166 = vunpack.c.l.bf16 %v102
    %v167 = vunpack.c.l.bf16 %v103
    %v168 = vunpack.c.l.bf16 %v104
    %v169 = vunpack.c.l.bf16 %v105
    %v170 = vunpack.c.l.bf16 %v106
    %v171 = vunpack.c.l.bf16 %v107
    %v172 = vunpack.c.l.bf16 %v108
    %v173 = vunpack.c.l.bf16 %v109
    %v174 = vunpack.c.l.bf16 %v110
    %v175 = vunpack.c.l.bf16 %v111
    %v176 = vunpack.c.l.bf16 %v112
    %v177 = vunpack.c.l.bf16 %v113
    %v178 = vunpack.c.l.bf16 %v114
    %v179 = vunpack.c.l.bf16 %v115
    %v180 = vunpack.c.l.bf16 %v116
    %v181 = vunpack.c.l.bf16 %v117
    %v182 = vunpack.c.l.bf16 %v118
    %v183 = vunpack.c.l.bf16 %v119
    %v184 = vunpack.c.l.bf16 %v120
    %v185 = vunpack.c.l.bf16 %v121
    %v186 = vunpack.c.l.bf16 %v122
    %v187 = vunpack.c.l.bf16 %v123
    %v188 = vunpack.c.l.bf16 %v124
    %v189 = vunpack.c.l.bf16 %v125
    %v190 = vunpack.c.l.bf16 %v126
    %v191 = vunpack.c.l.bf16 %v127
    %v192 = vunpack.c.l.bf16 %v128
    %v193 = vunpack.c.l.bf16 %v129
    %v194 = vunpack.c.l.bf16 %v130
    %v195 = vunpack.c.l.bf16 %v131
    %v196 = vunpack.c.l.bf16 %v132
    %v197 = vld [vmem:[#allocation5] sm:$0x1]
    %v199 = vlaneseq
    %v200 = vshrl.u32 %v199, 7
    %v201 = vsub.s32 0, %v200
    %v202 = vrot.slane %v197, %v201
    %v204 = vmul.f32 %v133, %v202
    %v205 = vmul.f32 %v134, %v202
    %v206 = vmul.f32 %v135, %v202
    %v207 = vmul.f32 %v136, %v202
    %v208 = vmul.f32 %v137, %v202
    %v209 = vmul.f32 %v138, %v202
    %v210 = vmul.f32 %v139, %v202
    %v211 = vmul.f32 %v140, %v202
    %v212 = vmul.f32 %v141, %v202
    %v213 = vmul.f32 %v142, %v202
    %v214 = vmul.f32 %v143, %v202
    %v215 = vmul.f32 %v144, %v202
    %v216 = vmul.f32 %v145, %v202
    %v217 = vmul.f32 %v146, %v202
    %v218 = vmul.f32 %v147, %v202
    %v219 = vmul.f32 %v148, %v202
    %v220 = vmul.f32 %v149, %v202
    %v221 = vmul.f32 %v150, %v202
    %v222 = vmul.f32 %v151, %v202
    %v223 = vmul.f32 %v152, %v202
    %v224 = vmul.f32 %v153, %v202
    %v225 = vmul.f32 %v154, %v202
    %v226 = vmul.f32 %v155, %v202
    %v227 = vmul.f32 %v156, %v202
    %v228 = vmul.f32 %v157, %v202
    %v229 = vmul.f32 %v158, %v202
    %v230 = vmul.f32 %v159, %v202
    %v231 = vmul.f32 %v160, %v202
    %v232 = vmul.f32 %v161, %v202
    %v233 = vmul.f32 %v162, %v202
    %v234 = vmul.f32 %v163, %v202
    %v235 = vmul.f32 %v164, %v202
    %v236 = vmul.f32 %v165, %v202
    %v237 = vmul.f32 %v166, %v202
    %v238 = vmul.f32 %v167, %v202
    %v239 = vmul.f32 %v168, %v202
    %v240 = vmul.f32 %v169, %v202
    %v241 = vmul.f32 %v170, %v202
    %v242 = vmul.f32 %v171, %v202
    %v243 = vmul.f32 %v172, %v202
    %v244 = vmul.f32 %v173, %v202
    %v245 = vmul.f32 %v174, %v202
    %v246 = vmul.f32 %v175, %v202
    %v247 = vmul.f32 %v176, %v202
    %v248 = vmul.f32 %v177, %v202
    %v249 = vmul.f32 %v178, %v202
    %v250 = vmul.f32 %v179, %v202
    %v251 = vmul.f32 %v180, %v202
    %v252 = vmul.f32 %v181, %v202
    %v253 = vmul.f32 %v182, %v202
    %v254 = vmul.f32 %v183, %v202
    %v255 = vmul.f32 %v184, %v202
    %v256 = vmul.f32 %v185, %v202
    %v257 = vmul.f32 %v186, %v202
    %v258 = vmul.f32 %v187, %v202
    %v259 = vmul.f32 %v188, %v202
    %v260 = vmul.f32 %v189, %v202
    %v261 = vmul.f32 %v190, %v202
    %v262 = vmul.f32 %v191, %v202
    %v263 = vmul.f32 %v192, %v202
    %v264 = vmul.f32 %v193, %v202
    %v265 = vmul.f32 %v194, %v202
    %v266 = vmul.f32 %v195, %v202
    %v267 = vmul.f32 %v196, %v202
    %v268 = vld [vmem:[#allocation7] sm:$0x1]
    %v270 = vlaneseq
    %v271 = vshrl.u32 %v270, 7
    %v272 = vsub.s32 0, %v271
    %v273 = vrot.slane %v268, %v272
    %v275 = vadd.f32 %v204, %v273
    %v276 = vadd.f32 %v205, %v273
    %v277 = vadd.f32 %v206, %v273
    %v278 = vadd.f32 %v207, %v273
    %v279 = vadd.f32 %v208, %v273
    %v280 = vadd.f32 %v209, %v273
    %v281 = vadd.f32 %v210, %v273
    %v282 = vadd.f32 %v211, %v273
    %v283 = vadd.f32 %v212, %v273
    %v284 = vadd.f32 %v213, %v273
    %v285 = vadd.f32 %v214, %v273
    %v286 = vadd.f32 %v215, %v273
    %v287 = vadd.f32 %v216, %v273
    %v288 = vadd.f32 %v217, %v273
    %v289 = vadd.f32 %v218, %v273
    %v290 = vadd.f32 %v219, %v273
    %v291 = vadd.f32 %v220, %v273
    %v292 = vadd.f32 %v221, %v273
    %v293 = vadd.f32 %v222, %v273
    %v294 = vadd.f32 %v223, %v273
    %v295 = vadd.f32 %v224, %v273
    %v296 = vadd.f32 %v225, %v273
    %v297 = vadd.f32 %v226, %v273
    %v298 = vadd.f32 %v227, %v273
    %v299 = vadd.f32 %v228, %v273
    %v300 = vadd.f32 %v229, %v273
    %v301 = vadd.f32 %v230, %v273
    %v302 = vadd.f32 %v231, %v273
    %v303 = vadd.f32 %v232, %v273
    %v304 = vadd.f32 %v233, %v273
    %v305 = vadd.f32 %v234, %v273
    %v306 = vadd.f32 %v235, %v273
    %v307 = vadd.f32 %v236, %v273
    %v308 = vadd.f32 %v237, %v273
    %v309 = vadd.f32 %v238, %v273
    %v310 = vadd.f32 %v239, %v273
    %v311 = vadd.f32 %v240, %v273
    %v312 = vadd.f32 %v241, %v273
    %v313 = vadd.f32 %v242, %v273
    %v314 = vadd.f32 %v243, %v273
    %v315 = vadd.f32 %v244, %v273
    %v316 = vadd.f32 %v245, %v273
    %v317 = vadd.f32 %v246, %v273
    %v318 = vadd.f32 %v247, %v273
    %v319 = vadd.f32 %v248, %v273
    %v320 = vadd.f32 %v249, %v273
    %v321 = vadd.f32 %v250, %v273
    %v322 = vadd.f32 %v251, %v273
    %v323 = vadd.f32 %v252, %v273
    %v324 = vadd.f32 %v253, %v273
    %v325 = vadd.f32 %v254, %v273
    %v326 = vadd.f32 %v255, %v273
    %v327 = vadd.f32 %v256, %v273
    %v328 = vadd.f32 %v257, %v273
    %v329 = vadd.f32 %v258, %v273
    %v330 = vadd.f32 %v259, %v273
    %v331 = vadd.f32 %v260, %v273
    %v332 = vadd.f32 %v261, %v273
    %v333 = vadd.f32 %v262, %v273
    %v334 = vadd.f32 %v263, %v273
    %v335 = vadd.f32 %v264, %v273
    %v336 = vadd.f32 %v265, %v273
    %v337 = vadd.f32 %v266, %v273
    %v338 = vadd.f32 %v267, %v273
    %v339 = vld [vmem:[#allocation8] sm:$0xff]
    %v340 = vld [vmem:[#allocation8 + $0x8] sm:$0xff]
    %v341 = vld [vmem:[#allocation8 + $0x10] sm:$0xff]
    %v342 = vld [vmem:[#allocation8 + $0x18] sm:$0xff]
    %v343 = vld [vmem:[#allocation8 + $0x20] sm:$0xff]
    %v344 = vld [vmem:[#allocation8 + $0x28] sm:$0xff]
    %v345 = vld [vmem:[#allocation8 + $0x30] sm:$0xff]
    %v346 = vld [vmem:[#allocation8 + $0x38] sm:$0xff]
    %v347 = vld [vmem:[#allocation8 + $0x40] sm:$0xff]
    %v348 = vld [vmem:[#allocation8 + $0x48] sm:$0xff]
    %v349 = vld [vmem:[#allocation8 + $0x50] sm:$0xff]
    %v350 = vld [vmem:[#allocation8 + $0x58] sm:$0xff]
    %v351 = vld [vmem:[#allocation8 + $0x60] sm:$0xff]
    %v352 = vld [vmem:[#allocation8 + $0x68] sm:$0xff]
    %v353 = vld [vmem:[#allocation8 + $0x70] sm:$0xff]
    %v354 = vld [vmem:[#allocation8 + $0x78] sm:$0xff]
    %v355 = vld [vmem:[#allocation8 + $0x80] sm:$0xff]
    %v356 = vld [vmem:[#allocation8 + $0x88] sm:$0xff]
    %v357 = vld [vmem:[#allocation8 + $0x90] sm:$0xff]
    %v358 = vld [vmem:[#allocation8 + $0x98] sm:$0xff]
    %v359 = vld [vmem:[#allocation8 + $0xa0] sm:$0xff]
    %v360 = vld [vmem:[#allocation8 + $0xa8] sm:$0xff]
    %v361 = vld [vmem:[#allocation8 + $0xb0] sm:$0xff]
    %v362 = vld [vmem:[#allocation8 + $0xb8] sm:$0xff]
    %v363 = vld [vmem:[#allocation8 + $0xc0] sm:$0xff]
    %v364 = vld [vmem:[#allocation8 + $0xc8] sm:$0xff]
    %v365 = vld [vmem:[#allocation8 + $0xd0] sm:$0xff]
    %v366 = vld [vmem:[#allocation8 + $0xd8] sm:$0xff]
    %v367 = vld [vmem:[#allocation8 + $0xe0] sm:$0xff]
    %v368 = vld [vmem:[#allocation8 + $0xe8] sm:$0xff]
    %v369 = vld [vmem:[#allocation8 + $0xf0] sm:$0xff]
    %v370 = vld [vmem:[#allocation8 + $0xf8] sm:$0xff]
    %v371 = vld [vmem:[#allocation8 + $0x100] sm:$0xff]
    %v372 = vld [vmem:[#allocation8 + $0x108] sm:$0xff]
    %v373 = vld [vmem:[#allocation8 + $0x110] sm:$0xff]
    %v374 = vld [vmem:[#allocation8 + $0x118] sm:$0xff]
    %v375 = vld [vmem:[#allocation8 + $0x120] sm:$0xff]
    %v376 = vld [vmem:[#allocation8 + $0x128] sm:$0xff]
    %v377 = vld [vmem:[#allocation8 + $0x130] sm:$0xff]
    %v378 = vld [vmem:[#allocation8 + $0x138] sm:$0xff]
    %v379 = vld [vmem:[#allocation8 + $0x140] sm:$0xff]
    %v380 = vld [vmem:[#allocation8 + $0x148] sm:$0xff]
    %v381 = vld [vmem:[#allocation8 + $0x150] sm:$0xff]
    %v382 = vld [vmem:[#allocation8 + $0x158] sm:$0xff]
    %v383 = vld [vmem:[#allocation8 + $0x160] sm:$0xff]
    %v384 = vld [vmem:[#allocation8 + $0x168] sm:$0xff]
    %v385 = vld [vmem:[#allocation8 + $0x170] sm:$0xff]
    %v386 = vld [vmem:[#allocation8 + $0x178] sm:$0xff]
    %v387 = vld [vmem:[#allocation8 + $0x180] sm:$0xff]
    %v388 = vld [vmem:[#allocation8 + $0x188] sm:$0xff]
    %v389 = vld [vmem:[#allocation8 + $0x190] sm:$0xff]
    %v390 = vld [vmem:[#allocation8 + $0x198] sm:$0xff]
    %v391 = vld [vmem:[#allocation8 + $0x1a0] sm:$0xff]
    %v392 = vld [vmem:[#allocation8 + $0x1a8] sm:$0xff]
    %v393 = vld [vmem:[#allocation8 + $0x1b0] sm:$0xff]
    %v394 = vld [vmem:[#allocation8 + $0x1b8] sm:$0xff]
    %v395 = vld [vmem:[#allocation8 + $0x1c0] sm:$0xff]
    %v396 = vld [vmem:[#allocation8 + $0x1c8] sm:$0xff]
    %v397 = vld [vmem:[#allocation8 + $0x1d0] sm:$0xff]
    %v398 = vld [vmem:[#allocation8 + $0x1d8] sm:$0xff]
    %v399 = vld [vmem:[#allocation8 + $0x1e0] sm:$0xff]
    %v400 = vld [vmem:[#allocation8 + $0x1e8] sm:$0xff]
    %v401 = vld [vmem:[#allocation8 + $0x1f0] sm:$0xff]
    %v402 = vld [vmem:[#allocation8 + $0x1f8] sm:$0xff]
    %v403 = vadd.f32 %v275, %v339
    %v404 = vadd.f32 %v276, %v340
    %v405 = vadd.f32 %v277, %v341
    %v406 = vadd.f32 %v278, %v342
    %v407 = vadd.f32 %v279, %v343
    %v408 = vadd.f32 %v280, %v344
    %v409 = vadd.f32 %v281, %v345
    %v410 = vadd.f32 %v282, %v346
    %v411 = vadd.f32 %v283, %v347
    %v412 = vadd.f32 %v284, %v348
    %v413 = vadd.f32 %v285, %v349
    %v414 = vadd.f32 %v286, %v350
    %v415 = vadd.f32 %v287, %v351
    %v416 = vadd.f32 %v288, %v352
    %v417 = vadd.f32 %v289, %v353
    %v418 = vadd.f32 %v290, %v354
    %v419 = vadd.f32 %v291, %v355
    %v420 = vadd.f32 %v292, %v356
    %v421 = vadd.f32 %v293, %v357
    %v422 = vadd.f32 %v294, %v358
    %v423 = vadd.f32 %v295, %v359
    %v424 = vadd.f32 %v296, %v360
    %v425 = vadd.f32 %v297, %v361
    %v426 = vadd.f32 %v298, %v362
    %v427 = vadd.f32 %v299, %v363
    %v428 = vadd.f32 %v300, %v364
    %v429 = vadd.f32 %v301, %v365
    %v430 = vadd.f32 %v302, %v366
    %v431 = vadd.f32 %v303, %v367
    %v432 = vadd.f32 %v304, %v368
    %v433 = vadd.f32 %v305, %v369
    %v434 = vadd.f32 %v306, %v370
    %v435 = vadd.f32 %v307, %v371
    %v436 = vadd.f32 %v308, %v372
    %v437 = vadd.f32 %v309, %v373
    %v438 = vadd.f32 %v310, %v374
    %v439 = vadd.f32 %v311, %v375
    %v440 = vadd.f32 %v312, %v376
    %v441 = vadd.f32 %v313, %v377
    %v442 = vadd.f32 %v314, %v378
    %v443 = vadd.f32 %v315, %v379
    %v444 = vadd.f32 %v316, %v380
    %v445 = vadd.f32 %v317, %v381
    %v446 = vadd.f32 %v318, %v382
    %v447 = vadd.f32 %v319, %v383
    %v448 = vadd.f32 %v320, %v384
    %v449 = vadd.f32 %v321, %v385
    %v450 = vadd.f32 %v322, %v386
    %v451 = vadd.f32 %v323, %v387
    %v452 = vadd.f32 %v324, %v388
    %v453 = vadd.f32 %v325, %v389
    %v454 = vadd.f32 %v326, %v390
    %v455 = vadd.f32 %v327, %v391
    %v456 = vadd.f32 %v328, %v392
    %v457 = vadd.f32 %v329, %v393
    %v458 = vadd.f32 %v330, %v394
    %v459 = vadd.f32 %v331, %v395
    %v460 = vadd.f32 %v332, %v396
    %v461 = vadd.f32 %v333, %v397
    %v462 = vadd.f32 %v334, %v398
    %v463 = vadd.f32 %v335, %v399
    %v464 = vadd.f32 %v336, %v400
    %v465 = vadd.f32 %v337, %v401
    %v466 = vadd.f32 %v338, %v402
    %v467 = vmax.f32 %v403, 0.0
    %v468 = vmax.f32 %v404, 0.0
    %v469 = vmax.f32 %v405, 0.0
    %v470 = vmax.f32 %v406, 0.0
    %v471 = vmax.f32 %v407, 0.0
    %v472 = vmax.f32 %v408, 0.0
    %v473 = vmax.f32 %v409, 0.0
    %v474 = vmax.f32 %v410, 0.0
    %v475 = vmax.f32 %v411, 0.0
    %v476 = vmax.f32 %v412, 0.0
    %v477 = vmax.f32 %v413, 0.0
    %v478 = vmax.f32 %v414, 0.0
    %v479 = vmax.f32 %v415, 0.0
    %v480 = vmax.f32 %v416, 0.0
    %v481 = vmax.f32 %v417, 0.0
    %v482 = vmax.f32 %v418, 0.0
    %v483 = vmax.f32 %v419, 0.0
    %v484 = vmax.f32 %v420, 0.0
    %v485 = vmax.f32 %v421, 0.0
    %v486 = vmax.f32 %v422, 0.0
    %v487 = vmax.f32 %v423, 0.0
    %v488 = vmax.f32 %v424, 0.0
    %v489 = vmax.f32 %v425, 0.0
    %v490 = vmax.f32 %v426, 0.0
    %v491 = vmax.f32 %v427, 0.0
    %v492 = vmax.f32 %v428, 0.0
    %v493 = vmax.f32 %v429, 0.0
    %v494 = vmax.f32 %v430, 0.0
    %v495 = vmax.f32 %v431, 0.0
    %v496 = vmax.f32 %v432, 0.0
    %v497 = vmax.f32 %v433, 0.0
    %v498 = vmax.f32 %v434, 0.0
    %v499 = vmax.f32 %v435, 0.0
    %v500 = vmax.f32 %v436, 0.0
    %v501 = vmax.f32 %v437, 0.0
    %v502 = vmax.f32 %v438, 0.0
    %v503 = vmax.f32 %v439, 0.0
    %v504 = vmax.f32 %v440, 0.0
    %v505 = vmax.f32 %v441, 0.0
    %v506 = vmax.f32 %v442, 0.0
    %v507 = vmax.f32 %v443, 0.0
    %v508 = vmax.f32 %v444, 0.0
    %v509 = vmax.f32 %v445, 0.0
    %v510 = vmax.f32 %v446, 0.0
    %v511 = vmax.f32 %v447, 0.0
    %v512 = vmax.f32 %v448, 0.0
    %v513 = vmax.f32 %v449, 0.0
    %v514 = vmax.f32 %v450, 0.0
    %v515 = vmax.f32 %v451, 0.0
    %v516 = vmax.f32 %v452, 0.0
    %v517 = vmax.f32 %v453, 0.0
    %v518 = vmax.f32 %v454, 0.0
    %v519 = vmax.f32 %v455, 0.0
    %v520 = vmax.f32 %v456, 0.0
    %v521 = vmax.f32 %v457, 0.0
    %v522 = vmax.f32 %v458, 0.0
    %v523 = vmax.f32 %v459, 0.0
    %v524 = vmax.f32 %v460, 0.0
    %v525 = vmax.f32 %v461, 0.0
    %v526 = vmax.f32 %v462, 0.0
    %v527 = vmax.f32 %v463, 0.0
    %v528 = vmax.f32 %v464, 0.0
    %v529 = vmax.f32 %v465, 0.0
    %v530 = vmax.f32 %v466, 0.0
    %vm531 = vcmask 130048
    %532 = vst.msk [vmem:[#allocation10] sm:$0xff] %vm531, %v467
    %533 = vst.msk [vmem:[#allocation10 + $0x8] sm:$0xff] %vm531, %v468
    %534 = vst.msk [vmem:[#allocation10 + $0x10] sm:$0xff] %vm531, %v469
    %535 = vst.msk [vmem:[#allocation10 + $0x18] sm:$0xff] %vm531, %v470
    %536 = vst.msk [vmem:[#allocation10 + $0x20] sm:$0xff] %vm531, %v471
    %537 = vst.msk [vmem:[#allocation10 + $0x28] sm:$0xff] %vm531, %v472
    %538 = vst.msk [vmem:[#allocation10 + $0x30] sm:$0xff] %vm531, %v473
    %539 = vst.msk [vmem:[#allocation10 + $0x38] sm:$0xff] %vm531, %v474
    %540 = vst.msk [vmem:[#allocation10 + $0x40] sm:$0xff] %vm531, %v475
    %541 = vst.msk [vmem:[#allocation10 + $0x48] sm:$0xff] %vm531, %v476
    %542 = vst.msk [vmem:[#allocation10 + $0x50] sm:$0xff] %vm531, %v477
    %543 = vst.msk [vmem:[#allocation10 + $0x58] sm:$0xff] %vm531, %v478
    %544 = vst.msk [vmem:[#allocation10 + $0x60] sm:$0xff] %vm531, %v479
    %545 = vst.msk [vmem:[#allocation10 + $0x68] sm:$0xff] %vm531, %v480
    %546 = vst.msk [vmem:[#allocation10 + $0x70] sm:$0xff] %vm531, %v481
    %547 = vst.msk [vmem:[#allocation10 + $0x78] sm:$0xff] %vm531, %v482
    %548 = vst.msk [vmem:[#allocation10 + $0x80] sm:$0xff] %vm531, %v483
    %549 = vst.msk [vmem:[#allocation10 + $0x88] sm:$0xff] %vm531, %v484
    %550 = vst.msk [vmem:[#allocation10 + $0x90] sm:$0xff] %vm531, %v485
    %551 = vst.msk [vmem:[#allocation10 + $0x98] sm:$0xff] %vm531, %v486
    %552 = vst.msk [vmem:[#allocation10 + $0xa0] sm:$0xff] %vm531, %v487
    %553 = vst.msk [vmem:[#allocation10 + $0xa8] sm:$0xff] %vm531, %v488
    %554 = vst.msk [vmem:[#allocation10 + $0xb0] sm:$0xff] %vm531, %v489
    %555 = vst.msk [vmem:[#allocation10 + $0xb8] sm:$0xff] %vm531, %v490
    %556 = vst.msk [vmem:[#allocation10 + $0xc0] sm:$0xff] %vm531, %v491
    %557 = vst.msk [vmem:[#allocation10 + $0xc8] sm:$0xff] %vm531, %v492
    %558 = vst.msk [vmem:[#allocation10 + $0xd0] sm:$0xff] %vm531, %v493
    %559 = vst.msk [vmem:[#allocation10 + $0xd8] sm:$0xff] %vm531, %v494
    %560 = vst.msk [vmem:[#allocation10 + $0xe0] sm:$0xff] %vm531, %v495
    %561 = vst.msk [vmem:[#allocation10 + $0xe8] sm:$0xff] %vm531, %v496
    %562 = vst.msk [vmem:[#allocation10 + $0xf0] sm:$0xff] %vm531, %v497
    %563 = vst.msk [vmem:[#allocation10 + $0xf8] sm:$0xff] %vm531, %v498
    %564 = vst.msk [vmem:[#allocation10 + $0x100] sm:$0xff] %vm531, %v499
    %565 = vst.msk [vmem:[#allocation10 + $0x108] sm:$0xff] %vm531, %v500
    %566 = vst.msk [vmem:[#allocation10 + $0x110] sm:$0xff] %vm531, %v501
    %567 = vst.msk [vmem:[#allocation10 + $0x118] sm:$0xff] %vm531, %v502
    %568 = vst.msk [vmem:[#allocation10 + $0x120] sm:$0xff] %vm531, %v503
    %569 = vst.msk [vmem:[#allocation10 + $0x128] sm:$0xff] %vm531, %v504
    %570 = vst.msk [vmem:[#allocation10 + $0x130] sm:$0xff] %vm531, %v505
    %571 = vst.msk [vmem:[#allocation10 + $0x138] sm:$0xff] %vm531, %v506
    %572 = vst.msk [vmem:[#allocation10 + $0x140] sm:$0xff] %vm531, %v507
    %573 = vst.msk [vmem:[#allocation10 + $0x148] sm:$0xff] %vm531, %v508
    %574 = vst.msk [vmem:[#allocation10 + $0x150] sm:$0xff] %vm531, %v509
    %575 = vst.msk [vmem:[#allocation10 + $0x158] sm:$0xff] %vm531, %v510
    %576 = vst.msk [vmem:[#allocation10 + $0x160] sm:$0xff] %vm531, %v511
    %577 = vst.msk [vmem:[#allocation10 + $0x168] sm:$0xff] %vm531, %v512
    %578 = vst.msk [vmem:[#allocation10 + $0x170] sm:$0xff] %vm531, %v513
    %579 = vst.msk [vmem:[#allocation10 + $0x178] sm:$0xff] %vm531, %v514
    %580 = vst.msk [vmem:[#allocation10 + $0x180] sm:$0xff] %vm531, %v515
    %581 = vst.msk [vmem:[#allocation10 + $0x188] sm:$0xff] %vm531, %v516
    %582 = vst.msk [vmem:[#allocation10 + $0x190] sm:$0xff] %vm531, %v517
    %583 = vst.msk [vmem:[#allocation10 + $0x198] sm:$0xff] %vm531, %v518
    %584 = vst.msk [vmem:[#allocation10 + $0x1a0] sm:$0xff] %vm531, %v519
    %585 = vst.msk [vmem:[#allocation10 + $0x1a8] sm:$0xff] %vm531, %v520
    %586 = vst.msk [vmem:[#allocation10 + $0x1b0] sm:$0xff] %vm531, %v521
    %587 = vst.msk [vmem:[#allocation10 + $0x1b8] sm:$0xff] %vm531, %v522
    %588 = vst.msk [vmem:[#allocation10 + $0x1c0] sm:$0xff] %vm531, %v523
    %589 = vst.msk [vmem:[#allocation10 + $0x1c8] sm:$0xff] %vm531, %v524
    %590 = vst.msk [vmem:[#allocation10 + $0x1d0] sm:$0xff] %vm531, %v525
    %591 = vst.msk [vmem:[#allocation10 + $0x1d8] sm:$0xff] %vm531, %v526
    %592 = vst.msk [vmem:[#allocation10 + $0x1e0] sm:$0xff] %vm531, %v527
    %593 = vst.msk [vmem:[#allocation10 + $0x1e8] sm:$0xff] %vm531, %v528
    %594 = vst.msk [vmem:[#allocation10 + $0x1f0] sm:$0xff] %vm531, %v529
    %595 = vst.msk [vmem:[#allocation10 + $0x1f8] sm:$0xff] %vm531, %v530
    // Predicated region
    $region34: #{_lambda_.7} parent=1 // pred_check
      _
    $region35: #{_lambda_.7} parent=1 // pred_check_branch
      %597 = sbr.rel (0) target = $region37
    $region36: #{_lambda_.7} parent=1 // pred_region
      %s599 = ssub.s32 8192, 8192
      %600 = vsyncadd [#allocation4], %s599
      %s601 = sshll.u32 [#allocation10], 4
      %s602 = int_to_ptr.vmem [resolvable:$true] %s601
      %607 = dma.vmem_to_hbm [thread:$0]  %s602, 8192, %s4, [#allocation4], 128, 128, 8
    $region37: #{_lambda_.7} parent=1 // pred_fallthru
      _
    // Predicated region
    $region38: #{_lambda_.7} parent=1 // pred_check
      _
    $region39: #{_lambda_.7} parent=1 // pred_check_branch
      %609 = sbr.rel (0) target = $region41
    $region40: #{_lambda_.7} parent=1 // pred_region
      %610 = dma.done [#allocation4], 8192
    $region41: #{_lambda_.7} parent=1 // pred_fallthru
      _
    %611 = vsyncpa [#allocation3], 1
    %612 = vsyncpa [#allocation6], 1
    %613 = vsyncpa [#allocation9], 1
    %614 = vsyncpa [#allocation4], 1

// kernel: _lambda_.6
$region0: #{_lambda_.6}
  #allocation0 [shape = 'u32[]', space=smem, size = 0x4, offset = 0x4, fixed_abs, tag = 'smem constant byte address 0x4 - core index']
  #allocation1 [shape = 'u32[144,128]{1,0:T(1,128)}', space=vmem, size = 0x12000, scoped, tag = 'internal scratch']
  %s0 = inlined_call_operand.hbm [shape: bf16[512,128], index: 0, kind: input, shape index: {}]
  %s1 = inlined_call_operand.hbm [shape: f32[1,128], index: 1, kind: input, shape index: {}]
  %s2 = inlined_call_operand.hbm [shape: f32[1,128], index: 2, kind: input, shape index: {}]
  %s3 = inlined_call_operand.hbm [shape: bf16[128,16], index: 3, kind: input, shape index: {}]
  %s4 = inlined_call_operand.hbm [shape: bf16[512,16], index: 4, kind: output, shape index: {0}]
  %s5 = inlined_call_operand.hbm [shape: f32[1,2,16], index: 5, kind: output, shape index: {1}]
  %6 = xla_tuple %s4, %s5
  %s7 = sld [smem:[#allocation0]]
  $region50: #{_lambda_.6} parent=0
    _
  %s9 = ssub.s32 1, %s7
  %s10 = scalar_select 0, %s9, %s7
  $region1: #{_lambda_.6} parent=0
    #allocation2 [shape = 'u8[131072]{0}', space=vmem, size = 0x20000, scoped, tag = 'input window, operand 0, single buffered']
    #allocation3 [shape = 's32[1]{0}', space=sflag, size = 0x4, scoped, tag = 'scoped memory for _lambda_.6']
    #allocation4 [shape = 's32[1]{0}', space=sflag, size = 0x4, scoped, tag = 'scoped memory for _lambda_.6']
    #allocation5 [shape = 'u8[512]{0}', space=vmem, size = 0x400, scoped, tag = 'input window, operand 1, single buffered']
    #allocation6 [shape = 's32[1]{0}', space=sflag, size = 0x4, scoped, tag = 'scoped memory for _lambda_.6']
    #allocation7 [shape = 'u8[512]{0}', space=vmem, size = 0x400, scoped, tag = 'input window, operand 2, single buffered']
    #allocation8 [shape = 'u8[32768]{0}', space=vmem, size = 0x8000, scoped, tag = 'input window, operand 3, single buffered']
    #allocation9 [shape = 's32[1]{0}', space=sflag, size = 0x4, scoped, tag = 'scoped memory for _lambda_.6']
    #allocation10 [shape = 'u8[131072]{0}', space=vmem, size = 0x20000, scoped, tag = 'output window, operand 0, single buffered']
    #allocation11 [shape = 'u8[1024]{0}', space=vmem, size = 0x400, scoped, tag = 'output window, operand 1, single buffered']
    #allocation12 [shape = 's32[1]{0}', space=sflag, size = 0x4, scoped, tag = 'scoped memory for _lambda_.6']
    %11 = vsyncpa [#allocation3], 0
    %12 = vsyncpa [#allocation6], 0
    %13 = vsyncpa [#allocation9], 0
    %14 = vsyncpa [#allocation4], 0
    %15 = vsyncpa [#allocation12], 0
    // Predicated region
    $region2: #{_lambda_.6} parent=1 // pred_check
      _
    $region3: #{_lambda_.6} parent=1 // pred_check_branch
      %17 = sbr.rel (0) target = $region5
    $region4: #{_lambda_.6} parent=1 // pred_region
      %s19 = ssub.s32 4096, 4096
      %20 = vsyncadd [#allocation3], %s19
      %s21 = sshll.u32 [#allocation2], 4
      %s22 = int_to_ptr.vmem [resolvable:$true] %s21
      %27 = dma.hbm_to_vmem [thread:$0]  %s0, 4096, %s22, [#allocation3], 64, 64, 4
    $region5: #{_lambda_.6} parent=1 // pred_fallthru
      _
    // Predicated region
    $region6: #{_lambda_.6} parent=1 // pred_check
      _
    $region7: #{_lambda_.6} parent=1 // pred_check_branch
      %29 = sbr.rel (0) target = $region9
    $region8: #{_lambda_.6} parent=1 // pred_region
      %s31 = ssub.s32 16, 16
      %32 = vsyncadd [#allocation6], %s31
      %s34 = sshll.u32 [#allocation5], 4
      %s35 = int_to_ptr.vmem [resolvable:$true] %s34
      %37 = dma.hbm_to_vmem [thread:$0]  %s1, 16, %s35, [#allocation6]
    $region9: #{_lambda_.6} parent=1 // pred_fallthru
      _
    // Predicated region
    $region10: #{_lambda_.6} parent=1 // pred_check
      _
    $region11: #{_lambda_.6} parent=1 // pred_check_branch
      %39 = sbr.rel (0) target = $region13
    $region12: #{_lambda_.6} parent=1 // pred_region
      %s41 = ssub.s32 16, 16
      %42 = vsyncadd [#allocation6], %s41
      %s44 = sshll.u32 [#allocation7], 4
      %s45 = int_to_ptr.vmem [resolvable:$true] %s44
      %47 = dma.hbm_to_vmem [thread:$0]  %s2, 16, %s45, [#allocation6]
    $region13: #{_lambda_.6} parent=1 // pred_fallthru
      _
    // Predicated region
    $region14: #{_lambda_.6} parent=1 // pred_check
      _
    $region15: #{_lambda_.6} parent=1 // pred_check_branch
      %49 = sbr.rel (0) target = $region17
    $region16: #{_lambda_.6} parent=1 // pred_region
      %s51 = ssub.s32 1024, 1024
      %52 = vsyncadd [#allocation9], %s51
      %s53 = sshll.u32 [#allocation8], 4
      %s54 = int_to_ptr.vmem [resolvable:$true] %s53
      %59 = dma.hbm_to_vmem [thread:$0]  %s3, 1024, %s54, [#allocation9], 64, 64, 4
    $region17: #{_lambda_.6} parent=1 // pred_fallthru
      _
    // Predicated region
    $region18: #{_lambda_.6} parent=1 // pred_check
      _
    $region19: #{_lambda_.6} parent=1 // pred_check_branch
      %61 = sbr.rel (0) target = $region21
    $region20: #{_lambda_.6} parent=1 // pred_region
      %62 = dma.done [#allocation3], 4096
    $region21: #{_lambda_.6} parent=1 // pred_fallthru
      _
    // Predicated region
    $region22: #{_lambda_.6} parent=1 // pred_check
      _
    $region23: #{_lambda_.6} parent=1 // pred_check_branch
      %64 = sbr.rel (0) target = $region25
    $region24: #{_lambda_.6} parent=1 // pred_region
      %65 = dma.done [#allocation6], 16
    $region25: #{_lambda_.6} parent=1 // pred_fallthru
      _
    // Predicated region
    $region26: #{_lambda_.6} parent=1 // pred_check
      _
    $region27: #{_lambda_.6} parent=1 // pred_check_branch
      %67 = sbr.rel (0) target = $region29
    $region28: #{_lambda_.6} parent=1 // pred_region
      %68 = dma.done [#allocation6], 16
    $region29: #{_lambda_.6} parent=1 // pred_fallthru
      _
    // Predicated region
    $region30: #{_lambda_.6} parent=1 // pred_check
      _
    $region31: #{_lambda_.6} parent=1 // pred_check_branch
      %70 = sbr.rel (0) target = $region33
    $region32: #{_lambda_.6} parent=1 // pred_region
      %71 = dma.done [#allocation9], 1024
    $region33: #{_lambda_.6} parent=1 // pred_fallthru
      _
    %v73 = vld [vmem:[#allocation2] sm:$0xf]
    %v74 = vld [vmem:[#allocation2 + $0x4] sm:$0xf]
    %v75 = vld [vmem:[#allocation2 + $0x8] sm:$0xf]
    %v76 = vld [vmem:[#allocation2 + $0xc] sm:$0xf]
    %v77 = vld [vmem:[#allocation2 + $0x10] sm:$0xf]
    %v78 = vld [vmem:[#allocation2 + $0x14] sm:$0xf]
    %v79 = vld [vmem:[#allocation2 + $0x18] sm:$0xf]
    %v80 = vld [vmem:[#allocation2 + $0x1c] sm:$0xf]
    %v81 = vld [vmem:[#allocation2 + $0x20] sm:$0xf]
    %v82 = vld [vmem:[#allocation2 + $0x24] sm:$0xf]
    %v83 = vld [vmem:[#allocation2 + $0x28] sm:$0xf]
    %v84 = vld [vmem:[#allocation2 + $0x2c] sm:$0xf]
    %v85 = vld [vmem:[#allocation2 + $0x30] sm:$0xf]
    %v86 = vld [vmem:[#allocation2 + $0x34] sm:$0xf]
    %v87 = vld [vmem:[#allocation2 + $0x38] sm:$0xf]
    %v88 = vld [vmem:[#allocation2 + $0x3c] sm:$0xf]
    %v89 = vld [vmem:[#allocation2 + $0x40] sm:$0xf]
    %v90 = vld [vmem:[#allocation2 + $0x44] sm:$0xf]
    %v91 = vld [vmem:[#allocation2 + $0x48] sm:$0xf]
    %v92 = vld [vmem:[#allocation2 + $0x4c] sm:$0xf]
    %v93 = vld [vmem:[#allocation2 + $0x50] sm:$0xf]
    %v94 = vld [vmem:[#allocation2 + $0x54] sm:$0xf]
    %v95 = vld [vmem:[#allocation2 + $0x58] sm:$0xf]
    %v96 = vld [vmem:[#allocation2 + $0x5c] sm:$0xf]
    %v97 = vld [vmem:[#allocation2 + $0x60] sm:$0xf]
    %v98 = vld [vmem:[#allocation2 + $0x64] sm:$0xf]
    %v99 = vld [vmem:[#allocation2 + $0x68] sm:$0xf]
    %v100 = vld [vmem:[#allocation2 + $0x6c] sm:$0xf]
    %v101 = vld [vmem:[#allocation2 + $0x70] sm:$0xf]
    %v102 = vld [vmem:[#allocation2 + $0x74] sm:$0xf]
    %v103 = vld [vmem:[#allocation2 + $0x78] sm:$0xf]
    %v104 = vld [vmem:[#allocation2 + $0x7c] sm:$0xf]
    %v105 = vld [vmem:[#allocation2 + $0x80] sm:$0xf]
    %v106 = vld [vmem:[#allocation2 + $0x84] sm:$0xf]
    %v107 = vld [vmem:[#allocation2 + $0x88] sm:$0xf]
    %v108 = vld [vmem:[#allocation2 + $0x8c] sm:$0xf]
    %v109 = vld [vmem:[#allocation2 + $0x90] sm:$0xf]
    %v110 = vld [vmem:[#allocation2 + $0x94] sm:$0xf]
    %v111 = vld [vmem:[#allocation2 + $0x98] sm:$0xf]
    %v112 = vld [vmem:[#allocation2 + $0x9c] sm:$0xf]
    %v113 = vld [vmem:[#allocation2 + $0xa0] sm:$0xf]
    %v114 = vld [vmem:[#allocation2 + $0xa4] sm:$0xf]
    %v115 = vld [vmem:[#allocation2 + $0xa8] sm:$0xf]
    %v116 = vld [vmem:[#allocation2 + $0xac] sm:$0xf]
    %v117 = vld [vmem:[#allocation2 + $0xb0] sm:$0xf]
    %v118 = vld [vmem:[#allocation2 + $0xb4] sm:$0xf]
    %v119 = vld [vmem:[#allocation2 + $0xb8] sm:$0xf]
    %v120 = vld [vmem:[#allocation2 + $0xbc] sm:$0xf]
    %v121 = vld [vmem:[#allocation2 + $0xc0] sm:$0xf]
    %v122 = vld [vmem:[#allocation2 + $0xc4] sm:$0xf]
    %v123 = vld [vmem:[#allocation2 + $0xc8] sm:$0xf]
    %v124 = vld [vmem:[#allocation2 + $0xcc] sm:$0xf]
    %v125 = vld [vmem:[#allocation2 + $0xd0] sm:$0xf]
    %v126 = vld [vmem:[#allocation2 + $0xd4] sm:$0xf]
    %v127 = vld [vmem:[#allocation2 + $0xd8] sm:$0xf]
    %v128 = vld [vmem:[#allocation2 + $0xdc] sm:$0xf]
    %v129 = vld [vmem:[#allocation2 + $0xe0] sm:$0xf]
    %v130 = vld [vmem:[#allocation2 + $0xe4] sm:$0xf]
    %v131 = vld [vmem:[#allocation2 + $0xe8] sm:$0xf]
    %v132 = vld [vmem:[#allocation2 + $0xec] sm:$0xf]
    %v133 = vld [vmem:[#allocation2 + $0xf0] sm:$0xf]
    %v134 = vld [vmem:[#allocation2 + $0xf4] sm:$0xf]
    %v135 = vld [vmem:[#allocation2 + $0xf8] sm:$0xf]
    %v136 = vld [vmem:[#allocation2 + $0xfc] sm:$0xf]
    %v137 = vunpack.c.l.bf16 %v73
    %v138 = vunpack.c.l.bf16 %v74
    %v139 = vunpack.c.l.bf16 %v75
    %v140 = vunpack.c.l.bf16 %v76
    %v141 = vunpack.c.l.bf16 %v77
    %v142 = vunpack.c.l.bf16 %v78
    %v143 = vunpack.c.l.bf16 %v79
    %v144 = vunpack.c.l.bf16 %v80
    %v145 = vunpack.c.l.bf16 %v81
    %v146 = vunpack.c.l.bf16 %v82
    %v147 = vunpack.c.l.bf16 %v83
    %v148 = vunpack.c.l.bf16 %v84
    %v149 = vunpack.c.l.bf16 %v85
    %v150 = vunpack.c.l.bf16 %v86
    %v151 = vunpack.c.l.bf16 %v87
    %v152 = vunpack.c.l.bf16 %v88
    %v153 = vunpack.c.l.bf16 %v89
    %v154 = vunpack.c.l.bf16 %v90
    %v155 = vunpack.c.l.bf16 %v91
    %v156 = vunpack.c.l.bf16 %v92
    %v157 = vunpack.c.l.bf16 %v93
    %v158 = vunpack.c.l.bf16 %v94
    %v159 = vunpack.c.l.bf16 %v95
    %v160 = vunpack.c.l.bf16 %v96
    %v161 = vunpack.c.l.bf16 %v97
    %v162 = vunpack.c.l.bf16 %v98
    %v163 = vunpack.c.l.bf16 %v99
    %v164 = vunpack.c.l.bf16 %v100
    %v165 = vunpack.c.l.bf16 %v101
    %v166 = vunpack.c.l.bf16 %v102
    %v167 = vunpack.c.l.bf16 %v103
    %v168 = vunpack.c.l.bf16 %v104
    %v169 = vunpack.c.l.bf16 %v105
    %v170 = vunpack.c.l.bf16 %v106
    %v171 = vunpack.c.l.bf16 %v107
    %v172 = vunpack.c.l.bf16 %v108
    %v173 = vunpack.c.l.bf16 %v109
    %v174 = vunpack.c.l.bf16 %v110
    %v175 = vunpack.c.l.bf16 %v111
    %v176 = vunpack.c.l.bf16 %v112
    %v177 = vunpack.c.l.bf16 %v113
    %v178 = vunpack.c.l.bf16 %v114
    %v179 = vunpack.c.l.bf16 %v115
    %v180 = vunpack.c.l.bf16 %v116
    %v181 = vunpack.c.l.bf16 %v117
    %v182 = vunpack.c.l.bf16 %v118
    %v183 = vunpack.c.l.bf16 %v119
    %v184 = vunpack.c.l.bf16 %v120
    %v185 = vunpack.c.l.bf16 %v121
    %v186 = vunpack.c.l.bf16 %v122
    %v187 = vunpack.c.l.bf16 %v123
    %v188 = vunpack.c.l.bf16 %v124
    %v189 = vunpack.c.l.bf16 %v125
    %v190 = vunpack.c.l.bf16 %v126
    %v191 = vunpack.c.l.bf16 %v127
    %v192 = vunpack.c.l.bf16 %v128
    %v193 = vunpack.c.l.bf16 %v129
    %v194 = vunpack.c.l.bf16 %v130
    %v195 = vunpack.c.l.bf16 %v131
    %v196 = vunpack.c.l.bf16 %v132
    %v197 = vunpack.c.l.bf16 %v133
    %v198 = vunpack.c.l.bf16 %v134
    %v199 = vunpack.c.l.bf16 %v135
    %v200 = vunpack.c.l.bf16 %v136
    %v201 = vld [vmem:[#allocation5] sm:$0x1]
    %v203 = vlaneseq
    %v204 = vshrl.u32 %v203, 7
    %v205 = vsub.s32 0, %v204
    %v206 = vrot.slane %v201, %v205
    %v208 = vmul.f32 %v137, %v206
    %v209 = vmul.f32 %v138, %v206
    %v210 = vmul.f32 %v139, %v206
    %v211 = vmul.f32 %v140, %v206
    %v212 = vmul.f32 %v141, %v206
    %v213 = vmul.f32 %v142, %v206
    %v214 = vmul.f32 %v143, %v206
    %v215 = vmul.f32 %v144, %v206
    %v216 = vmul.f32 %v145, %v206
    %v217 = vmul.f32 %v146, %v206
    %v218 = vmul.f32 %v147, %v206
    %v219 = vmul.f32 %v148, %v206
    %v220 = vmul.f32 %v149, %v206
    %v221 = vmul.f32 %v150, %v206
    %v222 = vmul.f32 %v151, %v206
    %v223 = vmul.f32 %v152, %v206
    %v224 = vmul.f32 %v153, %v206
    %v225 = vmul.f32 %v154, %v206
    %v226 = vmul.f32 %v155, %v206
    %v227 = vmul.f32 %v156, %v206
    %v228 = vmul.f32 %v157, %v206
    %v229 = vmul.f32 %v158, %v206
    %v230 = vmul.f32 %v159, %v206
    %v231 = vmul.f32 %v160, %v206
    %v232 = vmul.f32 %v161, %v206
    %v233 = vmul.f32 %v162, %v206
    %v234 = vmul.f32 %v163, %v206
    %v235 = vmul.f32 %v164, %v206
    %v236 = vmul.f32 %v165, %v206
    %v237 = vmul.f32 %v166, %v206
    %v238 = vmul.f32 %v167, %v206
    %v239 = vmul.f32 %v168, %v206
    %v240 = vmul.f32 %v169, %v206
    %v241 = vmul.f32 %v170, %v206
    %v242 = vmul.f32 %v171, %v206
    %v243 = vmul.f32 %v172, %v206
    %v244 = vmul.f32 %v173, %v206
    %v245 = vmul.f32 %v174, %v206
    %v246 = vmul.f32 %v175, %v206
    %v247 = vmul.f32 %v176, %v206
    %v248 = vmul.f32 %v177, %v206
    %v249 = vmul.f32 %v178, %v206
    %v250 = vmul.f32 %v179, %v206
    %v251 = vmul.f32 %v180, %v206
    %v252 = vmul.f32 %v181, %v206
    %v253 = vmul.f32 %v182, %v206
    %v254 = vmul.f32 %v183, %v206
    %v255 = vmul.f32 %v184, %v206
    %v256 = vmul.f32 %v185, %v206
    %v257 = vmul.f32 %v186, %v206
    %v258 = vmul.f32 %v187, %v206
    %v259 = vmul.f32 %v188, %v206
    %v260 = vmul.f32 %v189, %v206
    %v261 = vmul.f32 %v190, %v206
    %v262 = vmul.f32 %v191, %v206
    %v263 = vmul.f32 %v192, %v206
    %v264 = vmul.f32 %v193, %v206
    %v265 = vmul.f32 %v194, %v206
    %v266 = vmul.f32 %v195, %v206
    %v267 = vmul.f32 %v196, %v206
    %v268 = vmul.f32 %v197, %v206
    %v269 = vmul.f32 %v198, %v206
    %v270 = vmul.f32 %v199, %v206
    %v271 = vmul.f32 %v200, %v206
    %v272 = vld [vmem:[#allocation7] sm:$0x1]
    %v274 = vlaneseq
    %v275 = vshrl.u32 %v274, 7
    %v276 = vsub.s32 0, %v275
    %v277 = vrot.slane %v272, %v276
    %v279 = vadd.f32 %v208, %v277
    %v280 = vadd.f32 %v209, %v277
    %v281 = vadd.f32 %v210, %v277
    %v282 = vadd.f32 %v211, %v277
    %v283 = vadd.f32 %v212, %v277
    %v284 = vadd.f32 %v213, %v277
    %v285 = vadd.f32 %v214, %v277
    %v286 = vadd.f32 %v215, %v277
    %v287 = vadd.f32 %v216, %v277
    %v288 = vadd.f32 %v217, %v277
    %v289 = vadd.f32 %v218, %v277
    %v290 = vadd.f32 %v219, %v277
    %v291 = vadd.f32 %v220, %v277
    %v292 = vadd.f32 %v221, %v277
    %v293 = vadd.f32 %v222, %v277
    %v294 = vadd.f32 %v223, %v277
    %v295 = vadd.f32 %v224, %v277
    %v296 = vadd.f32 %v225, %v277
    %v297 = vadd.f32 %v226, %v277
    %v298 = vadd.f32 %v227, %v277
    %v299 = vadd.f32 %v228, %v277
    %v300 = vadd.f32 %v229, %v277
    %v301 = vadd.f32 %v230, %v277
    %v302 = vadd.f32 %v231, %v277
    %v303 = vadd.f32 %v232, %v277
    %v304 = vadd.f32 %v233, %v277
    %v305 = vadd.f32 %v234, %v277
    %v306 = vadd.f32 %v235, %v277
    %v307 = vadd.f32 %v236, %v277
    %v308 = vadd.f32 %v237, %v277
    %v309 = vadd.f32 %v238, %v277
    %v310 = vadd.f32 %v239, %v277
    %v311 = vadd.f32 %v240, %v277
    %v312 = vadd.f32 %v241, %v277
    %v313 = vadd.f32 %v242, %v277
    %v314 = vadd.f32 %v243, %v277
    %v315 = vadd.f32 %v244, %v277
    %v316 = vadd.f32 %v245, %v277
    %v317 = vadd.f32 %v246, %v277
    %v318 = vadd.f32 %v247, %v277
    %v319 = vadd.f32 %v248, %v277
    %v320 = vadd.f32 %v249, %v277
    %v321 = vadd.f32 %v250, %v277
    %v322 = vadd.f32 %v251, %v277
    %v323 = vadd.f32 %v252, %v277
    %v324 = vadd.f32 %v253, %v277
    %v325 = vadd.f32 %v254, %v277
    %v326 = vadd.f32 %v255, %v277
    %v327 = vadd.f32 %v256, %v277
    %v328 = vadd.f32 %v257, %v277
    %v329 = vadd.f32 %v258, %v277
    %v330 = vadd.f32 %v259, %v277
    %v331 = vadd.f32 %v260, %v277
    %v332 = vadd.f32 %v261, %v277
    %v333 = vadd.f32 %v262, %v277
    %v334 = vadd.f32 %v263, %v277
    %v335 = vadd.f32 %v264, %v277
    %v336 = vadd.f32 %v265, %v277
    %v337 = vadd.f32 %v266, %v277
    %v338 = vadd.f32 %v267, %v277
    %v339 = vadd.f32 %v268, %v277
    %v340 = vadd.f32 %v269, %v277
    %v341 = vadd.f32 %v270, %v277
    %v342 = vadd.f32 %v271, %v277
    %v343 = vmax.f32 %v279, 0.0
    %v344 = vmax.f32 %v280, 0.0
    %v345 = vmax.f32 %v281, 0.0
    %v346 = vmax.f32 %v282, 0.0
    %v347 = vmax.f32 %v283, 0.0
    %v348 = vmax.f32 %v284, 0.0
    %v349 = vmax.f32 %v285, 0.0
    %v350 = vmax.f32 %v286, 0.0
    %v351 = vmax.f32 %v287, 0.0
    %v352 = vmax.f32 %v288, 0.0
    %v353 = vmax.f32 %v289, 0.0
    %v354 = vmax.f32 %v290, 0.0
    %v355 = vmax.f32 %v291, 0.0
    %v356 = vmax.f32 %v292, 0.0
    %v357 = vmax.f32 %v293, 0.0
    %v358 = vmax.f32 %v294, 0.0
    %v359 = vmax.f32 %v295, 0.0
    %v360 = vmax.f32 %v296, 0.0
    %v361 = vmax.f32 %v297, 0.0
    %v362 = vmax.f32 %v298, 0.0
    %v363 = vmax.f32 %v299, 0.0
    %v364 = vmax.f32 %v300, 0.0
    %v365 = vmax.f32 %v301, 0.0
    %v366 = vmax.f32 %v302, 0.0
    %v367 = vmax.f32 %v303, 0.0
    %v368 = vmax.f32 %v304, 0.0
    %v369 = vmax.f32 %v305, 0.0
    %v370 = vmax.f32 %v306, 0.0
    %v371 = vmax.f32 %v307, 0.0
    %v372 = vmax.f32 %v308, 0.0
    %v373 = vmax.f32 %v309, 0.0
    %v374 = vmax.f32 %v310, 0.0
    %v375 = vmax.f32 %v311, 0.0
    %v376 = vmax.f32 %v312, 0.0
    %v377 = vmax.f32 %v313, 0.0
    %v378 = vmax.f32 %v314, 0.0
    %v379 = vmax.f32 %v315, 0.0
    %v380 = vmax.f32 %v316, 0.0
    %v381 = vmax.f32 %v317, 0.0
    %v382 = vmax.f32 %v318, 0.0
    %v383 = vmax.f32 %v319, 0.0
    %v384 = vmax.f32 %v320, 0.0
    %v385 = vmax.f32 %v321, 0.0
    %v386 = vmax.f32 %v322, 0.0
    %v387 = vmax.f32 %v323, 0.0
    %v388 = vmax.f32 %v324, 0.0
    %v389 = vmax.f32 %v325, 0.0
    %v390 = vmax.f32 %v326, 0.0
    %v391 = vmax.f32 %v327, 0.0
    %v392 = vmax.f32 %v328, 0.0
    %v393 = vmax.f32 %v329, 0.0
    %v394 = vmax.f32 %v330, 0.0
    %v395 = vmax.f32 %v331, 0.0
    %v396 = vmax.f32 %v332, 0.0
    %v397 = vmax.f32 %v333, 0.0
    %v398 = vmax.f32 %v334, 0.0
    %v399 = vmax.f32 %v335, 0.0
    %v400 = vmax.f32 %v336, 0.0
    %v401 = vmax.f32 %v337, 0.0
    %v402 = vmax.f32 %v338, 0.0
    %v403 = vmax.f32 %v339, 0.0
    %v404 = vmax.f32 %v340, 0.0
    %v405 = vmax.f32 %v341, 0.0
    %v406 = vmax.f32 %v342, 0.0
    %v407 = vpack.c.bf16 %v344, %v343
    %v408 = vpack.c.bf16 %v346, %v345
    %v409 = vpack.c.bf16 %v348, %v347
    %v410 = vpack.c.bf16 %v350, %v349
    %v411 = vpack.c.bf16 %v352, %v351
    %v412 = vpack.c.bf16 %v354, %v353
    %v413 = vpack.c.bf16 %v356, %v355
    %v414 = vpack.c.bf16 %v358, %v357
    %v415 = vpack.c.bf16 %v360, %v359
    %v416 = vpack.c.bf16 %v362, %v361
    %v417 = vpack.c.bf16 %v364, %v363
    %v418 = vpack.c.bf16 %v366, %v365
    %v419 = vpack.c.bf16 %v368, %v367
    %v420 = vpack.c.bf16 %v370, %v369
    %v421 = vpack.c.bf16 %v372, %v371
    %v422 = vpack.c.bf16 %v374, %v373
    %v423 = vpack.c.bf16 %v376, %v375
    %v424 = vpack.c.bf16 %v378, %v377
    %v425 = vpack.c.bf16 %v380, %v379
    %v426 = vpack.c.bf16 %v382, %v381
    %v427 = vpack.c.bf16 %v384, %v383
    %v428 = vpack.c.bf16 %v386, %v385
    %v429 = vpack.c.bf16 %v388, %v387
    %v430 = vpack.c.bf16 %v390, %v389
    %v431 = vpack.c.bf16 %v392, %v391
    %v432 = vpack.c.bf16 %v394, %v393
    %v433 = vpack.c.bf16 %v396, %v395
    %v434 = vpack.c.bf16 %v398, %v397
    %v435 = vpack.c.bf16 %v400, %v399
    %v436 = vpack.c.bf16 %v402, %v401
    %v437 = vpack.c.bf16 %v404, %v403
    %v438 = vpack.c.bf16 %v406, %v405
    %v439 = vld [vmem:[#allocation8] sm:$0xf]
    %v440 = vld [vmem:[#allocation8 + $0x4] sm:$0xf]
    %v441 = vld [vmem:[#allocation8 + $0x8] sm:$0xf]
    %v442 = vld [vmem:[#allocation8 + $0xc] sm:$0xf]
    %v443 = vld [vmem:[#allocation8 + $0x10] sm:$0xf]
    %v444 = vld [vmem:[#allocation8 + $0x14] sm:$0xf]
    %v445 = vld [vmem:[#allocation8 + $0x18] sm:$0xf]
    %v446 = vld [vmem:[#allocation8 + $0x1c] sm:$0xf]
    %v447 = vld [vmem:[#allocation8 + $0x20] sm:$0xf]
    %v448 = vld [vmem:[#allocation8 + $0x24] sm:$0xf]
    %v449 = vld [vmem:[#allocation8 + $0x28] sm:$0xf]
    %v450 = vld [vmem:[#allocation8 + $0x2c] sm:$0xf]
    %v451 = vld [vmem:[#allocation8 + $0x30] sm:$0xf]
    %v452 = vld [vmem:[#allocation8 + $0x34] sm:$0xf]
    %v453 = vld [vmem:[#allocation8 + $0x38] sm:$0xf]
    %v454 = vld [vmem:[#allocation8 + $0x3c] sm:$0xf]
    %v471 = vunpack.c.l.b16 %v439
    %v472 = vunpack.c.l.b16 %v440
    %v473 = vunpack.c.l.b16 %v441
    %v474 = vunpack.c.l.b16 %v442
    %v475 = vunpack.c.l.b16 %v443
    %v476 = vunpack.c.l.b16 %v444
    %v477 = vunpack.c.l.b16 %v445
    %v478 = vunpack.c.l.b16 %v446
    %v479 = vunpack.c.l.b16 %v447
    %v480 = vunpack.c.l.b16 %v448
    %v481 = vunpack.c.l.b16 %v449
    %v482 = vunpack.c.l.b16 %v450
    %v483 = vunpack.c.l.b16 %v451
    %v484 = vunpack.c.l.b16 %v452
    %v485 = vunpack.c.l.b16 %v453
    %v486 = vunpack.c.l.b16 %v454
    %v487 = vpack.c.b16 %v472, %v471
    %v488 = vpack.c.b16 %v474, %v473
    %v489 = vpack.c.b16 %v476, %v475
    %v490 = vpack.c.b16 %v478, %v477
    %v491 = vpack.c.b16 %v480, %v479
    %v492 = vpack.c.b16 %v482, %v481
    %v493 = vpack.c.b16 %v484, %v483
    %v494 = vpack.c.b16 %v486, %v485
    %503 = vmatprep.subr.bf16.mxu0 0
    %504 = vmatpush1.bf16.msra.mxu0 %v487
    %505 = vmatprep.subr.bf16.mxu0 0
    %506 = vmatpush1.bf16.msra.mxu0 %v488
    %507 = vmatprep.subr.bf16.mxu0 0
    %508 = vmatpush1.bf16.msra.mxu0 %v489
    %509 = vmatprep.subr.bf16.mxu0 0
    %510 = vmatpush1.bf16.msra.mxu0 %v490
    %511 = vmatprep.subr.bf16.mxu0 0
    %512 = vmatpush1.bf16.msra.mxu0 %v491
    %513 = vmatprep.subr.bf16.mxu0 0
    %514 = vmatpush1.bf16.msra.mxu0 %v492
    %515 = vmatprep.subr.bf16.mxu0 0
    %516 = vmatpush1.bf16.msra.mxu0 %v493
    %517 = vmatprep.subr.bf16.mxu0 0
    %518 = vmatpush1.bf16.msra.mxu0 %v494
    %519 = vmatprep.subr.bf16.mxu0 0
    %520 = vmatpush1.bf16.msra.mxu0 0
    %521 = vmatprep.subr.bf16.mxu0 0
    %522 = vmatpush1.bf16.msra.mxu0 0
    %523 = vmatprep.subr.bf16.mxu0 0
    %524 = vmatpush1.bf16.msra.mxu0 0
    %525 = vmatprep.subr.bf16.mxu0 0
    %526 = vmatpush1.bf16.msra.mxu0 0
    %527 = vmatprep.subr.bf16.mxu0 0
    %528 = vmatpush1.bf16.msra.mxu0 0
    %529 = vmatprep.subr.bf16.mxu0 0
    %530 = vmatpush1.bf16.msra.mxu0 0
    %531 = vmatprep.subr.bf16.mxu0 0
    %532 = vmatpush1.bf16.msra.mxu0 0
    %533 = vmatprep.subr.bf16.mxu0 0
    %534 = vmatpush1.bf16.msra.mxu0 0
    %535 = vmatprep.mubr.bf16.mxu0 0
    %536 = vmatmul.mubr.bf16.gmra.mrb[0].mxu0 %v407
    %v537 = vpop.f32.mrb[0].mxu0
    %v538 = vadd.f32 0.0, %v537
    %v539 = vpop.f32.mrb[0].mxu0
    %v540 = vpop.f32.mrb[0].mxu0
    %v541 = vadd.f32 0.0, %v540
    %v542 = vpop.f32.mrb[0].mxu0
    %543 = vmatprep.mubr.bf16.mxu0 0
    %544 = vmatmul.mubr.bf16.gmra.mrb[0].mxu0 %v408
    %v545 = vpop.f32.mrb[0].mxu0
    %v546 = vadd.f32 0.0, %v545
    %v547 = vpop.f32.mrb[0].mxu0
    %v548 = vpop.f32.mrb[0].mxu0
    %v549 = vadd.f32 0.0, %v548
    %v550 = vpop.f32.mrb[0].mxu0
    %551 = vmatprep.mubr.bf16.mxu0 0
    %552 = vmatmul.mubr.bf16.gmra.mrb[0].mxu0 %v409
    %v553 = vpop.f32.mrb[0].mxu0
    %v554 = vadd.f32 0.0, %v553
    %v555 = vpop.f32.mrb[0].mxu0
    %v556 = vpop.f32.mrb[0].mxu0
    %v557 = vadd.f32 0.0, %v556
    %v558 = vpop.f32.mrb[0].mxu0
    %559 = vmatprep.mubr.bf16.mxu0 0
    %560 = vmatmul.mubr.bf16.gmra.mrb[0].mxu0 %v410
    %v561 = vpop.f32.mrb[0].mxu0
    %v562 = vadd.f32 0.0, %v561
    %v563 = vpop.f32.mrb[0].mxu0
    %v564 = vpop.f32.mrb[0].mxu0
    %v565 = vadd.f32 0.0, %v564
    %v566 = vpop.f32.mrb[0].mxu0
    %567 = vmatprep.mubr.bf16.mxu0 0
    %568 = vmatmul.mubr.bf16.gmra.mrb[0].mxu0 %v411
    %v569 = vpop.f32.mrb[0].mxu0
    %v570 = vadd.f32 0.0, %v569
    %v571 = vpop.f32.mrb[0].mxu0
    %v572 = vpop.f32.mrb[0].mxu0
    %v573 = vadd.f32 0.0, %v572
    %v574 = vpop.f32.mrb[0].mxu0
    %575 = vmatprep.mubr.bf16.mxu0 0
    %576 = vmatmul.mubr.bf16.gmra.mrb[0].mxu0 %v412
    %v577 = vpop.f32.mrb[0].mxu0
    %v578 = vadd.f32 0.0, %v577
    %v579 = vpop.f32.mrb[0].mxu0
    %v580 = vpop.f32.mrb[0].mxu0
    %v581 = vadd.f32 0.0, %v580
    %v582 = vpop.f32.mrb[0].mxu0
    %583 = vmatprep.mubr.bf16.mxu0 0
    %584 = vmatmul.mubr.bf16.gmra.mrb[0].mxu0 %v413
    %v585 = vpop.f32.mrb[0].mxu0
    %v586 = vadd.f32 0.0, %v585
    %v587 = vpop.f32.mrb[0].mxu0
    %v588 = vpop.f32.mrb[0].mxu0
    %v589 = vadd.f32 0.0, %v588
    %v590 = vpop.f32.mrb[0].mxu0
    %591 = vmatprep.mubr.bf16.mxu0 0
    %592 = vmatmul.mubr.bf16.gmra.mrb[0].mxu0 %v414
    %v593 = vpop.f32.mrb[0].mxu0
    %v594 = vadd.f32 0.0, %v593
    %v595 = vpop.f32.mrb[0].mxu0
    %v596 = vpop.f32.mrb[0].mxu0
    %v597 = vadd.f32 0.0, %v596
    %v598 = vpop.f32.mrb[0].mxu0
    %599 = vmatprep.mubr.bf16.mxu0 0
    %600 = vmatmul.mubr.bf16.gmra.mrb[0].mxu0 %v415
    %v601 = vpop.f32.mrb[0].mxu0
    %v602 = vadd.f32 0.0, %v601
    %v603 = vpop.f32.mrb[0].mxu0
    %v604 = vpop.f32.mrb[0].mxu0
    %v605 = vadd.f32 0.0, %v604
    %v606 = vpop.f32.mrb[0].mxu0
    %607 = vmatprep.mubr.bf16.mxu0 0
    %608 = vmatmul.mubr.bf16.gmra.mrb[0].mxu0 %v416
    %v609 = vpop.f32.mrb[0].mxu0
    %v610 = vadd.f32 0.0, %v609
    %v611 = vpop.f32.mrb[0].mxu0
    %v612 = vpop.f32.mrb[0].mxu0
    %v613 = vadd.f32 0.0, %v612
    %v614 = vpop.f32.mrb[0].mxu0
    %615 = vmatprep.mubr.bf16.mxu0 0
    %616 = vmatmul.mubr.bf16.gmra.mrb[0].mxu0 %v417
    %v617 = vpop.f32.mrb[0].mxu0
    %v618 = vadd.f32 0.0, %v617
    %v619 = vpop.f32.mrb[0].mxu0
    %v620 = vpop.f32.mrb[0].mxu0
    %v621 = vadd.f32 0.0, %v620
    %v622 = vpop.f32.mrb[0].mxu0
    %623 = vmatprep.mubr.bf16.mxu0 0
    %624 = vmatmul.mubr.bf16.gmra.mrb[0].mxu0 %v418
    %v625 = vpop.f32.mrb[0].mxu0
    %v626 = vadd.f32 0.0, %v625
    %v627 = vpop.f32.mrb[0].mxu0
    %v628 = vpop.f32.mrb[0].mxu0
    %v629 = vadd.f32 0.0, %v628
    %v630 = vpop.f32.mrb[0].mxu0
    %631 = vmatprep.mubr.bf16.mxu0 0
    %632 = vmatmul.mubr.bf16.gmra.mrb[0].mxu0 %v419
    %v633 = vpop.f32.mrb[0].mxu0
    %v634 = vadd.f32 0.0, %v633
    %v635 = vpop.f32.mrb[0].mxu0
    %v636 = vpop.f32.mrb[0].mxu0
    %v637 = vadd.f32 0.0, %v636
    %v638 = vpop.f32.mrb[0].mxu0
    %639 = vmatprep.mubr.bf16.mxu0 0
    %640 = vmatmul.mubr.bf16.gmra.mrb[0].mxu0 %v420
    %v641 = vpop.f32.mrb[0].mxu0
    %v642 = vadd.f32 0.0, %v641
    %v643 = vpop.f32.mrb[0].mxu0
    %v644 = vpop.f32.mrb[0].mxu0
    %v645 = vadd.f32 0.0, %v644
    %v646 = vpop.f32.mrb[0].mxu0
    %647 = vmatprep.mubr.bf16.mxu0 0
    %648 = vmatmul.mubr.bf16.gmra.mrb[0].mxu0 %v421
    %v649 = vpop.f32.mrb[0].mxu0
    %v650 = vadd.f32 0.0, %v649
    %v651 = vpop.f32.mrb[0].mxu0
    %v652 = vpop.f32.mrb[0].mxu0
    %v653 = vadd.f32 0.0, %v652
    %v654 = vpop.f32.mrb[0].mxu0
    %655 = vmatprep.mubr.bf16.mxu0 0
    %656 = vmatmul.mubr.bf16.gmra.mrb[0].mxu0 %v422
    %v657 = vpop.f32.mrb[0].mxu0
    %v658 = vadd.f32 0.0, %v657
    %v659 = vpop.f32.mrb[0].mxu0
    %v660 = vpop.f32.mrb[0].mxu0
    %v661 = vadd.f32 0.0, %v660
    %v662 = vpop.f32.mrb[0].mxu0
    %663 = vmatprep.mubr.bf16.mxu0 0
    %664 = vmatmul.mubr.bf16.gmra.mrb[0].mxu0 %v423
    %v665 = vpop.f32.mrb[0].mxu0
    %v666 = vadd.f32 0.0, %v665
    %v667 = vpop.f32.mrb[0].mxu0
    %v668 = vpop.f32.mrb[0].mxu0
    %v669 = vadd.f32 0.0, %v668
    %v670 = vpop.f32.mrb[0].mxu0
    %671 = vmatprep.mubr.bf16.mxu0 0
    %672 = vmatmul.mubr.bf16.gmra.mrb[0].mxu0 %v424
    %v673 = vpop.f32.mrb[0].mxu0
    %v674 = vadd.f32 0.0, %v673
    %v675 = vpop.f32.mrb[0].mxu0
    %v676 = vpop.f32.mrb[0].mxu0
    %v677 = vadd.f32 0.0, %v676
    %v678 = vpop.f32.mrb[0].mxu0
    %679 = vmatprep.mubr.bf16.mxu0 0
    %680 = vmatmul.mubr.bf16.gmra.mrb[0].mxu0 %v425
    %v681 = vpop.f32.mrb[0].mxu0
    %v682 = vadd.f32 0.0, %v681
    %v683 = vpop.f32.mrb[0].mxu0
    %v684 = vpop.f32.mrb[0].mxu0
    %v685 = vadd.f32 0.0, %v684
    %v686 = vpop.f32.mrb[0].mxu0
    %687 = vmatprep.mubr.bf16.mxu0 0
    %688 = vmatmul.mubr.bf16.gmra.mrb[0].mxu0 %v426
    %v689 = vpop.f32.mrb[0].mxu0
    %v690 = vadd.f32 0.0, %v689
    %v691 = vpop.f32.mrb[0].mxu0
    %v692 = vpop.f32.mrb[0].mxu0
    %v693 = vadd.f32 0.0, %v692
    %v694 = vpop.f32.mrb[0].mxu0
    %695 = vmatprep.mubr.bf16.mxu0 0
    %696 = vmatmul.mubr.bf16.gmra.mrb[0].mxu0 %v427
    %v697 = vpop.f32.mrb[0].mxu0
    %v698 = vadd.f32 0.0, %v697
    %v699 = vpop.f32.mrb[0].mxu0
    %v700 = vpop.f32.mrb[0].mxu0
    %v701 = vadd.f32 0.0, %v700
    %v702 = vpop.f32.mrb[0].mxu0
    %703 = vmatprep.mubr.bf16.mxu0 0
    %704 = vmatmul.mubr.bf16.gmra.mrb[0].mxu0 %v428
    %v705 = vpop.f32.mrb[0].mxu0
    %v706 = vadd.f32 0.0, %v705
    %v707 = vpop.f32.mrb[0].mxu0
    %v708 = vpop.f32.mrb[0].mxu0
    %v709 = vadd.f32 0.0, %v708
    %v710 = vpop.f32.mrb[0].mxu0
    %711 = vmatprep.mubr.bf16.mxu0 0
    %712 = vmatmul.mubr.bf16.gmra.mrb[0].mxu0 %v429
    %v713 = vpop.f32.mrb[0].mxu0
    %v714 = vadd.f32 0.0, %v713
    %v715 = vpop.f32.mrb[0].mxu0
    %v716 = vpop.f32.mrb[0].mxu0
    %v717 = vadd.f32 0.0, %v716
    %v718 = vpop.f32.mrb[0].mxu0
    %719 = vmatprep.mubr.bf16.mxu0 0
    %720 = vmatmul.mubr.bf16.gmra.mrb[0].mxu0 %v430
    %v721 = vpop.f32.mrb[0].mxu0
    %v722 = vadd.f32 0.0, %v721
    %v723 = vpop.f32.mrb[0].mxu0
    %v724 = vpop.f32.mrb[0].mxu0
    %v725 = vadd.f32 0.0, %v724
    %v726 = vpop.f32.mrb[0].mxu0
    %727 = vmatprep.mubr.bf16.mxu0 0
    %728 = vmatmul.mubr.bf16.gmra.mrb[0].mxu0 %v431
    %v729 = vpop.f32.mrb[0].mxu0
    %v730 = vadd.f32 0.0, %v729
    %v731 = vpop.f32.mrb[0].mxu0
    %v732 = vpop.f32.mrb[0].mxu0
    %v733 = vadd.f32 0.0, %v732
    %v734 = vpop.f32.mrb[0].mxu0
    %735 = vmatprep.mubr.bf16.mxu0 0
    %736 = vmatmul.mubr.bf16.gmra.mrb[0].mxu0 %v432
    %v737 = vpop.f32.mrb[0].mxu0
    %v738 = vadd.f32 0.0, %v737
    %v739 = vpop.f32.mrb[0].mxu0
    %v740 = vpop.f32.mrb[0].mxu0
    %v741 = vadd.f32 0.0, %v740
    %v742 = vpop.f32.mrb[0].mxu0
    %743 = vmatprep.mubr.bf16.mxu0 0
    %744 = vmatmul.mubr.bf16.gmra.mrb[0].mxu0 %v433
    %v745 = vpop.f32.mrb[0].mxu0
    %v746 = vadd.f32 0.0, %v745
    %v747 = vpop.f32.mrb[0].mxu0
    %v748 = vpop.f32.mrb[0].mxu0
    %v749 = vadd.f32 0.0, %v748
    %v750 = vpop.f32.mrb[0].mxu0
    %751 = vmatprep.mubr.bf16.mxu0 0
    %752 = vmatmul.mubr.bf16.gmra.mrb[0].mxu0 %v434
    %v753 = vpop.f32.mrb[0].mxu0
    %v754 = vadd.f32 0.0, %v753
    %v755 = vpop.f32.mrb[0].mxu0
    %v756 = vpop.f32.mrb[0].mxu0
    %v757 = vadd.f32 0.0, %v756
    %v758 = vpop.f32.mrb[0].mxu0
    %759 = vmatprep.mubr.bf16.mxu0 0
    %760 = vmatmul.mubr.bf16.gmra.mrb[0].mxu0 %v435
    %v761 = vpop.f32.mrb[0].mxu0
    %v762 = vadd.f32 0.0, %v761
    %v763 = vpop.f32.mrb[0].mxu0
    %v764 = vpop.f32.mrb[0].mxu0
    %v765 = vadd.f32 0.0, %v764
    %v766 = vpop.f32.mrb[0].mxu0
    %767 = vmatprep.mubr.bf16.mxu0 0
    %768 = vmatmul.mubr.bf16.gmra.mrb[0].mxu0 %v436
    %v769 = vpop.f32.mrb[0].mxu0
    %v770 = vadd.f32 0.0, %v769
    %v771 = vpop.f32.mrb[0].mxu0
    %v772 = vpop.f32.mrb[0].mxu0
    %v773 = vadd.f32 0.0, %v772
    %v774 = vpop.f32.mrb[0].mxu0
    %775 = vmatprep.mubr.bf16.mxu0 0
    %776 = vmatmul.mubr.bf16.gmra.mrb[0].mxu0 %v437
    %v777 = vpop.f32.mrb[0].mxu0
    %v778 = vadd.f32 0.0, %v777
    %v779 = vpop.f32.mrb[0].mxu0
    %v780 = vpop.f32.mrb[0].mxu0
    %v781 = vadd.f32 0.0, %v780
    %v782 = vpop.f32.mrb[0].mxu0
    %783 = vmatprep.mubr.bf16.mxu0 0
    %784 = vmatmul.mubr.bf16.gmra.mrb[0].mxu0 %v438
    %v785 = vpop.f32.mrb[0].mxu0
    %v786 = vadd.f32 0.0, %v785
    %v787 = vpop.f32.mrb[0].mxu0
    %v788 = vpop.f32.mrb[0].mxu0
    %v789 = vadd.f32 0.0, %v788
    %v790 = vpop.f32.mrb[0].mxu0
    %791 = vdwg.mxu0
    %v792 = vpack.c.bf16 %v541, %v538
    %v793 = vpack.c.bf16 %v549, %v546
    %v794 = vpack.c.bf16 %v557, %v554
    %v795 = vpack.c.bf16 %v565, %v562
    %v796 = vpack.c.bf16 %v573, %v570
    %v797 = vpack.c.bf16 %v581, %v578
    %v798 = vpack.c.bf16 %v589, %v586
    %v799 = vpack.c.bf16 %v597, %v594
    %v800 = vpack.c.bf16 %v605, %v602
    %v801 = vpack.c.bf16 %v613, %v610
    %v802 = vpack.c.bf16 %v621, %v618
    %v803 = vpack.c.bf16 %v629, %v626
    %v804 = vpack.c.bf16 %v637, %v634
    %v805 = vpack.c.bf16 %v645, %v642
    %v806 = vpack.c.bf16 %v653, %v650
    %v807 = vpack.c.bf16 %v661, %v658
    %v808 = vpack.c.bf16 %v669, %v666
    %v809 = vpack.c.bf16 %v677, %v674
    %v810 = vpack.c.bf16 %v685, %v682
    %v811 = vpack.c.bf16 %v693, %v690
    %v812 = vpack.c.bf16 %v701, %v698
    %v813 = vpack.c.bf16 %v709, %v706
    %v814 = vpack.c.bf16 %v717, %v714
    %v815 = vpack.c.bf16 %v725, %v722
    %v816 = vpack.c.bf16 %v733, %v730
    %v817 = vpack.c.bf16 %v741, %v738
    %v818 = vpack.c.bf16 %v749, %v746
    %v819 = vpack.c.bf16 %v757, %v754
    %v820 = vpack.c.bf16 %v765, %v762
    %v821 = vpack.c.bf16 %v773, %v770
    %v822 = vpack.c.bf16 %v781, %v778
    %v823 = vpack.c.bf16 %v789, %v786
    %v856 = vunpack.c.l.b16 %v792
    %v857 = vunpack.c.h.b16 %v792
    %v858 = vunpack.c.l.b16 %v793
    %v859 = vunpack.c.h.b16 %v793
    %v860 = vunpack.c.l.b16 %v794
    %v861 = vunpack.c.h.b16 %v794
    %v862 = vunpack.c.l.b16 %v795
    %v863 = vunpack.c.h.b16 %v795
    %v864 = vunpack.c.l.b16 %v796
    %v865 = vunpack.c.h.b16 %v796
    %v866 = vunpack.c.l.b16 %v797
    %v867 = vunpack.c.h.b16 %v797
    %v868 = vunpack.c.l.b16 %v798
    %v869 = vunpack.c.h.b16 %v798
    %v870 = vunpack.c.l.b16 %v799
    %v871 = vunpack.c.h.b16 %v799
    %v872 = vunpack.c.l.b16 %v800
    %v873 = vunpack.c.h.b16 %v800
    %v874 = vunpack.c.l.b16 %v801
    %v875 = vunpack.c.h.b16 %v801
    %v876 = vunpack.c.l.b16 %v802
    %v877 = vunpack.c.h.b16 %v802
    %v878 = vunpack.c.l.b16 %v803
    %v879 = vunpack.c.h.b16 %v803
    %v880 = vunpack.c.l.b16 %v804
    %v881 = vunpack.c.h.b16 %v804
    %v882 = vunpack.c.l.b16 %v805
    %v883 = vunpack.c.h.b16 %v805
    %v884 = vunpack.c.l.b16 %v806
    %v885 = vunpack.c.h.b16 %v806
    %v886 = vunpack.c.l.b16 %v807
    %v887 = vunpack.c.h.b16 %v807
    %v888 = vunpack.c.l.b16 %v808
    %v889 = vunpack.c.h.b16 %v808
    %v890 = vunpack.c.l.b16 %v809
    %v891 = vunpack.c.h.b16 %v809
    %v892 = vunpack.c.l.b16 %v810
    %v893 = vunpack.c.h.b16 %v810
    %v894 = vunpack.c.l.b16 %v811
    %v895 = vunpack.c.h.b16 %v811
    %v896 = vunpack.c.l.b16 %v812
    %v897 = vunpack.c.h.b16 %v812
    %v898 = vunpack.c.l.b16 %v813
    %v899 = vunpack.c.h.b16 %v813
    %v900 = vunpack.c.l.b16 %v814
    %v901 = vunpack.c.h.b16 %v814
    %v902 = vunpack.c.l.b16 %v815
    %v903 = vunpack.c.h.b16 %v815
    %v904 = vunpack.c.l.b16 %v816
    %v905 = vunpack.c.h.b16 %v816
    %v906 = vunpack.c.l.b16 %v817
    %v907 = vunpack.c.h.b16 %v817
    %v908 = vunpack.c.l.b16 %v818
    %v909 = vunpack.c.h.b16 %v818
    %v910 = vunpack.c.l.b16 %v819
    %v911 = vunpack.c.h.b16 %v819
    %v912 = vunpack.c.l.b16 %v820
    %v913 = vunpack.c.h.b16 %v820
    %v914 = vunpack.c.l.b16 %v821
    %v915 = vunpack.c.h.b16 %v821
    %v916 = vunpack.c.l.b16 %v822
    %v917 = vunpack.c.h.b16 %v822
    %v918 = vunpack.c.l.b16 %v823
    %v919 = vunpack.c.h.b16 %v823
    %v920 = vpack.c.b16 %v856, %v856
    %v921 = vpack.c.b16 %v857, %v857
    %v922 = vpack.c.b16 %v858, %v858
    %v923 = vpack.c.b16 %v859, %v859
    %v924 = vpack.c.b16 %v860, %v860
    %v925 = vpack.c.b16 %v861, %v861
    %v926 = vpack.c.b16 %v862, %v862
    %v927 = vpack.c.b16 %v863, %v863
    %v928 = vpack.c.b16 %v864, %v864
    %v929 = vpack.c.b16 %v865, %v865
    %v930 = vpack.c.b16 %v866, %v866
    %v931 = vpack.c.b16 %v867, %v867
    %v932 = vpack.c.b16 %v868, %v868
    %v933 = vpack.c.b16 %v869, %v869
    %v934 = vpack.c.b16 %v870, %v870
    %v935 = vpack.c.b16 %v871, %v871
    %v936 = vpack.c.b16 %v872, %v872
    %v937 = vpack.c.b16 %v873, %v873
    %v938 = vpack.c.b16 %v874, %v874
    %v939 = vpack.c.b16 %v875, %v875
    %v940 = vpack.c.b16 %v876, %v876
    %v941 = vpack.c.b16 %v877, %v877
    %v942 = vpack.c.b16 %v878, %v878
    %v943 = vpack.c.b16 %v879, %v879
    %v944 = vpack.c.b16 %v880, %v880
    %v945 = vpack.c.b16 %v881, %v881
    %v946 = vpack.c.b16 %v882, %v882
    %v947 = vpack.c.b16 %v883, %v883
    %v948 = vpack.c.b16 %v884, %v884
    %v949 = vpack.c.b16 %v885, %v885
    %v950 = vpack.c.b16 %v886, %v886
    %v951 = vpack.c.b16 %v887, %v887
    %v952 = vpack.c.b16 %v888, %v888
    %v953 = vpack.c.b16 %v889, %v889
    %v954 = vpack.c.b16 %v890, %v890
    %v955 = vpack.c.b16 %v891, %v891
    %v956 = vpack.c.b16 %v892, %v892
    %v957 = vpack.c.b16 %v893, %v893
    %v958 = vpack.c.b16 %v894, %v894
    %v959 = vpack.c.b16 %v895, %v895
    %v960 = vpack.c.b16 %v896, %v896
    %v961 = vpack.c.b16 %v897, %v897
    %v962 = vpack.c.b16 %v898, %v898
    %v963 = vpack.c.b16 %v899, %v899
    %v964 = vpack.c.b16 %v900, %v900
    %v965 = vpack.c.b16 %v901, %v901
    %v966 = vpack.c.b16 %v902, %v902
    %v967 = vpack.c.b16 %v903, %v903
    %v968 = vpack.c.b16 %v904, %v904
    %v969 = vpack.c.b16 %v905, %v905
    %v970 = vpack.c.b16 %v906, %v906
    %v971 = vpack.c.b16 %v907, %v907
    %v972 = vpack.c.b16 %v908, %v908
    %v973 = vpack.c.b16 %v909, %v909
    %v974 = vpack.c.b16 %v910, %v910
    %v975 = vpack.c.b16 %v911, %v911
    %v976 = vpack.c.b16 %v912, %v912
    %v977 = vpack.c.b16 %v913, %v913
    %v978 = vpack.c.b16 %v914, %v914
    %v979 = vpack.c.b16 %v915, %v915
    %v980 = vpack.c.b16 %v916, %v916
    %v981 = vpack.c.b16 %v917, %v917
    %v982 = vpack.c.b16 %v918, %v918
    %v983 = vpack.c.b16 %v919, %v919
    %vm1048 = vcmask 125952
    %1049 = vst.msk [vmem:[#allocation10] sm:$0xf] %vm1048, %v920
    %1050 = vst.msk [vmem:[#allocation10 + $0x4] sm:$0xf] %vm1048, %v921
    %1051 = vst.msk [vmem:[#allocation10 + $0x8] sm:$0xf] %vm1048, %v922
    %1052 = vst.msk [vmem:[#allocation10 + $0xc] sm:$0xf] %vm1048, %v923
    %1053 = vst.msk [vmem:[#allocation10 + $0x10] sm:$0xf] %vm1048, %v924
    %1054 = vst.msk [vmem:[#allocation10 + $0x14] sm:$0xf] %vm1048, %v925
    %1055 = vst.msk [vmem:[#allocation10 + $0x18] sm:$0xf] %vm1048, %v926
    %1056 = vst.msk [vmem:[#allocation10 + $0x1c] sm:$0xf] %vm1048, %v927
    %1057 = vst.msk [vmem:[#allocation10 + $0x20] sm:$0xf] %vm1048, %v928
    %1058 = vst.msk [vmem:[#allocation10 + $0x24] sm:$0xf] %vm1048, %v929
    %1059 = vst.msk [vmem:[#allocation10 + $0x28] sm:$0xf] %vm1048, %v930
    %1060 = vst.msk [vmem:[#allocation10 + $0x2c] sm:$0xf] %vm1048, %v931
    %1061 = vst.msk [vmem:[#allocation10 + $0x30] sm:$0xf] %vm1048, %v932
    %1062 = vst.msk [vmem:[#allocation10 + $0x34] sm:$0xf] %vm1048, %v933
    %1063 = vst.msk [vmem:[#allocation10 + $0x38] sm:$0xf] %vm1048, %v934
    %1064 = vst.msk [vmem:[#allocation10 + $0x3c] sm:$0xf] %vm1048, %v935
    %1065 = vst.msk [vmem:[#allocation10 + $0x40] sm:$0xf] %vm1048, %v936
    %1066 = vst.msk [vmem:[#allocation10 + $0x44] sm:$0xf] %vm1048, %v937
    %1067 = vst.msk [vmem:[#allocation10 + $0x48] sm:$0xf] %vm1048, %v938
    %1068 = vst.msk [vmem:[#allocation10 + $0x4c] sm:$0xf] %vm1048, %v939
    %1069 = vst.msk [vmem:[#allocation10 + $0x50] sm:$0xf] %vm1048, %v940
    %1070 = vst.msk [vmem:[#allocation10 + $0x54] sm:$0xf] %vm1048, %v941
    %1071 = vst.msk [vmem:[#allocation10 + $0x58] sm:$0xf] %vm1048, %v942
    %1072 = vst.msk [vmem:[#allocation10 + $0x5c] sm:$0xf] %vm1048, %v943
    %1073 = vst.msk [vmem:[#allocation10 + $0x60] sm:$0xf] %vm1048, %v944
    %1074 = vst.msk [vmem:[#allocation10 + $0x64] sm:$0xf] %vm1048, %v945
    %1075 = vst.msk [vmem:[#allocation10 + $0x68] sm:$0xf] %vm1048, %v946
    %1076 = vst.msk [vmem:[#allocation10 + $0x6c] sm:$0xf] %vm1048, %v947
    %1077 = vst.msk [vmem:[#allocation10 + $0x70] sm:$0xf] %vm1048, %v948
    %1078 = vst.msk [vmem:[#allocation10 + $0x74] sm:$0xf] %vm1048, %v949
    %1079 = vst.msk [vmem:[#allocation10 + $0x78] sm:$0xf] %vm1048, %v950
    %1080 = vst.msk [vmem:[#allocation10 + $0x7c] sm:$0xf] %vm1048, %v951
    %1081 = vst.msk [vmem:[#allocation10 + $0x80] sm:$0xf] %vm1048, %v952
    %1082 = vst.msk [vmem:[#allocation10 + $0x84] sm:$0xf] %vm1048, %v953
    %1083 = vst.msk [vmem:[#allocation10 + $0x88] sm:$0xf] %vm1048, %v954
    %1084 = vst.msk [vmem:[#allocation10 + $0x8c] sm:$0xf] %vm1048, %v955
    %1085 = vst.msk [vmem:[#allocation10 + $0x90] sm:$0xf] %vm1048, %v956
    %1086 = vst.msk [vmem:[#allocation10 + $0x94] sm:$0xf] %vm1048, %v957
    %1087 = vst.msk [vmem:[#allocation10 + $0x98] sm:$0xf] %vm1048, %v958
    %1088 = vst.msk [vmem:[#allocation10 + $0x9c] sm:$0xf] %vm1048, %v959
    %1089 = vst.msk [vmem:[#allocation10 + $0xa0] sm:$0xf] %vm1048, %v960
    %1090 = vst.msk [vmem:[#allocation10 + $0xa4] sm:$0xf] %vm1048, %v961
    %1091 = vst.msk [vmem:[#allocation10 + $0xa8] sm:$0xf] %vm1048, %v962
    %1092 = vst.msk [vmem:[#allocation10 + $0xac] sm:$0xf] %vm1048, %v963
    %1093 = vst.msk [vmem:[#allocation10 + $0xb0] sm:$0xf] %vm1048, %v964
    %1094 = vst.msk [vmem:[#allocation10 + $0xb4] sm:$0xf] %vm1048, %v965
    %1095 = vst.msk [vmem:[#allocation10 + $0xb8] sm:$0xf] %vm1048, %v966
    %1096 = vst.msk [vmem:[#allocation10 + $0xbc] sm:$0xf] %vm1048, %v967
    %1097 = vst.msk [vmem:[#allocation10 + $0xc0] sm:$0xf] %vm1048, %v968
    %1098 = vst.msk [vmem:[#allocation10 + $0xc4] sm:$0xf] %vm1048, %v969
    %1099 = vst.msk [vmem:[#allocation10 + $0xc8] sm:$0xf] %vm1048, %v970
    %1100 = vst.msk [vmem:[#allocation10 + $0xcc] sm:$0xf] %vm1048, %v971
    %1101 = vst.msk [vmem:[#allocation10 + $0xd0] sm:$0xf] %vm1048, %v972
    %1102 = vst.msk [vmem:[#allocation10 + $0xd4] sm:$0xf] %vm1048, %v973
    %1103 = vst.msk [vmem:[#allocation10 + $0xd8] sm:$0xf] %vm1048, %v974
    %1104 = vst.msk [vmem:[#allocation10 + $0xdc] sm:$0xf] %vm1048, %v975
    %1105 = vst.msk [vmem:[#allocation10 + $0xe0] sm:$0xf] %vm1048, %v976
    %1106 = vst.msk [vmem:[#allocation10 + $0xe4] sm:$0xf] %vm1048, %v977
    %1107 = vst.msk [vmem:[#allocation10 + $0xe8] sm:$0xf] %vm1048, %v978
    %1108 = vst.msk [vmem:[#allocation10 + $0xec] sm:$0xf] %vm1048, %v979
    %1109 = vst.msk [vmem:[#allocation10 + $0xf0] sm:$0xf] %vm1048, %v980
    %1110 = vst.msk [vmem:[#allocation10 + $0xf4] sm:$0xf] %vm1048, %v981
    %1111 = vst.msk [vmem:[#allocation10 + $0xf8] sm:$0xf] %vm1048, %v982
    %1112 = vst.msk [vmem:[#allocation10 + $0xfc] sm:$0xf] %vm1048, %v983
    %vm1113 = vcmask 130048
    %v1114 = vsel %vm1113, %v538, 0.0
    %v1115 = vsel %vm1113, %v541, 0.0
    %v1116 = vadd.f32 %v1114, %v1115
    %v1117 = vsel %vm1113, %v546, 0.0
    %v1118 = vadd.f32 %v1116, %v1117
    %v1119 = vsel %vm1113, %v549, 0.0
    %v1120 = vadd.f32 %v1118, %v1119
    %v1121 = vsel %vm1113, %v554, 0.0
    %v1122 = vadd.f32 %v1120, %v1121
    %v1123 = vsel %vm1113, %v557, 0.0
    %v1124 = vadd.f32 %v1122, %v1123
    %v1125 = vsel %vm1113, %v562, 0.0
    %v1126 = vadd.f32 %v1124, %v1125
    %v1127 = vsel %vm1113, %v565, 0.0
    %v1128 = vadd.f32 %v1126, %v1127
    %v1129 = vsel %vm1113, %v570, 0.0
    %v1130 = vadd.f32 %v1128, %v1129
    %v1131 = vsel %vm1113, %v573, 0.0
    %v1132 = vadd.f32 %v1130, %v1131
    %v1133 = vsel %vm1113, %v578, 0.0
    %v1134 = vadd.f32 %v1132, %v1133
    %v1135 = vsel %vm1113, %v581, 0.0
    %v1136 = vadd.f32 %v1134, %v1135
    %v1137 = vsel %vm1113, %v586, 0.0
    %v1138 = vadd.f32 %v1136, %v1137
    %v1139 = vsel %vm1113, %v589, 0.0
    %v1140 = vadd.f32 %v1138, %v1139
    %v1141 = vsel %vm1113, %v594, 0.0
    %v1142 = vadd.f32 %v1140, %v1141
    %v1143 = vsel %vm1113, %v597, 0.0
    %v1144 = vadd.f32 %v1142, %v1143
    %v1145 = vsel %vm1113, %v602, 0.0
    %v1146 = vadd.f32 %v1144, %v1145
    %v1147 = vsel %vm1113, %v605, 0.0
    %v1148 = vadd.f32 %v1146, %v1147
    %v1149 = vsel %vm1113, %v610, 0.0
    %v1150 = vadd.f32 %v1148, %v1149
    %v1151 = vsel %vm1113, %v613, 0.0
    %v1152 = vadd.f32 %v1150, %v1151
    %v1153 = vsel %vm1113, %v618, 0.0
    %v1154 = vadd.f32 %v1152, %v1153
    %v1155 = vsel %vm1113, %v621, 0.0
    %v1156 = vadd.f32 %v1154, %v1155
    %v1157 = vsel %vm1113, %v626, 0.0
    %v1158 = vadd.f32 %v1156, %v1157
    %v1159 = vsel %vm1113, %v629, 0.0
    %v1160 = vadd.f32 %v1158, %v1159
    %v1161 = vsel %vm1113, %v634, 0.0
    %v1162 = vadd.f32 %v1160, %v1161
    %v1163 = vsel %vm1113, %v637, 0.0
    %v1164 = vadd.f32 %v1162, %v1163
    %v1165 = vsel %vm1113, %v642, 0.0
    %v1166 = vadd.f32 %v1164, %v1165
    %v1167 = vsel %vm1113, %v645, 0.0
    %v1168 = vadd.f32 %v1166, %v1167
    %v1169 = vsel %vm1113, %v650, 0.0
    %v1170 = vadd.f32 %v1168, %v1169
    %v1171 = vsel %vm1113, %v653, 0.0
    %v1172 = vadd.f32 %v1170, %v1171
    %v1173 = vsel %vm1113, %v658, 0.0
    %v1174 = vadd.f32 %v1172, %v1173
    %v1175 = vsel %vm1113, %v661, 0.0
    %v1176 = vadd.f32 %v1174, %v1175
    %v1177 = vsel %vm1113, %v666, 0.0
    %v1178 = vadd.f32 %v1176, %v1177
    %v1179 = vsel %vm1113, %v669, 0.0
    %v1180 = vadd.f32 %v1178, %v1179
    %v1181 = vsel %vm1113, %v674, 0.0
    %v1182 = vadd.f32 %v1180, %v1181
    %v1183 = vsel %vm1113, %v677, 0.0
    %v1184 = vadd.f32 %v1182, %v1183
    %v1185 = vsel %vm1113, %v682, 0.0
    %v1186 = vadd.f32 %v1184, %v1185
    %v1187 = vsel %vm1113, %v685, 0.0
    %v1188 = vadd.f32 %v1186, %v1187
    %v1189 = vsel %vm1113, %v690, 0.0
    %v1190 = vadd.f32 %v1188, %v1189
    %v1191 = vsel %vm1113, %v693, 0.0
    %v1192 = vadd.f32 %v1190, %v1191
    %v1193 = vsel %vm1113, %v698, 0.0
    %v1194 = vadd.f32 %v1192, %v1193
    %v1195 = vsel %vm1113, %v701, 0.0
    %v1196 = vadd.f32 %v1194, %v1195
    %v1197 = vsel %vm1113, %v706, 0.0
    %v1198 = vadd.f32 %v1196, %v1197
    %v1199 = vsel %vm1113, %v709, 0.0
    %v1200 = vadd.f32 %v1198, %v1199
    %v1201 = vsel %vm1113, %v714, 0.0
    %v1202 = vadd.f32 %v1200, %v1201
    %v1203 = vsel %vm1113, %v717, 0.0
    %v1204 = vadd.f32 %v1202, %v1203
    %v1205 = vsel %vm1113, %v722, 0.0
    %v1206 = vadd.f32 %v1204, %v1205
    %v1207 = vsel %vm1113, %v725, 0.0
    %v1208 = vadd.f32 %v1206, %v1207
    %v1209 = vsel %vm1113, %v730, 0.0
    %v1210 = vadd.f32 %v1208, %v1209
    %v1211 = vsel %vm1113, %v733, 0.0
    %v1212 = vadd.f32 %v1210, %v1211
    %v1213 = vsel %vm1113, %v738, 0.0
    %v1214 = vadd.f32 %v1212, %v1213
    %v1215 = vsel %vm1113, %v741, 0.0
    %v1216 = vadd.f32 %v1214, %v1215
    %v1217 = vsel %vm1113, %v746, 0.0
    %v1218 = vadd.f32 %v1216, %v1217
    %v1219 = vsel %vm1113, %v749, 0.0
    %v1220 = vadd.f32 %v1218, %v1219
    %v1221 = vsel %vm1113, %v754, 0.0
    %v1222 = vadd.f32 %v1220, %v1221
    %v1223 = vsel %vm1113, %v757, 0.0
    %v1224 = vadd.f32 %v1222, %v1223
    %v1225 = vsel %vm1113, %v762, 0.0
    %v1226 = vadd.f32 %v1224, %v1225
    %v1227 = vsel %vm1113, %v765, 0.0
    %v1228 = vadd.f32 %v1226, %v1227
    %v1229 = vsel %vm1113, %v770, 0.0
    %v1230 = vadd.f32 %v1228, %v1229
    %v1231 = vsel %vm1113, %v773, 0.0
    %v1232 = vadd.f32 %v1230, %v1231
    %v1233 = vsel %vm1113, %v778, 0.0
    %v1234 = vadd.f32 %v1232, %v1233
    %v1235 = vsel %vm1113, %v781, 0.0
    %v1236 = vadd.f32 %v1234, %v1235
    %v1237 = vsel %vm1113, %v786, 0.0
    %v1238 = vadd.f32 %v1236, %v1237
    %v1239 = vsel %vm1113, %v789, 0.0
    %v1240 = vadd.f32 %v1238, %v1239
    %v1241 = vrot.slane %v1240, 4
    %v1242 = vadd.f32 %v1240, %v1241
    %v1243 = vrot.slane %v1242, 2
    %v1244 = vadd.f32 %v1242, %v1243
    %v1245 = vrot.slane %v1244, 1
    %v1246 = vadd.f32 %v1244, %v1245
    %v1247 = vmul.f32 %v538, %v538
    %v1248 = vmul.f32 %v541, %v541
    %v1249 = vmul.f32 %v546, %v546
    %v1250 = vmul.f32 %v549, %v549
    %v1251 = vmul.f32 %v554, %v554
    %v1252 = vmul.f32 %v557, %v557
    %v1253 = vmul.f32 %v562, %v562
    %v1254 = vmul.f32 %v565, %v565
    %v1255 = vmul.f32 %v570, %v570
    %v1256 = vmul.f32 %v573, %v573
    %v1257 = vmul.f32 %v578, %v578
    %v1258 = vmul.f32 %v581, %v581
    %v1259 = vmul.f32 %v586, %v586
    %v1260 = vmul.f32 %v589, %v589
    %v1261 = vmul.f32 %v594, %v594
    %v1262 = vmul.f32 %v597, %v597
    %v1263 = vmul.f32 %v602, %v602
    %v1264 = vmul.f32 %v605, %v605
    %v1265 = vmul.f32 %v610, %v610
    %v1266 = vmul.f32 %v613, %v613
    %v1267 = vmul.f32 %v618, %v618
    %v1268 = vmul.f32 %v621, %v621
    %v1269 = vmul.f32 %v626, %v626
    %v1270 = vmul.f32 %v629, %v629
    %v1271 = vmul.f32 %v634, %v634
    %v1272 = vmul.f32 %v637, %v637
    %v1273 = vmul.f32 %v642, %v642
    %v1274 = vmul.f32 %v645, %v645
    %v1275 = vmul.f32 %v650, %v650
    %v1276 = vmul.f32 %v653, %v653
    %v1277 = vmul.f32 %v658, %v658
    %v1278 = vmul.f32 %v661, %v661
    %v1279 = vmul.f32 %v666, %v666
    %v1280 = vmul.f32 %v669, %v669
    %v1281 = vmul.f32 %v674, %v674
    %v1282 = vmul.f32 %v677, %v677
    %v1283 = vmul.f32 %v682, %v682
    %v1284 = vmul.f32 %v685, %v685
    %v1285 = vmul.f32 %v690, %v690
    %v1286 = vmul.f32 %v693, %v693
    %v1287 = vmul.f32 %v698, %v698
    %v1288 = vmul.f32 %v701, %v701
    %v1289 = vmul.f32 %v706, %v706
    %v1290 = vmul.f32 %v709, %v709
    %v1291 = vmul.f32 %v714, %v714
    %v1292 = vmul.f32 %v717, %v717
    %v1293 = vmul.f32 %v722, %v722
    %v1294 = vmul.f32 %v725, %v725
    %v1295 = vmul.f32 %v730, %v730
    %v1296 = vmul.f32 %v733, %v733
    %v1297 = vmul.f32 %v738, %v738
    %v1298 = vmul.f32 %v741, %v741
    %v1299 = vmul.f32 %v746, %v746
    %v1300 = vmul.f32 %v749, %v749
    %v1301 = vmul.f32 %v754, %v754
    %v1302 = vmul.f32 %v757, %v757
    %v1303 = vmul.f32 %v762, %v762
    %v1304 = vmul.f32 %v765, %v765
    %v1305 = vmul.f32 %v770, %v770
    %v1306 = vmul.f32 %v773, %v773
    %v1307 = vmul.f32 %v778, %v778
    %v1308 = vmul.f32 %v781, %v781
    %v1309 = vmul.f32 %v786, %v786
    %v1310 = vmul.f32 %v789, %v789
    %v1311 = vsel %vm1113, %v1247, 0.0
    %v1312 = vsel %vm1113, %v1248, 0.0
    %v1313 = vadd.f32 %v1311, %v1312
    %v1314 = vsel %vm1113, %v1249, 0.0
    %v1315 = vadd.f32 %v1313, %v1314
    %v1316 = vsel %vm1113, %v1250, 0.0
    %v1317 = vadd.f32 %v1315, %v1316
    %v1318 = vsel %vm1113, %v1251, 0.0
    %v1319 = vadd.f32 %v1317, %v1318
    %v1320 = vsel %vm1113, %v1252, 0.0
    %v1321 = vadd.f32 %v1319, %v1320
    %v1322 = vsel %vm1113, %v1253, 0.0
    %v1323 = vadd.f32 %v1321, %v1322
    %v1324 = vsel %vm1113, %v1254, 0.0
    %v1325 = vadd.f32 %v1323, %v1324
    %v1326 = vsel %vm1113, %v1255, 0.0
    %v1327 = vadd.f32 %v1325, %v1326
    %v1328 = vsel %vm1113, %v1256, 0.0
    %v1329 = vadd.f32 %v1327, %v1328
    %v1330 = vsel %vm1113, %v1257, 0.0
    %v1331 = vadd.f32 %v1329, %v1330
    %v1332 = vsel %vm1113, %v1258, 0.0
    %v1333 = vadd.f32 %v1331, %v1332
    %v1334 = vsel %vm1113, %v1259, 0.0
    %v1335 = vadd.f32 %v1333, %v1334
    %v1336 = vsel %vm1113, %v1260, 0.0
    %v1337 = vadd.f32 %v1335, %v1336
    %v1338 = vsel %vm1113, %v1261, 0.0
    %v1339 = vadd.f32 %v1337, %v1338
    %v1340 = vsel %vm1113, %v1262, 0.0
    %v1341 = vadd.f32 %v1339, %v1340
    %v1342 = vsel %vm1113, %v1263, 0.0
    %v1343 = vadd.f32 %v1341, %v1342
    %v1344 = vsel %vm1113, %v1264, 0.0
    %v1345 = vadd.f32 %v1343, %v1344
    %v1346 = vsel %vm1113, %v1265, 0.0
    %v1347 = vadd.f32 %v1345, %v1346
    %v1348 = vsel %vm1113, %v1266, 0.0
    %v1349 = vadd.f32 %v1347, %v1348
    %v1350 = vsel %vm1113, %v1267, 0.0
    %v1351 = vadd.f32 %v1349, %v1350
    %v1352 = vsel %vm1113, %v1268, 0.0
    %v1353 = vadd.f32 %v1351, %v1352
    %v1354 = vsel %vm1113, %v1269, 0.0
    %v1355 = vadd.f32 %v1353, %v1354
    %v1356 = vsel %vm1113, %v1270, 0.0
    %v1357 = vadd.f32 %v1355, %v1356
    %v1358 = vsel %vm1113, %v1271, 0.0
    %v1359 = vadd.f32 %v1357, %v1358
    %v1360 = vsel %vm1113, %v1272, 0.0
    %v1361 = vadd.f32 %v1359, %v1360
    %v1362 = vsel %vm1113, %v1273, 0.0
    %v1363 = vadd.f32 %v1361, %v1362
    %v1364 = vsel %vm1113, %v1274, 0.0
    %v1365 = vadd.f32 %v1363, %v1364
    %v1366 = vsel %vm1113, %v1275, 0.0
    %v1367 = vadd.f32 %v1365, %v1366
    %v1368 = vsel %vm1113, %v1276, 0.0
    %v1369 = vadd.f32 %v1367, %v1368
    %v1370 = vsel %vm1113, %v1277, 0.0
    %v1371 = vadd.f32 %v1369, %v1370
    %v1372 = vsel %vm1113, %v1278, 0.0
    %v1373 = vadd.f32 %v1371, %v1372
    %v1374 = vsel %vm1113, %v1279, 0.0
    %v1375 = vadd.f32 %v1373, %v1374
    %v1376 = vsel %vm1113, %v1280, 0.0
    %v1377 = vadd.f32 %v1375, %v1376
    %v1378 = vsel %vm1113, %v1281, 0.0
    %v1379 = vadd.f32 %v1377, %v1378
    %v1380 = vsel %vm1113, %v1282, 0.0
    %v1381 = vadd.f32 %v1379, %v1380
    %v1382 = vsel %vm1113, %v1283, 0.0
    %v1383 = vadd.f32 %v1381, %v1382
    %v1384 = vsel %vm1113, %v1284, 0.0
    %v1385 = vadd.f32 %v1383, %v1384
    %v1386 = vsel %vm1113, %v1285, 0.0
    %v1387 = vadd.f32 %v1385, %v1386
    %v1388 = vsel %vm1113, %v1286, 0.0
    %v1389 = vadd.f32 %v1387, %v1388
    %v1390 = vsel %vm1113, %v1287, 0.0
    %v1391 = vadd.f32 %v1389, %v1390
    %v1392 = vsel %vm1113, %v1288, 0.0
    %v1393 = vadd.f32 %v1391, %v1392
    %v1394 = vsel %vm1113, %v1289, 0.0
    %v1395 = vadd.f32 %v1393, %v1394
    %v1396 = vsel %vm1113, %v1290, 0.0
    %v1397 = vadd.f32 %v1395, %v1396
    %v1398 = vsel %vm1113, %v1291, 0.0
    %v1399 = vadd.f32 %v1397, %v1398
    %v1400 = vsel %vm1113, %v1292, 0.0
    %v1401 = vadd.f32 %v1399, %v1400
    %v1402 = vsel %vm1113, %v1293, 0.0
    %v1403 = vadd.f32 %v1401, %v1402
    %v1404 = vsel %vm1113, %v1294, 0.0
    %v1405 = vadd.f32 %v1403, %v1404
    %v1406 = vsel %vm1113, %v1295, 0.0
    %v1407 = vadd.f32 %v1405, %v1406
    %v1408 = vsel %vm1113, %v1296, 0.0
    %v1409 = vadd.f32 %v1407, %v1408
    %v1410 = vsel %vm1113, %v1297, 0.0
    %v1411 = vadd.f32 %v1409, %v1410
    %v1412 = vsel %vm1113, %v1298, 0.0
    %v1413 = vadd.f32 %v1411, %v1412
    %v1414 = vsel %vm1113, %v1299, 0.0
    %v1415 = vadd.f32 %v1413, %v1414
    %v1416 = vsel %vm1113, %v1300, 0.0
    %v1417 = vadd.f32 %v1415, %v1416
    %v1418 = vsel %vm1113, %v1301, 0.0
    %v1419 = vadd.f32 %v1417, %v1418
    %v1420 = vsel %vm1113, %v1302, 0.0
    %v1421 = vadd.f32 %v1419, %v1420
    %v1422 = vsel %vm1113, %v1303, 0.0
    %v1423 = vadd.f32 %v1421, %v1422
    %v1424 = vsel %vm1113, %v1304, 0.0
    %v1425 = vadd.f32 %v1423, %v1424
    %v1426 = vsel %vm1113, %v1305, 0.0
    %v1427 = vadd.f32 %v1425, %v1426
    %v1428 = vsel %vm1113, %v1306, 0.0
    %v1429 = vadd.f32 %v1427, %v1428
    %v1430 = vsel %vm1113, %v1307, 0.0
    %v1431 = vadd.f32 %v1429, %v1430
    %v1432 = vsel %vm1113, %v1308, 0.0
    %v1433 = vadd.f32 %v1431, %v1432
    %v1434 = vsel %vm1113, %v1309, 0.0
    %v1435 = vadd.f32 %v1433, %v1434
    %v1436 = vsel %vm1113, %v1310, 0.0
    %v1437 = vadd.f32 %v1435, %v1436
    %v1438 = vrot.slane %v1437, 4
    %v1439 = vadd.f32 %v1437, %v1438
    %v1440 = vrot.slane %v1439, 2
    %v1441 = vadd.f32 %v1439, %v1440
    %v1442 = vrot.slane %v1441, 1
    %v1443 = vadd.f32 %v1441, %v1442
    %vm1444 = vcmask 1040384
    %v1445 = vsel %vm1444, %v1246, %v1443
    %vm1446 = vcmask 123904
    %1447 = vst.msk [vmem:[#allocation11] sm:$0x3] %vm1446, %v1445
    // Predicated region
    $region34: #{_lambda_.6} parent=1 // pred_check
      _
    $region35: #{_lambda_.6} parent=1 // pred_check_branch
      %1449 = sbr.rel (0) target = $region37
    $region36: #{_lambda_.6} parent=1 // pred_region
      %s1451 = ssub.s32 4096, 4096
      %1452 = vsyncadd [#allocation4], %s1451
      %s1453 = sshll.u32 [#allocation10], 4
      %s1454 = int_to_ptr.vmem [resolvable:$true] %s1453
      %1459 = dma.vmem_to_hbm [thread:$0]  %s1454, 4096, %s4, [#allocation4], 64, 64, 4
    $region37: #{_lambda_.6} parent=1 // pred_fallthru
      _
    // Predicated region
    $region38: #{_lambda_.6} parent=1 // pred_check
      _
    $region39: #{_lambda_.6} parent=1 // pred_check_branch
      %1461 = sbr.rel (0) target = $region41
    $region40: #{_lambda_.6} parent=1 // pred_region
      %s1463 = ssub.s32 32, 32
      %1464 = vsyncadd [#allocation12], %s1463
      %s1466 = sshll.u32 [#allocation11], 4
      %s1467 = int_to_ptr.vmem [resolvable:$true] %s1466
      %1469 = dma.vmem_to_hbm [thread:$0]  %s1467, 32, %s5, [#allocation12]
    $region41: #{_lambda_.6} parent=1 // pred_fallthru
      _
    // Predicated region
    $region42: #{_lambda_.6} parent=1 // pred_check
      _
    $region43: #{_lambda_.6} parent=1 // pred_check_branch
      %1471 = sbr.rel (0) target = $region45
    $region44: #{_lambda_.6} parent=1 // pred_region
      %1472 = dma.done [#allocation4], 4096
    $region45: #{_lambda_.6} parent=1 // pred_fallthru
      _
    // Predicated region
    $region46: #{_lambda_.6} parent=1 // pred_check
      _
    $region47: #{_lambda_.6} parent=1 // pred_check_branch
      %1474 = sbr.rel (0) target = $region49
    $region48: #{_lambda_.6} parent=1 // pred_region
      %1475 = dma.done [#allocation12], 32
    $region49: #{_lambda_.6} parent=1 // pred_fallthru
      _
    %1476 = vsyncpa [#allocation3], 1
    %1477 = vsyncpa [#allocation6], 1
    %1478 = vsyncpa [#allocation9], 1
    %1479 = vsyncpa [#allocation4], 1
    %1480 = vsyncpa [#allocation12], 1

// kernel: _lambda_.5
$region0: #{_lambda_.5}
  #allocation0 [shape = 'u32[]', space=smem, size = 0x4, offset = 0x4, fixed_abs, tag = 'smem constant byte address 0x4 - core index']
  #allocation1 [shape = 'u32[144,128]{1,0:T(1,128)}', space=vmem, size = 0x12000, scoped, tag = 'internal scratch']
  #allocation2 [shape = 'bf16[320,128]{1,0:T(16,128)(2,1)}', space=vmem, size = 0x14000, scoped, tag = 'scratch operand']
  %s0 = inlined_call_operand.hbm [shape: bf16[2,256,128], index: 0, kind: input, shape index: {}, may-alias: {0,1,2}]
  %s1 = inlined_call_operand.hbm [shape: bf16[2,256,128], index: 1, kind: input, shape index: {}, may-alias: {0,1,2}]
  %s2 = inlined_call_operand.hbm [shape: bf16[2,256,128], index: 2, kind: input, shape index: {}, may-alias: {0,1,2}]
  %s3 = inlined_call_operand.hbm [shape: f32[1,128], index: 3, kind: input, shape index: {}]
  %s4 = inlined_call_operand.hbm [shape: f32[1,128], index: 4, kind: input, shape index: {}]
  %s5 = inlined_call_operand.hbm [shape: bf16[9,128,128], index: 5, kind: input, shape index: {}]
  %s6 = inlined_call_operand.hbm [shape: bf16[2,256,128], index: 6, kind: output, shape index: {0}]
  %s7 = inlined_call_operand.hbm [shape: f32[2,1,2,128], index: 7, kind: output, shape index: {1}]
  %8 = xla_tuple %s6, %s7
  %s9 = sld [smem:[#allocation0]]
  $region89: #{_lambda_.5} parent=0
    _
  %s11 = ssub.s32 1, %s9
  %s12 = scalar_select 0, %s11, %s9
  $region1: #{_lambda_.5} parent=0
    #allocation3 [shape = 'u8[131072]{0}', space=vmem, size = 0x20000, scoped, tag = 'input window, operand 0']
    #allocation4 [shape = 's32[2]{0}', space=sflag, size = 0x8, scoped, tag = 'scoped memory for _lambda_.5']
    #allocation5 [shape = 's32[2]{0}', space=sflag, size = 0x8, scoped, tag = 'scoped memory for _lambda_.5']
    #allocation6 [shape = 'u8[8192]{0}', space=vmem, size = 0x2000, scoped, tag = 'input window, operand 1']
    #allocation7 [shape = 's32[2]{0}', space=sflag, size = 0x8, scoped, tag = 'scoped memory for _lambda_.5']
    #allocation8 [shape = 'u8[8192]{0}', space=vmem, size = 0x2000, scoped, tag = 'input window, operand 2']
    #allocation9 [shape = 'u8[512]{0}', space=vmem, size = 0x400, scoped, tag = 'input window, operand 3, single buffered']
    #allocation10 [shape = 's32[1]{0}', space=sflag, size = 0x4, scoped, tag = 'scoped memory for _lambda_.5']
    #allocation11 [shape = 'u8[512]{0}', space=vmem, size = 0x400, scoped, tag = 'input window, operand 4, single buffered']
    #allocation12 [shape = 'u8[294912]{0}', space=vmem, size = 0x48000, scoped, tag = 'input window, operand 5, single buffered']
    #allocation13 [shape = 's32[1]{0}', space=sflag, size = 0x4, scoped, tag = 'scoped memory for _lambda_.5']
    #allocation14 [shape = 'u8[131072]{0}', space=vmem, size = 0x20000, scoped, tag = 'output window, operand 0']
    #allocation15 [shape = 'u8[2048]{0}', space=vmem, size = 0x800, scoped, tag = 'output window, operand 1']
    #allocation16 [shape = 's32[2]{0}', space=sflag, size = 0x8, scoped, tag = 'scoped memory for _lambda_.5']
    %13 = vsyncpa [#allocation4], 0
    %s14 = scalar_lea.sflag [#allocation4], 1
    %15 = vsyncpa %s14, 0
    %16 = vsyncpa [#allocation7], 0
    %s17 = scalar_lea.sflag [#allocation7], 1
    %18 = vsyncpa %s17, 0
    %19 = vsyncpa [#allocation10], 0
    %20 = vsyncpa [#allocation13], 0
    %21 = vsyncpa [#allocation5], 0
    %s22 = scalar_lea.sflag [#allocation5], 1
    %23 = vsyncpa %s22, 0
    %24 = vsyncpa [#allocation16], 0
    %s25 = scalar_lea.sflag [#allocation16], 1
    %26 = vsyncpa %s25, 0
    loop: start=0, step=1, limit=4
    $region2: #{_lambda_.5} parent=1 // loop_pre_header
      _
    $region3: #{_lambda_.5} parent=1 // loop_header
      %s28 = sphi 0, %s32
      %p29 = scmp.ge.s32.totalorder %s28, 4
      %s35 = sphi 0, %s47
      %s36 = sphi 0, %s43
      %s37 = sphi 0, %s35
      %s38 = sphi 0, %s36
      %s39 = sphi 0, %s37
      %s40 = sphi 0, %s38
      %s52 = sphi 0, %s54
      %s55 = sphi 0, %s52
      %s56 = sphi 0, %s55
      %s72 = sphi 0, %s56
      %s88 = sphi 0, %s90
      %s91 = sphi 0, %s88
      %s92 = sphi 0, %s91
      %s108 = sphi 0, %s92
      %s124 = sphi 0, %s126
      %s127 = sphi 0, %s124
      %s128 = sphi 0, %s127
      %s144 = sphi 0, %s128
      %s148 = sphi 0, %s148
      %s150 = sphi 0, %s148
      %s151 = sphi 0, %s150
      %s165 = sphi 0, %s151
      %s169 = sphi 0, %s169
      %s171 = sphi 0, %s169
      %s172 = sphi 0, %s171
      %s186 = sphi 0, %s172
      %s190 = sphi 0, %s190
      %s192 = sphi 0, %s190
      %s193 = sphi 0, %s192
      %s207 = sphi 0, %s193
      %s215 = sphi 0, %s217
      %s218 = sphi 0, %s215
      %s219 = sphi 0, %s218
      %s235 = sphi 0, %s219
      %s243 = sphi 0, %s245
      %s246 = sphi 0, %s243
      %s247 = sphi 0, %s246
      %s263 = sphi 0, %s247
    $region4: #{_lambda_.5} parent=1 // loop_header_branch
      %31 = sbr.rel (%p29) target = $region8
    $region5: #{_lambda_.5} parent=1 // loop_body
      %s33 = ssub.s32 %s28, 1
      %s34 = ssub.s32 %s28, 2
      %s41 = sadd.s32 1, %s36
      %p42 = scmp.ge.s32.totalorder %s41, 1
      %s43 = scalar_select %p42, 0, %s41
      %s44 = sadd.s32 1, %s35
      %s45 = scalar_select %p42, %s44, %s35
      %p46 = scmp.ge.s32.totalorder %s45, 2
      %s47 = scalar_select %p46, 0, %s45
      %s48 = ssub.s32 %s35, %s47
      %s49 = ssub.s32 %s36, %s43
      %s50 = sor.u32 %s48, %s49
      %p51 = scmp.eq.s32.totalorder %s50, 0
      %s53 = sadd.s32 %s52, 1
      %s54 = scalar_select %p51, %s52, %s53
      %p57 = pneg %p51
      %p58 = scmp.eq.s32.totalorder %s28, 1
      %p59 = por %p57, %p58
      %p60 = scmp.ne.s32.totalorder %s52, %s55
      %p61 = scmp.eq.s32.totalorder %s28, 0
      %p62 = por %p60, %p61
      %p63 = scmp.ne.s32.totalorder %s52, %s55
      %p64 = scmp.eq.s32.totalorder %s33, 1
      %p65 = por %p63, %p64
      %p66 = scmp.ne.s32.totalorder %s55, %s56
      %p67 = scmp.eq.s32.totalorder %s33, 0
      %p68 = por %p66, %p67
      %p69 = scmp.ne.s32.totalorder %s55, %s56
      %p70 = scmp.eq.s32.totalorder %s34, 1
      %p71 = por %p69, %p70
      %p73 = scmp.ne.s32.totalorder %s56, %s72
      %p74 = scmp.eq.s32.totalorder %s34, 0
      %p75 = por %p73, %p74
      %s76 = smul.u32 %s36, 16
      %s77 = ssub.s32 %s76, 1
      %p78 = scmp.gt.s32.totalorder %s77, 0
      %s79 = scalar_select %p78, %s77, 0
      %s80 = smul.u32 %s43, 16
      %s81 = ssub.s32 %s80, 1
      %p82 = scmp.gt.s32.totalorder %s81, 0
      %s83 = scalar_select %p82, %s81, 0
      %s84 = ssub.s32 %s35, %s47
      %s85 = ssub.s32 %s79, %s83
      %s86 = sor.u32 %s84, %s85
      %p87 = scmp.eq.s32.totalorder %s86, 0
      %s89 = sadd.s32 %s88, 1
      %s90 = scalar_select %p87, %s88, %s89
      %p93 = pneg %p87
      %p94 = scmp.eq.s32.totalorder %s28, 1
      %p95 = por %p93, %p94
      %p96 = scmp.ne.s32.totalorder %s88, %s91
      %p97 = scmp.eq.s32.totalorder %s28, 0
      %p98 = por %p96, %p97
      %p99 = scmp.ne.s32.totalorder %s88, %s91
      %p100 = scmp.eq.s32.totalorder %s33, 1
      %p101 = por %p99, %p100
      %p102 = scmp.ne.s32.totalorder %s91, %s92
      %p103 = scmp.eq.s32.totalorder %s33, 0
      %p104 = por %p102, %p103
      %p105 = scmp.ne.s32.totalorder %s91, %s92
      %p106 = scmp.eq.s32.totalorder %s34, 1
      %p107 = por %p105, %p106
      %p109 = scmp.ne.s32.totalorder %s92, %s108
      %p110 = scmp.eq.s32.totalorder %s34, 0
      %p111 = por %p109, %p110
      %s112 = sadd.s32 %s36, 1
      %s113 = smul.u32 %s112, 16
      %p114 = scmp.lt.s32.totalorder %s113, 15
      %s115 = scalar_select %p114, %s113, 15
      %s116 = sadd.s32 %s43, 1
      %s117 = smul.u32 %s116, 16
      %p118 = scmp.lt.s32.totalorder %s117, 15
      %s119 = scalar_select %p118, %s117, 15
      %s120 = ssub.s32 %s35, %s47
      %s121 = ssub.s32 %s115, %s119
      %s122 = sor.u32 %s120, %s121
      %p123 = scmp.eq.s32.totalorder %s122, 0
      %s125 = sadd.s32 %s124, 1
      %s126 = scalar_select %p123, %s124, %s125
      %p129 = pneg %p123
      %p130 = scmp.eq.s32.totalorder %s28, 1
      %p131 = por %p129, %p130
      %p132 = scmp.ne.s32.totalorder %s124, %s127
      %p133 = scmp.eq.s32.totalorder %s28, 0
      %p134 = por %p132, %p133
      %p135 = scmp.ne.s32.totalorder %s124, %s127
      %p136 = scmp.eq.s32.totalorder %s33, 1
      %p137 = por %p135, %p136
      %p138 = scmp.ne.s32.totalorder %s127, %s128
      %p139 = scmp.eq.s32.totalorder %s33, 0
      %p140 = por %p138, %p139
      %p141 = scmp.ne.s32.totalorder %s127, %s128
      %p142 = scmp.eq.s32.totalorder %s34, 1
      %p143 = por %p141, %p142
      %p145 = scmp.ne.s32.totalorder %s128, %s144
      %p146 = scmp.eq.s32.totalorder %s34, 0
      %p147 = por %p145, %p146
      %s149 = sadd.s32 %s148, 1
      %p152 = scmp.eq.s32.totalorder %s28, 1
      %p153 = scmp.ne.s32.totalorder %s148, %s150
      %p154 = scmp.eq.s32.totalorder %s28, 0
      %p155 = por %p153, %p154
      %p156 = scmp.ne.s32.totalorder %s148, %s150
      %p157 = scmp.eq.s32.totalorder %s33, 1
      %p158 = por %p156, %p157
      %p159 = scmp.ne.s32.totalorder %s150, %s151
      %p160 = scmp.eq.s32.totalorder %s33, 0
      %p161 = por %p159, %p160
      %p162 = scmp.ne.s32.totalorder %s150, %s151
      %p163 = scmp.eq.s32.totalorder %s34, 1
      %p164 = por %p162, %p163
      %p166 = scmp.ne.s32.totalorder %s151, %s165
      %p167 = scmp.eq.s32.totalorder %s34, 0
      %p168 = por %p166, %p167
      %s170 = sadd.s32 %s169, 1
      %p173 = scmp.eq.s32.totalorder %s28, 1
      %p174 = scmp.ne.s32.totalorder %s169, %s171
      %p175 = scmp.eq.s32.totalorder %s28, 0
      %p176 = por %p174, %p175
      %p177 = scmp.ne.s32.totalorder %s169, %s171
      %p178 = scmp.eq.s32.totalorder %s33, 1
      %p179 = por %p177, %p178
      %p180 = scmp.ne.s32.totalorder %s171, %s172
      %p181 = scmp.eq.s32.totalorder %s33, 0
      %p182 = por %p180, %p181
      %p183 = scmp.ne.s32.totalorder %s171, %s172
      %p184 = scmp.eq.s32.totalorder %s34, 1
      %p185 = por %p183, %p184
      %p187 = scmp.ne.s32.totalorder %s172, %s186
      %p188 = scmp.eq.s32.totalorder %s34, 0
      %p189 = por %p187, %p188
      %s191 = sadd.s32 %s190, 1
      %p194 = scmp.eq.s32.totalorder %s28, 1
      %p195 = scmp.ne.s32.totalorder %s190, %s192
      %p196 = scmp.eq.s32.totalorder %s28, 0
      %p197 = por %p195, %p196
      %p198 = scmp.ne.s32.totalorder %s190, %s192
      %p199 = scmp.eq.s32.totalorder %s33, 1
      %p200 = por %p198, %p199
      %p201 = scmp.ne.s32.totalorder %s192, %s193
      %p202 = scmp.eq.s32.totalorder %s33, 0
      %p203 = por %p201, %p202
      %p204 = scmp.ne.s32.totalorder %s192, %s193
      %p205 = scmp.eq.s32.totalorder %s34, 1
      %p206 = por %p204, %p205
      %p208 = scmp.ne.s32.totalorder %s193, %s207
      %p209 = scmp.eq.s32.totalorder %s34, 0
      %p210 = por %p208, %p209
      %s211 = ssub.s32 %s35, %s47
      %s212 = ssub.s32 %s36, %s43
      %s213 = sor.u32 %s211, %s212
      %p214 = scmp.eq.s32.totalorder %s213, 0
      %s216 = sadd.s32 %s215, 1
      %s217 = scalar_select %p214, %s215, %s216
      %p220 = pneg %p214
      %p221 = scmp.eq.s32.totalorder %s28, 1
      %p222 = por %p220, %p221
      %p223 = scmp.ne.s32.totalorder %s215, %s218
      %p224 = scmp.eq.s32.totalorder %s28, 0
      %p225 = por %p223, %p224
      %p226 = scmp.ne.s32.totalorder %s215, %s218
      %p227 = scmp.eq.s32.totalorder %s33, 1
      %p228 = por %p226, %p227
      %p229 = scmp.ne.s32.totalorder %s218, %s219
      %p230 = scmp.eq.s32.totalorder %s33, 0
      %p231 = por %p229, %p230
      %p232 = scmp.ne.s32.totalorder %s218, %s219
      %p233 = scmp.eq.s32.totalorder %s34, 1
      %p234 = por %p232, %p233
      %p236 = scmp.ne.s32.totalorder %s219, %s235
      %p237 = scmp.eq.s32.totalorder %s34, 0
      %p238 = por %p236, %p237
      %s239 = ssub.s32 %s35, %s47
      %s240 = ssub.s32 %s36, %s43
      %s241 = sor.u32 %s239, %s240
      %p242 = scmp.eq.s32.totalorder %s241, 0
      %s244 = sadd.s32 %s243, 1
      %s245 = scalar_select %p242, %s243, %s244
      %p248 = pneg %p242
      %p249 = scmp.eq.s32.totalorder %s28, 1
      %p250 = por %p248, %p249
      %p251 = scmp.ne.s32.totalorder %s243, %s246
      %p252 = scmp.eq.s32.totalorder %s28, 0
      %p253 = por %p251, %p252
      %p254 = scmp.ne.s32.totalorder %s243, %s246
      %p255 = scmp.eq.s32.totalorder %s33, 1
      %p256 = por %p254, %p255
      %p257 = scmp.ne.s32.totalorder %s246, %s247
      %p258 = scmp.eq.s32.totalorder %s33, 0
      %p259 = por %p257, %p258
      %p260 = scmp.ne.s32.totalorder %s246, %s247
      %p261 = scmp.eq.s32.totalorder %s34, 1
      %p262 = por %p260, %p261
      %p264 = scmp.ne.s32.totalorder %s247, %s263
      %p265 = scmp.eq.s32.totalorder %s34, 0
      %p266 = por %p264, %p265
      %p267 = scmp.le.s32.totalorder 1, %s28
      %p268 = scmp.lt.s32.totalorder %s28, 3
      %p269 = pnand %p267, %p268
      %p270 = pneg %p269
      // Predicated region
      $region9: #{_lambda_.5} parent=5 // pred_check
        _
      $region10: #{_lambda_.5} parent=5 // pred_check_branch
        %272 = sbr.rel (%p269) target = $region12
      $region11: #{_lambda_.5} parent=5 // pred_region
        %s273 = ssub.s32 %s28, 1
        // Predicated region
        $region13: #{_lambda_.5} parent=11 // pred_check
          %p274 = pneg %p161
        $region14: #{_lambda_.5} parent=11 // pred_check_branch
          %276 = sbr.rel (%p274) target = $region16
        $region15: #{_lambda_.5} parent=11 // pred_region
          %s278 = ssub.s32 16, 16
          %279 = vsyncadd [#allocation10], %s278
          %s281 = sshll.u32 [#allocation9], 4
          %s282 = int_to_ptr.vmem [resolvable:$true] %s281
          %284 = dma.hbm_to_vmem [thread:$0]  %s3, 16, %s282, [#allocation10]
        $region16: #{_lambda_.5} parent=11 // pred_fallthru
          _
        // Predicated region
        $region17: #{_lambda_.5} parent=11 // pred_check
          %p285 = pneg %p182
        $region18: #{_lambda_.5} parent=11 // pred_check_branch
          %287 = sbr.rel (%p285) target = $region20
        $region19: #{_lambda_.5} parent=11 // pred_region
          %s289 = ssub.s32 16, 16
          %290 = vsyncadd [#allocation10], %s289
          %s292 = sshll.u32 [#allocation11], 4
          %s293 = int_to_ptr.vmem [resolvable:$true] %s292
          %295 = dma.hbm_to_vmem [thread:$0]  %s4, 16, %s293, [#allocation10]
        $region20: #{_lambda_.5} parent=11 // pred_fallthru
          _
        // Predicated region
        $region21: #{_lambda_.5} parent=11 // pred_check
          %p296 = pneg %p203
        $region22: #{_lambda_.5} parent=11 // pred_check_branch
          %298 = sbr.rel (%p296) target = $region24
        $region23: #{_lambda_.5} parent=11 // pred_region
          %s300 = ssub.s32 9216, 9216
          %301 = vsyncadd [#allocation13], %s300
          %s302 = sshll.u32 [#allocation12], 4
          %s303 = int_to_ptr.vmem [resolvable:$true] %s302
          %308 = dma.hbm_to_vmem [thread:$0]  %s5, 9216, %s303, [#allocation13], 64, 64, 4
        $region24: #{_lambda_.5} parent=11 // pred_fallthru
          _
      $region12: #{_lambda_.5} parent=5 // pred_fallthru
        _
      %p309 = scmp.lt.s32.totalorder %s28, 2
      // Predicated region
      $region25: #{_lambda_.5} parent=5 // pred_check
        %p310 = pneg %p309
      $region26: #{_lambda_.5} parent=5 // pred_check_branch
        %312 = sbr.rel (%p310) target = $region28
      $region27: #{_lambda_.5} parent=5 // pred_region
        // Predicated region
        $region29: #{_lambda_.5} parent=27 // pred_check
          %p313 = pneg %p62
        $region30: #{_lambda_.5} parent=27 // pred_check_branch
          %315 = sbr.rel (%p313) target = $region32
        $region31: #{_lambda_.5} parent=27 // pred_region
          %s316 = sand.u32 %s52, 1
          %s317 = scalar_lea.sflag [#allocation4], %s316
          %s318 = sand.u32 %s52, 1
          %s319 = smul.addr %s318, 128
          %s320 = scalar_lea.vmem [#allocation3], %s319
          %s321 = smul.u32 32, %s36
          %s323 = ssub.s32 2048, 2048
          %324 = vsyncadd %s317, %s323
          %s325 = smul.addr %s35, 32
          %s326 = sadd.s32 %s321, %s325
          %s327 = smul.addr %s326, 64
          %s328 = scalar_lea.hbm %s0, %s327
          %s329 = sshll.u32 %s320, 4
          %s330 = int_to_ptr.vmem [resolvable:$true] %s329
          %335 = dma.hbm_to_vmem [thread:$0]  %s328, 2048, %s330, %s317, 64, 64, 4
        $region32: #{_lambda_.5} parent=27 // pred_fallthru
          _
        // Predicated region
        $region33: #{_lambda_.5} parent=27 // pred_check
          %p336 = pneg %p98
        $region34: #{_lambda_.5} parent=27 // pred_check_branch
          %338 = sbr.rel (%p336) target = $region36
        $region35: #{_lambda_.5} parent=27 // pred_region
          %s339 = sand.u32 %s28, 1
          %s340 = scalar_lea.sflag [#allocation7], %s339
          %s341 = sand.u32 %s88, 1
          %s342 = smul.addr %s341, 8
          %s343 = scalar_lea.vmem [#allocation6], %s342
          %s344 = smul.u32 %s36, 16
          %s345 = ssub.s32 %s344, 1
          %p346 = scmp.gt.s32.totalorder %s345, 0
          %s347 = scalar_select %p346, %s345, 0
          %s348 = smul.u32 2, %s347
          %s350 = ssub.s32 128, 128
          %351 = vsyncadd %s340, %s350
          %s352 = smul.addr %s35, 32
          %s353 = sadd.s32 %s348, %s352
          %s354 = smul.addr %s353, 64
          %s355 = scalar_lea.hbm %s1, %s354
          %s356 = sshll.u32 %s343, 4
          %s357 = int_to_ptr.vmem [resolvable:$true] %s356
          %362 = dma.hbm_to_vmem [thread:$0]  %s355, 128, %s357, %s340, 64, 64, 4
        $region36: #{_lambda_.5} parent=27 // pred_fallthru
          _
        // Predicated region
        $region37: #{_lambda_.5} parent=27 // pred_check
          %p363 = pneg %p134
        $region38: #{_lambda_.5} parent=27 // pred_check_branch
          %365 = sbr.rel (%p363) target = $region40
        $region39: #{_lambda_.5} parent=27 // pred_region
          %s366 = sand.u32 %s28, 1
          %s367 = scalar_lea.sflag [#allocation7], %s366
          %s368 = sand.u32 %s124, 1
          %s369 = smul.addr %s368, 8
          %s370 = scalar_lea.vmem [#allocation8], %s369
          %s371 = sadd.s32 %s36, 1
          %s372 = smul.u32 %s371, 16
          %p373 = scmp.lt.s32.totalorder %s372, 15
          %s374 = scalar_select %p373, %s372, 15
          %s375 = smul.u32 2, %s374
          %s377 = ssub.s32 128, 128
          %378 = vsyncadd %s367, %s377
          %s379 = smul.addr %s35, 32
          %s380 = sadd.s32 %s375, %s379
          %s381 = smul.addr %s380, 64
          %s382 = scalar_lea.hbm %s2, %s381
          %s383 = sshll.u32 %s370, 4
          %s384 = int_to_ptr.vmem [resolvable:$true] %s383
          %389 = dma.hbm_to_vmem [thread:$0]  %s382, 128, %s384, %s367, 64, 64, 4
        $region40: #{_lambda_.5} parent=27 // pred_fallthru
          _
      $region28: #{_lambda_.5} parent=5 // pred_fallthru
        _
      %p390 = scmp.le.s32.totalorder 1, %s28
      %p391 = scmp.lt.s32.totalorder %s28, 3
      %p392 = pnand %p390, %p391
      %p393 = pneg %p392
      // Predicated region
      $region41: #{_lambda_.5} parent=5 // pred_check
        _
      $region42: #{_lambda_.5} parent=5 // pred_check_branch
        %395 = sbr.rel (%p392) target = $region44
      $region43: #{_lambda_.5} parent=5 // pred_region
        %s396 = ssub.s32 %s28, 1
        %s397 = sand.u32 %s55, 1
        %s398 = scalar_lea.sflag [#allocation4], %s397
        %s399 = sand.u32 %s55, 1
        %s400 = smul.addr %s399, 128
        %s401 = scalar_lea.vmem [#allocation3], %s400
        // Predicated region
        $region45: #{_lambda_.5} parent=43 // pred_check
          %p402 = pneg %p68
        $region46: #{_lambda_.5} parent=43 // pred_check_branch
          %404 = sbr.rel (%p402) target = $region48
        $region47: #{_lambda_.5} parent=43 // pred_region
          %405 = dma.done %s398, 2048
        $region48: #{_lambda_.5} parent=43 // pred_fallthru
          _
        %s406 = sand.u32 %s33, 1
        %s407 = scalar_lea.sflag [#allocation7], %s406
        %s408 = sand.u32 %s91, 1
        %s409 = smul.addr %s408, 8
        %s410 = scalar_lea.vmem [#allocation6], %s409
        // Predicated region
        $region49: #{_lambda_.5} parent=43 // pred_check
          %p411 = pneg %p104
        $region50: #{_lambda_.5} parent=43 // pred_check_branch
          %413 = sbr.rel (%p411) target = $region52
        $region51: #{_lambda_.5} parent=43 // pred_region
          %414 = dma.done %s407, 128
        $region52: #{_lambda_.5} parent=43 // pred_fallthru
          _
        %s415 = sand.u32 %s33, 1
        %s416 = scalar_lea.sflag [#allocation7], %s415
        %s417 = sand.u32 %s127, 1
        %s418 = smul.addr %s417, 8
        %s419 = scalar_lea.vmem [#allocation8], %s418
        // Predicated region
        $region53: #{_lambda_.5} parent=43 // pred_check
          %p420 = pneg %p140
        $region54: #{_lambda_.5} parent=43 // pred_check_branch
          %422 = sbr.rel (%p420) target = $region56
        $region55: #{_lambda_.5} parent=43 // pred_region
          %423 = dma.done %s416, 128
        $region56: #{_lambda_.5} parent=43 // pred_fallthru
          _
        // Predicated region
        $region57: #{_lambda_.5} parent=43 // pred_check
          %p424 = pneg %p161
        $region58: #{_lambda_.5} parent=43 // pred_check_branch
          %426 = sbr.rel (%p424) target = $region60
        $region59: #{_lambda_.5} parent=43 // pred_region
          %427 = dma.done [#allocation10], 16
        $region60: #{_lambda_.5} parent=43 // pred_fallthru
          _
        // Predicated region
        $region61: #{_lambda_.5} parent=43 // pred_check
          %p428 = pneg %p182
        $region62: #{_lambda_.5} parent=43 // pred_check_branch
          %430 = sbr.rel (%p428) target = $region64
        $region63: #{_lambda_.5} parent=43 // pred_region
          %431 = dma.done [#allocation10], 16
        $region64: #{_lambda_.5} parent=43 // pred_fallthru
          _
        // Predicated region
        $region65: #{_lambda_.5} parent=43 // pred_check
          %p432 = pneg %p203
        $region66: #{_lambda_.5} parent=43 // pred_check_branch
          %434 = sbr.rel (%p432) target = $region68
        $region67: #{_lambda_.5} parent=43 // pred_region
          %435 = dma.done [#allocation13], 9216
        $region68: #{_lambda_.5} parent=43 // pred_fallthru
          _
        %s436 = sand.u32 %s55, 1
        %s437 = scalar_lea.sflag [#allocation4], %s436
        %s438 = sand.u32 %s55, 1
        %s439 = smul.addr %s438, 128
        %s440 = scalar_lea.vmem [#allocation3], %s439
        %p441 = pneg %p68
        %p442 = pneg %p65
        %s443 = sand.u32 %s33, 1
        %s444 = scalar_lea.sflag [#allocation7], %s443
        %s445 = sand.u32 %s91, 1
        %s446 = smul.addr %s445, 8
        %s447 = scalar_lea.vmem [#allocation6], %s446
        %p448 = pneg %p104
        %p449 = pneg %p101
        %s450 = sand.u32 %s33, 1
        %s451 = scalar_lea.sflag [#allocation7], %s450
        %s452 = sand.u32 %s127, 1
        %s453 = smul.addr %s452, 8
        %s454 = scalar_lea.vmem [#allocation8], %s453
        %p455 = pneg %p140
        %p456 = pneg %p137
        %p457 = pneg %p161
        %p458 = pneg %p158
        %p459 = pneg %p182
        %p460 = pneg %p179
        %p461 = pneg %p203
        %p462 = pneg %p200
        %p463 = pneg %p231
        %p464 = pneg %p228
        %s465 = sand.u32 %s218, 1
        %s466 = scalar_lea.sflag [#allocation5], %s465
        %s467 = sand.u32 %s218, 1
        %s468 = smul.addr %s467, 128
        %s469 = scalar_lea.vmem [#allocation14], %s468
        %p470 = pneg %p259
        %p471 = pneg %p256
        %s472 = sand.u32 %s246, 1
        %s473 = scalar_lea.sflag [#allocation16], %s472
        %s474 = sand.u32 %s246, 1
        %s475 = smul.addr %s474, 2
        %s476 = scalar_lea.vmem [#allocation15], %s475
        %s477 = smul.u32 32, %s38
        %s478 = smul.u32 %s38, 16
        %s479 = ssub.s32 %s478, 1
        %p480 = scmp.gt.s32.totalorder %s479, 0
        %s481 = scalar_select %p480, %s479, 0
        %s482 = smul.u32 2, %s481
        %s483 = sadd.s32 %s38, 1
        %s484 = smul.u32 %s483, 16
        %p485 = scmp.lt.s32.totalorder %s484, 15
        %s486 = scalar_select %p485, %s484, 15
        %s487 = smul.u32 2, %s486
        %s488 = smul.u32 32, %s38
        %v492 = vld [vmem:[#allocation9] sm:$0x1]
        %v493 = vld [vmem:[#allocation11] sm:$0x1]
        %p494 = scmp.gt.s32.totalorder %s38, 0
        %v495 = vld [vmem:[%s410] sm:$0xf]
        %v496 = vld [vmem:[%s410 + $0x4] sm:$0xf]
        %v497 = vunpack.c.l.bf16 %v495
        %v498 = vunpack.c.l.bf16 %v496
        %v500 = vlaneseq
        %v501 = vshrl.u32 %v500, 7
        %v502 = vsub.s32 0, %v501
        %v503 = vrot.slane %v492, %v502
        %v505 = vmul.f32 %v497, %v503
        %v506 = vmul.f32 %v498, %v503
        %v508 = vlaneseq
        %v509 = vshrl.u32 %v508, 7
        %v510 = vsub.s32 0, %v509
        %v511 = vrot.slane %v493, %v510
        %v513 = vadd.f32 %v505, %v511
        %v514 = vadd.f32 %v506, %v511
        %v515 = vmax.f32 %v513, 0.0
        %v516 = vmax.f32 %v514, 0.0
        %s517 = scalar_select %p494, 1, 0
        %v518 = vstv %s517
        %vm519 = vcmp.eq.s32.totalorder %v518, 1
        %v520 = vsel %vm519, %v515, 0.0
        %v521 = vsel %vm519, %v516, 0.0
        %v522 = vpack.c.bf16 %v521, %v520
        %p523 = scmp.lt.s32.totalorder %s38, 0
        %v524 = vld [vmem:[%s419] sm:$0xf]
        %v525 = vld [vmem:[%s419 + $0x4] sm:$0xf]
        %v526 = vunpack.c.l.bf16 %v524
        %v527 = vunpack.c.l.bf16 %v525
        %v528 = vmul.f32 %v526, %v503
        %v529 = vmul.f32 %v527, %v503
        %v530 = vadd.f32 %v528, %v511
        %v531 = vadd.f32 %v529, %v511
        %v532 = vmax.f32 %v530, 0.0
        %v533 = vmax.f32 %v531, 0.0
        %s534 = scalar_select %p523, 1, 0
        %v535 = vstv %s534
        %vm536 = vcmp.eq.s32.totalorder %v535, 1
        %v537 = vsel %vm536, %v532, 0.0
        %v538 = vsel %vm536, %v533, 0.0
        %v539 = vpack.c.bf16 %v538, %v537
        %v540 = vld [vmem:[%s401] sm:$0xf]
        %v541 = vld [vmem:[%s401 + $0x4] sm:$0xf]
        %v542 = vld [vmem:[%s401 + $0x8] sm:$0xf]
        %v543 = vld [vmem:[%s401 + $0xc] sm:$0xf]
        %v544 = vld [vmem:[%s401 + $0x10] sm:$0xf]
        %v545 = vld [vmem:[%s401 + $0x14] sm:$0xf]
        %v546 = vld [vmem:[%s401 + $0x18] sm:$0xf]
        %v547 = vld [vmem:[%s401 + $0x1c] sm:$0xf]
        %v548 = vld [vmem:[%s401 + $0x20] sm:$0xf]
        %v549 = vld [vmem:[%s401 + $0x24] sm:$0xf]
        %v550 = vld [vmem:[%s401 + $0x28] sm:$0xf]
        %v551 = vld [vmem:[%s401 + $0x2c] sm:$0xf]
        %v552 = vld [vmem:[%s401 + $0x30] sm:$0xf]
        %v553 = vld [vmem:[%s401 + $0x34] sm:$0xf]
        %v554 = vld [vmem:[%s401 + $0x38] sm:$0xf]
        %v555 = vld [vmem:[%s401 + $0x3c] sm:$0xf]
        %v556 = vld [vmem:[%s401 + $0x40] sm:$0xf]
        %v557 = vld [vmem:[%s401 + $0x44] sm:$0xf]
        %v558 = vld [vmem:[%s401 + $0x48] sm:$0xf]
        %v559 = vld [vmem:[%s401 + $0x4c] sm:$0xf]
        %v560 = vld [vmem:[%s401 + $0x50] sm:$0xf]
        %v561 = vld [vmem:[%s401 + $0x54] sm:$0xf]
        %v562 = vld [vmem:[%s401 + $0x58] sm:$0xf]
        %v563 = vld [vmem:[%s401 + $0x5c] sm:$0xf]
        %v564 = vld [vmem:[%s401 + $0x60] sm:$0xf]
        %v565 = vld [vmem:[%s401 + $0x64] sm:$0xf]
        %v566 = vld [vmem:[%s401 + $0x68] sm:$0xf]
        %v567 = vld [vmem:[%s401 + $0x6c] sm:$0xf]
        %v568 = vld [vmem:[%s401 + $0x70] sm:$0xf]
        %v569 = vld [vmem:[%s401 + $0x74] sm:$0xf]
        %v570 = vld [vmem:[%s401 + $0x78] sm:$0xf]
        %v571 = vld [vmem:[%s401 + $0x7c] sm:$0xf]
        %v572 = vunpack.c.l.bf16 %v540
        %v573 = vunpack.c.l.bf16 %v541
        %v574 = vunpack.c.l.bf16 %v542
        %v575 = vunpack.c.l.bf16 %v543
        %v576 = vunpack.c.l.bf16 %v544
        %v577 = vunpack.c.l.bf16 %v545
        %v578 = vunpack.c.l.bf16 %v546
        %v579 = vunpack.c.l.bf16 %v547
        %v580 = vunpack.c.l.bf16 %v548
        %v581 = vunpack.c.l.bf16 %v549
        %v582 = vunpack.c.l.bf16 %v550
        %v583 = vunpack.c.l.bf16 %v551
        %v584 = vunpack.c.l.bf16 %v552
        %v585 = vunpack.c.l.bf16 %v553
        %v586 = vunpack.c.l.bf16 %v554
        %v587 = vunpack.c.l.bf16 %v555
        %v588 = vunpack.c.l.bf16 %v556
        %v589 = vunpack.c.l.bf16 %v557
        %v590 = vunpack.c.l.bf16 %v558
        %v591 = vunpack.c.l.bf16 %v559
        %v592 = vunpack.c.l.bf16 %v560
        %v593 = vunpack.c.l.bf16 %v561
        %v594 = vunpack.c.l.bf16 %v562
        %v595 = vunpack.c.l.bf16 %v563
        %v596 = vunpack.c.l.bf16 %v564
        %v597 = vunpack.c.l.bf16 %v565
        %v598 = vunpack.c.l.bf16 %v566
        %v599 = vunpack.c.l.bf16 %v567
        %v600 = vunpack.c.l.bf16 %v568
        %v601 = vunpack.c.l.bf16 %v569
        %v602 = vunpack.c.l.bf16 %v570
        %v603 = vunpack.c.l.bf16 %v571
        %v604 = vmul.f32 %v572, %v503
        %v605 = vmul.f32 %v573, %v503
        %v606 = vmul.f32 %v574, %v503
        %v607 = vmul.f32 %v575, %v503
        %v608 = vmul.f32 %v576, %v503
        %v609 = vmul.f32 %v577, %v503
        %v610 = vmul.f32 %v578, %v503
        %v611 = vmul.f32 %v579, %v503
        %v612 = vmul.f32 %v580, %v503
        %v613 = vmul.f32 %v581, %v503
        %v614 = vmul.f32 %v582, %v503
        %v615 = vmul.f32 %v583, %v503
        %v616 = vmul.f32 %v584, %v503
        %v617 = vmul.f32 %v585, %v503
        %v618 = vmul.f32 %v586, %v503
        %v619 = vmul.f32 %v587, %v503
        %v620 = vmul.f32 %v588, %v503
        %v621 = vmul.f32 %v589, %v503
        %v622 = vmul.f32 %v590, %v503
        %v623 = vmul.f32 %v591, %v503
        %v624 = vmul.f32 %v592, %v503
        %v625 = vmul.f32 %v593, %v503
        %v626 = vmul.f32 %v594, %v503
        %v627 = vmul.f32 %v595, %v503
        %v628 = vmul.f32 %v596, %v503
        %v629 = vmul.f32 %v597, %v503
        %v630 = vmul.f32 %v598, %v503
        %v631 = vmul.f32 %v599, %v503
        %v632 = vmul.f32 %v600, %v503
        %v633 = vmul.f32 %v601, %v503
        %v634 = vmul.f32 %v602, %v503
        %v635 = vmul.f32 %v603, %v503
        %v636 = vadd.f32 %v604, %v511
        %v637 = vadd.f32 %v605, %v511
        %v638 = vadd.f32 %v606, %v511
        %v639 = vadd.f32 %v607, %v511
        %v640 = vadd.f32 %v608, %v511
        %v641 = vadd.f32 %v609, %v511
        %v642 = vadd.f32 %v610, %v511
        %v643 = vadd.f32 %v611, %v511
        %v644 = vadd.f32 %v612, %v511
        %v645 = vadd.f32 %v613, %v511
        %v646 = vadd.f32 %v614, %v511
        %v647 = vadd.f32 %v615, %v511
        %v648 = vadd.f32 %v616, %v511
        %v649 = vadd.f32 %v617, %v511
        %v650 = vadd.f32 %v618, %v511
        %v651 = vadd.f32 %v619, %v511
        %v652 = vadd.f32 %v620, %v511
        %v653 = vadd.f32 %v621, %v511
        %v654 = vadd.f32 %v622, %v511
        %v655 = vadd.f32 %v623, %v511
        %v656 = vadd.f32 %v624, %v511
        %v657 = vadd.f32 %v625, %v511
        %v658 = vadd.f32 %v626, %v511
        %v659 = vadd.f32 %v627, %v511
        %v660 = vadd.f32 %v628, %v511
        %v661 = vadd.f32 %v629, %v511
        %v662 = vadd.f32 %v630, %v511
        %v663 = vadd.f32 %v631, %v511
        %v664 = vadd.f32 %v632, %v511
        %v665 = vadd.f32 %v633, %v511
        %v666 = vadd.f32 %v634, %v511
        %v667 = vadd.f32 %v635, %v511
        %v668 = vmax.f32 %v636, 0.0
        %v669 = vmax.f32 %v637, 0.0
        %v670 = vmax.f32 %v638, 0.0
        %v671 = vmax.f32 %v639, 0.0
        %v672 = vmax.f32 %v640, 0.0
        %v673 = vmax.f32 %v641, 0.0
        %v674 = vmax.f32 %v642, 0.0
        %v675 = vmax.f32 %v643, 0.0
        %v676 = vmax.f32 %v644, 0.0
        %v677 = vmax.f32 %v645, 0.0
        %v678 = vmax.f32 %v646, 0.0
        %v679 = vmax.f32 %v647, 0.0
        %v680 = vmax.f32 %v648, 0.0
        %v681 = vmax.f32 %v649, 0.0
        %v682 = vmax.f32 %v650, 0.0
        %v683 = vmax.f32 %v651, 0.0
        %v684 = vmax.f32 %v652, 0.0
        %v685 = vmax.f32 %v653, 0.0
        %v686 = vmax.f32 %v654, 0.0
        %v687 = vmax.f32 %v655, 0.0
        %v688 = vmax.f32 %v656, 0.0
        %v689 = vmax.f32 %v657, 0.0
        %v690 = vmax.f32 %v658, 0.0
        %v691 = vmax.f32 %v659, 0.0
        %v692 = vmax.f32 %v660, 0.0
        %v693 = vmax.f32 %v661, 0.0
        %v694 = vmax.f32 %v662, 0.0
        %v695 = vmax.f32 %v663, 0.0
        %v696 = vmax.f32 %v664, 0.0
        %v697 = vmax.f32 %v665, 0.0
        %v698 = vmax.f32 %v666, 0.0
        %v699 = vmax.f32 %v667, 0.0
        %v700 = vpack.c.bf16 %v669, %v668
        %v701 = vpack.c.bf16 %v671, %v670
        %v702 = vpack.c.bf16 %v673, %v672
        %v703 = vpack.c.bf16 %v675, %v674
        %v704 = vpack.c.bf16 %v677, %v676
        %v705 = vpack.c.bf16 %v679, %v678
        %v706 = vpack.c.bf16 %v681, %v680
        %v707 = vpack.c.bf16 %v683, %v682
        %v708 = vpack.c.bf16 %v685, %v684
        %v709 = vpack.c.bf16 %v687, %v686
        %v710 = vpack.c.bf16 %v689, %v688
        %v711 = vpack.c.bf16 %v691, %v690
        %v712 = vpack.c.bf16 %v693, %v692
        %v713 = vpack.c.bf16 %v695, %v694
        %v714 = vpack.c.bf16 %v697, %v696
        %v715 = vpack.c.bf16 %v699, %v698
        %716 = vst [vmem:[#allocation2 + $0x8] sm:$0xff] %v522
        %717 = vst [vmem:[#allocation2 + $0x10] sm:$0xff] %v700
        %718 = vst [vmem:[#allocation2 + $0x18] sm:$0xff] %v701
        %719 = vst [vmem:[#allocation2 + $0x20] sm:$0xff] %v702
        %720 = vst [vmem:[#allocation2 + $0x28] sm:$0xff] %v703
        %721 = vst [vmem:[#allocation2 + $0x30] sm:$0xff] %v704
        %722 = vst [vmem:[#allocation2 + $0x38] sm:$0xff] %v705
        %723 = vst [vmem:[#allocation2 + $0x40] sm:$0xff] %v706
        %724 = vst [vmem:[#allocation2 + $0x48] sm:$0xff] %v707
        %725 = vst [vmem:[#allocation2 + $0x50] sm:$0xff] %v708
        %726 = vst [vmem:[#allocation2 + $0x58] sm:$0xff] %v709
        %727 = vst [vmem:[#allocation2 + $0x60] sm:$0xff] %v710
        %728 = vst [vmem:[#allocation2 + $0x68] sm:$0xff] %v711
        %729 = vst [vmem:[#allocation2 + $0x70] sm:$0xff] %v712
        %730 = vst [vmem:[#allocation2 + $0x78] sm:$0xff] %v713
        %731 = vst [vmem:[#allocation2 + $0x80] sm:$0xff] %v714
        %732 = vst [vmem:[#allocation2 + $0x88] sm:$0xff] %v715
        %733 = vst [vmem:[#allocation2 + $0x90] sm:$0xff] %v539
        %v734 = vlaneseq
        %v735 = vshrl.u32 %v734, 7
        %v736 = vadd.s32 %v735, 8
        %v737 = vadd.s32 %v735, 16
        %v738 = vadd.s32 %v735, 24
        %v739 = vadd.s32 %v735, 32
        %v740 = vadd.s32 %v735, 40
        %v741 = vadd.s32 %v735, 48
        %v742 = vadd.s32 %v735, 56
        %v743 = vadd.s32 %v735, 64
        %v744 = vadd.s32 %v735, 72
        %v745 = vadd.s32 %v735, 80
        %v746 = vadd.s32 %v735, 88
        %v747 = vadd.s32 %v735, 96
        %v748 = vadd.s32 %v735, 104
        %v749 = vadd.s32 %v735, 112
        %v750 = vadd.s32 %v735, 120
        %v751 = vadd.s32 %v735, 128
        %v752 = vadd.s32 %v735, 136
        %v753 = vadd.s32 %v735, 144
        %v754 = vadd.s32 %v735, 152
        %v755 = vadd.s32 %v735, 160
        %v756 = vadd.s32 %v735, 168
        %v757 = vadd.s32 %v735, 176
        %v758 = vadd.s32 %v735, 184
        %v759 = vadd.s32 %v735, 192
        %v760 = vadd.s32 %v735, 200
        %v761 = vadd.s32 %v735, 208
        %v762 = vadd.s32 %v735, 216
        %v763 = vadd.s32 %v735, 224
        %v764 = vadd.s32 %v735, 232
        %v765 = vadd.s32 %v735, 240
        %v766 = vadd.s32 %v735, 248
        %vm767 = vcmp.lt.s32.totalorder %v735, 0
        %v768 = vsub.s32 0, %v735
        %v769 = vsel %vm767, %v768, %v735
        %v770 = vshrl.u32 %v769, 4
        %v771 = vand.u32 %v769, 15
        %v772 = vsub.s32 0, %v771
        %v773 = vsel %vm767, %v772, %v771
        %vm774 = vcmp.lt.s32.totalorder %v736, 0
        %v775 = vsub.s32 0, %v736
        %v776 = vsel %vm774, %v775, %v736
        %v777 = vshrl.u32 %v776, 4
        %v778 = vand.u32 %v776, 15
        %v779 = vsub.s32 0, %v778
        %v780 = vsel %vm774, %v779, %v778
        %vm781 = vcmp.lt.s32.totalorder %v737, 0
        %v782 = vsub.s32 0, %v737
        %v783 = vsel %vm781, %v782, %v737
        %v784 = vshrl.u32 %v783, 4
        %v785 = vand.u32 %v783, 15
        %v786 = vsub.s32 0, %v785
        %v787 = vsel %vm781, %v786, %v785
        %vm788 = vcmp.lt.s32.totalorder %v738, 0
        %v789 = vsub.s32 0, %v738
        %v790 = vsel %vm788, %v789, %v738
        %v791 = vshrl.u32 %v790, 4
        %v792 = vand.u32 %v790, 15
        %v793 = vsub.s32 0, %v792
        %v794 = vsel %vm788, %v793, %v792
        %vm795 = vcmp.lt.s32.totalorder %v739, 0
        %v796 = vsub.s32 0, %v739
        %v797 = vsel %vm795, %v796, %v739
        %v798 = vshrl.u32 %v797, 4
        %v799 = vand.u32 %v797, 15
        %v800 = vsub.s32 0, %v799
        %v801 = vsel %vm795, %v800, %v799
        %vm802 = vcmp.lt.s32.totalorder %v740, 0
        %v803 = vsub.s32 0, %v740
        %v804 = vsel %vm802, %v803, %v740
        %v805 = vshrl.u32 %v804, 4
        %v806 = vand.u32 %v804, 15
        %v807 = vsub.s32 0, %v806
        %v808 = vsel %vm802, %v807, %v806
        %vm809 = vcmp.lt.s32.totalorder %v741, 0
        %v810 = vsub.s32 0, %v741
        %v811 = vsel %vm809, %v810, %v741
        %v812 = vshrl.u32 %v811, 4
        %v813 = vand.u32 %v811, 15
        %v814 = vsub.s32 0, %v813
        %v815 = vsel %vm809, %v814, %v813
        %vm816 = vcmp.lt.s32.totalorder %v742, 0
        %v817 = vsub.s32 0, %v742
        %v818 = vsel %vm816, %v817, %v742
        %v819 = vshrl.u32 %v818, 4
        %v820 = vand.u32 %v818, 15
        %v821 = vsub.s32 0, %v820
        %v822 = vsel %vm816, %v821, %v820
        %vm823 = vcmp.lt.s32.totalorder %v743, 0
        %v824 = vsub.s32 0, %v743
        %v825 = vsel %vm823, %v824, %v743
        %v826 = vshrl.u32 %v825, 4
        %v827 = vand.u32 %v825, 15
        %v828 = vsub.s32 0, %v827
        %v829 = vsel %vm823, %v828, %v827
        %vm830 = vcmp.lt.s32.totalorder %v744, 0
        %v831 = vsub.s32 0, %v744
        %v832 = vsel %vm830, %v831, %v744
        %v833 = vshrl.u32 %v832, 4
        %v834 = vand.u32 %v832, 15
        %v835 = vsub.s32 0, %v834
        %v836 = vsel %vm830, %v835, %v834
        %vm837 = vcmp.lt.s32.totalorder %v745, 0
        %v838 = vsub.s32 0, %v745
        %v839 = vsel %vm837, %v838, %v745
        %v840 = vshrl.u32 %v839, 4
        %v841 = vand.u32 %v839, 15
        %v842 = vsub.s32 0, %v841
        %v843 = vsel %vm837, %v842, %v841
        %vm844 = vcmp.lt.s32.totalorder %v746, 0
        %v845 = vsub.s32 0, %v746
        %v846 = vsel %vm844, %v845, %v746
        %v847 = vshrl.u32 %v846, 4
        %v848 = vand.u32 %v846, 15
        %v849 = vsub.s32 0, %v848
        %v850 = vsel %vm844, %v849, %v848
        %vm851 = vcmp.lt.s32.totalorder %v747, 0
        %v852 = vsub.s32 0, %v747
        %v853 = vsel %vm851, %v852, %v747
        %v854 = vshrl.u32 %v853, 4
        %v855 = vand.u32 %v853, 15
        %v856 = vsub.s32 0, %v855
        %v857 = vsel %vm851, %v856, %v855
        %vm858 = vcmp.lt.s32.totalorder %v748, 0
        %v859 = vsub.s32 0, %v748
        %v860 = vsel %vm858, %v859, %v748
        %v861 = vshrl.u32 %v860, 4
        %v862 = vand.u32 %v860, 15
        %v863 = vsub.s32 0, %v862
        %v864 = vsel %vm858, %v863, %v862
        %vm865 = vcmp.lt.s32.totalorder %v749, 0
        %v866 = vsub.s32 0, %v749
        %v867 = vsel %vm865, %v866, %v749
        %v868 = vshrl.u32 %v867, 4
        %v869 = vand.u32 %v867, 15
        %v870 = vsub.s32 0, %v869
        %v871 = vsel %vm865, %v870, %v869
        %vm872 = vcmp.lt.s32.totalorder %v750, 0
        %v873 = vsub.s32 0, %v750
        %v874 = vsel %vm872, %v873, %v750
        %v875 = vshrl.u32 %v874, 4
        %v876 = vand.u32 %v874, 15
        %v877 = vsub.s32 0, %v876
        %v878 = vsel %vm872, %v877, %v876
        %vm879 = vcmp.lt.s32.totalorder %v751, 0
        %v880 = vsub.s32 0, %v751
        %v881 = vsel %vm879, %v880, %v751
        %v882 = vshrl.u32 %v881, 4
        %v883 = vand.u32 %v881, 15
        %v884 = vsub.s32 0, %v883
        %v885 = vsel %vm879, %v884, %v883
        %vm886 = vcmp.lt.s32.totalorder %v752, 0
        %v887 = vsub.s32 0, %v752
        %v888 = vsel %vm886, %v887, %v752
        %v889 = vshrl.u32 %v888, 4
        %v890 = vand.u32 %v888, 15
        %v891 = vsub.s32 0, %v890
        %v892 = vsel %vm886, %v891, %v890
        %vm893 = vcmp.lt.s32.totalorder %v753, 0
        %v894 = vsub.s32 0, %v753
        %v895 = vsel %vm893, %v894, %v753
        %v896 = vshrl.u32 %v895, 4
        %v897 = vand.u32 %v895, 15
        %v898 = vsub.s32 0, %v897
        %v899 = vsel %vm893, %v898, %v897
        %vm900 = vcmp.lt.s32.totalorder %v754, 0
        %v901 = vsub.s32 0, %v754
        %v902 = vsel %vm900, %v901, %v754
        %v903 = vshrl.u32 %v902, 4
        %v904 = vand.u32 %v902, 15
        %v905 = vsub.s32 0, %v904
        %v906 = vsel %vm900, %v905, %v904
        %vm907 = vcmp.lt.s32.totalorder %v755, 0
        %v908 = vsub.s32 0, %v755
        %v909 = vsel %vm907, %v908, %v755
        %v910 = vshrl.u32 %v909, 4
        %v911 = vand.u32 %v909, 15
        %v912 = vsub.s32 0, %v911
        %v913 = vsel %vm907, %v912, %v911
        %vm914 = vcmp.lt.s32.totalorder %v756, 0
        %v915 = vsub.s32 0, %v756
        %v916 = vsel %vm914, %v915, %v756
        %v917 = vshrl.u32 %v916, 4
        %v918 = vand.u32 %v916, 15
        %v919 = vsub.s32 0, %v918
        %v920 = vsel %vm914, %v919, %v918
        %vm921 = vcmp.lt.s32.totalorder %v757, 0
        %v922 = vsub.s32 0, %v757
        %v923 = vsel %vm921, %v922, %v757
        %v924 = vshrl.u32 %v923, 4
        %v925 = vand.u32 %v923, 15
        %v926 = vsub.s32 0, %v925
        %v927 = vsel %vm921, %v926, %v925
        %vm928 = vcmp.lt.s32.totalorder %v758, 0
        %v929 = vsub.s32 0, %v758
        %v930 = vsel %vm928, %v929, %v758
        %v931 = vshrl.u32 %v930, 4
        %v932 = vand.u32 %v930, 15
        %v933 = vsub.s32 0, %v932
        %v934 = vsel %vm928, %v933, %v932
        %vm935 = vcmp.lt.s32.totalorder %v759, 0
        %v936 = vsub.s32 0, %v759
        %v937 = vsel %vm935, %v936, %v759
        %v938 = vshrl.u32 %v937, 4
        %v939 = vand.u32 %v937, 15
        %v940 = vsub.s32 0, %v939
        %v941 = vsel %vm935, %v940, %v939
        %vm942 = vcmp.lt.s32.totalorder %v760, 0
        %v943 = vsub.s32 0, %v760
        %v944 = vsel %vm942, %v943, %v760
        %v945 = vshrl.u32 %v944, 4
        %v946 = vand.u32 %v944, 15
        %v947 = vsub.s32 0, %v946
        %v948 = vsel %vm942, %v947, %v946
        %vm949 = vcmp.lt.s32.totalorder %v761, 0
        %v950 = vsub.s32 0, %v761
        %v951 = vsel %vm949, %v950, %v761
        %v952 = vshrl.u32 %v951, 4
        %v953 = vand.u32 %v951, 15
        %v954 = vsub.s32 0, %v953
        %v955 = vsel %vm949, %v954, %v953
        %vm956 = vcmp.lt.s32.totalorder %v762, 0
        %v957 = vsub.s32 0, %v762
        %v958 = vsel %vm956, %v957, %v762
        %v959 = vshrl.u32 %v958, 4
        %v960 = vand.u32 %v958, 15
        %v961 = vsub.s32 0, %v960
        %v962 = vsel %vm956, %v961, %v960
        %vm963 = vcmp.lt.s32.totalorder %v763, 0
        %v964 = vsub.s32 0, %v763
        %v965 = vsel %vm963, %v964, %v763
        %v966 = vshrl.u32 %v965, 4
        %v967 = vand.u32 %v965, 15
        %v968 = vsub.s32 0, %v967
        %v969 = vsel %vm963, %v968, %v967
        %vm970 = vcmp.lt.s32.totalorder %v764, 0
        %v971 = vsub.s32 0, %v764
        %v972 = vsel %vm970, %v971, %v764
        %v973 = vshrl.u32 %v972, 4
        %v974 = vand.u32 %v972, 15
        %v975 = vsub.s32 0, %v974
        %v976 = vsel %vm970, %v975, %v974
        %vm977 = vcmp.lt.s32.totalorder %v765, 0
        %v978 = vsub.s32 0, %v765
        %v979 = vsel %vm977, %v978, %v765
        %v980 = vshrl.u32 %v979, 4
        %v981 = vand.u32 %v979, 15
        %v982 = vsub.s32 0, %v981
        %v983 = vsel %vm977, %v982, %v981
        %vm984 = vcmp.lt.s32.totalorder %v766, 0
        %v985 = vsub.s32 0, %v766
        %v986 = vsel %vm984, %v985, %v766
        %v987 = vshrl.u32 %v986, 4
        %v988 = vand.u32 %v986, 15
        %v989 = vsub.s32 0, %v988
        %v990 = vsel %vm984, %v989, %v988
        %vm991 = vcmp.ne.s32.totalorder %v773, 0
        %vm992 = vcmp.ne.s32.totalorder %v780, 0
        %vm993 = vcmp.ne.s32.totalorder %v787, 0
        %vm994 = vcmp.ne.s32.totalorder %v794, 0
        %vm995 = vcmp.ne.s32.totalorder %v801, 0
        %vm996 = vcmp.ne.s32.totalorder %v808, 0
        %vm997 = vcmp.ne.s32.totalorder %v815, 0
        %vm998 = vcmp.ne.s32.totalorder %v822, 0
        %vm999 = vcmp.ne.s32.totalorder %v829, 0
        %vm1000 = vcmp.ne.s32.totalorder %v836, 0
        %vm1001 = vcmp.ne.s32.totalorder %v843, 0
        %vm1002 = vcmp.ne.s32.totalorder %v850, 0
        %vm1003 = vcmp.ne.s32.totalorder %v857, 0
        %vm1004 = vcmp.ne.s32.totalorder %v864, 0
        %vm1005 = vcmp.ne.s32.totalorder %v871, 0
        %vm1006 = vcmp.ne.s32.totalorder %v878, 0
        %vm1007 = vcmp.ne.s32.totalorder %v885, 0
        %vm1008 = vcmp.ne.s32.totalorder %v892, 0
        %vm1009 = vcmp.ne.s32.totalorder %v899, 0
        %vm1010 = vcmp.ne.s32.totalorder %v906, 0
        %vm1011 = vcmp.ne.s32.totalorder %v913, 0
        %vm1012 = vcmp.ne.s32.totalorder %v920, 0
        %vm1013 = vcmp.ne.s32.totalorder %v927, 0
        %vm1014 = vcmp.ne.s32.totalorder %v934, 0
        %vm1015 = vcmp.ne.s32.totalorder %v941, 0
        %vm1016 = vcmp.ne.s32.totalorder %v948, 0
        %vm1017 = vcmp.ne.s32.totalorder %v955, 0
        %vm1018 = vcmp.ne.s32.totalorder %v962, 0
        %vm1019 = vcmp.ne.s32.totalorder %v969, 0
        %vm1020 = vcmp.ne.s32.totalorder %v976, 0
        %vm1021 = vcmp.ne.s32.totalorder %v983, 0
        %vm1022 = vcmp.ne.s32.totalorder %v990, 0
        %vm1023 = vcmp.lt.s32.totalorder %v773, 0
        %vm1024 = vcmp.lt.s32.totalorder %v780, 0
        %vm1025 = vcmp.lt.s32.totalorder %v787, 0
        %vm1026 = vcmp.lt.s32.totalorder %v794, 0
        %vm1027 = vcmp.lt.s32.totalorder %v801, 0
        %vm1028 = vcmp.lt.s32.totalorder %v808, 0
        %vm1029 = vcmp.lt.s32.totalorder %v815, 0
        %vm1030 = vcmp.lt.s32.totalorder %v822, 0
        %vm1031 = vcmp.lt.s32.totalorder %v829, 0
        %vm1032 = vcmp.lt.s32.totalorder %v836, 0
        %vm1033 = vcmp.lt.s32.totalorder %v843, 0
        %vm1034 = vcmp.lt.s32.totalorder %v850, 0
        %vm1035 = vcmp.lt.s32.totalorder %v857, 0
        %vm1036 = vcmp.lt.s32.totalorder %v864, 0
        %vm1037 = vcmp.lt.s32.totalorder %v871, 0
        %vm1038 = vcmp.lt.s32.totalorder %v878, 0
        %vm1039 = vcmp.lt.s32.totalorder %v885, 0
        %vm1040 = vcmp.lt.s32.totalorder %v892, 0
        %vm1041 = vcmp.lt.s32.totalorder %v899, 0
        %vm1042 = vcmp.lt.s32.totalorder %v906, 0
        %vm1043 = vcmp.lt.s32.totalorder %v913, 0
        %vm1044 = vcmp.lt.s32.totalorder %v920, 0
        %vm1045 = vcmp.lt.s32.totalorder %v927, 0
        %vm1046 = vcmp.lt.s32.totalorder %v934, 0
        %vm1047 = vcmp.lt.s32.totalorder %v941, 0
        %vm1048 = vcmp.lt.s32.totalorder %v948, 0
        %vm1049 = vcmp.lt.s32.totalorder %v955, 0
        %vm1050 = vcmp.lt.s32.totalorder %v962, 0
        %vm1051 = vcmp.lt.s32.totalorder %v969, 0
        %vm1052 = vcmp.lt.s32.totalorder %v976, 0
        %vm1053 = vcmp.lt.s32.totalorder %v983, 0
        %vm1054 = vcmp.lt.s32.totalorder %v990, 0
        %vm1055 = vmand %vm1023, %vm991
        %vm1056 = vmand %vm1024, %vm992
        %vm1057 = vmand %vm1025, %vm993
        %vm1058 = vmand %vm1026, %vm994
        %vm1059 = vmand %vm1027, %vm995
        %vm1060 = vmand %vm1028, %vm996
        %vm1061 = vmand %vm1029, %vm997
        %vm1062 = vmand %vm1030, %vm998
        %vm1063 = vmand %vm1031, %vm999
        %vm1064 = vmand %vm1032, %vm1000
        %vm1065 = vmand %vm1033, %vm1001
        %vm1066 = vmand %vm1034, %vm1002
        %vm1067 = vmand %vm1035, %vm1003
        %vm1068 = vmand %vm1036, %vm1004
        %vm1069 = vmand %vm1037, %vm1005
        %vm1070 = vmand %vm1038, %vm1006
        %vm1071 = vmand %vm1039, %vm1007
        %vm1072 = vmand %vm1040, %vm1008
        %vm1073 = vmand %vm1041, %vm1009
        %vm1074 = vmand %vm1042, %vm1010
        %vm1075 = vmand %vm1043, %vm1011
        %vm1076 = vmand %vm1044, %vm1012
        %vm1077 = vmand %vm1045, %vm1013
        %vm1078 = vmand %vm1046, %vm1014
        %vm1079 = vmand %vm1047, %vm1015
        %vm1080 = vmand %vm1048, %vm1016
        %vm1081 = vmand %vm1049, %vm1017
        %vm1082 = vmand %vm1050, %vm1018
        %vm1083 = vmand %vm1051, %vm1019
        %vm1084 = vmand %vm1052, %vm1020
        %vm1085 = vmand %vm1053, %vm1021
        %vm1086 = vmand %vm1054, %vm1022
        %v1087 = vadd.s32 %v773, 16
        %v1088 = vadd.s32 %v780, 16
        %v1089 = vadd.s32 %v787, 16
        %v1090 = vadd.s32 %v794, 16
        %v1091 = vadd.s32 %v801, 16
        %v1092 = vadd.s32 %v808, 16
        %v1093 = vadd.s32 %v815, 16
        %v1094 = vadd.s32 %v822, 16
        %v1095 = vadd.s32 %v829, 16
        %v1096 = vadd.s32 %v836, 16
        %v1097 = vadd.s32 %v843, 16
        %v1098 = vadd.s32 %v850, 16
        %v1099 = vadd.s32 %v857, 16
        %v1100 = vadd.s32 %v864, 16
        %v1101 = vadd.s32 %v871, 16
        %v1102 = vadd.s32 %v878, 16
        %v1103 = vadd.s32 %v885, 16
        %v1104 = vadd.s32 %v892, 16
        %v1105 = vadd.s32 %v899, 16
        %v1106 = vadd.s32 %v906, 16
        %v1107 = vadd.s32 %v913, 16
        %v1108 = vadd.s32 %v920, 16
        %v1109 = vadd.s32 %v927, 16
        %v1110 = vadd.s32 %v934, 16
        %v1111 = vadd.s32 %v941, 16
        %v1112 = vadd.s32 %v948, 16
        %v1113 = vadd.s32 %v955, 16
        %v1114 = vadd.s32 %v962, 16
        %v1115 = vadd.s32 %v969, 16
        %v1116 = vadd.s32 %v976, 16
        %v1117 = vadd.s32 %v983, 16
        %v1118 = vadd.s32 %v990, 16
        %v1119 = vsel %vm1055, %v1087, %v773
        %v1120 = vsel %vm1056, %v1088, %v780
        %v1121 = vsel %vm1057, %v1089, %v787
        %v1122 = vsel %vm1058, %v1090, %v794
        %v1123 = vsel %vm1059, %v1091, %v801
        %v1124 = vsel %vm1060, %v1092, %v808
        %v1125 = vsel %vm1061, %v1093, %v815
        %v1126 = vsel %vm1062, %v1094, %v822
        %v1127 = vsel %vm1063, %v1095, %v829
        %v1128 = vsel %vm1064, %v1096, %v836
        %v1129 = vsel %vm1065, %v1097, %v843
        %v1130 = vsel %vm1066, %v1098, %v850
        %v1131 = vsel %vm1067, %v1099, %v857
        %v1132 = vsel %vm1068, %v1100, %v864
        %v1133 = vsel %vm1069, %v1101, %v871
        %v1134 = vsel %vm1070, %v1102, %v878
        %v1135 = vsel %vm1071, %v1103, %v885
        %v1136 = vsel %vm1072, %v1104, %v892
        %v1137 = vsel %vm1073, %v1105, %v899
        %v1138 = vsel %vm1074, %v1106, %v906
        %v1139 = vsel %vm1075, %v1107, %v913
        %v1140 = vsel %vm1076, %v1108, %v920
        %v1141 = vsel %vm1077, %v1109, %v927
        %v1142 = vsel %vm1078, %v1110, %v934
        %v1143 = vsel %vm1079, %v1111, %v941
        %v1144 = vsel %vm1080, %v1112, %v948
        %v1145 = vsel %vm1081, %v1113, %v955
        %v1146 = vsel %vm1082, %v1114, %v962
        %v1147 = vsel %vm1083, %v1115, %v969
        %v1148 = vsel %vm1084, %v1116, %v976
        %v1149 = vsel %vm1085, %v1117, %v983
        %v1150 = vsel %vm1086, %v1118, %v990
        %vm1151 = vcmp.ge.s32.totalorder %v1119, 1
        %vm1152 = vcmp.ge.s32.totalorder %v1120, 1
        %vm1153 = vcmp.ge.s32.totalorder %v1121, 1
        %vm1154 = vcmp.ge.s32.totalorder %v1122, 1
        %vm1155 = vcmp.ge.s32.totalorder %v1123, 1
        %vm1156 = vcmp.ge.s32.totalorder %v1124, 1
        %vm1157 = vcmp.ge.s32.totalorder %v1125, 1
        %vm1158 = vcmp.ge.s32.totalorder %v1126, 1
        %vm1159 = vcmp.ge.s32.totalorder %v1127, 1
        %vm1160 = vcmp.ge.s32.totalorder %v1128, 1
        %vm1161 = vcmp.ge.s32.totalorder %v1129, 1
        %vm1162 = vcmp.ge.s32.totalorder %v1130, 1
        %vm1163 = vcmp.ge.s32.totalorder %v1131, 1
        %vm1164 = vcmp.ge.s32.totalorder %v1132, 1
        %vm1165 = vcmp.ge.s32.totalorder %v1133, 1
        %vm1166 = vcmp.ge.s32.totalorder %v1134, 1
        %vm1167 = vcmp.ge.s32.totalorder %v1135, 1
        %vm1168 = vcmp.ge.s32.totalorder %v1136, 1
        %vm1169 = vcmp.ge.s32.totalorder %v1137, 1
        %vm1170 = vcmp.ge.s32.totalorder %v1138, 1
        %vm1171 = vcmp.ge.s32.totalorder %v1139, 1
        %vm1172 = vcmp.ge.s32.totalorder %v1140, 1
        %vm1173 = vcmp.ge.s32.totalorder %v1141, 1
        %vm1174 = vcmp.ge.s32.totalorder %v1142, 1
        %vm1175 = vcmp.ge.s32.totalorder %v1143, 1
        %vm1176 = vcmp.ge.s32.totalorder %v1144, 1
        %vm1177 = vcmp.ge.s32.totalorder %v1145, 1
        %vm1178 = vcmp.ge.s32.totalorder %v1146, 1
        %vm1179 = vcmp.ge.s32.totalorder %v1147, 1
        %vm1180 = vcmp.ge.s32.totalorder %v1148, 1
        %vm1181 = vcmp.ge.s32.totalorder %v1149, 1
        %vm1182 = vcmp.ge.s32.totalorder %v1150, 1
        %vm1183 = vcmp.le.s32.totalorder %v1119, 14
        %vm1184 = vcmp.le.s32.totalorder %v1120, 14
        %vm1185 = vcmp.le.s32.totalorder %v1121, 14
        %vm1186 = vcmp.le.s32.totalorder %v1122, 14
        %vm1187 = vcmp.le.s32.totalorder %v1123, 14
        %vm1188 = vcmp.le.s32.totalorder %v1124, 14
        %vm1189 = vcmp.le.s32.totalorder %v1125, 14
        %vm1190 = vcmp.le.s32.totalorder %v1126, 14
        %vm1191 = vcmp.le.s32.totalorder %v1127, 14
        %vm1192 = vcmp.le.s32.totalorder %v1128, 14
        %vm1193 = vcmp.le.s32.totalorder %v1129, 14
        %vm1194 = vcmp.le.s32.totalorder %v1130, 14
        %vm1195 = vcmp.le.s32.totalorder %v1131, 14
        %vm1196 = vcmp.le.s32.totalorder %v1132, 14
        %vm1197 = vcmp.le.s32.totalorder %v1133, 14
        %vm1198 = vcmp.le.s32.totalorder %v1134, 14
        %vm1199 = vcmp.le.s32.totalorder %v1135, 14
        %vm1200 = vcmp.le.s32.totalorder %v1136, 14
        %vm1201 = vcmp.le.s32.totalorder %v1137, 14
        %vm1202 = vcmp.le.s32.totalorder %v1138, 14
        %vm1203 = vcmp.le.s32.totalorder %v1139, 14
        %vm1204 = vcmp.le.s32.totalorder %v1140, 14
        %vm1205 = vcmp.le.s32.totalorder %v1141, 14
        %vm1206 = vcmp.le.s32.totalorder %v1142, 14
        %vm1207 = vcmp.le.s32.totalorder %v1143, 14
        %vm1208 = vcmp.le.s32.totalorder %v1144, 14
        %vm1209 = vcmp.le.s32.totalorder %v1145, 14
        %vm1210 = vcmp.le.s32.totalorder %v1146, 14
        %vm1211 = vcmp.le.s32.totalorder %v1147, 14
        %vm1212 = vcmp.le.s32.totalorder %v1148, 14
        %vm1213 = vcmp.le.s32.totalorder %v1149, 14
        %vm1214 = vcmp.le.s32.totalorder %v1150, 14
        %v1215 = vld [vmem:[#allocation2] sm:$0x80]
        %v1216 = vld [vmem:[#allocation2 + $0x8] sm:$0xff]
        %v1217 = vld [vmem:[#allocation2 + $0x10] sm:$0xff]
        %v1218 = vld [vmem:[#allocation2 + $0x18] sm:$0xff]
        %v1219 = vld [vmem:[#allocation2 + $0x20] sm:$0xff]
        %v1220 = vld [vmem:[#allocation2 + $0x28] sm:$0xff]
        %v1221 = vld [vmem:[#allocation2 + $0x30] sm:$0xff]
        %v1222 = vld [vmem:[#allocation2 + $0x38] sm:$0xff]
        %v1223 = vld [vmem:[#allocation2 + $0x40] sm:$0xff]
        %v1224 = vld [vmem:[#allocation2 + $0x48] sm:$0xff]
        %v1225 = vld [vmem:[#allocation2 + $0x50] sm:$0xff]
        %v1226 = vld [vmem:[#allocation2 + $0x58] sm:$0xff]
        %v1227 = vld [vmem:[#allocation2 + $0x60] sm:$0xff]
        %v1228 = vld [vmem:[#allocation2 + $0x68] sm:$0xff]
        %v1229 = vld [vmem:[#allocation2 + $0x70] sm:$0xff]
        %v1230 = vld [vmem:[#allocation2 + $0x78] sm:$0xff]
        %v1231 = vld [vmem:[#allocation2 + $0x80] sm:$0xff]
        %v1232 = vsel %vm1151, 1, 0
        %v1233 = vsel %vm1152, 1, 0
        %v1234 = vsel %vm1153, 1, 0
        %v1235 = vsel %vm1154, 1, 0
        %v1236 = vsel %vm1155, 1, 0
        %v1237 = vsel %vm1156, 1, 0
        %v1238 = vsel %vm1157, 1, 0
        %v1239 = vsel %vm1158, 1, 0
        %v1240 = vsel %vm1159, 1, 0
        %v1241 = vsel %vm1160, 1, 0
        %v1242 = vsel %vm1161, 1, 0
        %v1243 = vsel %vm1162, 1, 0
        %v1244 = vsel %vm1163, 1, 0
        %v1245 = vsel %vm1164, 1, 0
        %v1246 = vsel %vm1165, 1, 0
        %v1247 = vsel %vm1166, 1, 0
        %v1248 = vsel %vm1167, 1, 0
        %v1249 = vsel %vm1168, 1, 0
        %v1250 = vsel %vm1169, 1, 0
        %v1251 = vsel %vm1170, 1, 0
        %v1252 = vsel %vm1171, 1, 0
        %v1253 = vsel %vm1172, 1, 0
        %v1254 = vsel %vm1173, 1, 0
        %v1255 = vsel %vm1174, 1, 0
        %v1256 = vsel %vm1175, 1, 0
        %v1257 = vsel %vm1176, 1, 0
        %v1258 = vsel %vm1177, 1, 0
        %v1259 = vsel %vm1178, 1, 0
        %v1260 = vsel %vm1179, 1, 0
        %v1261 = vsel %vm1180, 1, 0
        %v1262 = vsel %vm1181, 1, 0
        %v1263 = vsel %vm1182, 1, 0
        %vm1264 = vcmp.eq.s32.totalorder %v1232, 1
        %vm1265 = vcmp.eq.s32.totalorder %v1233, 1
        %vm1266 = vcmp.eq.s32.totalorder %v1234, 1
        %vm1267 = vcmp.eq.s32.totalorder %v1235, 1
        %vm1268 = vcmp.eq.s32.totalorder %v1236, 1
        %vm1269 = vcmp.eq.s32.totalorder %v1237, 1
        %vm1270 = vcmp.eq.s32.totalorder %v1238, 1
        %vm1271 = vcmp.eq.s32.totalorder %v1239, 1
        %vm1272 = vcmp.eq.s32.totalorder %v1240, 1
        %vm1273 = vcmp.eq.s32.totalorder %v1241, 1
        %vm1274 = vcmp.eq.s32.totalorder %v1242, 1
        %vm1275 = vcmp.eq.s32.totalorder %v1243, 1
        %vm1276 = vcmp.eq.s32.totalorder %v1244, 1
        %vm1277 = vcmp.eq.s32.totalorder %v1245, 1
        %vm1278 = vcmp.eq.s32.totalorder %v1246, 1
        %vm1279 = vcmp.eq.s32.totalorder %v1247, 1
        %vm1280 = vcmp.eq.s32.totalorder %v1248, 1
        %vm1281 = vcmp.eq.s32.totalorder %v1249, 1
        %vm1282 = vcmp.eq.s32.totalorder %v1250, 1
        %vm1283 = vcmp.eq.s32.totalorder %v1251, 1
        %vm1284 = vcmp.eq.s32.totalorder %v1252, 1
        %vm1285 = vcmp.eq.s32.totalorder %v1253, 1
        %vm1286 = vcmp.eq.s32.totalorder %v1254, 1
        %vm1287 = vcmp.eq.s32.totalorder %v1255, 1
        %vm1288 = vcmp.eq.s32.totalorder %v1256, 1
        %vm1289 = vcmp.eq.s32.totalorder %v1257, 1
        %vm1290 = vcmp.eq.s32.totalorder %v1258, 1
        %vm1291 = vcmp.eq.s32.totalorder %v1259, 1
        %vm1292 = vcmp.eq.s32.totalorder %v1260, 1
        %vm1293 = vcmp.eq.s32.totalorder %v1261, 1
        %vm1294 = vcmp.eq.s32.totalorder %v1262, 1
        %vm1295 = vcmp.eq.s32.totalorder %v1263, 1
        %vm1296 = vmpackc.low %vm1264, %vm1264
        %vm1297 = vmpackc.low %vm1265, %vm1265
        %vm1298 = vmpackc.low %vm1266, %vm1266
        %vm1299 = vmpackc.low %vm1267, %vm1267
        %vm1300 = vmpackc.low %vm1268, %vm1268
        %vm1301 = vmpackc.low %vm1269, %vm1269
        %vm1302 = vmpackc.low %vm1270, %vm1270
        %vm1303 = vmpackc.low %vm1271, %vm1271
        %vm1304 = vmpackc.low %vm1272, %vm1272
        %vm1305 = vmpackc.low %vm1273, %vm1273
        %vm1306 = vmpackc.low %vm1274, %vm1274
        %vm1307 = vmpackc.low %vm1275, %vm1275
        %vm1308 = vmpackc.low %vm1276, %vm1276
        %vm1309 = vmpackc.low %vm1277, %vm1277
        %vm1310 = vmpackc.low %vm1278, %vm1278
        %vm1311 = vmpackc.low %vm1279, %vm1279
        %vm1312 = vmpackc.low %vm1280, %vm1280
        %vm1313 = vmpackc.low %vm1281, %vm1281
        %vm1314 = vmpackc.low %vm1282, %vm1282
        %vm1315 = vmpackc.low %vm1283, %vm1283
        %vm1316 = vmpackc.low %vm1284, %vm1284
        %vm1317 = vmpackc.low %vm1285, %vm1285
        %vm1318 = vmpackc.low %vm1286, %vm1286
        %vm1319 = vmpackc.low %vm1287, %vm1287
        %vm1320 = vmpackc.low %vm1288, %vm1288
        %vm1321 = vmpackc.low %vm1289, %vm1289
        %vm1322 = vmpackc.low %vm1290, %vm1290
        %vm1323 = vmpackc.low %vm1291, %vm1291
        %vm1324 = vmpackc.low %vm1292, %vm1292
        %vm1325 = vmpackc.low %vm1293, %vm1293
        %vm1326 = vmpackc.low %vm1294, %vm1294
        %vm1327 = vmpackc.low %vm1295, %vm1295
        %v1328 = vsel %vm1296, 65537, 0
        %v1329 = vsel %vm1297, 65537, 0
        %v1330 = vsel %vm1298, 65537, 0
        %v1331 = vsel %vm1299, 65537, 0
        %v1332 = vsel %vm1300, 65537, 0
        %v1333 = vsel %vm1301, 65537, 0
        %v1334 = vsel %vm1302, 65537, 0
        %v1335 = vsel %vm1303, 65537, 0
        %v1336 = vsel %vm1304, 65537, 0
        %v1337 = vsel %vm1305, 65537, 0
        %v1338 = vsel %vm1306, 65537, 0
        %v1339 = vsel %vm1307, 65537, 0
        %v1340 = vsel %vm1308, 65537, 0
        %v1341 = vsel %vm1309, 65537, 0
        %v1342 = vsel %vm1310, 65537, 0
        %v1343 = vsel %vm1311, 65537, 0
        %v1344 = vsel %vm1312, 65537, 0
        %v1345 = vsel %vm1313, 65537, 0
        %v1346 = vsel %vm1314, 65537, 0
        %v1347 = vsel %vm1315, 65537, 0
        %v1348 = vsel %vm1316, 65537, 0
        %v1349 = vsel %vm1317, 65537, 0
        %v1350 = vsel %vm1318, 65537, 0
        %v1351 = vsel %vm1319, 65537, 0
        %v1352 = vsel %vm1320, 65537, 0
        %v1353 = vsel %vm1321, 65537, 0
        %v1354 = vsel %vm1322, 65537, 0
        %v1355 = vsel %vm1323, 65537, 0
        %v1356 = vsel %vm1324, 65537, 0
        %v1357 = vsel %vm1325, 65537, 0
        %v1358 = vsel %vm1326, 65537, 0
        %v1359 = vsel %vm1327, 65537, 0
        %v1360 = vunpack.c.l.b16 %v1328
        %v1361 = vunpack.c.l.b16 %v1329
        %v1362 = vunpack.c.l.b16 %v1330
        %v1363 = vunpack.c.l.b16 %v1331
        %v1364 = vunpack.c.l.b16 %v1332
        %v1365 = vunpack.c.l.b16 %v1333
        %v1366 = vunpack.c.l.b16 %v1334
        %v1367 = vunpack.c.l.b16 %v1335
        %v1368 = vunpack.c.l.b16 %v1336
        %v1369 = vunpack.c.l.b16 %v1337
        %v1370 = vunpack.c.l.b16 %v1338
        %v1371 = vunpack.c.l.b16 %v1339
        %v1372 = vunpack.c.l.b16 %v1340
        %v1373 = vunpack.c.l.b16 %v1341
        %v1374 = vunpack.c.l.b16 %v1342
        %v1375 = vunpack.c.l.b16 %v1343
        %v1376 = vunpack.c.l.b16 %v1344
        %v1377 = vunpack.c.l.b16 %v1345
        %v1378 = vunpack.c.l.b16 %v1346
        %v1379 = vunpack.c.l.b16 %v1347
        %v1380 = vunpack.c.l.b16 %v1348
        %v1381 = vunpack.c.l.b16 %v1349
        %v1382 = vunpack.c.l.b16 %v1350
        %v1383 = vunpack.c.l.b16 %v1351
        %v1384 = vunpack.c.l.b16 %v1352
        %v1385 = vunpack.c.l.b16 %v1353
        %v1386 = vunpack.c.l.b16 %v1354
        %v1387 = vunpack.c.l.b16 %v1355
        %v1388 = vunpack.c.l.b16 %v1356
        %v1389 = vunpack.c.l.b16 %v1357
        %v1390 = vunpack.c.l.b16 %v1358
        %v1391 = vunpack.c.l.b16 %v1359
        %v1392 = vpack.c.b16 %v1361, %v1360
        %v1393 = vpack.c.b16 %v1363, %v1362
        %v1394 = vpack.c.b16 %v1365, %v1364
        %v1395 = vpack.c.b16 %v1367, %v1366
        %v1396 = vpack.c.b16 %v1369, %v1368
        %v1397 = vpack.c.b16 %v1371, %v1370
        %v1398 = vpack.c.b16 %v1373, %v1372
        %v1399 = vpack.c.b16 %v1375, %v1374
        %v1400 = vpack.c.b16 %v1377, %v1376
        %v1401 = vpack.c.b16 %v1379, %v1378
        %v1402 = vpack.c.b16 %v1381, %v1380
        %v1403 = vpack.c.b16 %v1383, %v1382
        %v1404 = vpack.c.b16 %v1385, %v1384
        %v1405 = vpack.c.b16 %v1387, %v1386
        %v1406 = vpack.c.b16 %v1389, %v1388
        %v1407 = vpack.c.b16 %v1391, %v1390
        %vm1408 = vsmask.f32 7424
        %v1410 = vshll.u32 %v1392, 16
        %v1412 = vrot.slane %v1410, 1
        %v1413 = vshrl.u32 %v1392, 16
        %v1415 = vor.u32 %v1413, %v1412
        %v1417 = vshll.u32 %v1393, 16
        %v1419 = vrot.slane %v1417, 1
        %v1420 = vsel %vm1408, %v1415, %v1419
        %v1421 = vshrl.u32 %v1393, 16
        %v1423 = vor.u32 %v1421, %v1419
        %v1425 = vshll.u32 %v1394, 16
        %v1427 = vrot.slane %v1425, 1
        %v1428 = vsel %vm1408, %v1423, %v1427
        %v1429 = vshrl.u32 %v1394, 16
        %v1431 = vor.u32 %v1429, %v1427
        %v1433 = vshll.u32 %v1395, 16
        %v1435 = vrot.slane %v1433, 1
        %v1436 = vsel %vm1408, %v1431, %v1435
        %v1437 = vshrl.u32 %v1395, 16
        %v1439 = vor.u32 %v1437, %v1435
        %v1441 = vshll.u32 %v1396, 16
        %v1443 = vrot.slane %v1441, 1
        %v1444 = vsel %vm1408, %v1439, %v1443
        %v1445 = vshrl.u32 %v1396, 16
        %v1447 = vor.u32 %v1445, %v1443
        %v1449 = vshll.u32 %v1397, 16
        %v1451 = vrot.slane %v1449, 1
        %v1452 = vsel %vm1408, %v1447, %v1451
        %v1453 = vshrl.u32 %v1397, 16
        %v1455 = vor.u32 %v1453, %v1451
        %v1457 = vshll.u32 %v1398, 16
        %v1459 = vrot.slane %v1457, 1
        %v1460 = vsel %vm1408, %v1455, %v1459
        %v1461 = vshrl.u32 %v1398, 16
        %v1463 = vor.u32 %v1461, %v1459
        %v1465 = vshll.u32 %v1399, 16
        %v1467 = vrot.slane %v1465, 1
        %v1468 = vsel %vm1408, %v1463, %v1467
        %v1469 = vshrl.u32 %v1399, 16
        %v1471 = vor.u32 %v1469, %v1467
        %v1473 = vshll.u32 %v1400, 16
        %v1475 = vrot.slane %v1473, 1
        %v1476 = vsel %vm1408, %v1471, %v1475
        %v1477 = vshrl.u32 %v1400, 16
        %v1479 = vor.u32 %v1477, %v1475
        %v1481 = vshll.u32 %v1401, 16
        %v1483 = vrot.slane %v1481, 1
        %v1484 = vsel %vm1408, %v1479, %v1483
        %v1485 = vshrl.u32 %v1401, 16
        %v1487 = vor.u32 %v1485, %v1483
        %v1489 = vshll.u32 %v1402, 16
        %v1491 = vrot.slane %v1489, 1
        %v1492 = vsel %vm1408, %v1487, %v1491
        %v1493 = vshrl.u32 %v1402, 16
        %v1495 = vor.u32 %v1493, %v1491
        %v1497 = vshll.u32 %v1403, 16
        %v1499 = vrot.slane %v1497, 1
        %v1500 = vsel %vm1408, %v1495, %v1499
        %v1501 = vshrl.u32 %v1403, 16
        %v1503 = vor.u32 %v1501, %v1499
        %v1505 = vshll.u32 %v1404, 16
        %v1507 = vrot.slane %v1505, 1
        %v1508 = vsel %vm1408, %v1503, %v1507
        %v1509 = vshrl.u32 %v1404, 16
        %v1511 = vor.u32 %v1509, %v1507
        %v1513 = vshll.u32 %v1405, 16
        %v1515 = vrot.slane %v1513, 1
        %v1516 = vsel %vm1408, %v1511, %v1515
        %v1517 = vshrl.u32 %v1405, 16
        %v1519 = vor.u32 %v1517, %v1515
        %v1521 = vshll.u32 %v1406, 16
        %v1523 = vrot.slane %v1521, 1
        %v1524 = vsel %vm1408, %v1519, %v1523
        %v1525 = vshrl.u32 %v1406, 16
        %v1527 = vor.u32 %v1525, %v1523
        %v1529 = vshll.u32 %v1407, 16
        %v1531 = vrot.slane %v1529, 1
        %v1532 = vsel %vm1408, %v1527, %v1531
        %v1533 = vshrl.u32 %v1407, 16
        %v1535 = vor.u32 %v1533, %v1531
        %vm1536 = vcmp.ne.s16.totalorder %v1412, 0
        %vm1537 = vcmp.ne.s16.totalorder %v1420, 0
        %vm1538 = vcmp.ne.s16.totalorder %v1428, 0
        %vm1539 = vcmp.ne.s16.totalorder %v1436, 0
        %vm1540 = vcmp.ne.s16.totalorder %v1444, 0
        %vm1541 = vcmp.ne.s16.totalorder %v1452, 0
        %vm1542 = vcmp.ne.s16.totalorder %v1460, 0
        %vm1543 = vcmp.ne.s16.totalorder %v1468, 0
        %vm1544 = vcmp.ne.s16.totalorder %v1476, 0
        %vm1545 = vcmp.ne.s16.totalorder %v1484, 0
        %vm1546 = vcmp.ne.s16.totalorder %v1492, 0
        %vm1547 = vcmp.ne.s16.totalorder %v1500, 0
        %vm1548 = vcmp.ne.s16.totalorder %v1508, 0
        %vm1549 = vcmp.ne.s16.totalorder %v1516, 0
        %vm1550 = vcmp.ne.s16.totalorder %v1524, 0
        %vm1551 = vcmp.ne.s16.totalorder %v1532, 0
        %vm1552 = vcmp.ne.s16.totalorder %v1535, 0
        %v1553 = vsel %vm1536, %v1215, 0
        %v1554 = vsel %vm1537, %v1216, 0
        %v1555 = vsel %vm1538, %v1217, 0
        %v1556 = vsel %vm1539, %v1218, 0
        %v1557 = vsel %vm1540, %v1219, 0
        %v1558 = vsel %vm1541, %v1220, 0
        %v1559 = vsel %vm1542, %v1221, 0
        %v1560 = vsel %vm1543, %v1222, 0
        %v1561 = vsel %vm1544, %v1223, 0
        %v1562 = vsel %vm1545, %v1224, 0
        %v1563 = vsel %vm1546, %v1225, 0
        %v1564 = vsel %vm1547, %v1226, 0
        %v1565 = vsel %vm1548, %v1227, 0
        %v1566 = vsel %vm1549, %v1228, 0
        %v1567 = vsel %vm1550, %v1229, 0
        %v1568 = vsel %vm1551, %v1230, 0
        %v1569 = vsel %vm1552, %v1231, 0
        %v1570 = vld [vmem:[#allocation12] sm:$0xf]
        %v1571 = vld [vmem:[#allocation12 + $0x4] sm:$0xf]
        %v1572 = vld [vmem:[#allocation12 + $0x8] sm:$0xf]
        %v1573 = vld [vmem:[#allocation12 + $0xc] sm:$0xf]
        %v1574 = vld [vmem:[#allocation12 + $0x10] sm:$0xf]
        %v1575 = vld [vmem:[#allocation12 + $0x14] sm:$0xf]
        %v1576 = vld [vmem:[#allocation12 + $0x18] sm:$0xf]
        %v1577 = vld [vmem:[#allocation12 + $0x1c] sm:$0xf]
        %v1578 = vld [vmem:[#allocation12 + $0x20] sm:$0xf]
        %v1579 = vld [vmem:[#allocation12 + $0x24] sm:$0xf]
        %v1580 = vld [vmem:[#allocation12 + $0x28] sm:$0xf]
        %v1581 = vld [vmem:[#allocation12 + $0x2c] sm:$0xf]
        %v1582 = vld [vmem:[#allocation12 + $0x30] sm:$0xf]
        %v1583 = vld [vmem:[#allocation12 + $0x34] sm:$0xf]
        %v1584 = vld [vmem:[#allocation12 + $0x38] sm:$0xf]
        %v1585 = vld [vmem:[#allocation12 + $0x3c] sm:$0xf]
        %s1586 = scalar_lea.vmem [#allocation12], 64
        %v1587 = vld [vmem:[%s1586] sm:$0xf]
        %v1588 = vld [vmem:[%s1586 + $0x4] sm:$0xf]
        %v1589 = vld [vmem:[%s1586 + $0x8] sm:$0xf]
        %v1590 = vld [vmem:[%s1586 + $0xc] sm:$0xf]
        %v1591 = vld [vmem:[%s1586 + $0x10] sm:$0xf]
        %v1592 = vld [vmem:[%s1586 + $0x14] sm:$0xf]
        %v1593 = vld [vmem:[%s1586 + $0x18] sm:$0xf]
        %v1594 = vld [vmem:[%s1586 + $0x1c] sm:$0xf]
        %v1595 = vld [vmem:[%s1586 + $0x20] sm:$0xf]
        %v1596 = vld [vmem:[%s1586 + $0x24] sm:$0xf]
        %v1597 = vld [vmem:[%s1586 + $0x28] sm:$0xf]
        %v1598 = vld [vmem:[%s1586 + $0x2c] sm:$0xf]
        %v1599 = vld [vmem:[%s1586 + $0x30] sm:$0xf]
        %v1600 = vld [vmem:[%s1586 + $0x34] sm:$0xf]
        %v1601 = vld [vmem:[%s1586 + $0x38] sm:$0xf]
        %v1602 = vld [vmem:[%s1586 + $0x3c] sm:$0xf]
        %v1619 = vunpack.c.l.b16 %v1587
        %v1620 = vunpack.c.l.b16 %v1588
        %v1621 = vunpack.c.l.b16 %v1589
        %v1622 = vunpack.c.l.b16 %v1590
        %v1623 = vunpack.c.l.b16 %v1591
        %v1624 = vunpack.c.l.b16 %v1592
        %v1625 = vunpack.c.l.b16 %v1593
        %v1626 = vunpack.c.l.b16 %v1594
        %v1627 = vunpack.c.l.b16 %v1595
        %v1628 = vunpack.c.l.b16 %v1596
        %v1629 = vunpack.c.l.b16 %v1597
        %v1630 = vunpack.c.l.b16 %v1598
        %v1631 = vunpack.c.l.b16 %v1599
        %v1632 = vunpack.c.l.b16 %v1600
        %v1633 = vunpack.c.l.b16 %v1601
        %v1634 = vunpack.c.l.b16 %v1602
        %v1635 = vpack.c.b16 %v1620, %v1619
        %v1636 = vpack.c.b16 %v1622, %v1621
        %v1637 = vpack.c.b16 %v1624, %v1623
        %v1638 = vpack.c.b16 %v1626, %v1625
        %v1639 = vpack.c.b16 %v1628, %v1627
        %v1640 = vpack.c.b16 %v1630, %v1629
        %v1641 = vpack.c.b16 %v1632, %v1631
        %v1642 = vpack.c.b16 %v1634, %v1633
        %1651 = vmatprep.subr.bf16.mxu0 0
        %1652 = vmatpush1.bf16.msra.mxu0 %v1635
        %1653 = vmatprep.subr.bf16.mxu0 0
        %1654 = vmatpush1.bf16.msra.mxu0 %v1636
        %1655 = vmatprep.subr.bf16.mxu0 0
        %1656 = vmatpush1.bf16.msra.mxu0 %v1637
        %1657 = vmatprep.subr.bf16.mxu0 0
        %1658 = vmatpush1.bf16.msra.mxu0 %v1638
        %1659 = vmatprep.subr.bf16.mxu0 0
        %1660 = vmatpush1.bf16.msra.mxu0 %v1639
        %1661 = vmatprep.subr.bf16.mxu0 0
        %1662 = vmatpush1.bf16.msra.mxu0 %v1640
        %1663 = vmatprep.subr.bf16.mxu0 0
        %1664 = vmatpush1.bf16.msra.mxu0 %v1641
        %1665 = vmatprep.subr.bf16.mxu0 0
        %1666 = vmatpush1.bf16.msra.mxu0 %v1642
        %1667 = vmatprep.subr.bf16.mxu0 0
        %1668 = vmatpush1.bf16.msra.mxu0 0
        %1669 = vmatprep.subr.bf16.mxu0 0
        %1670 = vmatpush1.bf16.msra.mxu0 0
        %1671 = vmatprep.subr.bf16.mxu0 0
        %1672 = vmatpush1.bf16.msra.mxu0 0
        %1673 = vmatprep.subr.bf16.mxu0 0
        %1674 = vmatpush1.bf16.msra.mxu0 0
        %1675 = vmatprep.subr.bf16.mxu0 0
        %1676 = vmatpush1.bf16.msra.mxu0 0
        %1677 = vmatprep.subr.bf16.mxu0 0
        %1678 = vmatpush1.bf16.msra.mxu0 0
        %1679 = vmatprep.subr.bf16.mxu0 0
        %1680 = vmatpush1.bf16.msra.mxu0 0
        %1681 = vmatprep.subr.bf16.mxu0 0
        %1682 = vmatpush1.bf16.msra.mxu0 0
        %1683 = vmatprep.mubr.bf16.mxu0 0
        %1684 = vmatmul.mubr.bf16.gmra.mrb[0].mxu0 %v1216
        %v1685 = vpop.f32.mrb[0].mxu0
        %v1686 = vadd.f32 0.0, %v1685
        %v1687 = vpop.f32.mrb[0].mxu0
        %v1688 = vpop.f32.mrb[0].mxu0
        %v1689 = vadd.f32 0.0, %v1688
        %v1690 = vpop.f32.mrb[0].mxu0
        %1691 = vmatprep.mubr.bf16.mxu0 0
        %1692 = vmatmul.mubr.bf16.gmra.mrb[0].mxu0 %v1217
        %v1693 = vpop.f32.mrb[0].mxu0
        %v1694 = vadd.f32 0.0, %v1693
        %v1695 = vpop.f32.mrb[0].mxu0
        %v1696 = vpop.f32.mrb[0].mxu0
        %v1697 = vadd.f32 0.0, %v1696
        %v1698 = vpop.f32.mrb[0].mxu0
        %1699 = vmatprep.mubr.bf16.mxu0 0
        %1700 = vmatmul.mubr.bf16.gmra.mrb[0].mxu0 %v1218
        %v1701 = vpop.f32.mrb[0].mxu0
        %v1702 = vadd.f32 0.0, %v1701
        %v1703 = vpop.f32.mrb[0].mxu0
        %v1704 = vpop.f32.mrb[0].mxu0
        %v1705 = vadd.f32 0.0, %v1704
        %v1706 = vpop.f32.mrb[0].mxu0
        %1707 = vmatprep.mubr.bf16.mxu0 0
        %1708 = vmatmul.mubr.bf16.gmra.mrb[0].mxu0 %v1219
        %v1709 = vpop.f32.mrb[0].mxu0
        %v1710 = vadd.f32 0.0, %v1709
        %v1711 = vpop.f32.mrb[0].mxu0
        %v1712 = vpop.f32.mrb[0].mxu0
        %v1713 = vadd.f32 0.0, %v1712
        %v1714 = vpop.f32.mrb[0].mxu0
        %1715 = vmatprep.mubr.bf16.mxu0 0
        %1716 = vmatmul.mubr.bf16.gmra.mrb[0].mxu0 %v1220
        %v1717 = vpop.f32.mrb[0].mxu0
        %v1718 = vadd.f32 0.0, %v1717
        %v1719 = vpop.f32.mrb[0].mxu0
        %v1720 = vpop.f32.mrb[0].mxu0
        %v1721 = vadd.f32 0.0, %v1720
        %v1722 = vpop.f32.mrb[0].mxu0
        %1723 = vmatprep.mubr.bf16.mxu0 0
        %1724 = vmatmul.mubr.bf16.gmra.mrb[0].mxu0 %v1221
        %v1725 = vpop.f32.mrb[0].mxu0
        %v1726 = vadd.f32 0.0, %v1725
        %v1727 = vpop.f32.mrb[0].mxu0
        %v1728 = vpop.f32.mrb[0].mxu0
        %v1729 = vadd.f32 0.0, %v1728
        %v1730 = vpop.f32.mrb[0].mxu0
        %1731 = vmatprep.mubr.bf16.mxu0 0
        %1732 = vmatmul.mubr.bf16.gmra.mrb[0].mxu0 %v1222
        %v1733 = vpop.f32.mrb[0].mxu0
        %v1734 = vadd.f32 0.0, %v1733
        %v1735 = vpop.f32.mrb[0].mxu0
        %v1736 = vpop.f32.mrb[0].mxu0
        %v1737 = vadd.f32 0.0, %v1736
        %v1738 = vpop.f32.mrb[0].mxu0
        %1739 = vmatprep.mubr.bf16.mxu0 0
        %1740 = vmatmul.mubr.bf16.gmra.mrb[0].mxu0 %v1223
        %v1741 = vpop.f32.mrb[0].mxu0
        %v1742 = vadd.f32 0.0, %v1741
        %v1743 = vpop.f32.mrb[0].mxu0
        %v1744 = vpop.f32.mrb[0].mxu0
        %v1745 = vadd.f32 0.0, %v1744
        %v1746 = vpop.f32.mrb[0].mxu0
        %1747 = vmatprep.mubr.bf16.mxu0 0
        %1748 = vmatmul.mubr.bf16.gmra.mrb[0].mxu0 %v1224
        %v1749 = vpop.f32.mrb[0].mxu0
        %v1750 = vadd.f32 0.0, %v1749
        %v1751 = vpop.f32.mrb[0].mxu0
        %v1752 = vpop.f32.mrb[0].mxu0
        %v1753 = vadd.f32 0.0, %v1752
        %v1754 = vpop.f32.mrb[0].mxu0
        %1755 = vmatprep.mubr.bf16.mxu0 0
        %1756 = vmatmul.mubr.bf16.gmra.mrb[0].mxu0 %v1225
        %v1757 = vpop.f32.mrb[0].mxu0
        %v1758 = vadd.f32 0.0, %v1757
        %v1759 = vpop.f32.mrb[0].mxu0
        %v1760 = vpop.f32.mrb[0].mxu0
        %v1761 = vadd.f32 0.0, %v1760
        %v1762 = vpop.f32.mrb[0].mxu0
        %1763 = vmatprep.mubr.bf16.mxu0 0
        %1764 = vmatmul.mubr.bf16.gmra.mrb[0].mxu0 %v1226
        %v1765 = vpop.f32.mrb[0].mxu0
        %v1766 = vadd.f32 0.0, %v1765
        %v1767 = vpop.f32.mrb[0].mxu0
        %v1768 = vpop.f32.mrb[0].mxu0
        %v1769 = vadd.f32 0.0, %v1768
        %v1770 = vpop.f32.mrb[0].mxu0
        %1771 = vmatprep.mubr.bf16.mxu0 0
        %1772 = vmatmul.mubr.bf16.gmra.mrb[0].mxu0 %v1227
        %v1773 = vpop.f32.mrb[0].mxu0
        %v1774 = vadd.f32 0.0, %v1773
        %v1775 = vpop.f32.mrb[0].mxu0
        %v1776 = vpop.f32.mrb[0].mxu0
        %v1777 = vadd.f32 0.0, %v1776
        %v1778 = vpop.f32.mrb[0].mxu0
        %1779 = vmatprep.mubr.bf16.mxu0 0
        %1780 = vmatmul.mubr.bf16.gmra.mrb[0].mxu0 %v1228
        %v1781 = vpop.f32.mrb[0].mxu0
        %v1782 = vadd.f32 0.0, %v1781
        %v1783 = vpop.f32.mrb[0].mxu0
        %v1784 = vpop.f32.mrb[0].mxu0
        %v1785 = vadd.f32 0.0, %v1784
        %v1786 = vpop.f32.mrb[0].mxu0
        %1787 = vmatprep.mubr.bf16.mxu0 0
        %1788 = vmatmul.mubr.bf16.gmra.mrb[0].mxu0 %v1229
        %v1789 = vpop.f32.mrb[0].mxu0
        %v1790 = vadd.f32 0.0, %v1789
        %v1791 = vpop.f32.mrb[0].mxu0
        %v1792 = vpop.f32.mrb[0].mxu0
        %v1793 = vadd.f32 0.0, %v1792
        %v1794 = vpop.f32.mrb[0].mxu0
        %1795 = vmatprep.mubr.bf16.mxu0 0
        %1796 = vmatmul.mubr.bf16.gmra.mrb[0].mxu0 %v1230
        %v1797 = vpop.f32.mrb[0].mxu0
        %v1798 = vadd.f32 0.0, %v1797
        %v1799 = vpop.f32.mrb[0].mxu0
        %v1800 = vpop.f32.mrb[0].mxu0
        %v1801 = vadd.f32 0.0, %v1800
        %v1802 = vpop.f32.mrb[0].mxu0
        %1803 = vmatprep.mubr.bf16.mxu0 0
        %1804 = vmatmul.mubr.bf16.gmra.mrb[0].mxu0 %v1231
        %v1805 = vpop.f32.mrb[0].mxu0
        %v1806 = vadd.f32 0.0, %v1805
        %v1807 = vpop.f32.mrb[0].mxu0
        %v1808 = vpop.f32.mrb[0].mxu0
        %v1809 = vadd.f32 0.0, %v1808
        %v1810 = vpop.f32.mrb[0].mxu0
        %1811 = vdwg.mxu0
        %vm1812 = vsmask.f32 256
        %v1814 = vshrl.u32 %v1553, 16
        %v1816 = vrot.slane %v1814, 7
        %v1818 = vshrl.u32 %v1554, 16
        %v1820 = vrot.slane %v1818, 7
        %v1821 = vshll.u32 %v1554, 16
        %v1823 = vor.u32 %v1820, %v1821
        %v1824 = vsel %vm1812, %v1816, %v1823
        %v1826 = vshrl.u32 %v1555, 16
        %v1828 = vrot.slane %v1826, 7
        %v1829 = vshll.u32 %v1555, 16
        %v1831 = vor.u32 %v1828, %v1829
        %v1832 = vsel %vm1812, %v1820, %v1831
        %v1834 = vshrl.u32 %v1556, 16
        %v1836 = vrot.slane %v1834, 7
        %v1837 = vshll.u32 %v1556, 16
        %v1839 = vor.u32 %v1836, %v1837
        %v1840 = vsel %vm1812, %v1828, %v1839
        %v1842 = vshrl.u32 %v1557, 16
        %v1844 = vrot.slane %v1842, 7
        %v1845 = vshll.u32 %v1557, 16
        %v1847 = vor.u32 %v1844, %v1845
        %v1848 = vsel %vm1812, %v1836, %v1847
        %v1850 = vshrl.u32 %v1558, 16
        %v1852 = vrot.slane %v1850, 7
        %v1853 = vshll.u32 %v1558, 16
        %v1855 = vor.u32 %v1852, %v1853
        %v1856 = vsel %vm1812, %v1844, %v1855
        %v1858 = vshrl.u32 %v1559, 16
        %v1860 = vrot.slane %v1858, 7
        %v1861 = vshll.u32 %v1559, 16
        %v1863 = vor.u32 %v1860, %v1861
        %v1864 = vsel %vm1812, %v1852, %v1863
        %v1866 = vshrl.u32 %v1560, 16
        %v1868 = vrot.slane %v1866, 7
        %v1869 = vshll.u32 %v1560, 16
        %v1871 = vor.u32 %v1868, %v1869
        %v1872 = vsel %vm1812, %v1860, %v1871
        %v1874 = vshrl.u32 %v1561, 16
        %v1876 = vrot.slane %v1874, 7
        %v1877 = vshll.u32 %v1561, 16
        %v1879 = vor.u32 %v1876, %v1877
        %v1880 = vsel %vm1812, %v1868, %v1879
        %v1882 = vshrl.u32 %v1562, 16
        %v1884 = vrot.slane %v1882, 7
        %v1885 = vshll.u32 %v1562, 16
        %v1887 = vor.u32 %v1884, %v1885
        %v1888 = vsel %vm1812, %v1876, %v1887
        %v1890 = vshrl.u32 %v1563, 16
        %v1892 = vrot.slane %v1890, 7
        %v1893 = vshll.u32 %v1563, 16
        %v1895 = vor.u32 %v1892, %v1893
        %v1896 = vsel %vm1812, %v1884, %v1895
        %v1898 = vshrl.u32 %v1564, 16
        %v1900 = vrot.slane %v1898, 7
        %v1901 = vshll.u32 %v1564, 16
        %v1903 = vor.u32 %v1900, %v1901
        %v1904 = vsel %vm1812, %v1892, %v1903
        %v1906 = vshrl.u32 %v1565, 16
        %v1908 = vrot.slane %v1906, 7
        %v1909 = vshll.u32 %v1565, 16
        %v1911 = vor.u32 %v1908, %v1909
        %v1912 = vsel %vm1812, %v1900, %v1911
        %v1914 = vshrl.u32 %v1566, 16
        %v1916 = vrot.slane %v1914, 7
        %v1917 = vshll.u32 %v1566, 16
        %v1919 = vor.u32 %v1916, %v1917
        %v1920 = vsel %vm1812, %v1908, %v1919
        %v1922 = vshrl.u32 %v1567, 16
        %v1924 = vrot.slane %v1922, 7
        %v1925 = vshll.u32 %v1567, 16
        %v1927 = vor.u32 %v1924, %v1925
        %v1928 = vsel %vm1812, %v1916, %v1927
        %v1930 = vshrl.u32 %v1568, 16
        %v1932 = vrot.slane %v1930, 7
        %v1933 = vshll.u32 %v1568, 16
        %v1935 = vor.u32 %v1932, %v1933
        %v1936 = vsel %vm1812, %v1924, %v1935
        %v1938 = vshrl.u32 %v1569, 16
        %v1940 = vrot.slane %v1938, 7
        %v1941 = vshll.u32 %v1569, 16
        %v1943 = vor.u32 %v1940, %v1941
        %v1944 = vsel %vm1812, %v1932, %v1943
        %v1977 = vunpack.c.l.b16 %v1570
        %v1978 = vunpack.c.l.b16 %v1571
        %v1979 = vunpack.c.l.b16 %v1572
        %v1980 = vunpack.c.l.b16 %v1573
        %v1981 = vunpack.c.l.b16 %v1574
        %v1982 = vunpack.c.l.b16 %v1575
        %v1983 = vunpack.c.l.b16 %v1576
        %v1984 = vunpack.c.l.b16 %v1577
        %v1985 = vunpack.c.l.b16 %v1578
        %v1986 = vunpack.c.l.b16 %v1579
        %v1987 = vunpack.c.l.b16 %v1580
        %v1988 = vunpack.c.l.b16 %v1581
        %v1989 = vunpack.c.l.b16 %v1582
        %v1990 = vunpack.c.l.b16 %v1583
        %v1991 = vunpack.c.l.b16 %v1584
        %v1992 = vunpack.c.l.b16 %v1585
        %v1993 = vpack.c.b16 %v1978, %v1977
        %v1994 = vpack.c.b16 %v1980, %v1979
        %v1995 = vpack.c.b16 %v1982, %v1981
        %v1996 = vpack.c.b16 %v1984, %v1983
        %v1997 = vpack.c.b16 %v1986, %v1985
        %v1998 = vpack.c.b16 %v1988, %v1987
        %v1999 = vpack.c.b16 %v1990, %v1989
        %v2000 = vpack.c.b16 %v1992, %v1991
        %2009 = vmatprep.subr.bf16.mxu0 0
        %2010 = vmatpush1.bf16.msra.mxu0 %v1993
        %2011 = vmatprep.subr.bf16.mxu0 0
        %2012 = vmatpush1.bf16.msra.mxu0 %v1994
        %2013 = vmatprep.subr.bf16.mxu0 0
        %2014 = vmatpush1.bf16.msra.mxu0 %v1995
        %2015 = vmatprep.subr.bf16.mxu0 0
        %2016 = vmatpush1.bf16.msra.mxu0 %v1996
        %2017 = vmatprep.subr.bf16.mxu0 0
        %2018 = vmatpush1.bf16.msra.mxu0 %v1997
        %2019 = vmatprep.subr.bf16.mxu0 0
        %2020 = vmatpush1.bf16.msra.mxu0 %v1998
        %2021 = vmatprep.subr.bf16.mxu0 0
        %2022 = vmatpush1.bf16.msra.mxu0 %v1999
        %2023 = vmatprep.subr.bf16.mxu0 0
        %2024 = vmatpush1.bf16.msra.mxu0 %v2000
        %2025 = vmatprep.subr.bf16.mxu0 0
        %2026 = vmatpush1.bf16.msra.mxu0 0
        %2027 = vmatprep.subr.bf16.mxu0 0
        %2028 = vmatpush1.bf16.msra.mxu0 0
        %2029 = vmatprep.subr.bf16.mxu0 0
        %2030 = vmatpush1.bf16.msra.mxu0 0
        %2031 = vmatprep.subr.bf16.mxu0 0
        %2032 = vmatpush1.bf16.msra.mxu0 0
        %2033 = vmatprep.subr.bf16.mxu0 0
        %2034 = vmatpush1.bf16.msra.mxu0 0
        %2035 = vmatprep.subr.bf16.mxu0 0
        %2036 = vmatpush1.bf16.msra.mxu0 0
        %2037 = vmatprep.subr.bf16.mxu0 0
        %2038 = vmatpush1.bf16.msra.mxu0 0
        %2039 = vmatprep.subr.bf16.mxu0 0
        %2040 = vmatpush1.bf16.msra.mxu0 0
        %2041 = vmatprep.mubr.bf16.mxu0 0
        %2042 = vmatmul.mubr.bf16.gmra.mrb[0].mxu0 %v1824
        %v2043 = vpop.f32.mrb[0].mxu0
        %v2044 = vadd.f32 %v1686, %v2043
        %v2045 = vpop.f32.mrb[0].mxu0
        %v2046 = vpop.f32.mrb[0].mxu0
        %v2047 = vadd.f32 %v1689, %v2046
        %v2048 = vpop.f32.mrb[0].mxu0
        %2049 = vmatprep.mubr.bf16.mxu0 0
        %2050 = vmatmul.mubr.bf16.gmra.mrb[0].mxu0 %v1832
        %v2051 = vpop.f32.mrb[0].mxu0
        %v2052 = vadd.f32 %v1694, %v2051
        %v2053 = vpop.f32.mrb[0].mxu0
        %v2054 = vpop.f32.mrb[0].mxu0
        %v2055 = vadd.f32 %v1697, %v2054
        %v2056 = vpop.f32.mrb[0].mxu0
        %2057 = vmatprep.mubr.bf16.mxu0 0
        %2058 = vmatmul.mubr.bf16.gmra.mrb[0].mxu0 %v1840
        %v2059 = vpop.f32.mrb[0].mxu0
        %v2060 = vadd.f32 %v1702, %v2059
        %v2061 = vpop.f32.mrb[0].mxu0
        %v2062 = vpop.f32.mrb[0].mxu0
        %v2063 = vadd.f32 %v1705, %v2062
        %v2064 = vpop.f32.mrb[0].mxu0
        %2065 = vmatprep.mubr.bf16.mxu0 0
        %2066 = vmatmul.mubr.bf16.gmra.mrb[0].mxu0 %v1848
        %v2067 = vpop.f32.mrb[0].mxu0
        %v2068 = vadd.f32 %v1710, %v2067
        %v2069 = vpop.f32.mrb[0].mxu0
        %v2070 = vpop.f32.mrb[0].mxu0
        %v2071 = vadd.f32 %v1713, %v2070
        %v2072 = vpop.f32.mrb[0].mxu0
        %2073 = vmatprep.mubr.bf16.mxu0 0
        %2074 = vmatmul.mubr.bf16.gmra.mrb[0].mxu0 %v1856
        %v2075 = vpop.f32.mrb[0].mxu0
        %v2076 = vadd.f32 %v1718, %v2075
        %v2077 = vpop.f32.mrb[0].mxu0
        %v2078 = vpop.f32.mrb[0].mxu0
        %v2079 = vadd.f32 %v1721, %v2078
        %v2080 = vpop.f32.mrb[0].mxu0
        %2081 = vmatprep.mubr.bf16.mxu0 0
        %2082 = vmatmul.mubr.bf16.gmra.mrb[0].mxu0 %v1864
        %v2083 = vpop.f32.mrb[0].mxu0
        %v2084 = vadd.f32 %v1726, %v2083
        %v2085 = vpop.f32.mrb[0].mxu0
        %v2086 = vpop.f32.mrb[0].mxu0
        %v2087 = vadd.f32 %v1729, %v2086
        %v2088 = vpop.f32.mrb[0].mxu0
        %2089 = vmatprep.mubr.bf16.mxu0 0
        %2090 = vmatmul.mubr.bf16.gmra.mrb[0].mxu0 %v1872
        %v2091 = vpop.f32.mrb[0].mxu0
        %v2092 = vadd.f32 %v1734, %v2091
        %v2093 = vpop.f32.mrb[0].mxu0
        %v2094 = vpop.f32.mrb[0].mxu0
        %v2095 = vadd.f32 %v1737, %v2094
        %v2096 = vpop.f32.mrb[0].mxu0
        %2097 = vmatprep.mubr.bf16.mxu0 0
        %2098 = vmatmul.mubr.bf16.gmra.mrb[0].mxu0 %v1880
        %v2099 = vpop.f32.mrb[0].mxu0
        %v2100 = vadd.f32 %v1742, %v2099
        %v2101 = vpop.f32.mrb[0].mxu0
        %v2102 = vpop.f32.mrb[0].mxu0
        %v2103 = vadd.f32 %v1745, %v2102
        %v2104 = vpop.f32.mrb[0].mxu0
        %2105 = vmatprep.mubr.bf16.mxu0 0
        %2106 = vmatmul.mubr.bf16.gmra.mrb[0].mxu0 %v1888
        %v2107 = vpop.f32.mrb[0].mxu0
        %v2108 = vadd.f32 %v1750, %v2107
        %v2109 = vpop.f32.mrb[0].mxu0
        %v2110 = vpop.f32.mrb[0].mxu0
        %v2111 = vadd.f32 %v1753, %v2110
        %v2112 = vpop.f32.mrb[0].mxu0
        %2113 = vmatprep.mubr.bf16.mxu0 0
        %2114 = vmatmul.mubr.bf16.gmra.mrb[0].mxu0 %v1896
        %v2115 = vpop.f32.mrb[0].mxu0
        %v2116 = vadd.f32 %v1758, %v2115
        %v2117 = vpop.f32.mrb[0].mxu0
        %v2118 = vpop.f32.mrb[0].mxu0
        %v2119 = vadd.f32 %v1761, %v2118
        %v2120 = vpop.f32.mrb[0].mxu0
        %2121 = vmatprep.mubr.bf16.mxu0 0
        %2122 = vmatmul.mubr.bf16.gmra.mrb[0].mxu0 %v1904
        %v2123 = vpop.f32.mrb[0].mxu0
        %v2124 = vadd.f32 %v1766, %v2123
        %v2125 = vpop.f32.mrb[0].mxu0
        %v2126 = vpop.f32.mrb[0].mxu0
        %v2127 = vadd.f32 %v1769, %v2126
        %v2128 = vpop.f32.mrb[0].mxu0
        %2129 = vmatprep.mubr.bf16.mxu0 0
        %2130 = vmatmul.mubr.bf16.gmra.mrb[0].mxu0 %v1912
        %v2131 = vpop.f32.mrb[0].mxu0
        %v2132 = vadd.f32 %v1774, %v2131
        %v2133 = vpop.f32.mrb[0].mxu0
        %v2134 = vpop.f32.mrb[0].mxu0
        %v2135 = vadd.f32 %v1777, %v2134
        %v2136 = vpop.f32.mrb[0].mxu0
        %2137 = vmatprep.mubr.bf16.mxu0 0
        %2138 = vmatmul.mubr.bf16.gmra.mrb[0].mxu0 %v1920
        %v2139 = vpop.f32.mrb[0].mxu0
        %v2140 = vadd.f32 %v1782, %v2139
        %v2141 = vpop.f32.mrb[0].mxu0
        %v2142 = vpop.f32.mrb[0].mxu0
        %v2143 = vadd.f32 %v1785, %v2142
        %v2144 = vpop.f32.mrb[0].mxu0
        %2145 = vmatprep.mubr.bf16.mxu0 0
        %2146 = vmatmul.mubr.bf16.gmra.mrb[0].mxu0 %v1928
        %v2147 = vpop.f32.mrb[0].mxu0
        %v2148 = vadd.f32 %v1790, %v2147
        %v2149 = vpop.f32.mrb[0].mxu0
        %v2150 = vpop.f32.mrb[0].mxu0
        %v2151 = vadd.f32 %v1793, %v2150
        %v2152 = vpop.f32.mrb[0].mxu0
        %2153 = vmatprep.mubr.bf16.mxu0 0
        %2154 = vmatmul.mubr.bf16.gmra.mrb[0].mxu0 %v1936
        %v2155 = vpop.f32.mrb[0].mxu0
        %v2156 = vadd.f32 %v1798, %v2155
        %v2157 = vpop.f32.mrb[0].mxu0
        %v2158 = vpop.f32.mrb[0].mxu0
        %v2159 = vadd.f32 %v1801, %v2158
        %v2160 = vpop.f32.mrb[0].mxu0
        %2161 = vmatprep.mubr.bf16.mxu0 0
        %2162 = vmatmul.mubr.bf16.gmra.mrb[0].mxu0 %v1944
        %v2163 = vpop.f32.mrb[0].mxu0
        %v2164 = vadd.f32 %v1806, %v2163
        %v2165 = vpop.f32.mrb[0].mxu0
        %v2166 = vpop.f32.mrb[0].mxu0
        %v2167 = vadd.f32 %v1809, %v2166
        %v2168 = vpop.f32.mrb[0].mxu0
        %2169 = vdwg.mxu0
        %v2170 = vld [vmem:[#allocation2 + $0x8] sm:$0xff]
        %v2171 = vld [vmem:[#allocation2 + $0x10] sm:$0xff]
        %v2172 = vld [vmem:[#allocation2 + $0x18] sm:$0xff]
        %v2173 = vld [vmem:[#allocation2 + $0x20] sm:$0xff]
        %v2174 = vld [vmem:[#allocation2 + $0x28] sm:$0xff]
        %v2175 = vld [vmem:[#allocation2 + $0x30] sm:$0xff]
        %v2176 = vld [vmem:[#allocation2 + $0x38] sm:$0xff]
        %v2177 = vld [vmem:[#allocation2 + $0x40] sm:$0xff]
        %v2178 = vld [vmem:[#allocation2 + $0x48] sm:$0xff]
        %v2179 = vld [vmem:[#allocation2 + $0x50] sm:$0xff]
        %v2180 = vld [vmem:[#allocation2 + $0x58] sm:$0xff]
        %v2181 = vld [vmem:[#allocation2 + $0x60] sm:$0xff]
        %v2182 = vld [vmem:[#allocation2 + $0x68] sm:$0xff]
        %v2183 = vld [vmem:[#allocation2 + $0x70] sm:$0xff]
        %v2184 = vld [vmem:[#allocation2 + $0x78] sm:$0xff]
        %v2185 = vld [vmem:[#allocation2 + $0x80] sm:$0xff]
        %v2186 = vld [vmem:[#allocation2 + $0x88] sm:$0x1]
        %v2187 = vsel %vm1183, 1, 0
        %v2188 = vsel %vm1184, 1, 0
        %v2189 = vsel %vm1185, 1, 0
        %v2190 = vsel %vm1186, 1, 0
        %v2191 = vsel %vm1187, 1, 0
        %v2192 = vsel %vm1188, 1, 0
        %v2193 = vsel %vm1189, 1, 0
        %v2194 = vsel %vm1190, 1, 0
        %v2195 = vsel %vm1191, 1, 0
        %v2196 = vsel %vm1192, 1, 0
        %v2197 = vsel %vm1193, 1, 0
        %v2198 = vsel %vm1194, 1, 0
        %v2199 = vsel %vm1195, 1, 0
        %v2200 = vsel %vm1196, 1, 0
        %v2201 = vsel %vm1197, 1, 0
        %v2202 = vsel %vm1198, 1, 0
        %v2203 = vsel %vm1199, 1, 0
        %v2204 = vsel %vm1200, 1, 0
        %v2205 = vsel %vm1201, 1, 0
        %v2206 = vsel %vm1202, 1, 0
        %v2207 = vsel %vm1203, 1, 0
        %v2208 = vsel %vm1204, 1, 0
        %v2209 = vsel %vm1205, 1, 0
        %v2210 = vsel %vm1206, 1, 0
        %v2211 = vsel %vm1207, 1, 0
        %v2212 = vsel %vm1208, 1, 0
        %v2213 = vsel %vm1209, 1, 0
        %v2214 = vsel %vm1210, 1, 0
        %v2215 = vsel %vm1211, 1, 0
        %v2216 = vsel %vm1212, 1, 0
        %v2217 = vsel %vm1213, 1, 0
        %v2218 = vsel %vm1214, 1, 0
        %vm2219 = vcmp.eq.s32.totalorder %v2187, 1
        %vm2220 = vcmp.eq.s32.totalorder %v2188, 1
        %vm2221 = vcmp.eq.s32.totalorder %v2189, 1
        %vm2222 = vcmp.eq.s32.totalorder %v2190, 1
        %vm2223 = vcmp.eq.s32.totalorder %v2191, 1
        %vm2224 = vcmp.eq.s32.totalorder %v2192, 1
        %vm2225 = vcmp.eq.s32.totalorder %v2193, 1
        %vm2226 = vcmp.eq.s32.totalorder %v2194, 1
        %vm2227 = vcmp.eq.s32.totalorder %v2195, 1
        %vm2228 = vcmp.eq.s32.totalorder %v2196, 1
        %vm2229 = vcmp.eq.s32.totalorder %v2197, 1
        %vm2230 = vcmp.eq.s32.totalorder %v2198, 1
        %vm2231 = vcmp.eq.s32.totalorder %v2199, 1
        %vm2232 = vcmp.eq.s32.totalorder %v2200, 1
        %vm2233 = vcmp.eq.s32.totalorder %v2201, 1
        %vm2234 = vcmp.eq.s32.totalorder %v2202, 1
        %vm2235 = vcmp.eq.s32.totalorder %v2203, 1
        %vm2236 = vcmp.eq.s32.totalorder %v2204, 1
        %vm2237 = vcmp.eq.s32.totalorder %v2205, 1
        %vm2238 = vcmp.eq.s32.totalorder %v2206, 1
        %vm2239 = vcmp.eq.s32.totalorder %v2207, 1
        %vm2240 = vcmp.eq.s32.totalorder %v2208, 1
        %vm2241 = vcmp.eq.s32.totalorder %v2209, 1
        %vm2242 = vcmp.eq.s32.totalorder %v2210, 1
        %vm2243 = vcmp.eq.s32.totalorder %v2211, 1
        %vm2244 = vcmp.eq.s32.totalorder %v2212, 1
        %vm2245 = vcmp.eq.s32.totalorder %v2213, 1
        %vm2246 = vcmp.eq.s32.totalorder %v2214, 1
        %vm2247 = vcmp.eq.s32.totalorder %v2215, 1
        %vm2248 = vcmp.eq.s32.totalorder %v2216, 1
        %vm2249 = vcmp.eq.s32.totalorder %v2217, 1
        %vm2250 = vcmp.eq.s32.totalorder %v2218, 1
        %vm2251 = vmpackc.low %vm2219, %vm2219
        %vm2252 = vmpackc.low %vm2220, %vm2220
        %vm2253 = vmpackc.low %vm2221, %vm2221
        %vm2254 = vmpackc.low %vm2222, %vm2222
        %vm2255 = vmpackc.low %vm2223, %vm2223
        %vm2256 = vmpackc.low %vm2224, %vm2224
        %vm2257 = vmpackc.low %vm2225, %vm2225
        %vm2258 = vmpackc.low %vm2226, %vm2226
        %vm2259 = vmpackc.low %vm2227, %vm2227
        %vm2260 = vmpackc.low %vm2228, %vm2228
        %vm2261 = vmpackc.low %vm2229, %vm2229
        %vm2262 = vmpackc.low %vm2230, %vm2230
        %vm2263 = vmpackc.low %vm2231, %vm2231
        %vm2264 = vmpackc.low %vm2232, %vm2232
        %vm2265 = vmpackc.low %vm2233, %vm2233
        %vm2266 = vmpackc.low %vm2234, %vm2234
        %vm2267 = vmpackc.low %vm2235, %vm2235
        %vm2268 = vmpackc.low %vm2236, %vm2236
        %vm2269 = vmpackc.low %vm2237, %vm2237
        %vm2270 = vmpackc.low %vm2238, %vm2238
        %vm2271 = vmpackc.low %vm2239, %vm2239
        %vm2272 = vmpackc.low %vm2240, %vm2240
        %vm2273 = vmpackc.low %vm2241, %vm2241
        %vm2274 = vmpackc.low %vm2242, %vm2242
        %vm2275 = vmpackc.low %vm2243, %vm2243
        %vm2276 = vmpackc.low %vm2244, %vm2244
        %vm2277 = vmpackc.low %vm2245, %vm2245
        %vm2278 = vmpackc.low %vm2246, %vm2246
        %vm2279 = vmpackc.low %vm2247, %vm2247
        %vm2280 = vmpackc.low %vm2248, %vm2248
        %vm2281 = vmpackc.low %vm2249, %vm2249
        %vm2282 = vmpackc.low %vm2250, %vm2250
        %v2283 = vsel %vm2251, 65537, 0
        %v2284 = vsel %vm2252, 65537, 0
        %v2285 = vsel %vm2253, 65537, 0
        %v2286 = vsel %vm2254, 65537, 0
        %v2287 = vsel %vm2255, 65537, 0
        %v2288 = vsel %vm2256, 65537, 0
        %v2289 = vsel %vm2257, 65537, 0
        %v2290 = vsel %vm2258, 65537, 0
        %v2291 = vsel %vm2259, 65537, 0
        %v2292 = vsel %vm2260, 65537, 0
        %v2293 = vsel %vm2261, 65537, 0
        %v2294 = vsel %vm2262, 65537, 0
        %v2295 = vsel %vm2263, 65537, 0
        %v2296 = vsel %vm2264, 65537, 0
        %v2297 = vsel %vm2265, 65537, 0
        %v2298 = vsel %vm2266, 65537, 0
        %v2299 = vsel %vm2267, 65537, 0
        %v2300 = vsel %vm2268, 65537, 0
        %v2301 = vsel %vm2269, 65537, 0
        %v2302 = vsel %vm2270, 65537, 0
        %v2303 = vsel %vm2271, 65537, 0
        %v2304 = vsel %vm2272, 65537, 0
        %v2305 = vsel %vm2273, 65537, 0
        %v2306 = vsel %vm2274, 65537, 0
        %v2307 = vsel %vm2275, 65537, 0
        %v2308 = vsel %vm2276, 65537, 0
        %v2309 = vsel %vm2277, 65537, 0
        %v2310 = vsel %vm2278, 65537, 0
        %v2311 = vsel %vm2279, 65537, 0
        %v2312 = vsel %vm2280, 65537, 0
        %v2313 = vsel %vm2281, 65537, 0
        %v2314 = vsel %vm2282, 65537, 0
        %v2315 = vunpack.c.l.b16 %v2283
        %v2316 = vunpack.c.l.b16 %v2284
        %v2317 = vunpack.c.l.b16 %v2285
        %v2318 = vunpack.c.l.b16 %v2286
        %v2319 = vunpack.c.l.b16 %v2287
        %v2320 = vunpack.c.l.b16 %v2288
        %v2321 = vunpack.c.l.b16 %v2289
        %v2322 = vunpack.c.l.b16 %v2290
        %v2323 = vunpack.c.l.b16 %v2291
        %v2324 = vunpack.c.l.b16 %v2292
        %v2325 = vunpack.c.l.b16 %v2293
        %v2326 = vunpack.c.l.b16 %v2294
        %v2327 = vunpack.c.l.b16 %v2295
        %v2328 = vunpack.c.l.b16 %v2296
        %v2329 = vunpack.c.l.b16 %v2297
        %v2330 = vunpack.c.l.b16 %v2298
        %v2331 = vunpack.c.l.b16 %v2299
        %v2332 = vunpack.c.l.b16 %v2300
        %v2333 = vunpack.c.l.b16 %v2301
        %v2334 = vunpack.c.l.b16 %v2302
        %v2335 = vunpack.c.l.b16 %v2303
        %v2336 = vunpack.c.l.b16 %v2304
        %v2337 = vunpack.c.l.b16 %v2305
        %v2338 = vunpack.c.l.b16 %v2306
        %v2339 = vunpack.c.l.b16 %v2307
        %v2340 = vunpack.c.l.b16 %v2308
        %v2341 = vunpack.c.l.b16 %v2309
        %v2342 = vunpack.c.l.b16 %v2310
        %v2343 = vunpack.c.l.b16 %v2311
        %v2344 = vunpack.c.l.b16 %v2312
        %v2345 = vunpack.c.l.b16 %v2313
        %v2346 = vunpack.c.l.b16 %v2314
        %v2347 = vpack.c.b16 %v2316, %v2315
        %v2348 = vpack.c.b16 %v2318, %v2317
        %v2349 = vpack.c.b16 %v2320, %v2319
        %v2350 = vpack.c.b16 %v2322, %v2321
        %v2351 = vpack.c.b16 %v2324, %v2323
        %v2352 = vpack.c.b16 %v2326, %v2325
        %v2353 = vpack.c.b16 %v2328, %v2327
        %v2354 = vpack.c.b16 %v2330, %v2329
        %v2355 = vpack.c.b16 %v2332, %v2331
        %v2356 = vpack.c.b16 %v2334, %v2333
        %v2357 = vpack.c.b16 %v2336, %v2335
        %v2358 = vpack.c.b16 %v2338, %v2337
        %v2359 = vpack.c.b16 %v2340, %v2339
        %v2360 = vpack.c.b16 %v2342, %v2341
        %v2361 = vpack.c.b16 %v2344, %v2343
        %v2362 = vpack.c.b16 %v2346, %v2345
        %v2364 = vshrl.u32 %v2347, 16
        %v2366 = vrot.slane %v2364, 7
        %v2367 = vshll.u32 %v2347, 16
        %v2369 = vor.u32 %v2366, %v2367
        %v2371 = vshrl.u32 %v2348, 16
        %v2373 = vrot.slane %v2371, 7
        %v2374 = vshll.u32 %v2348, 16
        %v2376 = vor.u32 %v2373, %v2374
        %v2377 = vsel %vm1812, %v2366, %v2376
        %v2379 = vshrl.u32 %v2349, 16
        %v2381 = vrot.slane %v2379, 7
        %v2382 = vshll.u32 %v2349, 16
        %v2384 = vor.u32 %v2381, %v2382
        %v2385 = vsel %vm1812, %v2373, %v2384
        %v2387 = vshrl.u32 %v2350, 16
        %v2389 = vrot.slane %v2387, 7
        %v2390 = vshll.u32 %v2350, 16
        %v2392 = vor.u32 %v2389, %v2390
        %v2393 = vsel %vm1812, %v2381, %v2392
        %v2395 = vshrl.u32 %v2351, 16
        %v2397 = vrot.slane %v2395, 7
        %v2398 = vshll.u32 %v2351, 16
        %v2400 = vor.u32 %v2397, %v2398
        %v2401 = vsel %vm1812, %v2389, %v2400
        %v2403 = vshrl.u32 %v2352, 16
        %v2405 = vrot.slane %v2403, 7
        %v2406 = vshll.u32 %v2352, 16
        %v2408 = vor.u32 %v2405, %v2406
        %v2409 = vsel %vm1812, %v2397, %v2408
        %v2411 = vshrl.u32 %v2353, 16
        %v2413 = vrot.slane %v2411, 7
        %v2414 = vshll.u32 %v2353, 16
        %v2416 = vor.u32 %v2413, %v2414
        %v2417 = vsel %vm1812, %v2405, %v2416
        %v2419 = vshrl.u32 %v2354, 16
        %v2421 = vrot.slane %v2419, 7
        %v2422 = vshll.u32 %v2354, 16
        %v2424 = vor.u32 %v2421, %v2422
        %v2425 = vsel %vm1812, %v2413, %v2424
        %v2427 = vshrl.u32 %v2355, 16
        %v2429 = vrot.slane %v2427, 7
        %v2430 = vshll.u32 %v2355, 16
        %v2432 = vor.u32 %v2429, %v2430
        %v2433 = vsel %vm1812, %v2421, %v2432
        %v2435 = vshrl.u32 %v2356, 16
        %v2437 = vrot.slane %v2435, 7
        %v2438 = vshll.u32 %v2356, 16
        %v2440 = vor.u32 %v2437, %v2438
        %v2441 = vsel %vm1812, %v2429, %v2440
        %v2443 = vshrl.u32 %v2357, 16
        %v2445 = vrot.slane %v2443, 7
        %v2446 = vshll.u32 %v2357, 16
        %v2448 = vor.u32 %v2445, %v2446
        %v2449 = vsel %vm1812, %v2437, %v2448
        %v2451 = vshrl.u32 %v2358, 16
        %v2453 = vrot.slane %v2451, 7
        %v2454 = vshll.u32 %v2358, 16
        %v2456 = vor.u32 %v2453, %v2454
        %v2457 = vsel %vm1812, %v2445, %v2456
        %v2459 = vshrl.u32 %v2359, 16
        %v2461 = vrot.slane %v2459, 7
        %v2462 = vshll.u32 %v2359, 16
        %v2464 = vor.u32 %v2461, %v2462
        %v2465 = vsel %vm1812, %v2453, %v2464
        %v2467 = vshrl.u32 %v2360, 16
        %v2469 = vrot.slane %v2467, 7
        %v2470 = vshll.u32 %v2360, 16
        %v2472 = vor.u32 %v2469, %v2470
        %v2473 = vsel %vm1812, %v2461, %v2472
        %v2475 = vshrl.u32 %v2361, 16
        %v2477 = vrot.slane %v2475, 7
        %v2478 = vshll.u32 %v2361, 16
        %v2480 = vor.u32 %v2477, %v2478
        %v2481 = vsel %vm1812, %v2469, %v2480
        %v2483 = vshrl.u32 %v2362, 16
        %v2485 = vrot.slane %v2483, 7
        %v2486 = vshll.u32 %v2362, 16
        %v2488 = vor.u32 %v2485, %v2486
        %v2489 = vsel %vm1812, %v2477, %v2488
        %vm2490 = vcmp.ne.s16.totalorder %v2369, 0
        %vm2491 = vcmp.ne.s16.totalorder %v2377, 0
        %vm2492 = vcmp.ne.s16.totalorder %v2385, 0
        %vm2493 = vcmp.ne.s16.totalorder %v2393, 0
        %vm2494 = vcmp.ne.s16.totalorder %v2401, 0
        %vm2495 = vcmp.ne.s16.totalorder %v2409, 0
        %vm2496 = vcmp.ne.s16.totalorder %v2417, 0
        %vm2497 = vcmp.ne.s16.totalorder %v2425, 0
        %vm2498 = vcmp.ne.s16.totalorder %v2433, 0
        %vm2499 = vcmp.ne.s16.totalorder %v2441, 0
        %vm2500 = vcmp.ne.s16.totalorder %v2449, 0
        %vm2501 = vcmp.ne.s16.totalorder %v2457, 0
        %vm2502 = vcmp.ne.s16.totalorder %v2465, 0
        %vm2503 = vcmp.ne.s16.totalorder %v2473, 0
        %vm2504 = vcmp.ne.s16.totalorder %v2481, 0
        %vm2505 = vcmp.ne.s16.totalorder %v2489, 0
        %vm2506 = vcmp.ne.s16.totalorder %v2485, 0
        %v2507 = vsel %vm2490, %v2170, 0
        %v2508 = vsel %vm2491, %v2171, 0
        %v2509 = vsel %vm2492, %v2172, 0
        %v2510 = vsel %vm2493, %v2173, 0
        %v2511 = vsel %vm2494, %v2174, 0
        %v2512 = vsel %vm2495, %v2175, 0
        %v2513 = vsel %vm2496, %v2176, 0
        %v2514 = vsel %vm2497, %v2177, 0
        %v2515 = vsel %vm2498, %v2178, 0
        %v2516 = vsel %vm2499, %v2179, 0
        %v2517 = vsel %vm2500, %v2180, 0
        %v2518 = vsel %vm2501, %v2181, 0
        %v2519 = vsel %vm2502, %v2182, 0
        %v2520 = vsel %vm2503, %v2183, 0
        %v2521 = vsel %vm2504, %v2184, 0
        %v2522 = vsel %vm2505, %v2185, 0
        %v2523 = vsel %vm2506, %v2186, 0
        %s2524 = scalar_lea.vmem [#allocation12], 128
        %v2525 = vld [vmem:[%s2524] sm:$0xf]
        %v2526 = vld [vmem:[%s2524 + $0x4] sm:$0xf]
        %v2527 = vld [vmem:[%s2524 + $0x8] sm:$0xf]
        %v2528 = vld [vmem:[%s2524 + $0xc] sm:$0xf]
        %v2529 = vld [vmem:[%s2524 + $0x10] sm:$0xf]
        %v2530 = vld [vmem:[%s2524 + $0x14] sm:$0xf]
        %v2531 = vld [vmem:[%s2524 + $0x18] sm:$0xf]
        %v2532 = vld [vmem:[%s2524 + $0x1c] sm:$0xf]
        %v2533 = vld [vmem:[%s2524 + $0x20] sm:$0xf]
        %v2534 = vld [vmem:[%s2524 + $0x24] sm:$0xf]
        %v2535 = vld [vmem:[%s2524 + $0x28] sm:$0xf]
        %v2536 = vld [vmem:[%s2524 + $0x2c] sm:$0xf]
        %v2537 = vld [vmem:[%s2524 + $0x30] sm:$0xf]
        %v2538 = vld [vmem:[%s2524 + $0x34] sm:$0xf]
        %v2539 = vld [vmem:[%s2524 + $0x38] sm:$0xf]
        %v2540 = vld [vmem:[%s2524 + $0x3c] sm:$0xf]
        %v2542 = vshrl.u32 %v2507, 16
        %v2544 = vshll.u32 %v2507, 16
        %v2546 = vrot.slane %v2544, 1
        %v2547 = vor.u32 %v2542, %v2546
        %v2549 = vshll.u32 %v2508, 16
        %v2551 = vrot.slane %v2549, 1
        %v2552 = vsel %vm1408, %v2547, %v2551
        %v2553 = vshrl.u32 %v2508, 16
        %v2555 = vor.u32 %v2553, %v2551
        %v2557 = vshll.u32 %v2509, 16
        %v2559 = vrot.slane %v2557, 1
        %v2560 = vsel %vm1408, %v2555, %v2559
        %v2561 = vshrl.u32 %v2509, 16
        %v2563 = vor.u32 %v2561, %v2559
        %v2565 = vshll.u32 %v2510, 16
        %v2567 = vrot.slane %v2565, 1
        %v2568 = vsel %vm1408, %v2563, %v2567
        %v2569 = vshrl.u32 %v2510, 16
        %v2571 = vor.u32 %v2569, %v2567
        %v2573 = vshll.u32 %v2511, 16
        %v2575 = vrot.slane %v2573, 1
        %v2576 = vsel %vm1408, %v2571, %v2575
        %v2577 = vshrl.u32 %v2511, 16
        %v2579 = vor.u32 %v2577, %v2575
        %v2581 = vshll.u32 %v2512, 16
        %v2583 = vrot.slane %v2581, 1
        %v2584 = vsel %vm1408, %v2579, %v2583
        %v2585 = vshrl.u32 %v2512, 16
        %v2587 = vor.u32 %v2585, %v2583
        %v2589 = vshll.u32 %v2513, 16
        %v2591 = vrot.slane %v2589, 1
        %v2592 = vsel %vm1408, %v2587, %v2591
        %v2593 = vshrl.u32 %v2513, 16
        %v2595 = vor.u32 %v2593, %v2591
        %v2597 = vshll.u32 %v2514, 16
        %v2599 = vrot.slane %v2597, 1
        %v2600 = vsel %vm1408, %v2595, %v2599
        %v2601 = vshrl.u32 %v2514, 16
        %v2603 = vor.u32 %v2601, %v2599
        %v2605 = vshll.u32 %v2515, 16
        %v2607 = vrot.slane %v2605, 1
        %v2608 = vsel %vm1408, %v2603, %v2607
        %v2609 = vshrl.u32 %v2515, 16
        %v2611 = vor.u32 %v2609, %v2607
        %v2613 = vshll.u32 %v2516, 16
        %v2615 = vrot.slane %v2613, 1
        %v2616 = vsel %vm1408, %v2611, %v2615
        %v2617 = vshrl.u32 %v2516, 16
        %v2619 = vor.u32 %v2617, %v2615
        %v2621 = vshll.u32 %v2517, 16
        %v2623 = vrot.slane %v2621, 1
        %v2624 = vsel %vm1408, %v2619, %v2623
        %v2625 = vshrl.u32 %v2517, 16
        %v2627 = vor.u32 %v2625, %v2623
        %v2629 = vshll.u32 %v2518, 16
        %v2631 = vrot.slane %v2629, 1
        %v2632 = vsel %vm1408, %v2627, %v2631
        %v2633 = vshrl.u32 %v2518, 16
        %v2635 = vor.u32 %v2633, %v2631
        %v2637 = vshll.u32 %v2519, 16
        %v2639 = vrot.slane %v2637, 1
        %v2640 = vsel %vm1408, %v2635, %v2639
        %v2641 = vshrl.u32 %v2519, 16
        %v2643 = vor.u32 %v2641, %v2639
        %v2645 = vshll.u32 %v2520, 16
        %v2647 = vrot.slane %v2645, 1
        %v2648 = vsel %vm1408, %v2643, %v2647
        %v2649 = vshrl.u32 %v2520, 16
        %v2651 = vor.u32 %v2649, %v2647
        %v2653 = vshll.u32 %v2521, 16
        %v2655 = vrot.slane %v2653, 1
        %v2656 = vsel %vm1408, %v2651, %v2655
        %v2657 = vshrl.u32 %v2521, 16
        %v2659 = vor.u32 %v2657, %v2655
        %v2661 = vshll.u32 %v2522, 16
        %v2663 = vrot.slane %v2661, 1
        %v2664 = vsel %vm1408, %v2659, %v2663
        %v2665 = vshrl.u32 %v2522, 16
        %v2667 = vor.u32 %v2665, %v2663
        %v2669 = vshll.u32 %v2523, 16
        %v2671 = vrot.slane %v2669, 1
        %v2672 = vsel %vm1408, %v2667, %v2671
        %v2705 = vunpack.c.l.b16 %v2525
        %v2706 = vunpack.c.l.b16 %v2526
        %v2707 = vunpack.c.l.b16 %v2527
        %v2708 = vunpack.c.l.b16 %v2528
        %v2709 = vunpack.c.l.b16 %v2529
        %v2710 = vunpack.c.l.b16 %v2530
        %v2711 = vunpack.c.l.b16 %v2531
        %v2712 = vunpack.c.l.b16 %v2532
        %v2713 = vunpack.c.l.b16 %v2533
        %v2714 = vunpack.c.l.b16 %v2534
        %v2715 = vunpack.c.l.b16 %v2535
        %v2716 = vunpack.c.l.b16 %v2536
        %v2717 = vunpack.c.l.b16 %v2537
        %v2718 = vunpack.c.l.b16 %v2538
        %v2719 = vunpack.c.l.b16 %v2539
        %v2720 = vunpack.c.l.b16 %v2540
        %v2721 = vpack.c.b16 %v2706, %v2705
        %v2722 = vpack.c.b16 %v2708, %v2707
        %v2723 = vpack.c.b16 %v2710, %v2709
        %v2724 = vpack.c.b16 %v2712, %v2711
        %v2725 = vpack.c.b16 %v2714, %v2713
        %v2726 = vpack.c.b16 %v2716, %v2715
        %v2727 = vpack.c.b16 %v2718, %v2717
        %v2728 = vpack.c.b16 %v2720, %v2719
        %2737 = vmatprep.subr.bf16.mxu0 0
        %2738 = vmatpush1.bf16.msra.mxu0 %v2721
        %2739 = vmatprep.subr.bf16.mxu0 0
        %2740 = vmatpush1.bf16.msra.mxu0 %v2722
        %2741 = vmatprep.subr.bf16.mxu0 0
        %2742 = vmatpush1.bf16.msra.mxu0 %v2723
        %2743 = vmatprep.subr.bf16.mxu0 0
        %2744 = vmatpush1.bf16.msra.mxu0 %v2724
        %2745 = vmatprep.subr.bf16.mxu0 0
        %2746 = vmatpush1.bf16.msra.mxu0 %v2725
        %2747 = vmatprep.subr.bf16.mxu0 0
        %2748 = vmatpush1.bf16.msra.mxu0 %v2726
        %2749 = vmatprep.subr.bf16.mxu0 0
        %2750 = vmatpush1.bf16.msra.mxu0 %v2727
        %2751 = vmatprep.subr.bf16.mxu0 0
        %2752 = vmatpush1.bf16.msra.mxu0 %v2728
        %2753 = vmatprep.subr.bf16.mxu0 0
        %2754 = vmatpush1.bf16.msra.mxu0 0
        %2755 = vmatprep.subr.bf16.mxu0 0
        %2756 = vmatpush1.bf16.msra.mxu0 0
        %2757 = vmatprep.subr.bf16.mxu0 0
        %2758 = vmatpush1.bf16.msra.mxu0 0
        %2759 = vmatprep.subr.bf16.mxu0 0
        %2760 = vmatpush1.bf16.msra.mxu0 0
        %2761 = vmatprep.subr.bf16.mxu0 0
        %2762 = vmatpush1.bf16.msra.mxu0 0
        %2763 = vmatprep.subr.bf16.mxu0 0
        %2764 = vmatpush1.bf16.msra.mxu0 0
        %2765 = vmatprep.subr.bf16.mxu0 0
        %2766 = vmatpush1.bf16.msra.mxu0 0
        %2767 = vmatprep.subr.bf16.mxu0 0
        %2768 = vmatpush1.bf16.msra.mxu0 0
        %2769 = vmatprep.mubr.bf16.mxu0 0
        %2770 = vmatmul.mubr.bf16.gmra.mrb[0].mxu0 %v2552
        %v2771 = vpop.f32.mrb[0].mxu0
        %v2772 = vadd.f32 0.0, %v2771
        %v2773 = vpop.f32.mrb[0].mxu0
        %v2774 = vpop.f32.mrb[0].mxu0
        %v2775 = vadd.f32 0.0, %v2774
        %v2776 = vpop.f32.mrb[0].mxu0
        %2777 = vmatprep.mubr.bf16.mxu0 0
        %2778 = vmatmul.mubr.bf16.gmra.mrb[0].mxu0 %v2560
        %v2779 = vpop.f32.mrb[0].mxu0
        %v2780 = vadd.f32 0.0, %v2779
        %v2781 = vpop.f32.mrb[0].mxu0
        %v2782 = vpop.f32.mrb[0].mxu0
        %v2783 = vadd.f32 0.0, %v2782
        %v2784 = vpop.f32.mrb[0].mxu0
        %2785 = vmatprep.mubr.bf16.mxu0 0
        %2786 = vmatmul.mubr.bf16.gmra.mrb[0].mxu0 %v2568
        %v2787 = vpop.f32.mrb[0].mxu0
        %v2788 = vadd.f32 0.0, %v2787
        %v2789 = vpop.f32.mrb[0].mxu0
        %v2790 = vpop.f32.mrb[0].mxu0
        %v2791 = vadd.f32 0.0, %v2790
        %v2792 = vpop.f32.mrb[0].mxu0
        %2793 = vmatprep.mubr.bf16.mxu0 0
        %2794 = vmatmul.mubr.bf16.gmra.mrb[0].mxu0 %v2576
        %v2795 = vpop.f32.mrb[0].mxu0
        %v2796 = vadd.f32 0.0, %v2795
        %v2797 = vpop.f32.mrb[0].mxu0
        %v2798 = vpop.f32.mrb[0].mxu0
        %v2799 = vadd.f32 0.0, %v2798
        %v2800 = vpop.f32.mrb[0].mxu0
        %2801 = vmatprep.mubr.bf16.mxu0 0
        %2802 = vmatmul.mubr.bf16.gmra.mrb[0].mxu0 %v2584
        %v2803 = vpop.f32.mrb[0].mxu0
        %v2804 = vadd.f32 0.0, %v2803
        %v2805 = vpop.f32.mrb[0].mxu0
        %v2806 = vpop.f32.mrb[0].mxu0
        %v2807 = vadd.f32 0.0, %v2806
        %v2808 = vpop.f32.mrb[0].mxu0
        %2809 = vmatprep.mubr.bf16.mxu0 0
        %2810 = vmatmul.mubr.bf16.gmra.mrb[0].mxu0 %v2592
        %v2811 = vpop.f32.mrb[0].mxu0
        %v2812 = vadd.f32 0.0, %v2811
        %v2813 = vpop.f32.mrb[0].mxu0
        %v2814 = vpop.f32.mrb[0].mxu0
        %v2815 = vadd.f32 0.0, %v2814
        %v2816 = vpop.f32.mrb[0].mxu0
        %2817 = vmatprep.mubr.bf16.mxu0 0
        %2818 = vmatmul.mubr.bf16.gmra.mrb[0].mxu0 %v2600
        %v2819 = vpop.f32.mrb[0].mxu0
        %v2820 = vadd.f32 0.0, %v2819
        %v2821 = vpop.f32.mrb[0].mxu0
        %v2822 = vpop.f32.mrb[0].mxu0
        %v2823 = vadd.f32 0.0, %v2822
        %v2824 = vpop.f32.mrb[0].mxu0
        %2825 = vmatprep.mubr.bf16.mxu0 0
        %2826 = vmatmul.mubr.bf16.gmra.mrb[0].mxu0 %v2608
        %v2827 = vpop.f32.mrb[0].mxu0
        %v2828 = vadd.f32 0.0, %v2827
        %v2829 = vpop.f32.mrb[0].mxu0
        %v2830 = vpop.f32.mrb[0].mxu0
        %v2831 = vadd.f32 0.0, %v2830
        %v2832 = vpop.f32.mrb[0].mxu0
        %2833 = vmatprep.mubr.bf16.mxu0 0
        %2834 = vmatmul.mubr.bf16.gmra.mrb[0].mxu0 %v2616
        %v2835 = vpop.f32.mrb[0].mxu0
        %v2836 = vadd.f32 0.0, %v2835
        %v2837 = vpop.f32.mrb[0].mxu0
        %v2838 = vpop.f32.mrb[0].mxu0
        %v2839 = vadd.f32 0.0, %v2838
        %v2840 = vpop.f32.mrb[0].mxu0
        %2841 = vmatprep.mubr.bf16.mxu0 0
        %2842 = vmatmul.mubr.bf16.gmra.mrb[0].mxu0 %v2624
        %v2843 = vpop.f32.mrb[0].mxu0
        %v2844 = vadd.f32 0.0, %v2843
        %v2845 = vpop.f32.mrb[0].mxu0
        %v2846 = vpop.f32.mrb[0].mxu0
        %v2847 = vadd.f32 0.0, %v2846
        %v2848 = vpop.f32.mrb[0].mxu0
        %2849 = vmatprep.mubr.bf16.mxu0 0
        %2850 = vmatmul.mubr.bf16.gmra.mrb[0].mxu0 %v2632
        %v2851 = vpop.f32.mrb[0].mxu0
        %v2852 = vadd.f32 0.0, %v2851
        %v2853 = vpop.f32.mrb[0].mxu0
        %v2854 = vpop.f32.mrb[0].mxu0
        %v2855 = vadd.f32 0.0, %v2854
        %v2856 = vpop.f32.mrb[0].mxu0
        %2857 = vmatprep.mubr.bf16.mxu0 0
        %2858 = vmatmul.mubr.bf16.gmra.mrb[0].mxu0 %v2640
        %v2859 = vpop.f32.mrb[0].mxu0
        %v2860 = vadd.f32 0.0, %v2859
        %v2861 = vpop.f32.mrb[0].mxu0
        %v2862 = vpop.f32.mrb[0].mxu0
        %v2863 = vadd.f32 0.0, %v2862
        %v2864 = vpop.f32.mrb[0].mxu0
        %2865 = vmatprep.mubr.bf16.mxu0 0
        %2866 = vmatmul.mubr.bf16.gmra.mrb[0].mxu0 %v2648
        %v2867 = vpop.f32.mrb[0].mxu0
        %v2868 = vadd.f32 0.0, %v2867
        %v2869 = vpop.f32.mrb[0].mxu0
        %v2870 = vpop.f32.mrb[0].mxu0
        %v2871 = vadd.f32 0.0, %v2870
        %v2872 = vpop.f32.mrb[0].mxu0
        %2873 = vmatprep.mubr.bf16.mxu0 0
        %2874 = vmatmul.mubr.bf16.gmra.mrb[0].mxu0 %v2656
        %v2875 = vpop.f32.mrb[0].mxu0
        %v2876 = vadd.f32 0.0, %v2875
        %v2877 = vpop.f32.mrb[0].mxu0
        %v2878 = vpop.f32.mrb[0].mxu0
        %v2879 = vadd.f32 0.0, %v2878
        %v2880 = vpop.f32.mrb[0].mxu0
        %2881 = vmatprep.mubr.bf16.mxu0 0
        %2882 = vmatmul.mubr.bf16.gmra.mrb[0].mxu0 %v2664
        %v2883 = vpop.f32.mrb[0].mxu0
        %v2884 = vadd.f32 0.0, %v2883
        %v2885 = vpop.f32.mrb[0].mxu0
        %v2886 = vpop.f32.mrb[0].mxu0
        %v2887 = vadd.f32 0.0, %v2886
        %v2888 = vpop.f32.mrb[0].mxu0
        %2889 = vmatprep.mubr.bf16.mxu0 0
        %2890 = vmatmul.mubr.bf16.gmra.mrb[0].mxu0 %v2672
        %v2891 = vpop.f32.mrb[0].mxu0
        %v2892 = vadd.f32 0.0, %v2891
        %v2893 = vpop.f32.mrb[0].mxu0
        %v2894 = vpop.f32.mrb[0].mxu0
        %v2895 = vadd.f32 0.0, %v2894
        %v2896 = vpop.f32.mrb[0].mxu0
        %2897 = vdwg.mxu0
        %v2898 = vadd.f32 %v2044, %v2772
        %v2899 = vadd.f32 %v2047, %v2775
        %v2900 = vadd.f32 %v2052, %v2780
        %v2901 = vadd.f32 %v2055, %v2783
        %v2902 = vadd.f32 %v2060, %v2788
        %v2903 = vadd.f32 %v2063, %v2791
        %v2904 = vadd.f32 %v2068, %v2796
        %v2905 = vadd.f32 %v2071, %v2799
        %v2906 = vadd.f32 %v2076, %v2804
        %v2907 = vadd.f32 %v2079, %v2807
        %v2908 = vadd.f32 %v2084, %v2812
        %v2909 = vadd.f32 %v2087, %v2815
        %v2910 = vadd.f32 %v2092, %v2820
        %v2911 = vadd.f32 %v2095, %v2823
        %v2912 = vadd.f32 %v2100, %v2828
        %v2913 = vadd.f32 %v2103, %v2831
        %v2914 = vadd.f32 %v2108, %v2836
        %v2915 = vadd.f32 %v2111, %v2839
        %v2916 = vadd.f32 %v2116, %v2844
        %v2917 = vadd.f32 %v2119, %v2847
        %v2918 = vadd.f32 %v2124, %v2852
        %v2919 = vadd.f32 %v2127, %v2855
        %v2920 = vadd.f32 %v2132, %v2860
        %v2921 = vadd.f32 %v2135, %v2863
        %v2922 = vadd.f32 %v2140, %v2868
        %v2923 = vadd.f32 %v2143, %v2871
        %v2924 = vadd.f32 %v2148, %v2876
        %v2925 = vadd.f32 %v2151, %v2879
        %v2926 = vadd.f32 %v2156, %v2884
        %v2927 = vadd.f32 %v2159, %v2887
        %v2928 = vadd.f32 %v2164, %v2892
        %v2929 = vadd.f32 %v2167, %v2895
        %v2930 = vld [vmem:[#allocation2 + $0x8] sm:$0x80]
        %v2931 = vld [vmem:[#allocation2 + $0x88] sm:$0xff]
        %v2932 = vsel %vm1536, %v2930, 0
        %v2933 = vsel %vm1537, %v2171, 0
        %v2934 = vsel %vm1538, %v2172, 0
        %v2935 = vsel %vm1539, %v2173, 0
        %v2936 = vsel %vm1540, %v2174, 0
        %v2937 = vsel %vm1541, %v2175, 0
        %v2938 = vsel %vm1542, %v2176, 0
        %v2939 = vsel %vm1543, %v2177, 0
        %v2940 = vsel %vm1544, %v2178, 0
        %v2941 = vsel %vm1545, %v2179, 0
        %v2942 = vsel %vm1546, %v2180, 0
        %v2943 = vsel %vm1547, %v2181, 0
        %v2944 = vsel %vm1548, %v2182, 0
        %v2945 = vsel %vm1549, %v2183, 0
        %v2946 = vsel %vm1550, %v2184, 0
        %v2947 = vsel %vm1551, %v2185, 0
        %v2948 = vsel %vm1552, %v2931, 0
        %s2949 = scalar_lea.vmem [#allocation12], 192
        %v2950 = vld [vmem:[%s2949] sm:$0xf]
        %v2951 = vld [vmem:[%s2949 + $0x4] sm:$0xf]
        %v2952 = vld [vmem:[%s2949 + $0x8] sm:$0xf]
        %v2953 = vld [vmem:[%s2949 + $0xc] sm:$0xf]
        %v2954 = vld [vmem:[%s2949 + $0x10] sm:$0xf]
        %v2955 = vld [vmem:[%s2949 + $0x14] sm:$0xf]
        %v2956 = vld [vmem:[%s2949 + $0x18] sm:$0xf]
        %v2957 = vld [vmem:[%s2949 + $0x1c] sm:$0xf]
        %v2958 = vld [vmem:[%s2949 + $0x20] sm:$0xf]
        %v2959 = vld [vmem:[%s2949 + $0x24] sm:$0xf]
        %v2960 = vld [vmem:[%s2949 + $0x28] sm:$0xf]
        %v2961 = vld [vmem:[%s2949 + $0x2c] sm:$0xf]
        %v2962 = vld [vmem:[%s2949 + $0x30] sm:$0xf]
        %v2963 = vld [vmem:[%s2949 + $0x34] sm:$0xf]
        %v2964 = vld [vmem:[%s2949 + $0x38] sm:$0xf]
        %v2965 = vld [vmem:[%s2949 + $0x3c] sm:$0xf]
        %v2967 = vshrl.u32 %v2932, 16
        %v2969 = vrot.slane %v2967, 7
        %v2971 = vshrl.u32 %v2933, 16
        %v2973 = vrot.slane %v2971, 7
        %v2974 = vshll.u32 %v2933, 16
        %v2976 = vor.u32 %v2973, %v2974
        %v2977 = vsel %vm1812, %v2969, %v2976
        %v2979 = vshrl.u32 %v2934, 16
        %v2981 = vrot.slane %v2979, 7
        %v2982 = vshll.u32 %v2934, 16
        %v2984 = vor.u32 %v2981, %v2982
        %v2985 = vsel %vm1812, %v2973, %v2984
        %v2987 = vshrl.u32 %v2935, 16
        %v2989 = vrot.slane %v2987, 7
        %v2990 = vshll.u32 %v2935, 16
        %v2992 = vor.u32 %v2989, %v2990
        %v2993 = vsel %vm1812, %v2981, %v2992
        %v2995 = vshrl.u32 %v2936, 16
        %v2997 = vrot.slane %v2995, 7
        %v2998 = vshll.u32 %v2936, 16
        %v3000 = vor.u32 %v2997, %v2998
        %v3001 = vsel %vm1812, %v2989, %v3000
        %v3003 = vshrl.u32 %v2937, 16
        %v3005 = vrot.slane %v3003, 7
        %v3006 = vshll.u32 %v2937, 16
        %v3008 = vor.u32 %v3005, %v3006
        %v3009 = vsel %vm1812, %v2997, %v3008
        %v3011 = vshrl.u32 %v2938, 16
        %v3013 = vrot.slane %v3011, 7
        %v3014 = vshll.u32 %v2938, 16
        %v3016 = vor.u32 %v3013, %v3014
        %v3017 = vsel %vm1812, %v3005, %v3016
        %v3019 = vshrl.u32 %v2939, 16
        %v3021 = vrot.slane %v3019, 7
        %v3022 = vshll.u32 %v2939, 16
        %v3024 = vor.u32 %v3021, %v3022
        %v3025 = vsel %vm1812, %v3013, %v3024
        %v3027 = vshrl.u32 %v2940, 16
        %v3029 = vrot.slane %v3027, 7
        %v3030 = vshll.u32 %v2940, 16
        %v3032 = vor.u32 %v3029, %v3030
        %v3033 = vsel %vm1812, %v3021, %v3032
        %v3035 = vshrl.u32 %v2941, 16
        %v3037 = vrot.slane %v3035, 7
        %v3038 = vshll.u32 %v2941, 16
        %v3040 = vor.u32 %v3037, %v3038
        %v3041 = vsel %vm1812, %v3029, %v3040
        %v3043 = vshrl.u32 %v2942, 16
        %v3045 = vrot.slane %v3043, 7
        %v3046 = vshll.u32 %v2942, 16
        %v3048 = vor.u32 %v3045, %v3046
        %v3049 = vsel %vm1812, %v3037, %v3048
        %v3051 = vshrl.u32 %v2943, 16
        %v3053 = vrot.slane %v3051, 7
        %v3054 = vshll.u32 %v2943, 16
        %v3056 = vor.u32 %v3053, %v3054
        %v3057 = vsel %vm1812, %v3045, %v3056
        %v3059 = vshrl.u32 %v2944, 16
        %v3061 = vrot.slane %v3059, 7
        %v3062 = vshll.u32 %v2944, 16
        %v3064 = vor.u32 %v3061, %v3062
        %v3065 = vsel %vm1812, %v3053, %v3064
        %v3067 = vshrl.u32 %v2945, 16
        %v3069 = vrot.slane %v3067, 7
        %v3070 = vshll.u32 %v2945, 16
        %v3072 = vor.u32 %v3069, %v3070
        %v3073 = vsel %vm1812, %v3061, %v3072
        %v3075 = vshrl.u32 %v2946, 16
        %v3077 = vrot.slane %v3075, 7
        %v3078 = vshll.u32 %v2946, 16
        %v3080 = vor.u32 %v3077, %v3078
        %v3081 = vsel %vm1812, %v3069, %v3080
        %v3083 = vshrl.u32 %v2947, 16
        %v3085 = vrot.slane %v3083, 7
        %v3086 = vshll.u32 %v2947, 16
        %v3088 = vor.u32 %v3085, %v3086
        %v3089 = vsel %vm1812, %v3077, %v3088
        %v3091 = vshrl.u32 %v2948, 16
        %v3093 = vrot.slane %v3091, 7
        %v3094 = vshll.u32 %v2948, 16
        %v3096 = vor.u32 %v3093, %v3094
        %v3097 = vsel %vm1812, %v3085, %v3096
        %v3130 = vunpack.c.l.b16 %v2950
        %v3131 = vunpack.c.l.b16 %v2951
        %v3132 = vunpack.c.l.b16 %v2952
        %v3133 = vunpack.c.l.b16 %v2953
        %v3134 = vunpack.c.l.b16 %v2954
        %v3135 = vunpack.c.l.b16 %v2955
        %v3136 = vunpack.c.l.b16 %v2956
        %v3137 = vunpack.c.l.b16 %v2957
        %v3138 = vunpack.c.l.b16 %v2958
        %v3139 = vunpack.c.l.b16 %v2959
        %v3140 = vunpack.c.l.b16 %v2960
        %v3141 = vunpack.c.l.b16 %v2961
        %v3142 = vunpack.c.l.b16 %v2962
        %v3143 = vunpack.c.l.b16 %v2963
        %v3144 = vunpack.c.l.b16 %v2964
        %v3145 = vunpack.c.l.b16 %v2965
        %v3146 = vpack.c.b16 %v3131, %v3130
        %v3147 = vpack.c.b16 %v3133, %v3132
        %v3148 = vpack.c.b16 %v3135, %v3134
        %v3149 = vpack.c.b16 %v3137, %v3136
        %v3150 = vpack.c.b16 %v3139, %v3138
        %v3151 = vpack.c.b16 %v3141, %v3140
        %v3152 = vpack.c.b16 %v3143, %v3142
        %v3153 = vpack.c.b16 %v3145, %v3144
        %3162 = vmatprep.subr.bf16.mxu0 0
        %3163 = vmatpush1.bf16.msra.mxu0 %v3146
        %3164 = vmatprep.subr.bf16.mxu0 0
        %3165 = vmatpush1.bf16.msra.mxu0 %v3147
        %3166 = vmatprep.subr.bf16.mxu0 0
        %3167 = vmatpush1.bf16.msra.mxu0 %v3148
        %3168 = vmatprep.subr.bf16.mxu0 0
        %3169 = vmatpush1.bf16.msra.mxu0 %v3149
        %3170 = vmatprep.subr.bf16.mxu0 0
        %3171 = vmatpush1.bf16.msra.mxu0 %v3150
        %3172 = vmatprep.subr.bf16.mxu0 0
        %3173 = vmatpush1.bf16.msra.mxu0 %v3151
        %3174 = vmatprep.subr.bf16.mxu0 0
        %3175 = vmatpush1.bf16.msra.mxu0 %v3152
        %3176 = vmatprep.subr.bf16.mxu0 0
        %3177 = vmatpush1.bf16.msra.mxu0 %v3153
        %3178 = vmatprep.subr.bf16.mxu0 0
        %3179 = vmatpush1.bf16.msra.mxu0 0
        %3180 = vmatprep.subr.bf16.mxu0 0
        %3181 = vmatpush1.bf16.msra.mxu0 0
        %3182 = vmatprep.subr.bf16.mxu0 0
        %3183 = vmatpush1.bf16.msra.mxu0 0
        %3184 = vmatprep.subr.bf16.mxu0 0
        %3185 = vmatpush1.bf16.msra.mxu0 0
        %3186 = vmatprep.subr.bf16.mxu0 0
        %3187 = vmatpush1.bf16.msra.mxu0 0
        %3188 = vmatprep.subr.bf16.mxu0 0
        %3189 = vmatpush1.bf16.msra.mxu0 0
        %3190 = vmatprep.subr.bf16.mxu0 0
        %3191 = vmatpush1.bf16.msra.mxu0 0
        %3192 = vmatprep.subr.bf16.mxu0 0
        %3193 = vmatpush1.bf16.msra.mxu0 0
        %3194 = vmatprep.mubr.bf16.mxu0 0
        %3195 = vmatmul.mubr.bf16.gmra.mrb[0].mxu0 %v2977
        %v3196 = vpop.f32.mrb[0].mxu0
        %v3197 = vadd.f32 0.0, %v3196
        %v3198 = vpop.f32.mrb[0].mxu0
        %v3199 = vpop.f32.mrb[0].mxu0
        %v3200 = vadd.f32 0.0, %v3199
        %v3201 = vpop.f32.mrb[0].mxu0
        %3202 = vmatprep.mubr.bf16.mxu0 0
        %3203 = vmatmul.mubr.bf16.gmra.mrb[0].mxu0 %v2985
        %v3204 = vpop.f32.mrb[0].mxu0
        %v3205 = vadd.f32 0.0, %v3204
        %v3206 = vpop.f32.mrb[0].mxu0
        %v3207 = vpop.f32.mrb[0].mxu0
        %v3208 = vadd.f32 0.0, %v3207
        %v3209 = vpop.f32.mrb[0].mxu0
        %3210 = vmatprep.mubr.bf16.mxu0 0
        %3211 = vmatmul.mubr.bf16.gmra.mrb[0].mxu0 %v2993
        %v3212 = vpop.f32.mrb[0].mxu0
        %v3213 = vadd.f32 0.0, %v3212
        %v3214 = vpop.f32.mrb[0].mxu0
        %v3215 = vpop.f32.mrb[0].mxu0
        %v3216 = vadd.f32 0.0, %v3215
        %v3217 = vpop.f32.mrb[0].mxu0
        %3218 = vmatprep.mubr.bf16.mxu0 0
        %3219 = vmatmul.mubr.bf16.gmra.mrb[0].mxu0 %v3001
        %v3220 = vpop.f32.mrb[0].mxu0
        %v3221 = vadd.f32 0.0, %v3220
        %v3222 = vpop.f32.mrb[0].mxu0
        %v3223 = vpop.f32.mrb[0].mxu0
        %v3224 = vadd.f32 0.0, %v3223
        %v3225 = vpop.f32.mrb[0].mxu0
        %3226 = vmatprep.mubr.bf16.mxu0 0
        %3227 = vmatmul.mubr.bf16.gmra.mrb[0].mxu0 %v3009
        %v3228 = vpop.f32.mrb[0].mxu0
        %v3229 = vadd.f32 0.0, %v3228
        %v3230 = vpop.f32.mrb[0].mxu0
        %v3231 = vpop.f32.mrb[0].mxu0
        %v3232 = vadd.f32 0.0, %v3231
        %v3233 = vpop.f32.mrb[0].mxu0
        %3234 = vmatprep.mubr.bf16.mxu0 0
        %3235 = vmatmul.mubr.bf16.gmra.mrb[0].mxu0 %v3017
        %v3236 = vpop.f32.mrb[0].mxu0
        %v3237 = vadd.f32 0.0, %v3236
        %v3238 = vpop.f32.mrb[0].mxu0
        %v3239 = vpop.f32.mrb[0].mxu0
        %v3240 = vadd.f32 0.0, %v3239
        %v3241 = vpop.f32.mrb[0].mxu0
        %3242 = vmatprep.mubr.bf16.mxu0 0
        %3243 = vmatmul.mubr.bf16.gmra.mrb[0].mxu0 %v3025
        %v3244 = vpop.f32.mrb[0].mxu0
        %v3245 = vadd.f32 0.0, %v3244
        %v3246 = vpop.f32.mrb[0].mxu0
        %v3247 = vpop.f32.mrb[0].mxu0
        %v3248 = vadd.f32 0.0, %v3247
        %v3249 = vpop.f32.mrb[0].mxu0
        %3250 = vmatprep.mubr.bf16.mxu0 0
        %3251 = vmatmul.mubr.bf16.gmra.mrb[0].mxu0 %v3033
        %v3252 = vpop.f32.mrb[0].mxu0
        %v3253 = vadd.f32 0.0, %v3252
        %v3254 = vpop.f32.mrb[0].mxu0
        %v3255 = vpop.f32.mrb[0].mxu0
        %v3256 = vadd.f32 0.0, %v3255
        %v3257 = vpop.f32.mrb[0].mxu0
        %3258 = vmatprep.mubr.bf16.mxu0 0
        %3259 = vmatmul.mubr.bf16.gmra.mrb[0].mxu0 %v3041
        %v3260 = vpop.f32.mrb[0].mxu0
        %v3261 = vadd.f32 0.0, %v3260
        %v3262 = vpop.f32.mrb[0].mxu0
        %v3263 = vpop.f32.mrb[0].mxu0
        %v3264 = vadd.f32 0.0, %v3263
        %v3265 = vpop.f32.mrb[0].mxu0
        %3266 = vmatprep.mubr.bf16.mxu0 0
        %3267 = vmatmul.mubr.bf16.gmra.mrb[0].mxu0 %v3049
        %v3268 = vpop.f32.mrb[0].mxu0
        %v3269 = vadd.f32 0.0, %v3268
        %v3270 = vpop.f32.mrb[0].mxu0
        %v3271 = vpop.f32.mrb[0].mxu0
        %v3272 = vadd.f32 0.0, %v3271
        %v3273 = vpop.f32.mrb[0].mxu0
        %3274 = vmatprep.mubr.bf16.mxu0 0
        %3275 = vmatmul.mubr.bf16.gmra.mrb[0].mxu0 %v3057
        %v3276 = vpop.f32.mrb[0].mxu0
        %v3277 = vadd.f32 0.0, %v3276
        %v3278 = vpop.f32.mrb[0].mxu0
        %v3279 = vpop.f32.mrb[0].mxu0
        %v3280 = vadd.f32 0.0, %v3279
        %v3281 = vpop.f32.mrb[0].mxu0
        %3282 = vmatprep.mubr.bf16.mxu0 0
        %3283 = vmatmul.mubr.bf16.gmra.mrb[0].mxu0 %v3065
        %v3284 = vpop.f32.mrb[0].mxu0
        %v3285 = vadd.f32 0.0, %v3284
        %v3286 = vpop.f32.mrb[0].mxu0
        %v3287 = vpop.f32.mrb[0].mxu0
        %v3288 = vadd.f32 0.0, %v3287
        %v3289 = vpop.f32.mrb[0].mxu0
        %3290 = vmatprep.mubr.bf16.mxu0 0
        %3291 = vmatmul.mubr.bf16.gmra.mrb[0].mxu0 %v3073
        %v3292 = vpop.f32.mrb[0].mxu0
        %v3293 = vadd.f32 0.0, %v3292
        %v3294 = vpop.f32.mrb[0].mxu0
        %v3295 = vpop.f32.mrb[0].mxu0
        %v3296 = vadd.f32 0.0, %v3295
        %v3297 = vpop.f32.mrb[0].mxu0
        %3298 = vmatprep.mubr.bf16.mxu0 0
        %3299 = vmatmul.mubr.bf16.gmra.mrb[0].mxu0 %v3081
        %v3300 = vpop.f32.mrb[0].mxu0
        %v3301 = vadd.f32 0.0, %v3300
        %v3302 = vpop.f32.mrb[0].mxu0
        %v3303 = vpop.f32.mrb[0].mxu0
        %v3304 = vadd.f32 0.0, %v3303
        %v3305 = vpop.f32.mrb[0].mxu0
        %3306 = vmatprep.mubr.bf16.mxu0 0
        %3307 = vmatmul.mubr.bf16.gmra.mrb[0].mxu0 %v3089
        %v3308 = vpop.f32.mrb[0].mxu0
        %v3309 = vadd.f32 0.0, %v3308
        %v3310 = vpop.f32.mrb[0].mxu0
        %v3311 = vpop.f32.mrb[0].mxu0
        %v3312 = vadd.f32 0.0, %v3311
        %v3313 = vpop.f32.mrb[0].mxu0
        %3314 = vmatprep.mubr.bf16.mxu0 0
        %3315 = vmatmul.mubr.bf16.gmra.mrb[0].mxu0 %v3097
        %v3316 = vpop.f32.mrb[0].mxu0
        %v3317 = vadd.f32 0.0, %v3316
        %v3318 = vpop.f32.mrb[0].mxu0
        %v3319 = vpop.f32.mrb[0].mxu0
        %v3320 = vadd.f32 0.0, %v3319
        %v3321 = vpop.f32.mrb[0].mxu0
        %3322 = vdwg.mxu0
        %v3323 = vadd.f32 %v2898, %v3197
        %v3324 = vadd.f32 %v2899, %v3200
        %v3325 = vadd.f32 %v2900, %v3205
        %v3326 = vadd.f32 %v2901, %v3208
        %v3327 = vadd.f32 %v2902, %v3213
        %v3328 = vadd.f32 %v2903, %v3216
        %v3329 = vadd.f32 %v2904, %v3221
        %v3330 = vadd.f32 %v2905, %v3224
        %v3331 = vadd.f32 %v2906, %v3229
        %v3332 = vadd.f32 %v2907, %v3232
        %v3333 = vadd.f32 %v2908, %v3237
        %v3334 = vadd.f32 %v2909, %v3240
        %v3335 = vadd.f32 %v2910, %v3245
        %v3336 = vadd.f32 %v2911, %v3248
        %v3337 = vadd.f32 %v2912, %v3253
        %v3338 = vadd.f32 %v2913, %v3256
        %v3339 = vadd.f32 %v2914, %v3261
        %v3340 = vadd.f32 %v2915, %v3264
        %v3341 = vadd.f32 %v2916, %v3269
        %v3342 = vadd.f32 %v2917, %v3272
        %v3343 = vadd.f32 %v2918, %v3277
        %v3344 = vadd.f32 %v2919, %v3280
        %v3345 = vadd.f32 %v2920, %v3285
        %v3346 = vadd.f32 %v2921, %v3288
        %v3347 = vadd.f32 %v2922, %v3293
        %v3348 = vadd.f32 %v2923, %v3296
        %v3349 = vadd.f32 %v2924, %v3301
        %v3350 = vadd.f32 %v2925, %v3304
        %v3351 = vadd.f32 %v2926, %v3309
        %v3352 = vadd.f32 %v2927, %v3312
        %v3353 = vadd.f32 %v2928, %v3317
        %v3354 = vadd.f32 %v2929, %v3320
        %s3355 = scalar_lea.vmem [#allocation12], 256
        %v3356 = vld [vmem:[%s3355] sm:$0xf]
        %v3357 = vld [vmem:[%s3355 + $0x4] sm:$0xf]
        %v3358 = vld [vmem:[%s3355 + $0x8] sm:$0xf]
        %v3359 = vld [vmem:[%s3355 + $0xc] sm:$0xf]
        %v3360 = vld [vmem:[%s3355 + $0x10] sm:$0xf]
        %v3361 = vld [vmem:[%s3355 + $0x14] sm:$0xf]
        %v3362 = vld [vmem:[%s3355 + $0x18] sm:$0xf]
        %v3363 = vld [vmem:[%s3355 + $0x1c] sm:$0xf]
        %v3364 = vld [vmem:[%s3355 + $0x20] sm:$0xf]
        %v3365 = vld [vmem:[%s3355 + $0x24] sm:$0xf]
        %v3366 = vld [vmem:[%s3355 + $0x28] sm:$0xf]
        %v3367 = vld [vmem:[%s3355 + $0x2c] sm:$0xf]
        %v3368 = vld [vmem:[%s3355 + $0x30] sm:$0xf]
        %v3369 = vld [vmem:[%s3355 + $0x34] sm:$0xf]
        %v3370 = vld [vmem:[%s3355 + $0x38] sm:$0xf]
        %v3371 = vld [vmem:[%s3355 + $0x3c] sm:$0xf]
        %v3388 = vunpack.c.l.b16 %v3356
        %v3389 = vunpack.c.l.b16 %v3357
        %v3390 = vunpack.c.l.b16 %v3358
        %v3391 = vunpack.c.l.b16 %v3359
        %v3392 = vunpack.c.l.b16 %v3360
        %v3393 = vunpack.c.l.b16 %v3361
        %v3394 = vunpack.c.l.b16 %v3362
        %v3395 = vunpack.c.l.b16 %v3363
        %v3396 = vunpack.c.l.b16 %v3364
        %v3397 = vunpack.c.l.b16 %v3365
        %v3398 = vunpack.c.l.b16 %v3366
        %v3399 = vunpack.c.l.b16 %v3367
        %v3400 = vunpack.c.l.b16 %v3368
        %v3401 = vunpack.c.l.b16 %v3369
        %v3402 = vunpack.c.l.b16 %v3370
        %v3403 = vunpack.c.l.b16 %v3371
        %v3404 = vpack.c.b16 %v3389, %v3388
        %v3405 = vpack.c.b16 %v3391, %v3390
        %v3406 = vpack.c.b16 %v3393, %v3392
        %v3407 = vpack.c.b16 %v3395, %v3394
        %v3408 = vpack.c.b16 %v3397, %v3396
        %v3409 = vpack.c.b16 %v3399, %v3398
        %v3410 = vpack.c.b16 %v3401, %v3400
        %v3411 = vpack.c.b16 %v3403, %v3402
        %3420 = vmatprep.subr.bf16.mxu0 0
        %3421 = vmatpush1.bf16.msra.mxu0 %v3404
        %3422 = vmatprep.subr.bf16.mxu0 0
        %3423 = vmatpush1.bf16.msra.mxu0 %v3405
        %3424 = vmatprep.subr.bf16.mxu0 0
        %3425 = vmatpush1.bf16.msra.mxu0 %v3406
        %3426 = vmatprep.subr.bf16.mxu0 0
        %3427 = vmatpush1.bf16.msra.mxu0 %v3407
        %3428 = vmatprep.subr.bf16.mxu0 0
        %3429 = vmatpush1.bf16.msra.mxu0 %v3408
        %3430 = vmatprep.subr.bf16.mxu0 0
        %3431 = vmatpush1.bf16.msra.mxu0 %v3409
        %3432 = vmatprep.subr.bf16.mxu0 0
        %3433 = vmatpush1.bf16.msra.mxu0 %v3410
        %3434 = vmatprep.subr.bf16.mxu0 0
        %3435 = vmatpush1.bf16.msra.mxu0 %v3411
        %3436 = vmatprep.subr.bf16.mxu0 0
        %3437 = vmatpush1.bf16.msra.mxu0 0
        %3438 = vmatprep.subr.bf16.mxu0 0
        %3439 = vmatpush1.bf16.msra.mxu0 0
        %3440 = vmatprep.subr.bf16.mxu0 0
        %3441 = vmatpush1.bf16.msra.mxu0 0
        %3442 = vmatprep.subr.bf16.mxu0 0
        %3443 = vmatpush1.bf16.msra.mxu0 0
        %3444 = vmatprep.subr.bf16.mxu0 0
        %3445 = vmatpush1.bf16.msra.mxu0 0
        %3446 = vmatprep.subr.bf16.mxu0 0
        %3447 = vmatpush1.bf16.msra.mxu0 0
        %3448 = vmatprep.subr.bf16.mxu0 0
        %3449 = vmatpush1.bf16.msra.mxu0 0
        %3450 = vmatprep.subr.bf16.mxu0 0
        %3451 = vmatpush1.bf16.msra.mxu0 0
        %3452 = vmatprep.mubr.bf16.mxu0 0
        %3453 = vmatmul.mubr.bf16.gmra.mrb[0].mxu0 %v2171
        %v3454 = vpop.f32.mrb[0].mxu0
        %v3455 = vadd.f32 0.0, %v3454
        %v3456 = vpop.f32.mrb[0].mxu0
        %v3457 = vpop.f32.mrb[0].mxu0
        %v3458 = vadd.f32 0.0, %v3457
        %v3459 = vpop.f32.mrb[0].mxu0
        %3460 = vmatprep.mubr.bf16.mxu0 0
        %3461 = vmatmul.mubr.bf16.gmra.mrb[0].mxu0 %v2172
        %v3462 = vpop.f32.mrb[0].mxu0
        %v3463 = vadd.f32 0.0, %v3462
        %v3464 = vpop.f32.mrb[0].mxu0
        %v3465 = vpop.f32.mrb[0].mxu0
        %v3466 = vadd.f32 0.0, %v3465
        %v3467 = vpop.f32.mrb[0].mxu0
        %3468 = vmatprep.mubr.bf16.mxu0 0
        %3469 = vmatmul.mubr.bf16.gmra.mrb[0].mxu0 %v2173
        %v3470 = vpop.f32.mrb[0].mxu0
        %v3471 = vadd.f32 0.0, %v3470
        %v3472 = vpop.f32.mrb[0].mxu0
        %v3473 = vpop.f32.mrb[0].mxu0
        %v3474 = vadd.f32 0.0, %v3473
        %v3475 = vpop.f32.mrb[0].mxu0
        %3476 = vmatprep.mubr.bf16.mxu0 0
        %3477 = vmatmul.mubr.bf16.gmra.mrb[0].mxu0 %v2174
        %v3478 = vpop.f32.mrb[0].mxu0
        %v3479 = vadd.f32 0.0, %v3478
        %v3480 = vpop.f32.mrb[0].mxu0
        %v3481 = vpop.f32.mrb[0].mxu0
        %v3482 = vadd.f32 0.0, %v3481
        %v3483 = vpop.f32.mrb[0].mxu0
        %3484 = vmatprep.mubr.bf16.mxu0 0
        %3485 = vmatmul.mubr.bf16.gmra.mrb[0].mxu0 %v2175
        %v3486 = vpop.f32.mrb[0].mxu0
        %v3487 = vadd.f32 0.0, %v3486
        %v3488 = vpop.f32.mrb[0].mxu0
        %v3489 = vpop.f32.mrb[0].mxu0
        %v3490 = vadd.f32 0.0, %v3489
        %v3491 = vpop.f32.mrb[0].mxu0
        %3492 = vmatprep.mubr.bf16.mxu0 0
        %3493 = vmatmul.mubr.bf16.gmra.mrb[0].mxu0 %v2176
        %v3494 = vpop.f32.mrb[0].mxu0
        %v3495 = vadd.f32 0.0, %v3494
        %v3496 = vpop.f32.mrb[0].mxu0
        %v3497 = vpop.f32.mrb[0].mxu0
        %v3498 = vadd.f32 0.0, %v3497
        %v3499 = vpop.f32.mrb[0].mxu0
        %3500 = vmatprep.mubr.bf16.mxu0 0
        %3501 = vmatmul.mubr.bf16.gmra.mrb[0].mxu0 %v2177
        %v3502 = vpop.f32.mrb[0].mxu0
        %v3503 = vadd.f32 0.0, %v3502
        %v3504 = vpop.f32.mrb[0].mxu0
        %v3505 = vpop.f32.mrb[0].mxu0
        %v3506 = vadd.f32 0.0, %v3505
        %v3507 = vpop.f32.mrb[0].mxu0
        %3508 = vmatprep.mubr.bf16.mxu0 0
        %3509 = vmatmul.mubr.bf16.gmra.mrb[0].mxu0 %v2178
        %v3510 = vpop.f32.mrb[0].mxu0
        %v3511 = vadd.f32 0.0, %v3510
        %v3512 = vpop.f32.mrb[0].mxu0
        %v3513 = vpop.f32.mrb[0].mxu0
        %v3514 = vadd.f32 0.0, %v3513
        %v3515 = vpop.f32.mrb[0].mxu0
        %3516 = vmatprep.mubr.bf16.mxu0 0
        %3517 = vmatmul.mubr.bf16.gmra.mrb[0].mxu0 %v2179
        %v3518 = vpop.f32.mrb[0].mxu0
        %v3519 = vadd.f32 0.0, %v3518
        %v3520 = vpop.f32.mrb[0].mxu0
        %v3521 = vpop.f32.mrb[0].mxu0
        %v3522 = vadd.f32 0.0, %v3521
        %v3523 = vpop.f32.mrb[0].mxu0
        %3524 = vmatprep.mubr.bf16.mxu0 0
        %3525 = vmatmul.mubr.bf16.gmra.mrb[0].mxu0 %v2180
        %v3526 = vpop.f32.mrb[0].mxu0
        %v3527 = vadd.f32 0.0, %v3526
        %v3528 = vpop.f32.mrb[0].mxu0
        %v3529 = vpop.f32.mrb[0].mxu0
        %v3530 = vadd.f32 0.0, %v3529
        %v3531 = vpop.f32.mrb[0].mxu0
        %3532 = vmatprep.mubr.bf16.mxu0 0
        %3533 = vmatmul.mubr.bf16.gmra.mrb[0].mxu0 %v2181
        %v3534 = vpop.f32.mrb[0].mxu0
        %v3535 = vadd.f32 0.0, %v3534
        %v3536 = vpop.f32.mrb[0].mxu0
        %v3537 = vpop.f32.mrb[0].mxu0
        %v3538 = vadd.f32 0.0, %v3537
        %v3539 = vpop.f32.mrb[0].mxu0
        %3540 = vmatprep.mubr.bf16.mxu0 0
        %3541 = vmatmul.mubr.bf16.gmra.mrb[0].mxu0 %v2182
        %v3542 = vpop.f32.mrb[0].mxu0
        %v3543 = vadd.f32 0.0, %v3542
        %v3544 = vpop.f32.mrb[0].mxu0
        %v3545 = vpop.f32.mrb[0].mxu0
        %v3546 = vadd.f32 0.0, %v3545
        %v3547 = vpop.f32.mrb[0].mxu0
        %3548 = vmatprep.mubr.bf16.mxu0 0
        %3549 = vmatmul.mubr.bf16.gmra.mrb[0].mxu0 %v2183
        %v3550 = vpop.f32.mrb[0].mxu0
        %v3551 = vadd.f32 0.0, %v3550
        %v3552 = vpop.f32.mrb[0].mxu0
        %v3553 = vpop.f32.mrb[0].mxu0
        %v3554 = vadd.f32 0.0, %v3553
        %v3555 = vpop.f32.mrb[0].mxu0
        %3556 = vmatprep.mubr.bf16.mxu0 0
        %3557 = vmatmul.mubr.bf16.gmra.mrb[0].mxu0 %v2184
        %v3558 = vpop.f32.mrb[0].mxu0
        %v3559 = vadd.f32 0.0, %v3558
        %v3560 = vpop.f32.mrb[0].mxu0
        %v3561 = vpop.f32.mrb[0].mxu0
        %v3562 = vadd.f32 0.0, %v3561
        %v3563 = vpop.f32.mrb[0].mxu0
        %3564 = vmatprep.mubr.bf16.mxu0 0
        %3565 = vmatmul.mubr.bf16.gmra.mrb[0].mxu0 %v2185
        %v3566 = vpop.f32.mrb[0].mxu0
        %v3567 = vadd.f32 0.0, %v3566
        %v3568 = vpop.f32.mrb[0].mxu0
        %v3569 = vpop.f32.mrb[0].mxu0
        %v3570 = vadd.f32 0.0, %v3569
        %v3571 = vpop.f32.mrb[0].mxu0
        %3572 = vmatprep.mubr.bf16.mxu0 0
        %3573 = vmatmul.mubr.bf16.gmra.mrb[0].mxu0 %v2931
        %v3574 = vpop.f32.mrb[0].mxu0
        %v3575 = vadd.f32 0.0, %v3574
        %v3576 = vpop.f32.mrb[0].mxu0
        %v3577 = vpop.f32.mrb[0].mxu0
        %v3578 = vadd.f32 0.0, %v3577
        %v3579 = vpop.f32.mrb[0].mxu0
        %3580 = vdwg.mxu0
        %v3581 = vadd.f32 %v3323, %v3455
        %v3582 = vadd.f32 %v3324, %v3458
        %v3583 = vadd.f32 %v3325, %v3463
        %v3584 = vadd.f32 %v3326, %v3466
        %v3585 = vadd.f32 %v3327, %v3471
        %v3586 = vadd.f32 %v3328, %v3474
        %v3587 = vadd.f32 %v3329, %v3479
        %v3588 = vadd.f32 %v3330, %v3482
        %v3589 = vadd.f32 %v3331, %v3487
        %v3590 = vadd.f32 %v3332, %v3490
        %v3591 = vadd.f32 %v3333, %v3495
        %v3592 = vadd.f32 %v3334, %v3498
        %v3593 = vadd.f32 %v3335, %v3503
        %v3594 = vadd.f32 %v3336, %v3506
        %v3595 = vadd.f32 %v3337, %v3511
        %v3596 = vadd.f32 %v3338, %v3514
        %v3597 = vadd.f32 %v3339, %v3519
        %v3598 = vadd.f32 %v3340, %v3522
        %v3599 = vadd.f32 %v3341, %v3527
        %v3600 = vadd.f32 %v3342, %v3530
        %v3601 = vadd.f32 %v3343, %v3535
        %v3602 = vadd.f32 %v3344, %v3538
        %v3603 = vadd.f32 %v3345, %v3543
        %v3604 = vadd.f32 %v3346, %v3546
        %v3605 = vadd.f32 %v3347, %v3551
        %v3606 = vadd.f32 %v3348, %v3554
        %v3607 = vadd.f32 %v3349, %v3559
        %v3608 = vadd.f32 %v3350, %v3562
        %v3609 = vadd.f32 %v3351, %v3567
        %v3610 = vadd.f32 %v3352, %v3570
        %v3611 = vadd.f32 %v3353, %v3575
        %v3612 = vadd.f32 %v3354, %v3578
        %v3613 = vld [vmem:[#allocation2 + $0x10] sm:$0xff]
        %v3614 = vld [vmem:[#allocation2 + $0x18] sm:$0xff]
        %v3615 = vld [vmem:[#allocation2 + $0x20] sm:$0xff]
        %v3616 = vld [vmem:[#allocation2 + $0x28] sm:$0xff]
        %v3617 = vld [vmem:[#allocation2 + $0x30] sm:$0xff]
        %v3618 = vld [vmem:[#allocation2 + $0x38] sm:$0xff]
        %v3619 = vld [vmem:[#allocation2 + $0x40] sm:$0xff]
        %v3620 = vld [vmem:[#allocation2 + $0x48] sm:$0xff]
        %v3621 = vld [vmem:[#allocation2 + $0x50] sm:$0xff]
        %v3622 = vld [vmem:[#allocation2 + $0x58] sm:$0xff]
        %v3623 = vld [vmem:[#allocation2 + $0x60] sm:$0xff]
        %v3624 = vld [vmem:[#allocation2 + $0x68] sm:$0xff]
        %v3625 = vld [vmem:[#allocation2 + $0x70] sm:$0xff]
        %v3626 = vld [vmem:[#allocation2 + $0x78] sm:$0xff]
        %v3627 = vld [vmem:[#allocation2 + $0x80] sm:$0xff]
        %v3628 = vld [vmem:[#allocation2 + $0x88] sm:$0xff]
        %v3629 = vld [vmem:[#allocation2 + $0x90] sm:$0x1]
        %v3630 = vsel %vm2490, %v3613, 0
        %v3631 = vsel %vm2491, %v3614, 0
        %v3632 = vsel %vm2492, %v3615, 0
        %v3633 = vsel %vm2493, %v3616, 0
        %v3634 = vsel %vm2494, %v3617, 0
        %v3635 = vsel %vm2495, %v3618, 0
        %v3636 = vsel %vm2496, %v3619, 0
        %v3637 = vsel %vm2497, %v3620, 0
        %v3638 = vsel %vm2498, %v3621, 0
        %v3639 = vsel %vm2499, %v3622, 0
        %v3640 = vsel %vm2500, %v3623, 0
        %v3641 = vsel %vm2501, %v3624, 0
        %v3642 = vsel %vm2502, %v3625, 0
        %v3643 = vsel %vm2503, %v3626, 0
        %v3644 = vsel %vm2504, %v3627, 0
        %v3645 = vsel %vm2505, %v3628, 0
        %v3646 = vsel %vm2506, %v3629, 0
        %s3647 = scalar_lea.vmem [#allocation12], 320
        %v3648 = vld [vmem:[%s3647] sm:$0xf]
        %v3649 = vld [vmem:[%s3647 + $0x4] sm:$0xf]
        %v3650 = vld [vmem:[%s3647 + $0x8] sm:$0xf]
        %v3651 = vld [vmem:[%s3647 + $0xc] sm:$0xf]
        %v3652 = vld [vmem:[%s3647 + $0x10] sm:$0xf]
        %v3653 = vld [vmem:[%s3647 + $0x14] sm:$0xf]
        %v3654 = vld [vmem:[%s3647 + $0x18] sm:$0xf]
        %v3655 = vld [vmem:[%s3647 + $0x1c] sm:$0xf]
        %v3656 = vld [vmem:[%s3647 + $0x20] sm:$0xf]
        %v3657 = vld [vmem:[%s3647 + $0x24] sm:$0xf]
        %v3658 = vld [vmem:[%s3647 + $0x28] sm:$0xf]
        %v3659 = vld [vmem:[%s3647 + $0x2c] sm:$0xf]
        %v3660 = vld [vmem:[%s3647 + $0x30] sm:$0xf]
        %v3661 = vld [vmem:[%s3647 + $0x34] sm:$0xf]
        %v3662 = vld [vmem:[%s3647 + $0x38] sm:$0xf]
        %v3663 = vld [vmem:[%s3647 + $0x3c] sm:$0xf]
        %v3665 = vshrl.u32 %v3630, 16
        %v3667 = vshll.u32 %v3630, 16
        %v3669 = vrot.slane %v3667, 1
        %v3670 = vor.u32 %v3665, %v3669
        %v3672 = vshll.u32 %v3631, 16
        %v3674 = vrot.slane %v3672, 1
        %v3675 = vsel %vm1408, %v3670, %v3674
        %v3676 = vshrl.u32 %v3631, 16
        %v3678 = vor.u32 %v3676, %v3674
        %v3680 = vshll.u32 %v3632, 16
        %v3682 = vrot.slane %v3680, 1
        %v3683 = vsel %vm1408, %v3678, %v3682
        %v3684 = vshrl.u32 %v3632, 16
        %v3686 = vor.u32 %v3684, %v3682
        %v3688 = vshll.u32 %v3633, 16
        %v3690 = vrot.slane %v3688, 1
        %v3691 = vsel %vm1408, %v3686, %v3690
        %v3692 = vshrl.u32 %v3633, 16
        %v3694 = vor.u32 %v3692, %v3690
        %v3696 = vshll.u32 %v3634, 16
        %v3698 = vrot.slane %v3696, 1
        %v3699 = vsel %vm1408, %v3694, %v3698
        %v3700 = vshrl.u32 %v3634, 16
        %v3702 = vor.u32 %v3700, %v3698
        %v3704 = vshll.u32 %v3635, 16
        %v3706 = vrot.slane %v3704, 1
        %v3707 = vsel %vm1408, %v3702, %v3706
        %v3708 = vshrl.u32 %v3635, 16
        %v3710 = vor.u32 %v3708, %v3706
        %v3712 = vshll.u32 %v3636, 16
        %v3714 = vrot.slane %v3712, 1
        %v3715 = vsel %vm1408, %v3710, %v3714
        %v3716 = vshrl.u32 %v3636, 16
        %v3718 = vor.u32 %v3716, %v3714
        %v3720 = vshll.u32 %v3637, 16
        %v3722 = vrot.slane %v3720, 1
        %v3723 = vsel %vm1408, %v3718, %v3722
        %v3724 = vshrl.u32 %v3637, 16
        %v3726 = vor.u32 %v3724, %v3722
        %v3728 = vshll.u32 %v3638, 16
        %v3730 = vrot.slane %v3728, 1
        %v3731 = vsel %vm1408, %v3726, %v3730
        %v3732 = vshrl.u32 %v3638, 16
        %v3734 = vor.u32 %v3732, %v3730
        %v3736 = vshll.u32 %v3639, 16
        %v3738 = vrot.slane %v3736, 1
        %v3739 = vsel %vm1408, %v3734, %v3738
        %v3740 = vshrl.u32 %v3639, 16
        %v3742 = vor.u32 %v3740, %v3738
        %v3744 = vshll.u32 %v3640, 16
        %v3746 = vrot.slane %v3744, 1
        %v3747 = vsel %vm1408, %v3742, %v3746
        %v3748 = vshrl.u32 %v3640, 16
        %v3750 = vor.u32 %v3748, %v3746
        %v3752 = vshll.u32 %v3641, 16
        %v3754 = vrot.slane %v3752, 1
        %v3755 = vsel %vm1408, %v3750, %v3754
        %v3756 = vshrl.u32 %v3641, 16
        %v3758 = vor.u32 %v3756, %v3754
        %v3760 = vshll.u32 %v3642, 16
        %v3762 = vrot.slane %v3760, 1
        %v3763 = vsel %vm1408, %v3758, %v3762
        %v3764 = vshrl.u32 %v3642, 16
        %v3766 = vor.u32 %v3764, %v3762
        %v3768 = vshll.u32 %v3643, 16
        %v3770 = vrot.slane %v3768, 1
        %v3771 = vsel %vm1408, %v3766, %v3770
        %v3772 = vshrl.u32 %v3643, 16
        %v3774 = vor.u32 %v3772, %v3770
        %v3776 = vshll.u32 %v3644, 16
        %v3778 = vrot.slane %v3776, 1
        %v3779 = vsel %vm1408, %v3774, %v3778
        %v3780 = vshrl.u32 %v3644, 16
        %v3782 = vor.u32 %v3780, %v3778
        %v3784 = vshll.u32 %v3645, 16
        %v3786 = vrot.slane %v3784, 1
        %v3787 = vsel %vm1408, %v3782, %v3786
        %v3788 = vshrl.u32 %v3645, 16
        %v3790 = vor.u32 %v3788, %v3786
        %v3792 = vshll.u32 %v3646, 16
        %v3794 = vrot.slane %v3792, 1
        %v3795 = vsel %vm1408, %v3790, %v3794
        %v3828 = vunpack.c.l.b16 %v3648
        %v3829 = vunpack.c.l.b16 %v3649
        %v3830 = vunpack.c.l.b16 %v3650
        %v3831 = vunpack.c.l.b16 %v3651
        %v3832 = vunpack.c.l.b16 %v3652
        %v3833 = vunpack.c.l.b16 %v3653
        %v3834 = vunpack.c.l.b16 %v3654
        %v3835 = vunpack.c.l.b16 %v3655
        %v3836 = vunpack.c.l.b16 %v3656
        %v3837 = vunpack.c.l.b16 %v3657
        %v3838 = vunpack.c.l.b16 %v3658
        %v3839 = vunpack.c.l.b16 %v3659
        %v3840 = vunpack.c.l.b16 %v3660
        %v3841 = vunpack.c.l.b16 %v3661
        %v3842 = vunpack.c.l.b16 %v3662
        %v3843 = vunpack.c.l.b16 %v3663
        %v3844 = vpack.c.b16 %v3829, %v3828
        %v3845 = vpack.c.b16 %v3831, %v3830
        %v3846 = vpack.c.b16 %v3833, %v3832
        %v3847 = vpack.c.b16 %v3835, %v3834
        %v3848 = vpack.c.b16 %v3837, %v3836
        %v3849 = vpack.c.b16 %v3839, %v3838
        %v3850 = vpack.c.b16 %v3841, %v3840
        %v3851 = vpack.c.b16 %v3843, %v3842
        %3860 = vmatprep.subr.bf16.mxu0 0
        %3861 = vmatpush1.bf16.msra.mxu0 %v3844
        %3862 = vmatprep.subr.bf16.mxu0 0
        %3863 = vmatpush1.bf16.msra.mxu0 %v3845
        %3864 = vmatprep.subr.bf16.mxu0 0
        %3865 = vmatpush1.bf16.msra.mxu0 %v3846
        %3866 = vmatprep.subr.bf16.mxu0 0
        %3867 = vmatpush1.bf16.msra.mxu0 %v3847
        %3868 = vmatprep.subr.bf16.mxu0 0
        %3869 = vmatpush1.bf16.msra.mxu0 %v3848
        %3870 = vmatprep.subr.bf16.mxu0 0
        %3871 = vmatpush1.bf16.msra.mxu0 %v3849
        %3872 = vmatprep.subr.bf16.mxu0 0
        %3873 = vmatpush1.bf16.msra.mxu0 %v3850
        %3874 = vmatprep.subr.bf16.mxu0 0
        %3875 = vmatpush1.bf16.msra.mxu0 %v3851
        %3876 = vmatprep.subr.bf16.mxu0 0
        %3877 = vmatpush1.bf16.msra.mxu0 0
        %3878 = vmatprep.subr.bf16.mxu0 0
        %3879 = vmatpush1.bf16.msra.mxu0 0
        %3880 = vmatprep.subr.bf16.mxu0 0
        %3881 = vmatpush1.bf16.msra.mxu0 0
        %3882 = vmatprep.subr.bf16.mxu0 0
        %3883 = vmatpush1.bf16.msra.mxu0 0
        %3884 = vmatprep.subr.bf16.mxu0 0
        %3885 = vmatpush1.bf16.msra.mxu0 0
        %3886 = vmatprep.subr.bf16.mxu0 0
        %3887 = vmatpush1.bf16.msra.mxu0 0
        %3888 = vmatprep.subr.bf16.mxu0 0
        %3889 = vmatpush1.bf16.msra.mxu0 0
        %3890 = vmatprep.subr.bf16.mxu0 0
        %3891 = vmatpush1.bf16.msra.mxu0 0
        %3892 = vmatprep.mubr.bf16.mxu0 0
        %3893 = vmatmul.mubr.bf16.gmra.mrb[0].mxu0 %v3675
        %v3894 = vpop.f32.mrb[0].mxu0
        %v3895 = vadd.f32 0.0, %v3894
        %v3896 = vpop.f32.mrb[0].mxu0
        %v3897 = vpop.f32.mrb[0].mxu0
        %v3898 = vadd.f32 0.0, %v3897
        %v3899 = vpop.f32.mrb[0].mxu0
        %3900 = vmatprep.mubr.bf16.mxu0 0
        %3901 = vmatmul.mubr.bf16.gmra.mrb[0].mxu0 %v3683
        %v3902 = vpop.f32.mrb[0].mxu0
        %v3903 = vadd.f32 0.0, %v3902
        %v3904 = vpop.f32.mrb[0].mxu0
        %v3905 = vpop.f32.mrb[0].mxu0
        %v3906 = vadd.f32 0.0, %v3905
        %v3907 = vpop.f32.mrb[0].mxu0
        %3908 = vmatprep.mubr.bf16.mxu0 0
        %3909 = vmatmul.mubr.bf16.gmra.mrb[0].mxu0 %v3691
        %v3910 = vpop.f32.mrb[0].mxu0
        %v3911 = vadd.f32 0.0, %v3910
        %v3912 = vpop.f32.mrb[0].mxu0
        %v3913 = vpop.f32.mrb[0].mxu0
        %v3914 = vadd.f32 0.0, %v3913
        %v3915 = vpop.f32.mrb[0].mxu0
        %3916 = vmatprep.mubr.bf16.mxu0 0
        %3917 = vmatmul.mubr.bf16.gmra.mrb[0].mxu0 %v3699
        %v3918 = vpop.f32.mrb[0].mxu0
        %v3919 = vadd.f32 0.0, %v3918
        %v3920 = vpop.f32.mrb[0].mxu0
        %v3921 = vpop.f32.mrb[0].mxu0
        %v3922 = vadd.f32 0.0, %v3921
        %v3923 = vpop.f32.mrb[0].mxu0
        %3924 = vmatprep.mubr.bf16.mxu0 0
        %3925 = vmatmul.mubr.bf16.gmra.mrb[0].mxu0 %v3707
        %v3926 = vpop.f32.mrb[0].mxu0
        %v3927 = vadd.f32 0.0, %v3926
        %v3928 = vpop.f32.mrb[0].mxu0
        %v3929 = vpop.f32.mrb[0].mxu0
        %v3930 = vadd.f32 0.0, %v3929
        %v3931 = vpop.f32.mrb[0].mxu0
        %3932 = vmatprep.mubr.bf16.mxu0 0
        %3933 = vmatmul.mubr.bf16.gmra.mrb[0].mxu0 %v3715
        %v3934 = vpop.f32.mrb[0].mxu0
        %v3935 = vadd.f32 0.0, %v3934
        %v3936 = vpop.f32.mrb[0].mxu0
        %v3937 = vpop.f32.mrb[0].mxu0
        %v3938 = vadd.f32 0.0, %v3937
        %v3939 = vpop.f32.mrb[0].mxu0
        %3940 = vmatprep.mubr.bf16.mxu0 0
        %3941 = vmatmul.mubr.bf16.gmra.mrb[0].mxu0 %v3723
        %v3942 = vpop.f32.mrb[0].mxu0
        %v3943 = vadd.f32 0.0, %v3942
        %v3944 = vpop.f32.mrb[0].mxu0
        %v3945 = vpop.f32.mrb[0].mxu0
        %v3946 = vadd.f32 0.0, %v3945
        %v3947 = vpop.f32.mrb[0].mxu0
        %3948 = vmatprep.mubr.bf16.mxu0 0
        %3949 = vmatmul.mubr.bf16.gmra.mrb[0].mxu0 %v3731
        %v3950 = vpop.f32.mrb[0].mxu0
        %v3951 = vadd.f32 0.0, %v3950
        %v3952 = vpop.f32.mrb[0].mxu0
        %v3953 = vpop.f32.mrb[0].mxu0
        %v3954 = vadd.f32 0.0, %v3953
        %v3955 = vpop.f32.mrb[0].mxu0
        %3956 = vmatprep.mubr.bf16.mxu0 0
        %3957 = vmatmul.mubr.bf16.gmra.mrb[0].mxu0 %v3739
        %v3958 = vpop.f32.mrb[0].mxu0
        %v3959 = vadd.f32 0.0, %v3958
        %v3960 = vpop.f32.mrb[0].mxu0
        %v3961 = vpop.f32.mrb[0].mxu0
        %v3962 = vadd.f32 0.0, %v3961
        %v3963 = vpop.f32.mrb[0].mxu0
        %3964 = vmatprep.mubr.bf16.mxu0 0
        %3965 = vmatmul.mubr.bf16.gmra.mrb[0].mxu0 %v3747
        %v3966 = vpop.f32.mrb[0].mxu0
        %v3967 = vadd.f32 0.0, %v3966
        %v3968 = vpop.f32.mrb[0].mxu0
        %v3969 = vpop.f32.mrb[0].mxu0
        %v3970 = vadd.f32 0.0, %v3969
        %v3971 = vpop.f32.mrb[0].mxu0
        %3972 = vmatprep.mubr.bf16.mxu0 0
        %3973 = vmatmul.mubr.bf16.gmra.mrb[0].mxu0 %v3755
        %v3974 = vpop.f32.mrb[0].mxu0
        %v3975 = vadd.f32 0.0, %v3974
        %v3976 = vpop.f32.mrb[0].mxu0
        %v3977 = vpop.f32.mrb[0].mxu0
        %v3978 = vadd.f32 0.0, %v3977
        %v3979 = vpop.f32.mrb[0].mxu0
        %3980 = vmatprep.mubr.bf16.mxu0 0
        %3981 = vmatmul.mubr.bf16.gmra.mrb[0].mxu0 %v3763
        %v3982 = vpop.f32.mrb[0].mxu0
        %v3983 = vadd.f32 0.0, %v3982
        %v3984 = vpop.f32.mrb[0].mxu0
        %v3985 = vpop.f32.mrb[0].mxu0
        %v3986 = vadd.f32 0.0, %v3985
        %v3987 = vpop.f32.mrb[0].mxu0
        %3988 = vmatprep.mubr.bf16.mxu0 0
        %3989 = vmatmul.mubr.bf16.gmra.mrb[0].mxu0 %v3771
        %v3990 = vpop.f32.mrb[0].mxu0
        %v3991 = vadd.f32 0.0, %v3990
        %v3992 = vpop.f32.mrb[0].mxu0
        %v3993 = vpop.f32.mrb[0].mxu0
        %v3994 = vadd.f32 0.0, %v3993
        %v3995 = vpop.f32.mrb[0].mxu0
        %3996 = vmatprep.mubr.bf16.mxu0 0
        %3997 = vmatmul.mubr.bf16.gmra.mrb[0].mxu0 %v3779
        %v3998 = vpop.f32.mrb[0].mxu0
        %v3999 = vadd.f32 0.0, %v3998
        %v4000 = vpop.f32.mrb[0].mxu0
        %v4001 = vpop.f32.mrb[0].mxu0
        %v4002 = vadd.f32 0.0, %v4001
        %v4003 = vpop.f32.mrb[0].mxu0
        %4004 = vmatprep.mubr.bf16.mxu0 0
        %4005 = vmatmul.mubr.bf16.gmra.mrb[0].mxu0 %v3787
        %v4006 = vpop.f32.mrb[0].mxu0
        %v4007 = vadd.f32 0.0, %v4006
        %v4008 = vpop.f32.mrb[0].mxu0
        %v4009 = vpop.f32.mrb[0].mxu0
        %v4010 = vadd.f32 0.0, %v4009
        %v4011 = vpop.f32.mrb[0].mxu0
        %4012 = vmatprep.mubr.bf16.mxu0 0
        %4013 = vmatmul.mubr.bf16.gmra.mrb[0].mxu0 %v3795
        %v4014 = vpop.f32.mrb[0].mxu0
        %v4015 = vadd.f32 0.0, %v4014
        %v4016 = vpop.f32.mrb[0].mxu0
        %v4017 = vpop.f32.mrb[0].mxu0
        %v4018 = vadd.f32 0.0, %v4017
        %v4019 = vpop.f32.mrb[0].mxu0
        %4020 = vdwg.mxu0
        %v4021 = vadd.f32 %v3581, %v3895
        %v4022 = vadd.f32 %v3582, %v3898
        %v4023 = vadd.f32 %v3583, %v3903
        %v4024 = vadd.f32 %v3584, %v3906
        %v4025 = vadd.f32 %v3585, %v3911
        %v4026 = vadd.f32 %v3586, %v3914
        %v4027 = vadd.f32 %v3587, %v3919
        %v4028 = vadd.f32 %v3588, %v3922
        %v4029 = vadd.f32 %v3589, %v3927
        %v4030 = vadd.f32 %v3590, %v3930
        %v4031 = vadd.f32 %v3591, %v3935
        %v4032 = vadd.f32 %v3592, %v3938
        %v4033 = vadd.f32 %v3593, %v3943
        %v4034 = vadd.f32 %v3594, %v3946
        %v4035 = vadd.f32 %v3595, %v3951
        %v4036 = vadd.f32 %v3596, %v3954
        %v4037 = vadd.f32 %v3597, %v3959
        %v4038 = vadd.f32 %v3598, %v3962
        %v4039 = vadd.f32 %v3599, %v3967
        %v4040 = vadd.f32 %v3600, %v3970
        %v4041 = vadd.f32 %v3601, %v3975
        %v4042 = vadd.f32 %v3602, %v3978
        %v4043 = vadd.f32 %v3603, %v3983
        %v4044 = vadd.f32 %v3604, %v3986
        %v4045 = vadd.f32 %v3605, %v3991
        %v4046 = vadd.f32 %v3606, %v3994
        %v4047 = vadd.f32 %v3607, %v3999
        %v4048 = vadd.f32 %v3608, %v4002
        %v4049 = vadd.f32 %v3609, %v4007
        %v4050 = vadd.f32 %v3610, %v4010
        %v4051 = vadd.f32 %v3611, %v4015
        %v4052 = vadd.f32 %v3612, %v4018
        %v4053 = vld [vmem:[#allocation2 + $0x10] sm:$0x80]
        %v4054 = vld [vmem:[#allocation2 + $0x90] sm:$0xff]
        %v4055 = vsel %vm1536, %v4053, 0
        %v4056 = vsel %vm1537, %v3614, 0
        %v4057 = vsel %vm1538, %v3615, 0
        %v4058 = vsel %vm1539, %v3616, 0
        %v4059 = vsel %vm1540, %v3617, 0
        %v4060 = vsel %vm1541, %v3618, 0
        %v4061 = vsel %vm1542, %v3619, 0
        %v4062 = vsel %vm1543, %v3620, 0
        %v4063 = vsel %vm1544, %v3621, 0
        %v4064 = vsel %vm1545, %v3622, 0
        %v4065 = vsel %vm1546, %v3623, 0
        %v4066 = vsel %vm1547, %v3624, 0
        %v4067 = vsel %vm1548, %v3625, 0
        %v4068 = vsel %vm1549, %v3626, 0
        %v4069 = vsel %vm1550, %v3627, 0
        %v4070 = vsel %vm1551, %v3628, 0
        %v4071 = vsel %vm1552, %v4054, 0
        %s4072 = scalar_lea.vmem [#allocation12], 384
        %v4073 = vld [vmem:[%s4072] sm:$0xf]
        %v4074 = vld [vmem:[%s4072 + $0x4] sm:$0xf]
        %v4075 = vld [vmem:[%s4072 + $0x8] sm:$0xf]
        %v4076 = vld [vmem:[%s4072 + $0xc] sm:$0xf]
        %v4077 = vld [vmem:[%s4072 + $0x10] sm:$0xf]
        %v4078 = vld [vmem:[%s4072 + $0x14] sm:$0xf]
        %v4079 = vld [vmem:[%s4072 + $0x18] sm:$0xf]
        %v4080 = vld [vmem:[%s4072 + $0x1c] sm:$0xf]
        %v4081 = vld [vmem:[%s4072 + $0x20] sm:$0xf]
        %v4082 = vld [vmem:[%s4072 + $0x24] sm:$0xf]
        %v4083 = vld [vmem:[%s4072 + $0x28] sm:$0xf]
        %v4084 = vld [vmem:[%s4072 + $0x2c] sm:$0xf]
        %v4085 = vld [vmem:[%s4072 + $0x30] sm:$0xf]
        %v4086 = vld [vmem:[%s4072 + $0x34] sm:$0xf]
        %v4087 = vld [vmem:[%s4072 + $0x38] sm:$0xf]
        %v4088 = vld [vmem:[%s4072 + $0x3c] sm:$0xf]
        %v4090 = vshrl.u32 %v4055, 16
        %v4092 = vrot.slane %v4090, 7
        %v4094 = vshrl.u32 %v4056, 16
        %v4096 = vrot.slane %v4094, 7
        %v4097 = vshll.u32 %v4056, 16
        %v4099 = vor.u32 %v4096, %v4097
        %v4100 = vsel %vm1812, %v4092, %v4099
        %v4102 = vshrl.u32 %v4057, 16
        %v4104 = vrot.slane %v4102, 7
        %v4105 = vshll.u32 %v4057, 16
        %v4107 = vor.u32 %v4104, %v4105
        %v4108 = vsel %vm1812, %v4096, %v4107
        %v4110 = vshrl.u32 %v4058, 16
        %v4112 = vrot.slane %v4110, 7
        %v4113 = vshll.u32 %v4058, 16
        %v4115 = vor.u32 %v4112, %v4113
        %v4116 = vsel %vm1812, %v4104, %v4115
        %v4118 = vshrl.u32 %v4059, 16
        %v4120 = vrot.slane %v4118, 7
        %v4121 = vshll.u32 %v4059, 16
        %v4123 = vor.u32 %v4120, %v4121
        %v4124 = vsel %vm1812, %v4112, %v4123
        %v4126 = vshrl.u32 %v4060, 16
        %v4128 = vrot.slane %v4126, 7
        %v4129 = vshll.u32 %v4060, 16
        %v4131 = vor.u32 %v4128, %v4129
        %v4132 = vsel %vm1812, %v4120, %v4131
        %v4134 = vshrl.u32 %v4061, 16
        %v4136 = vrot.slane %v4134, 7
        %v4137 = vshll.u32 %v4061, 16
        %v4139 = vor.u32 %v4136, %v4137
        %v4140 = vsel %vm1812, %v4128, %v4139
        %v4142 = vshrl.u32 %v4062, 16
        %v4144 = vrot.slane %v4142, 7
        %v4145 = vshll.u32 %v4062, 16
        %v4147 = vor.u32 %v4144, %v4145
        %v4148 = vsel %vm1812, %v4136, %v4147
        %v4150 = vshrl.u32 %v4063, 16
        %v4152 = vrot.slane %v4150, 7
        %v4153 = vshll.u32 %v4063, 16
        %v4155 = vor.u32 %v4152, %v4153
        %v4156 = vsel %vm1812, %v4144, %v4155
        %v4158 = vshrl.u32 %v4064, 16
        %v4160 = vrot.slane %v4158, 7
        %v4161 = vshll.u32 %v4064, 16
        %v4163 = vor.u32 %v4160, %v4161
        %v4164 = vsel %vm1812, %v4152, %v4163
        %v4166 = vshrl.u32 %v4065, 16
        %v4168 = vrot.slane %v4166, 7
        %v4169 = vshll.u32 %v4065, 16
        %v4171 = vor.u32 %v4168, %v4169
        %v4172 = vsel %vm1812, %v4160, %v4171
        %v4174 = vshrl.u32 %v4066, 16
        %v4176 = vrot.slane %v4174, 7
        %v4177 = vshll.u32 %v4066, 16
        %v4179 = vor.u32 %v4176, %v4177
        %v4180 = vsel %vm1812, %v4168, %v4179
        %v4182 = vshrl.u32 %v4067, 16
        %v4184 = vrot.slane %v4182, 7
        %v4185 = vshll.u32 %v4067, 16
        %v4187 = vor.u32 %v4184, %v4185
        %v4188 = vsel %vm1812, %v4176, %v4187
        %v4190 = vshrl.u32 %v4068, 16
        %v4192 = vrot.slane %v4190, 7
        %v4193 = vshll.u32 %v4068, 16
        %v4195 = vor.u32 %v4192, %v4193
        %v4196 = vsel %vm1812, %v4184, %v4195
        %v4198 = vshrl.u32 %v4069, 16
        %v4200 = vrot.slane %v4198, 7
        %v4201 = vshll.u32 %v4069, 16
        %v4203 = vor.u32 %v4200, %v4201
        %v4204 = vsel %vm1812, %v4192, %v4203
        %v4206 = vshrl.u32 %v4070, 16
        %v4208 = vrot.slane %v4206, 7
        %v4209 = vshll.u32 %v4070, 16
        %v4211 = vor.u32 %v4208, %v4209
        %v4212 = vsel %vm1812, %v4200, %v4211
        %v4214 = vshrl.u32 %v4071, 16
        %v4216 = vrot.slane %v4214, 7
        %v4217 = vshll.u32 %v4071, 16
        %v4219 = vor.u32 %v4216, %v4217
        %v4220 = vsel %vm1812, %v4208, %v4219
        %v4253 = vunpack.c.l.b16 %v4073
        %v4254 = vunpack.c.l.b16 %v4074
        %v4255 = vunpack.c.l.b16 %v4075
        %v4256 = vunpack.c.l.b16 %v4076
        %v4257 = vunpack.c.l.b16 %v4077
        %v4258 = vunpack.c.l.b16 %v4078
        %v4259 = vunpack.c.l.b16 %v4079
        %v4260 = vunpack.c.l.b16 %v4080
        %v4261 = vunpack.c.l.b16 %v4081
        %v4262 = vunpack.c.l.b16 %v4082
        %v4263 = vunpack.c.l.b16 %v4083
        %v4264 = vunpack.c.l.b16 %v4084
        %v4265 = vunpack.c.l.b16 %v4085
        %v4266 = vunpack.c.l.b16 %v4086
        %v4267 = vunpack.c.l.b16 %v4087
        %v4268 = vunpack.c.l.b16 %v4088
        %v4269 = vpack.c.b16 %v4254, %v4253
        %v4270 = vpack.c.b16 %v4256, %v4255
        %v4271 = vpack.c.b16 %v4258, %v4257
        %v4272 = vpack.c.b16 %v4260, %v4259
        %v4273 = vpack.c.b16 %v4262, %v4261
        %v4274 = vpack.c.b16 %v4264, %v4263
        %v4275 = vpack.c.b16 %v4266, %v4265
        %v4276 = vpack.c.b16 %v4268, %v4267
        %4285 = vmatprep.subr.bf16.mxu0 0
        %4286 = vmatpush1.bf16.msra.mxu0 %v4269
        %4287 = vmatprep.subr.bf16.mxu0 0
        %4288 = vmatpush1.bf16.msra.mxu0 %v4270
        %4289 = vmatprep.subr.bf16.mxu0 0
        %4290 = vmatpush1.bf16.msra.mxu0 %v4271
        %4291 = vmatprep.subr.bf16.mxu0 0
        %4292 = vmatpush1.bf16.msra.mxu0 %v4272
        %4293 = vmatprep.subr.bf16.mxu0 0
        %4294 = vmatpush1.bf16.msra.mxu0 %v4273
        %4295 = vmatprep.subr.bf16.mxu0 0
        %4296 = vmatpush1.bf16.msra.mxu0 %v4274
        %4297 = vmatprep.subr.bf16.mxu0 0
        %4298 = vmatpush1.bf16.msra.mxu0 %v4275
        %4299 = vmatprep.subr.bf16.mxu0 0
        %4300 = vmatpush1.bf16.msra.mxu0 %v4276
        %4301 = vmatprep.subr.bf16.mxu0 0
        %4302 = vmatpush1.bf16.msra.mxu0 0
        %4303 = vmatprep.subr.bf16.mxu0 0
        %4304 = vmatpush1.bf16.msra.mxu0 0
        %4305 = vmatprep.subr.bf16.mxu0 0
        %4306 = vmatpush1.bf16.msra.mxu0 0
        %4307 = vmatprep.subr.bf16.mxu0 0
        %4308 = vmatpush1.bf16.msra.mxu0 0
        %4309 = vmatprep.subr.bf16.mxu0 0
        %4310 = vmatpush1.bf16.msra.mxu0 0
        %4311 = vmatprep.subr.bf16.mxu0 0
        %4312 = vmatpush1.bf16.msra.mxu0 0
        %4313 = vmatprep.subr.bf16.mxu0 0
        %4314 = vmatpush1.bf16.msra.mxu0 0
        %4315 = vmatprep.subr.bf16.mxu0 0
        %4316 = vmatpush1.bf16.msra.mxu0 0
        %4317 = vmatprep.mubr.bf16.mxu0 0
        %4318 = vmatmul.mubr.bf16.gmra.mrb[0].mxu0 %v4100
        %v4319 = vpop.f32.mrb[0].mxu0
        %v4320 = vadd.f32 0.0, %v4319
        %v4321 = vpop.f32.mrb[0].mxu0
        %v4322 = vpop.f32.mrb[0].mxu0
        %v4323 = vadd.f32 0.0, %v4322
        %v4324 = vpop.f32.mrb[0].mxu0
        %4325 = vmatprep.mubr.bf16.mxu0 0
        %4326 = vmatmul.mubr.bf16.gmra.mrb[0].mxu0 %v4108
        %v4327 = vpop.f32.mrb[0].mxu0
        %v4328 = vadd.f32 0.0, %v4327
        %v4329 = vpop.f32.mrb[0].mxu0
        %v4330 = vpop.f32.mrb[0].mxu0
        %v4331 = vadd.f32 0.0, %v4330
        %v4332 = vpop.f32.mrb[0].mxu0
        %4333 = vmatprep.mubr.bf16.mxu0 0
        %4334 = vmatmul.mubr.bf16.gmra.mrb[0].mxu0 %v4116
        %v4335 = vpop.f32.mrb[0].mxu0
        %v4336 = vadd.f32 0.0, %v4335
        %v4337 = vpop.f32.mrb[0].mxu0
        %v4338 = vpop.f32.mrb[0].mxu0
        %v4339 = vadd.f32 0.0, %v4338
        %v4340 = vpop.f32.mrb[0].mxu0
        %4341 = vmatprep.mubr.bf16.mxu0 0
        %4342 = vmatmul.mubr.bf16.gmra.mrb[0].mxu0 %v4124
        %v4343 = vpop.f32.mrb[0].mxu0
        %v4344 = vadd.f32 0.0, %v4343
        %v4345 = vpop.f32.mrb[0].mxu0
        %v4346 = vpop.f32.mrb[0].mxu0
        %v4347 = vadd.f32 0.0, %v4346
        %v4348 = vpop.f32.mrb[0].mxu0
        %4349 = vmatprep.mubr.bf16.mxu0 0
        %4350 = vmatmul.mubr.bf16.gmra.mrb[0].mxu0 %v4132
        %v4351 = vpop.f32.mrb[0].mxu0
        %v4352 = vadd.f32 0.0, %v4351
        %v4353 = vpop.f32.mrb[0].mxu0
        %v4354 = vpop.f32.mrb[0].mxu0
        %v4355 = vadd.f32 0.0, %v4354
        %v4356 = vpop.f32.mrb[0].mxu0
        %4357 = vmatprep.mubr.bf16.mxu0 0
        %4358 = vmatmul.mubr.bf16.gmra.mrb[0].mxu0 %v4140
        %v4359 = vpop.f32.mrb[0].mxu0
        %v4360 = vadd.f32 0.0, %v4359
        %v4361 = vpop.f32.mrb[0].mxu0
        %v4362 = vpop.f32.mrb[0].mxu0
        %v4363 = vadd.f32 0.0, %v4362
        %v4364 = vpop.f32.mrb[0].mxu0
        %4365 = vmatprep.mubr.bf16.mxu0 0
        %4366 = vmatmul.mubr.bf16.gmra.mrb[0].mxu0 %v4148
        %v4367 = vpop.f32.mrb[0].mxu0
        %v4368 = vadd.f32 0.0, %v4367
        %v4369 = vpop.f32.mrb[0].mxu0
        %v4370 = vpop.f32.mrb[0].mxu0
        %v4371 = vadd.f32 0.0, %v4370
        %v4372 = vpop.f32.mrb[0].mxu0
        %4373 = vmatprep.mubr.bf16.mxu0 0
        %4374 = vmatmul.mubr.bf16.gmra.mrb[0].mxu0 %v4156
        %v4375 = vpop.f32.mrb[0].mxu0
        %v4376 = vadd.f32 0.0, %v4375
        %v4377 = vpop.f32.mrb[0].mxu0
        %v4378 = vpop.f32.mrb[0].mxu0
        %v4379 = vadd.f32 0.0, %v4378
        %v4380 = vpop.f32.mrb[0].mxu0
        %4381 = vmatprep.mubr.bf16.mxu0 0
        %4382 = vmatmul.mubr.bf16.gmra.mrb[0].mxu0 %v4164
        %v4383 = vpop.f32.mrb[0].mxu0
        %v4384 = vadd.f32 0.0, %v4383
        %v4385 = vpop.f32.mrb[0].mxu0
        %v4386 = vpop.f32.mrb[0].mxu0
        %v4387 = vadd.f32 0.0, %v4386
        %v4388 = vpop.f32.mrb[0].mxu0
        %4389 = vmatprep.mubr.bf16.mxu0 0
        %4390 = vmatmul.mubr.bf16.gmra.mrb[0].mxu0 %v4172
        %v4391 = vpop.f32.mrb[0].mxu0
        %v4392 = vadd.f32 0.0, %v4391
        %v4393 = vpop.f32.mrb[0].mxu0
        %v4394 = vpop.f32.mrb[0].mxu0
        %v4395 = vadd.f32 0.0, %v4394
        %v4396 = vpop.f32.mrb[0].mxu0
        %4397 = vmatprep.mubr.bf16.mxu0 0
        %4398 = vmatmul.mubr.bf16.gmra.mrb[0].mxu0 %v4180
        %v4399 = vpop.f32.mrb[0].mxu0
        %v4400 = vadd.f32 0.0, %v4399
        %v4401 = vpop.f32.mrb[0].mxu0
        %v4402 = vpop.f32.mrb[0].mxu0
        %v4403 = vadd.f32 0.0, %v4402
        %v4404 = vpop.f32.mrb[0].mxu0
        %4405 = vmatprep.mubr.bf16.mxu0 0
        %4406 = vmatmul.mubr.bf16.gmra.mrb[0].mxu0 %v4188
        %v4407 = vpop.f32.mrb[0].mxu0
        %v4408 = vadd.f32 0.0, %v4407
        %v4409 = vpop.f32.mrb[0].mxu0
        %v4410 = vpop.f32.mrb[0].mxu0
        %v4411 = vadd.f32 0.0, %v4410
        %v4412 = vpop.f32.mrb[0].mxu0
        %4413 = vmatprep.mubr.bf16.mxu0 0
        %4414 = vmatmul.mubr.bf16.gmra.mrb[0].mxu0 %v4196
        %v4415 = vpop.f32.mrb[0].mxu0
        %v4416 = vadd.f32 0.0, %v4415
        %v4417 = vpop.f32.mrb[0].mxu0
        %v4418 = vpop.f32.mrb[0].mxu0
        %v4419 = vadd.f32 0.0, %v4418
        %v4420 = vpop.f32.mrb[0].mxu0
        %4421 = vmatprep.mubr.bf16.mxu0 0
        %4422 = vmatmul.mubr.bf16.gmra.mrb[0].mxu0 %v4204
        %v4423 = vpop.f32.mrb[0].mxu0
        %v4424 = vadd.f32 0.0, %v4423
        %v4425 = vpop.f32.mrb[0].mxu0
        %v4426 = vpop.f32.mrb[0].mxu0
        %v4427 = vadd.f32 0.0, %v4426
        %v4428 = vpop.f32.mrb[0].mxu0
        %4429 = vmatprep.mubr.bf16.mxu0 0
        %4430 = vmatmul.mubr.bf16.gmra.mrb[0].mxu0 %v4212
        %v4431 = vpop.f32.mrb[0].mxu0
        %v4432 = vadd.f32 0.0, %v4431
        %v4433 = vpop.f32.mrb[0].mxu0
        %v4434 = vpop.f32.mrb[0].mxu0
        %v4435 = vadd.f32 0.0, %v4434
        %v4436 = vpop.f32.mrb[0].mxu0
        %4437 = vmatprep.mubr.bf16.mxu0 0
        %4438 = vmatmul.mubr.bf16.gmra.mrb[0].mxu0 %v4220
        %v4439 = vpop.f32.mrb[0].mxu0
        %v4440 = vadd.f32 0.0, %v4439
        %v4441 = vpop.f32.mrb[0].mxu0
        %v4442 = vpop.f32.mrb[0].mxu0
        %v4443 = vadd.f32 0.0, %v4442
        %v4444 = vpop.f32.mrb[0].mxu0
        %4445 = vdwg.mxu0
        %v4446 = vadd.f32 %v4021, %v4320
        %v4447 = vadd.f32 %v4022, %v4323
        %v4448 = vadd.f32 %v4023, %v4328
        %v4449 = vadd.f32 %v4024, %v4331
        %v4450 = vadd.f32 %v4025, %v4336
        %v4451 = vadd.f32 %v4026, %v4339
        %v4452 = vadd.f32 %v4027, %v4344
        %v4453 = vadd.f32 %v4028, %v4347
        %v4454 = vadd.f32 %v4029, %v4352
        %v4455 = vadd.f32 %v4030, %v4355
        %v4456 = vadd.f32 %v4031, %v4360
        %v4457 = vadd.f32 %v4032, %v4363
        %v4458 = vadd.f32 %v4033, %v4368
        %v4459 = vadd.f32 %v4034, %v4371
        %v4460 = vadd.f32 %v4035, %v4376
        %v4461 = vadd.f32 %v4036, %v4379
        %v4462 = vadd.f32 %v4037, %v4384
        %v4463 = vadd.f32 %v4038, %v4387
        %v4464 = vadd.f32 %v4039, %v4392
        %v4465 = vadd.f32 %v4040, %v4395
        %v4466 = vadd.f32 %v4041, %v4400
        %v4467 = vadd.f32 %v4042, %v4403
        %v4468 = vadd.f32 %v4043, %v4408
        %v4469 = vadd.f32 %v4044, %v4411
        %v4470 = vadd.f32 %v4045, %v4416
        %v4471 = vadd.f32 %v4046, %v4419
        %v4472 = vadd.f32 %v4047, %v4424
        %v4473 = vadd.f32 %v4048, %v4427
        %v4474 = vadd.f32 %v4049, %v4432
        %v4475 = vadd.f32 %v4050, %v4435
        %v4476 = vadd.f32 %v4051, %v4440
        %v4477 = vadd.f32 %v4052, %v4443
        %s4478 = scalar_lea.vmem [#allocation12], 448
        %v4479 = vld [vmem:[%s4478] sm:$0xf]
        %v4480 = vld [vmem:[%s4478 + $0x4] sm:$0xf]
        %v4481 = vld [vmem:[%s4478 + $0x8] sm:$0xf]
        %v4482 = vld [vmem:[%s4478 + $0xc] sm:$0xf]
        %v4483 = vld [vmem:[%s4478 + $0x10] sm:$0xf]
        %v4484 = vld [vmem:[%s4478 + $0x14] sm:$0xf]
        %v4485 = vld [vmem:[%s4478 + $0x18] sm:$0xf]
        %v4486 = vld [vmem:[%s4478 + $0x1c] sm:$0xf]
        %v4487 = vld [vmem:[%s4478 + $0x20] sm:$0xf]
        %v4488 = vld [vmem:[%s4478 + $0x24] sm:$0xf]
        %v4489 = vld [vmem:[%s4478 + $0x28] sm:$0xf]
        %v4490 = vld [vmem:[%s4478 + $0x2c] sm:$0xf]
        %v4491 = vld [vmem:[%s4478 + $0x30] sm:$0xf]
        %v4492 = vld [vmem:[%s4478 + $0x34] sm:$0xf]
        %v4493 = vld [vmem:[%s4478 + $0x38] sm:$0xf]
        %v4494 = vld [vmem:[%s4478 + $0x3c] sm:$0xf]
        %v4511 = vunpack.c.l.b16 %v4479
        %v4512 = vunpack.c.l.b16 %v4480
        %v4513 = vunpack.c.l.b16 %v4481
        %v4514 = vunpack.c.l.b16 %v4482
        %v4515 = vunpack.c.l.b16 %v4483
        %v4516 = vunpack.c.l.b16 %v4484
        %v4517 = vunpack.c.l.b16 %v4485
        %v4518 = vunpack.c.l.b16 %v4486
        %v4519 = vunpack.c.l.b16 %v4487
        %v4520 = vunpack.c.l.b16 %v4488
        %v4521 = vunpack.c.l.b16 %v4489
        %v4522 = vunpack.c.l.b16 %v4490
        %v4523 = vunpack.c.l.b16 %v4491
        %v4524 = vunpack.c.l.b16 %v4492
        %v4525 = vunpack.c.l.b16 %v4493
        %v4526 = vunpack.c.l.b16 %v4494
        %v4527 = vpack.c.b16 %v4512, %v4511
        %v4528 = vpack.c.b16 %v4514, %v4513
        %v4529 = vpack.c.b16 %v4516, %v4515
        %v4530 = vpack.c.b16 %v4518, %v4517
        %v4531 = vpack.c.b16 %v4520, %v4519
        %v4532 = vpack.c.b16 %v4522, %v4521
        %v4533 = vpack.c.b16 %v4524, %v4523
        %v4534 = vpack.c.b16 %v4526, %v4525
        %4543 = vmatprep.subr.bf16.mxu0 0
        %4544 = vmatpush1.bf16.msra.mxu0 %v4527
        %4545 = vmatprep.subr.bf16.mxu0 0
        %4546 = vmatpush1.bf16.msra.mxu0 %v4528
        %4547 = vmatprep.subr.bf16.mxu0 0
        %4548 = vmatpush1.bf16.msra.mxu0 %v4529
        %4549 = vmatprep.subr.bf16.mxu0 0
        %4550 = vmatpush1.bf16.msra.mxu0 %v4530
        %4551 = vmatprep.subr.bf16.mxu0 0
        %4552 = vmatpush1.bf16.msra.mxu0 %v4531
        %4553 = vmatprep.subr.bf16.mxu0 0
        %4554 = vmatpush1.bf16.msra.mxu0 %v4532
        %4555 = vmatprep.subr.bf16.mxu0 0
        %4556 = vmatpush1.bf16.msra.mxu0 %v4533
        %4557 = vmatprep.subr.bf16.mxu0 0
        %4558 = vmatpush1.bf16.msra.mxu0 %v4534
        %4559 = vmatprep.subr.bf16.mxu0 0
        %4560 = vmatpush1.bf16.msra.mxu0 0
        %4561 = vmatprep.subr.bf16.mxu0 0
        %4562 = vmatpush1.bf16.msra.mxu0 0
        %4563 = vmatprep.subr.bf16.mxu0 0
        %4564 = vmatpush1.bf16.msra.mxu0 0
        %4565 = vmatprep.subr.bf16.mxu0 0
        %4566 = vmatpush1.bf16.msra.mxu0 0
        %4567 = vmatprep.subr.bf16.mxu0 0
        %4568 = vmatpush1.bf16.msra.mxu0 0
        %4569 = vmatprep.subr.bf16.mxu0 0
        %4570 = vmatpush1.bf16.msra.mxu0 0
        %4571 = vmatprep.subr.bf16.mxu0 0
        %4572 = vmatpush1.bf16.msra.mxu0 0
        %4573 = vmatprep.subr.bf16.mxu0 0
        %4574 = vmatpush1.bf16.msra.mxu0 0
        %4575 = vmatprep.mubr.bf16.mxu0 0
        %4576 = vmatmul.mubr.bf16.gmra.mrb[0].mxu0 %v3614
        %v4577 = vpop.f32.mrb[0].mxu0
        %v4578 = vadd.f32 0.0, %v4577
        %v4579 = vpop.f32.mrb[0].mxu0
        %v4580 = vpop.f32.mrb[0].mxu0
        %v4581 = vadd.f32 0.0, %v4580
        %v4582 = vpop.f32.mrb[0].mxu0
        %4583 = vmatprep.mubr.bf16.mxu0 0
        %4584 = vmatmul.mubr.bf16.gmra.mrb[0].mxu0 %v3615
        %v4585 = vpop.f32.mrb[0].mxu0
        %v4586 = vadd.f32 0.0, %v4585
        %v4587 = vpop.f32.mrb[0].mxu0
        %v4588 = vpop.f32.mrb[0].mxu0
        %v4589 = vadd.f32 0.0, %v4588
        %v4590 = vpop.f32.mrb[0].mxu0
        %4591 = vmatprep.mubr.bf16.mxu0 0
        %4592 = vmatmul.mubr.bf16.gmra.mrb[0].mxu0 %v3616
        %v4593 = vpop.f32.mrb[0].mxu0
        %v4594 = vadd.f32 0.0, %v4593
        %v4595 = vpop.f32.mrb[0].mxu0
        %v4596 = vpop.f32.mrb[0].mxu0
        %v4597 = vadd.f32 0.0, %v4596
        %v4598 = vpop.f32.mrb[0].mxu0
        %4599 = vmatprep.mubr.bf16.mxu0 0
        %4600 = vmatmul.mubr.bf16.gmra.mrb[0].mxu0 %v3617
        %v4601 = vpop.f32.mrb[0].mxu0
        %v4602 = vadd.f32 0.0, %v4601
        %v4603 = vpop.f32.mrb[0].mxu0
        %v4604 = vpop.f32.mrb[0].mxu0
        %v4605 = vadd.f32 0.0, %v4604
        %v4606 = vpop.f32.mrb[0].mxu0
        %4607 = vmatprep.mubr.bf16.mxu0 0
        %4608 = vmatmul.mubr.bf16.gmra.mrb[0].mxu0 %v3618
        %v4609 = vpop.f32.mrb[0].mxu0
        %v4610 = vadd.f32 0.0, %v4609
        %v4611 = vpop.f32.mrb[0].mxu0
        %v4612 = vpop.f32.mrb[0].mxu0
        %v4613 = vadd.f32 0.0, %v4612
        %v4614 = vpop.f32.mrb[0].mxu0
        %4615 = vmatprep.mubr.bf16.mxu0 0
        %4616 = vmatmul.mubr.bf16.gmra.mrb[0].mxu0 %v3619
        %v4617 = vpop.f32.mrb[0].mxu0
        %v4618 = vadd.f32 0.0, %v4617
        %v4619 = vpop.f32.mrb[0].mxu0
        %v4620 = vpop.f32.mrb[0].mxu0
        %v4621 = vadd.f32 0.0, %v4620
        %v4622 = vpop.f32.mrb[0].mxu0
        %4623 = vmatprep.mubr.bf16.mxu0 0
        %4624 = vmatmul.mubr.bf16.gmra.mrb[0].mxu0 %v3620
        %v4625 = vpop.f32.mrb[0].mxu0
        %v4626 = vadd.f32 0.0, %v4625
        %v4627 = vpop.f32.mrb[0].mxu0
        %v4628 = vpop.f32.mrb[0].mxu0
        %v4629 = vadd.f32 0.0, %v4628
        %v4630 = vpop.f32.mrb[0].mxu0
        %4631 = vmatprep.mubr.bf16.mxu0 0
        %4632 = vmatmul.mubr.bf16.gmra.mrb[0].mxu0 %v3621
        %v4633 = vpop.f32.mrb[0].mxu0
        %v4634 = vadd.f32 0.0, %v4633
        %v4635 = vpop.f32.mrb[0].mxu0
        %v4636 = vpop.f32.mrb[0].mxu0
        %v4637 = vadd.f32 0.0, %v4636
        %v4638 = vpop.f32.mrb[0].mxu0
        %4639 = vmatprep.mubr.bf16.mxu0 0
        %4640 = vmatmul.mubr.bf16.gmra.mrb[0].mxu0 %v3622
        %v4641 = vpop.f32.mrb[0].mxu0
        %v4642 = vadd.f32 0.0, %v4641
        %v4643 = vpop.f32.mrb[0].mxu0
        %v4644 = vpop.f32.mrb[0].mxu0
        %v4645 = vadd.f32 0.0, %v4644
        %v4646 = vpop.f32.mrb[0].mxu0
        %4647 = vmatprep.mubr.bf16.mxu0 0
        %4648 = vmatmul.mubr.bf16.gmra.mrb[0].mxu0 %v3623
        %v4649 = vpop.f32.mrb[0].mxu0
        %v4650 = vadd.f32 0.0, %v4649
        %v4651 = vpop.f32.mrb[0].mxu0
        %v4652 = vpop.f32.mrb[0].mxu0
        %v4653 = vadd.f32 0.0, %v4652
        %v4654 = vpop.f32.mrb[0].mxu0
        %4655 = vmatprep.mubr.bf16.mxu0 0
        %4656 = vmatmul.mubr.bf16.gmra.mrb[0].mxu0 %v3624
        %v4657 = vpop.f32.mrb[0].mxu0
        %v4658 = vadd.f32 0.0, %v4657
        %v4659 = vpop.f32.mrb[0].mxu0
        %v4660 = vpop.f32.mrb[0].mxu0
        %v4661 = vadd.f32 0.0, %v4660
        %v4662 = vpop.f32.mrb[0].mxu0
        %4663 = vmatprep.mubr.bf16.mxu0 0
        %4664 = vmatmul.mubr.bf16.gmra.mrb[0].mxu0 %v3625
        %v4665 = vpop.f32.mrb[0].mxu0
        %v4666 = vadd.f32 0.0, %v4665
        %v4667 = vpop.f32.mrb[0].mxu0
        %v4668 = vpop.f32.mrb[0].mxu0
        %v4669 = vadd.f32 0.0, %v4668
        %v4670 = vpop.f32.mrb[0].mxu0
        %4671 = vmatprep.mubr.bf16.mxu0 0
        %4672 = vmatmul.mubr.bf16.gmra.mrb[0].mxu0 %v3626
        %v4673 = vpop.f32.mrb[0].mxu0
        %v4674 = vadd.f32 0.0, %v4673
        %v4675 = vpop.f32.mrb[0].mxu0
        %v4676 = vpop.f32.mrb[0].mxu0
        %v4677 = vadd.f32 0.0, %v4676
        %v4678 = vpop.f32.mrb[0].mxu0
        %4679 = vmatprep.mubr.bf16.mxu0 0
        %4680 = vmatmul.mubr.bf16.gmra.mrb[0].mxu0 %v3627
        %v4681 = vpop.f32.mrb[0].mxu0
        %v4682 = vadd.f32 0.0, %v4681
        %v4683 = vpop.f32.mrb[0].mxu0
        %v4684 = vpop.f32.mrb[0].mxu0
        %v4685 = vadd.f32 0.0, %v4684
        %v4686 = vpop.f32.mrb[0].mxu0
        %4687 = vmatprep.mubr.bf16.mxu0 0
        %4688 = vmatmul.mubr.bf16.gmra.mrb[0].mxu0 %v3628
        %v4689 = vpop.f32.mrb[0].mxu0
        %v4690 = vadd.f32 0.0, %v4689
        %v4691 = vpop.f32.mrb[0].mxu0
        %v4692 = vpop.f32.mrb[0].mxu0
        %v4693 = vadd.f32 0.0, %v4692
        %v4694 = vpop.f32.mrb[0].mxu0
        %4695 = vmatprep.mubr.bf16.mxu0 0
        %4696 = vmatmul.mubr.bf16.gmra.mrb[0].mxu0 %v4054
        %v4697 = vpop.f32.mrb[0].mxu0
        %v4698 = vadd.f32 0.0, %v4697
        %v4699 = vpop.f32.mrb[0].mxu0
        %v4700 = vpop.f32.mrb[0].mxu0
        %v4701 = vadd.f32 0.0, %v4700
        %v4702 = vpop.f32.mrb[0].mxu0
        %4703 = vdwg.mxu0
        %v4704 = vadd.f32 %v4446, %v4578
        %v4705 = vadd.f32 %v4447, %v4581
        %v4706 = vadd.f32 %v4448, %v4586
        %v4707 = vadd.f32 %v4449, %v4589
        %v4708 = vadd.f32 %v4450, %v4594
        %v4709 = vadd.f32 %v4451, %v4597
        %v4710 = vadd.f32 %v4452, %v4602
        %v4711 = vadd.f32 %v4453, %v4605
        %v4712 = vadd.f32 %v4454, %v4610
        %v4713 = vadd.f32 %v4455, %v4613
        %v4714 = vadd.f32 %v4456, %v4618
        %v4715 = vadd.f32 %v4457, %v4621
        %v4716 = vadd.f32 %v4458, %v4626
        %v4717 = vadd.f32 %v4459, %v4629
        %v4718 = vadd.f32 %v4460, %v4634
        %v4719 = vadd.f32 %v4461, %v4637
        %v4720 = vadd.f32 %v4462, %v4642
        %v4721 = vadd.f32 %v4463, %v4645
        %v4722 = vadd.f32 %v4464, %v4650
        %v4723 = vadd.f32 %v4465, %v4653
        %v4724 = vadd.f32 %v4466, %v4658
        %v4725 = vadd.f32 %v4467, %v4661
        %v4726 = vadd.f32 %v4468, %v4666
        %v4727 = vadd.f32 %v4469, %v4669
        %v4728 = vadd.f32 %v4470, %v4674
        %v4729 = vadd.f32 %v4471, %v4677
        %v4730 = vadd.f32 %v4472, %v4682
        %v4731 = vadd.f32 %v4473, %v4685
        %v4732 = vadd.f32 %v4474, %v4690
        %v4733 = vadd.f32 %v4475, %v4693
        %v4734 = vadd.f32 %v4476, %v4698
        %v4735 = vadd.f32 %v4477, %v4701
        %v4736 = vld [vmem:[#allocation2 + $0x18] sm:$0xff]
        %v4737 = vld [vmem:[#allocation2 + $0x20] sm:$0xff]
        %v4738 = vld [vmem:[#allocation2 + $0x28] sm:$0xff]
        %v4739 = vld [vmem:[#allocation2 + $0x30] sm:$0xff]
        %v4740 = vld [vmem:[#allocation2 + $0x38] sm:$0xff]
        %v4741 = vld [vmem:[#allocation2 + $0x40] sm:$0xff]
        %v4742 = vld [vmem:[#allocation2 + $0x48] sm:$0xff]
        %v4743 = vld [vmem:[#allocation2 + $0x50] sm:$0xff]
        %v4744 = vld [vmem:[#allocation2 + $0x58] sm:$0xff]
        %v4745 = vld [vmem:[#allocation2 + $0x60] sm:$0xff]
        %v4746 = vld [vmem:[#allocation2 + $0x68] sm:$0xff]
        %v4747 = vld [vmem:[#allocation2 + $0x70] sm:$0xff]
        %v4748 = vld [vmem:[#allocation2 + $0x78] sm:$0xff]
        %v4749 = vld [vmem:[#allocation2 + $0x80] sm:$0xff]
        %v4750 = vld [vmem:[#allocation2 + $0x88] sm:$0xff]
        %v4751 = vld [vmem:[#allocation2 + $0x90] sm:$0xff]
        %v4752 = vld [vmem:[#allocation2 + $0x98] sm:$0x1]
        %v4753 = vsel %vm2490, %v4736, 0
        %v4754 = vsel %vm2491, %v4737, 0
        %v4755 = vsel %vm2492, %v4738, 0
        %v4756 = vsel %vm2493, %v4739, 0
        %v4757 = vsel %vm2494, %v4740, 0
        %v4758 = vsel %vm2495, %v4741, 0
        %v4759 = vsel %vm2496, %v4742, 0
        %v4760 = vsel %vm2497, %v4743, 0
        %v4761 = vsel %vm2498, %v4744, 0
        %v4762 = vsel %vm2499, %v4745, 0
        %v4763 = vsel %vm2500, %v4746, 0
        %v4764 = vsel %vm2501, %v4747, 0
        %v4765 = vsel %vm2502, %v4748, 0
        %v4766 = vsel %vm2503, %v4749, 0
        %v4767 = vsel %vm2504, %v4750, 0
        %v4768 = vsel %vm2505, %v4751, 0
        %v4769 = vsel %vm2506, %v4752, 0
        %s4770 = scalar_lea.vmem [#allocation12], 512
        %v4771 = vld [vmem:[%s4770] sm:$0xf]
        %v4772 = vld [vmem:[%s4770 + $0x4] sm:$0xf]
        %v4773 = vld [vmem:[%s4770 + $0x8] sm:$0xf]
        %v4774 = vld [vmem:[%s4770 + $0xc] sm:$0xf]
        %v4775 = vld [vmem:[%s4770 + $0x10] sm:$0xf]
        %v4776 = vld [vmem:[%s4770 + $0x14] sm:$0xf]
        %v4777 = vld [vmem:[%s4770 + $0x18] sm:$0xf]
        %v4778 = vld [vmem:[%s4770 + $0x1c] sm:$0xf]
        %v4779 = vld [vmem:[%s4770 + $0x20] sm:$0xf]
        %v4780 = vld [vmem:[%s4770 + $0x24] sm:$0xf]
        %v4781 = vld [vmem:[%s4770 + $0x28] sm:$0xf]
        %v4782 = vld [vmem:[%s4770 + $0x2c] sm:$0xf]
        %v4783 = vld [vmem:[%s4770 + $0x30] sm:$0xf]
        %v4784 = vld [vmem:[%s4770 + $0x34] sm:$0xf]
        %v4785 = vld [vmem:[%s4770 + $0x38] sm:$0xf]
        %v4786 = vld [vmem:[%s4770 + $0x3c] sm:$0xf]
        %v4788 = vshrl.u32 %v4753, 16
        %v4790 = vshll.u32 %v4753, 16
        %v4792 = vrot.slane %v4790, 1
        %v4793 = vor.u32 %v4788, %v4792
        %v4795 = vshll.u32 %v4754, 16
        %v4797 = vrot.slane %v4795, 1
        %v4798 = vsel %vm1408, %v4793, %v4797
        %v4799 = vshrl.u32 %v4754, 16
        %v4801 = vor.u32 %v4799, %v4797
        %v4803 = vshll.u32 %v4755, 16
        %v4805 = vrot.slane %v4803, 1
        %v4806 = vsel %vm1408, %v4801, %v4805
        %v4807 = vshrl.u32 %v4755, 16
        %v4809 = vor.u32 %v4807, %v4805
        %v4811 = vshll.u32 %v4756, 16
        %v4813 = vrot.slane %v4811, 1
        %v4814 = vsel %vm1408, %v4809, %v4813
        %v4815 = vshrl.u32 %v4756, 16
        %v4817 = vor.u32 %v4815, %v4813
        %v4819 = vshll.u32 %v4757, 16
        %v4821 = vrot.slane %v4819, 1
        %v4822 = vsel %vm1408, %v4817, %v4821
        %v4823 = vshrl.u32 %v4757, 16
        %v4825 = vor.u32 %v4823, %v4821
        %v4827 = vshll.u32 %v4758, 16
        %v4829 = vrot.slane %v4827, 1
        %v4830 = vsel %vm1408, %v4825, %v4829
        %v4831 = vshrl.u32 %v4758, 16
        %v4833 = vor.u32 %v4831, %v4829
        %v4835 = vshll.u32 %v4759, 16
        %v4837 = vrot.slane %v4835, 1
        %v4838 = vsel %vm1408, %v4833, %v4837
        %v4839 = vshrl.u32 %v4759, 16
        %v4841 = vor.u32 %v4839, %v4837
        %v4843 = vshll.u32 %v4760, 16
        %v4845 = vrot.slane %v4843, 1
        %v4846 = vsel %vm1408, %v4841, %v4845
        %v4847 = vshrl.u32 %v4760, 16
        %v4849 = vor.u32 %v4847, %v4845
        %v4851 = vshll.u32 %v4761, 16
        %v4853 = vrot.slane %v4851, 1
        %v4854 = vsel %vm1408, %v4849, %v4853
        %v4855 = vshrl.u32 %v4761, 16
        %v4857 = vor.u32 %v4855, %v4853
        %v4859 = vshll.u32 %v4762, 16
        %v4861 = vrot.slane %v4859, 1
        %v4862 = vsel %vm1408, %v4857, %v4861
        %v4863 = vshrl.u32 %v4762, 16
        %v4865 = vor.u32 %v4863, %v4861
        %v4867 = vshll.u32 %v4763, 16
        %v4869 = vrot.slane %v4867, 1
        %v4870 = vsel %vm1408, %v4865, %v4869
        %v4871 = vshrl.u32 %v4763, 16
        %v4873 = vor.u32 %v4871, %v4869
        %v4875 = vshll.u32 %v4764, 16
        %v4877 = vrot.slane %v4875, 1
        %v4878 = vsel %vm1408, %v4873, %v4877
        %v4879 = vshrl.u32 %v4764, 16
        %v4881 = vor.u32 %v4879, %v4877
        %v4883 = vshll.u32 %v4765, 16
        %v4885 = vrot.slane %v4883, 1
        %v4886 = vsel %vm1408, %v4881, %v4885
        %v4887 = vshrl.u32 %v4765, 16
        %v4889 = vor.u32 %v4887, %v4885
        %v4891 = vshll.u32 %v4766, 16
        %v4893 = vrot.slane %v4891, 1
        %v4894 = vsel %vm1408, %v4889, %v4893
        %v4895 = vshrl.u32 %v4766, 16
        %v4897 = vor.u32 %v4895, %v4893
        %v4899 = vshll.u32 %v4767, 16
        %v4901 = vrot.slane %v4899, 1
        %v4902 = vsel %vm1408, %v4897, %v4901
        %v4903 = vshrl.u32 %v4767, 16
        %v4905 = vor.u32 %v4903, %v4901
        %v4907 = vshll.u32 %v4768, 16
        %v4909 = vrot.slane %v4907, 1
        %v4910 = vsel %vm1408, %v4905, %v4909
        %v4911 = vshrl.u32 %v4768, 16
        %v4913 = vor.u32 %v4911, %v4909
        %v4915 = vshll.u32 %v4769, 16
        %v4917 = vrot.slane %v4915, 1
        %v4918 = vsel %vm1408, %v4913, %v4917
        %v4951 = vunpack.c.l.b16 %v4771
        %v4952 = vunpack.c.l.b16 %v4772
        %v4953 = vunpack.c.l.b16 %v4773
        %v4954 = vunpack.c.l.b16 %v4774
        %v4955 = vunpack.c.l.b16 %v4775
        %v4956 = vunpack.c.l.b16 %v4776
        %v4957 = vunpack.c.l.b16 %v4777
        %v4958 = vunpack.c.l.b16 %v4778
        %v4959 = vunpack.c.l.b16 %v4779
        %v4960 = vunpack.c.l.b16 %v4780
        %v4961 = vunpack.c.l.b16 %v4781
        %v4962 = vunpack.c.l.b16 %v4782
        %v4963 = vunpack.c.l.b16 %v4783
        %v4964 = vunpack.c.l.b16 %v4784
        %v4965 = vunpack.c.l.b16 %v4785
        %v4966 = vunpack.c.l.b16 %v4786
        %v4967 = vpack.c.b16 %v4952, %v4951
        %v4968 = vpack.c.b16 %v4954, %v4953
        %v4969 = vpack.c.b16 %v4956, %v4955
        %v4970 = vpack.c.b16 %v4958, %v4957
        %v4971 = vpack.c.b16 %v4960, %v4959
        %v4972 = vpack.c.b16 %v4962, %v4961
        %v4973 = vpack.c.b16 %v4964, %v4963
        %v4974 = vpack.c.b16 %v4966, %v4965
        %4983 = vmatprep.subr.bf16.mxu0 0
        %4984 = vmatpush1.bf16.msra.mxu0 %v4967
        %4985 = vmatprep.subr.bf16.mxu0 0
        %4986 = vmatpush1.bf16.msra.mxu0 %v4968
        %4987 = vmatprep.subr.bf16.mxu0 0
        %4988 = vmatpush1.bf16.msra.mxu0 %v4969
        %4989 = vmatprep.subr.bf16.mxu0 0
        %4990 = vmatpush1.bf16.msra.mxu0 %v4970
        %4991 = vmatprep.subr.bf16.mxu0 0
        %4992 = vmatpush1.bf16.msra.mxu0 %v4971
        %4993 = vmatprep.subr.bf16.mxu0 0
        %4994 = vmatpush1.bf16.msra.mxu0 %v4972
        %4995 = vmatprep.subr.bf16.mxu0 0
        %4996 = vmatpush1.bf16.msra.mxu0 %v4973
        %4997 = vmatprep.subr.bf16.mxu0 0
        %4998 = vmatpush1.bf16.msra.mxu0 %v4974
        %4999 = vmatprep.subr.bf16.mxu0 0
        %5000 = vmatpush1.bf16.msra.mxu0 0
        %5001 = vmatprep.subr.bf16.mxu0 0
        %5002 = vmatpush1.bf16.msra.mxu0 0
        %5003 = vmatprep.subr.bf16.mxu0 0
        %5004 = vmatpush1.bf16.msra.mxu0 0
        %5005 = vmatprep.subr.bf16.mxu0 0
        %5006 = vmatpush1.bf16.msra.mxu0 0
        %5007 = vmatprep.subr.bf16.mxu0 0
        %5008 = vmatpush1.bf16.msra.mxu0 0
        %5009 = vmatprep.subr.bf16.mxu0 0
        %5010 = vmatpush1.bf16.msra.mxu0 0
        %5011 = vmatprep.subr.bf16.mxu0 0
        %5012 = vmatpush1.bf16.msra.mxu0 0
        %5013 = vmatprep.subr.bf16.mxu0 0
        %5014 = vmatpush1.bf16.msra.mxu0 0
        %5015 = vmatprep.mubr.bf16.mxu0 0
        %5016 = vmatmul.mubr.bf16.gmra.mrb[0].mxu0 %v4798
        %v5017 = vpop.f32.mrb[0].mxu0
        %v5018 = vadd.f32 0.0, %v5017
        %v5019 = vpop.f32.mrb[0].mxu0
        %v5020 = vpop.f32.mrb[0].mxu0
        %v5021 = vadd.f32 0.0, %v5020
        %v5022 = vpop.f32.mrb[0].mxu0
        %5023 = vmatprep.mubr.bf16.mxu0 0
        %5024 = vmatmul.mubr.bf16.gmra.mrb[0].mxu0 %v4806
        %v5025 = vpop.f32.mrb[0].mxu0
        %v5026 = vadd.f32 0.0, %v5025
        %v5027 = vpop.f32.mrb[0].mxu0
        %v5028 = vpop.f32.mrb[0].mxu0
        %v5029 = vadd.f32 0.0, %v5028
        %v5030 = vpop.f32.mrb[0].mxu0
        %5031 = vmatprep.mubr.bf16.mxu0 0
        %5032 = vmatmul.mubr.bf16.gmra.mrb[0].mxu0 %v4814
        %v5033 = vpop.f32.mrb[0].mxu0
        %v5034 = vadd.f32 0.0, %v5033
        %v5035 = vpop.f32.mrb[0].mxu0
        %v5036 = vpop.f32.mrb[0].mxu0
        %v5037 = vadd.f32 0.0, %v5036
        %v5038 = vpop.f32.mrb[0].mxu0
        %5039 = vmatprep.mubr.bf16.mxu0 0
        %5040 = vmatmul.mubr.bf16.gmra.mrb[0].mxu0 %v4822
        %v5041 = vpop.f32.mrb[0].mxu0
        %v5042 = vadd.f32 0.0, %v5041
        %v5043 = vpop.f32.mrb[0].mxu0
        %v5044 = vpop.f32.mrb[0].mxu0
        %v5045 = vadd.f32 0.0, %v5044
        %v5046 = vpop.f32.mrb[0].mxu0
        %5047 = vmatprep.mubr.bf16.mxu0 0
        %5048 = vmatmul.mubr.bf16.gmra.mrb[0].mxu0 %v4830
        %v5049 = vpop.f32.mrb[0].mxu0
        %v5050 = vadd.f32 0.0, %v5049
        %v5051 = vpop.f32.mrb[0].mxu0
        %v5052 = vpop.f32.mrb[0].mxu0
        %v5053 = vadd.f32 0.0, %v5052
        %v5054 = vpop.f32.mrb[0].mxu0
        %5055 = vmatprep.mubr.bf16.mxu0 0
        %5056 = vmatmul.mubr.bf16.gmra.mrb[0].mxu0 %v4838
        %v5057 = vpop.f32.mrb[0].mxu0
        %v5058 = vadd.f32 0.0, %v5057
        %v5059 = vpop.f32.mrb[0].mxu0
        %v5060 = vpop.f32.mrb[0].mxu0
        %v5061 = vadd.f32 0.0, %v5060
        %v5062 = vpop.f32.mrb[0].mxu0
        %5063 = vmatprep.mubr.bf16.mxu0 0
        %5064 = vmatmul.mubr.bf16.gmra.mrb[0].mxu0 %v4846
        %v5065 = vpop.f32.mrb[0].mxu0
        %v5066 = vadd.f32 0.0, %v5065
        %v5067 = vpop.f32.mrb[0].mxu0
        %v5068 = vpop.f32.mrb[0].mxu0
        %v5069 = vadd.f32 0.0, %v5068
        %v5070 = vpop.f32.mrb[0].mxu0
        %5071 = vmatprep.mubr.bf16.mxu0 0
        %5072 = vmatmul.mubr.bf16.gmra.mrb[0].mxu0 %v4854
        %v5073 = vpop.f32.mrb[0].mxu0
        %v5074 = vadd.f32 0.0, %v5073
        %v5075 = vpop.f32.mrb[0].mxu0
        %v5076 = vpop.f32.mrb[0].mxu0
        %v5077 = vadd.f32 0.0, %v5076
        %v5078 = vpop.f32.mrb[0].mxu0
        %5079 = vmatprep.mubr.bf16.mxu0 0
        %5080 = vmatmul.mubr.bf16.gmra.mrb[0].mxu0 %v4862
        %v5081 = vpop.f32.mrb[0].mxu0
        %v5082 = vadd.f32 0.0, %v5081
        %v5083 = vpop.f32.mrb[0].mxu0
        %v5084 = vpop.f32.mrb[0].mxu0
        %v5085 = vadd.f32 0.0, %v5084
        %v5086 = vpop.f32.mrb[0].mxu0
        %5087 = vmatprep.mubr.bf16.mxu0 0
        %5088 = vmatmul.mubr.bf16.gmra.mrb[0].mxu0 %v4870
        %v5089 = vpop.f32.mrb[0].mxu0
        %v5090 = vadd.f32 0.0, %v5089
        %v5091 = vpop.f32.mrb[0].mxu0
        %v5092 = vpop.f32.mrb[0].mxu0
        %v5093 = vadd.f32 0.0, %v5092
        %v5094 = vpop.f32.mrb[0].mxu0
        %5095 = vmatprep.mubr.bf16.mxu0 0
        %5096 = vmatmul.mubr.bf16.gmra.mrb[0].mxu0 %v4878
        %v5097 = vpop.f32.mrb[0].mxu0
        %v5098 = vadd.f32 0.0, %v5097
        %v5099 = vpop.f32.mrb[0].mxu0
        %v5100 = vpop.f32.mrb[0].mxu0
        %v5101 = vadd.f32 0.0, %v5100
        %v5102 = vpop.f32.mrb[0].mxu0
        %5103 = vmatprep.mubr.bf16.mxu0 0
        %5104 = vmatmul.mubr.bf16.gmra.mrb[0].mxu0 %v4886
        %v5105 = vpop.f32.mrb[0].mxu0
        %v5106 = vadd.f32 0.0, %v5105
        %v5107 = vpop.f32.mrb[0].mxu0
        %v5108 = vpop.f32.mrb[0].mxu0
        %v5109 = vadd.f32 0.0, %v5108
        %v5110 = vpop.f32.mrb[0].mxu0
        %5111 = vmatprep.mubr.bf16.mxu0 0
        %5112 = vmatmul.mubr.bf16.gmra.mrb[0].mxu0 %v4894
        %v5113 = vpop.f32.mrb[0].mxu0
        %v5114 = vadd.f32 0.0, %v5113
        %v5115 = vpop.f32.mrb[0].mxu0
        %v5116 = vpop.f32.mrb[0].mxu0
        %v5117 = vadd.f32 0.0, %v5116
        %v5118 = vpop.f32.mrb[0].mxu0
        %5119 = vmatprep.mubr.bf16.mxu0 0
        %5120 = vmatmul.mubr.bf16.gmra.mrb[0].mxu0 %v4902
        %v5121 = vpop.f32.mrb[0].mxu0
        %v5122 = vadd.f32 0.0, %v5121
        %v5123 = vpop.f32.mrb[0].mxu0
        %v5124 = vpop.f32.mrb[0].mxu0
        %v5125 = vadd.f32 0.0, %v5124
        %v5126 = vpop.f32.mrb[0].mxu0
        %5127 = vmatprep.mubr.bf16.mxu0 0
        %5128 = vmatmul.mubr.bf16.gmra.mrb[0].mxu0 %v4910
        %v5129 = vpop.f32.mrb[0].mxu0
        %v5130 = vadd.f32 0.0, %v5129
        %v5131 = vpop.f32.mrb[0].mxu0
        %v5132 = vpop.f32.mrb[0].mxu0
        %v5133 = vadd.f32 0.0, %v5132
        %v5134 = vpop.f32.mrb[0].mxu0
        %5135 = vmatprep.mubr.bf16.mxu0 0
        %5136 = vmatmul.mubr.bf16.gmra.mrb[0].mxu0 %v4918
        %v5137 = vpop.f32.mrb[0].mxu0
        %v5138 = vadd.f32 0.0, %v5137
        %v5139 = vpop.f32.mrb[0].mxu0
        %v5140 = vpop.f32.mrb[0].mxu0
        %v5141 = vadd.f32 0.0, %v5140
        %v5142 = vpop.f32.mrb[0].mxu0
        %5143 = vdwg.mxu0
        %v5144 = vadd.f32 %v4704, %v5018
        %v5145 = vadd.f32 %v4705, %v5021
        %v5146 = vadd.f32 %v4706, %v5026
        %v5147 = vadd.f32 %v4707, %v5029
        %v5148 = vadd.f32 %v4708, %v5034
        %v5149 = vadd.f32 %v4709, %v5037
        %v5150 = vadd.f32 %v4710, %v5042
        %v5151 = vadd.f32 %v4711, %v5045
        %v5152 = vadd.f32 %v4712, %v5050
        %v5153 = vadd.f32 %v4713, %v5053
        %v5154 = vadd.f32 %v4714, %v5058
        %v5155 = vadd.f32 %v4715, %v5061
        %v5156 = vadd.f32 %v4716, %v5066
        %v5157 = vadd.f32 %v4717, %v5069
        %v5158 = vadd.f32 %v4718, %v5074
        %v5159 = vadd.f32 %v4719, %v5077
        %v5160 = vadd.f32 %v4720, %v5082
        %v5161 = vadd.f32 %v4721, %v5085
        %v5162 = vadd.f32 %v4722, %v5090
        %v5163 = vadd.f32 %v4723, %v5093
        %v5164 = vadd.f32 %v4724, %v5098
        %v5165 = vadd.f32 %v4725, %v5101
        %v5166 = vadd.f32 %v4726, %v5106
        %v5167 = vadd.f32 %v4727, %v5109
        %v5168 = vadd.f32 %v4728, %v5114
        %v5169 = vadd.f32 %v4729, %v5117
        %v5170 = vadd.f32 %v4730, %v5122
        %v5171 = vadd.f32 %v4731, %v5125
        %v5172 = vadd.f32 %v4732, %v5130
        %v5173 = vadd.f32 %v4733, %v5133
        %v5174 = vadd.f32 %v4734, %v5138
        %v5175 = vadd.f32 %v4735, %v5141
        %v5176 = vpack.c.bf16 %v5145, %v5144
        %v5177 = vpack.c.bf16 %v5147, %v5146
        %v5178 = vpack.c.bf16 %v5149, %v5148
        %v5179 = vpack.c.bf16 %v5151, %v5150
        %v5180 = vpack.c.bf16 %v5153, %v5152
        %v5181 = vpack.c.bf16 %v5155, %v5154
        %v5182 = vpack.c.bf16 %v5157, %v5156
        %v5183 = vpack.c.bf16 %v5159, %v5158
        %v5184 = vpack.c.bf16 %v5161, %v5160
        %v5185 = vpack.c.bf16 %v5163, %v5162
        %v5186 = vpack.c.bf16 %v5165, %v5164
        %v5187 = vpack.c.bf16 %v5167, %v5166
        %v5188 = vpack.c.bf16 %v5169, %v5168
        %v5189 = vpack.c.bf16 %v5171, %v5170
        %v5190 = vpack.c.bf16 %v5173, %v5172
        %v5191 = vpack.c.bf16 %v5175, %v5174
        %v5208 = vunpack.c.l.b16 %v5176
        %v5209 = vunpack.c.h.b16 %v5176
        %v5210 = vunpack.c.l.b16 %v5177
        %v5211 = vunpack.c.h.b16 %v5177
        %v5212 = vunpack.c.l.b16 %v5178
        %v5213 = vunpack.c.h.b16 %v5178
        %v5214 = vunpack.c.l.b16 %v5179
        %v5215 = vunpack.c.h.b16 %v5179
        %v5216 = vunpack.c.l.b16 %v5180
        %v5217 = vunpack.c.h.b16 %v5180
        %v5218 = vunpack.c.l.b16 %v5181
        %v5219 = vunpack.c.h.b16 %v5181
        %v5220 = vunpack.c.l.b16 %v5182
        %v5221 = vunpack.c.h.b16 %v5182
        %v5222 = vunpack.c.l.b16 %v5183
        %v5223 = vunpack.c.h.b16 %v5183
        %v5224 = vunpack.c.l.b16 %v5184
        %v5225 = vunpack.c.h.b16 %v5184
        %v5226 = vunpack.c.l.b16 %v5185
        %v5227 = vunpack.c.h.b16 %v5185
        %v5228 = vunpack.c.l.b16 %v5186
        %v5229 = vunpack.c.h.b16 %v5186
        %v5230 = vunpack.c.l.b16 %v5187
        %v5231 = vunpack.c.h.b16 %v5187
        %v5232 = vunpack.c.l.b16 %v5188
        %v5233 = vunpack.c.h.b16 %v5188
        %v5234 = vunpack.c.l.b16 %v5189
        %v5235 = vunpack.c.h.b16 %v5189
        %v5236 = vunpack.c.l.b16 %v5190
        %v5237 = vunpack.c.h.b16 %v5190
        %v5238 = vunpack.c.l.b16 %v5191
        %v5239 = vunpack.c.h.b16 %v5191
        %v5240 = vpack.c.b16 %v5208, %v5208
        %v5241 = vpack.c.b16 %v5209, %v5209
        %v5242 = vpack.c.b16 %v5210, %v5210
        %v5243 = vpack.c.b16 %v5211, %v5211
        %v5244 = vpack.c.b16 %v5212, %v5212
        %v5245 = vpack.c.b16 %v5213, %v5213
        %v5246 = vpack.c.b16 %v5214, %v5214
        %v5247 = vpack.c.b16 %v5215, %v5215
        %v5248 = vpack.c.b16 %v5216, %v5216
        %v5249 = vpack.c.b16 %v5217, %v5217
        %v5250 = vpack.c.b16 %v5218, %v5218
        %v5251 = vpack.c.b16 %v5219, %v5219
        %v5252 = vpack.c.b16 %v5220, %v5220
        %v5253 = vpack.c.b16 %v5221, %v5221
        %v5254 = vpack.c.b16 %v5222, %v5222
        %v5255 = vpack.c.b16 %v5223, %v5223
        %v5256 = vpack.c.b16 %v5224, %v5224
        %v5257 = vpack.c.b16 %v5225, %v5225
        %v5258 = vpack.c.b16 %v5226, %v5226
        %v5259 = vpack.c.b16 %v5227, %v5227
        %v5260 = vpack.c.b16 %v5228, %v5228
        %v5261 = vpack.c.b16 %v5229, %v5229
        %v5262 = vpack.c.b16 %v5230, %v5230
        %v5263 = vpack.c.b16 %v5231, %v5231
        %v5264 = vpack.c.b16 %v5232, %v5232
        %v5265 = vpack.c.b16 %v5233, %v5233
        %v5266 = vpack.c.b16 %v5234, %v5234
        %v5267 = vpack.c.b16 %v5235, %v5235
        %v5268 = vpack.c.b16 %v5236, %v5236
        %v5269 = vpack.c.b16 %v5237, %v5237
        %v5270 = vpack.c.b16 %v5238, %v5238
        %v5271 = vpack.c.b16 %v5239, %v5239
        %5304 = vst [vmem:[%s469] sm:$0xf] %v5240
        %5305 = vst [vmem:[%s469 + $0x4] sm:$0xf] %v5241
        %5306 = vst [vmem:[%s469 + $0x8] sm:$0xf] %v5242
        %5307 = vst [vmem:[%s469 + $0xc] sm:$0xf] %v5243
        %5308 = vst [vmem:[%s469 + $0x10] sm:$0xf] %v5244
        %5309 = vst [vmem:[%s469 + $0x14] sm:$0xf] %v5245
        %5310 = vst [vmem:[%s469 + $0x18] sm:$0xf] %v5246
        %5311 = vst [vmem:[%s469 + $0x1c] sm:$0xf] %v5247
        %5312 = vst [vmem:[%s469 + $0x20] sm:$0xf] %v5248
        %5313 = vst [vmem:[%s469 + $0x24] sm:$0xf] %v5249
        %5314 = vst [vmem:[%s469 + $0x28] sm:$0xf] %v5250
        %5315 = vst [vmem:[%s469 + $0x2c] sm:$0xf] %v5251
        %5316 = vst [vmem:[%s469 + $0x30] sm:$0xf] %v5252
        %5317 = vst [vmem:[%s469 + $0x34] sm:$0xf] %v5253
        %5318 = vst [vmem:[%s469 + $0x38] sm:$0xf] %v5254
        %5319 = vst [vmem:[%s469 + $0x3c] sm:$0xf] %v5255
        %5320 = vst [vmem:[%s469 + $0x40] sm:$0xf] %v5256
        %5321 = vst [vmem:[%s469 + $0x44] sm:$0xf] %v5257
        %5322 = vst [vmem:[%s469 + $0x48] sm:$0xf] %v5258
        %5323 = vst [vmem:[%s469 + $0x4c] sm:$0xf] %v5259
        %5324 = vst [vmem:[%s469 + $0x50] sm:$0xf] %v5260
        %5325 = vst [vmem:[%s469 + $0x54] sm:$0xf] %v5261
        %5326 = vst [vmem:[%s469 + $0x58] sm:$0xf] %v5262
        %5327 = vst [vmem:[%s469 + $0x5c] sm:$0xf] %v5263
        %5328 = vst [vmem:[%s469 + $0x60] sm:$0xf] %v5264
        %5329 = vst [vmem:[%s469 + $0x64] sm:$0xf] %v5265
        %5330 = vst [vmem:[%s469 + $0x68] sm:$0xf] %v5266
        %5331 = vst [vmem:[%s469 + $0x6c] sm:$0xf] %v5267
        %5332 = vst [vmem:[%s469 + $0x70] sm:$0xf] %v5268
        %5333 = vst [vmem:[%s469 + $0x74] sm:$0xf] %v5269
        %5334 = vst [vmem:[%s469 + $0x78] sm:$0xf] %v5270
        %5335 = vst [vmem:[%s469 + $0x7c] sm:$0xf] %v5271
        %v5336 = vadd.f32 %v5144, %v5145
        %v5337 = vadd.f32 %v5336, %v5146
        %v5338 = vadd.f32 %v5337, %v5147
        %v5339 = vadd.f32 %v5338, %v5148
        %v5340 = vadd.f32 %v5339, %v5149
        %v5341 = vadd.f32 %v5340, %v5150
        %v5342 = vadd.f32 %v5341, %v5151
        %v5343 = vadd.f32 %v5342, %v5152
        %v5344 = vadd.f32 %v5343, %v5153
        %v5345 = vadd.f32 %v5344, %v5154
        %v5346 = vadd.f32 %v5345, %v5155
        %v5347 = vadd.f32 %v5346, %v5156
        %v5348 = vadd.f32 %v5347, %v5157
        %v5349 = vadd.f32 %v5348, %v5158
        %v5350 = vadd.f32 %v5349, %v5159
        %v5351 = vadd.f32 %v5350, %v5160
        %v5352 = vadd.f32 %v5351, %v5161
        %v5353 = vadd.f32 %v5352, %v5162
        %v5354 = vadd.f32 %v5353, %v5163
        %v5355 = vadd.f32 %v5354, %v5164
        %v5356 = vadd.f32 %v5355, %v5165
        %v5357 = vadd.f32 %v5356, %v5166
        %v5358 = vadd.f32 %v5357, %v5167
        %v5359 = vadd.f32 %v5358, %v5168
        %v5360 = vadd.f32 %v5359, %v5169
        %v5361 = vadd.f32 %v5360, %v5170
        %v5362 = vadd.f32 %v5361, %v5171
        %v5363 = vadd.f32 %v5362, %v5172
        %v5364 = vadd.f32 %v5363, %v5173
        %v5365 = vadd.f32 %v5364, %v5174
        %v5366 = vadd.f32 %v5365, %v5175
        %v5367 = vrot.slane %v5366, 4
        %v5368 = vadd.f32 %v5366, %v5367
        %v5369 = vrot.slane %v5368, 2
        %v5370 = vadd.f32 %v5368, %v5369
        %v5371 = vrot.slane %v5370, 1
        %v5372 = vadd.f32 %v5370, %v5371
        %v5373 = vmul.f32 %v5144, %v5144
        %v5374 = vmul.f32 %v5145, %v5145
        %v5375 = vmul.f32 %v5146, %v5146
        %v5376 = vmul.f32 %v5147, %v5147
        %v5377 = vmul.f32 %v5148, %v5148
        %v5378 = vmul.f32 %v5149, %v5149
        %v5379 = vmul.f32 %v5150, %v5150
        %v5380 = vmul.f32 %v5151, %v5151
        %v5381 = vmul.f32 %v5152, %v5152
        %v5382 = vmul.f32 %v5153, %v5153
        %v5383 = vmul.f32 %v5154, %v5154
        %v5384 = vmul.f32 %v5155, %v5155
        %v5385 = vmul.f32 %v5156, %v5156
        %v5386 = vmul.f32 %v5157, %v5157
        %v5387 = vmul.f32 %v5158, %v5158
        %v5388 = vmul.f32 %v5159, %v5159
        %v5389 = vmul.f32 %v5160, %v5160
        %v5390 = vmul.f32 %v5161, %v5161
        %v5391 = vmul.f32 %v5162, %v5162
        %v5392 = vmul.f32 %v5163, %v5163
        %v5393 = vmul.f32 %v5164, %v5164
        %v5394 = vmul.f32 %v5165, %v5165
        %v5395 = vmul.f32 %v5166, %v5166
        %v5396 = vmul.f32 %v5167, %v5167
        %v5397 = vmul.f32 %v5168, %v5168
        %v5398 = vmul.f32 %v5169, %v5169
        %v5399 = vmul.f32 %v5170, %v5170
        %v5400 = vmul.f32 %v5171, %v5171
        %v5401 = vmul.f32 %v5172, %v5172
        %v5402 = vmul.f32 %v5173, %v5173
        %v5403 = vmul.f32 %v5174, %v5174
        %v5404 = vmul.f32 %v5175, %v5175
        %v5405 = vadd.f32 %v5373, %v5374
        %v5406 = vadd.f32 %v5405, %v5375
        %v5407 = vadd.f32 %v5406, %v5376
        %v5408 = vadd.f32 %v5407, %v5377
        %v5409 = vadd.f32 %v5408, %v5378
        %v5410 = vadd.f32 %v5409, %v5379
        %v5411 = vadd.f32 %v5410, %v5380
        %v5412 = vadd.f32 %v5411, %v5381
        %v5413 = vadd.f32 %v5412, %v5382
        %v5414 = vadd.f32 %v5413, %v5383
        %v5415 = vadd.f32 %v5414, %v5384
        %v5416 = vadd.f32 %v5415, %v5385
        %v5417 = vadd.f32 %v5416, %v5386
        %v5418 = vadd.f32 %v5417, %v5387
        %v5419 = vadd.f32 %v5418, %v5388
        %v5420 = vadd.f32 %v5419, %v5389
        %v5421 = vadd.f32 %v5420, %v5390
        %v5422 = vadd.f32 %v5421, %v5391
        %v5423 = vadd.f32 %v5422, %v5392
        %v5424 = vadd.f32 %v5423, %v5393
        %v5425 = vadd.f32 %v5424, %v5394
        %v5426 = vadd.f32 %v5425, %v5395
        %v5427 = vadd.f32 %v5426, %v5396
        %v5428 = vadd.f32 %v5427, %v5397
        %v5429 = vadd.f32 %v5428, %v5398
        %v5430 = vadd.f32 %v5429, %v5399
        %v5431 = vadd.f32 %v5430, %v5400
        %v5432 = vadd.f32 %v5431, %v5401
        %v5433 = vadd.f32 %v5432, %v5402
        %v5434 = vadd.f32 %v5433, %v5403
        %v5435 = vadd.f32 %v5434, %v5404
        %v5436 = vrot.slane %v5435, 4
        %v5437 = vadd.f32 %v5435, %v5436
        %v5438 = vrot.slane %v5437, 2
        %v5439 = vadd.f32 %v5437, %v5438
        %v5440 = vrot.slane %v5439, 1
        %v5441 = vadd.f32 %v5439, %v5440
        %vm5442 = vcmask 1040384
        %v5443 = vsel %vm5442, %v5372, %v5441
        %5444 = vst [vmem:[%s476] sm:$0x3] %v5443
        %s5445 = sand.u32 %s218, 1
        %s5446 = scalar_lea.sflag [#allocation5], %s5445
        %s5447 = sand.u32 %s218, 1
        %s5448 = smul.addr %s5447, 128
        %s5449 = scalar_lea.vmem [#allocation14], %s5448
        %s5450 = sand.u32 %s246, 1
        %s5451 = scalar_lea.sflag [#allocation16], %s5450
        %s5452 = sand.u32 %s246, 1
        %s5453 = smul.addr %s5452, 2
        %s5454 = scalar_lea.vmem [#allocation15], %s5453
        // Predicated region
        $region69: #{_lambda_.5} parent=43 // pred_check
          %p5455 = pneg %p228
        $region70: #{_lambda_.5} parent=43 // pred_check_branch
          %5457 = sbr.rel (%p5455) target = $region72
        $region71: #{_lambda_.5} parent=43 // pred_region
          %s5458 = smul.u32 32, %s38
          %s5460 = ssub.s32 2048, 2048
          %5461 = vsyncadd %s5446, %s5460
          %s5462 = smul.addr %s37, 32
          %s5463 = sadd.s32 %s5458, %s5462
          %s5464 = smul.addr %s5463, 64
          %s5465 = scalar_lea.hbm %s6, %s5464
          %s5466 = sshll.u32 %s5449, 4
          %s5467 = int_to_ptr.vmem [resolvable:$true] %s5466
          %5472 = dma.vmem_to_hbm [thread:$0]  %s5467, 2048, %s5465, %s5446, 64, 64, 4
        $region72: #{_lambda_.5} parent=43 // pred_fallthru
          _
        // Predicated region
        $region73: #{_lambda_.5} parent=43 // pred_check
          %p5473 = pneg %p256
        $region74: #{_lambda_.5} parent=43 // pred_check_branch
          %5475 = sbr.rel (%p5473) target = $region76
        $region75: #{_lambda_.5} parent=43 // pred_region
          %s5477 = ssub.s32 32, 32
          %5478 = vsyncadd %s5451, %s5477
          %s5479 = sadd.s32 %s38, %s37
          %s5480 = smul.addr %s5479, 32
          %s5481 = scalar_lea.hbm %s7, %s5480
          %s5483 = sshll.u32 %s5454, 4
          %s5484 = int_to_ptr.vmem [resolvable:$true] %s5483
          %5486 = dma.vmem_to_hbm [thread:$0]  %s5484, 32, %s5481, %s5451
        $region76: #{_lambda_.5} parent=43 // pred_fallthru
          _
      $region44: #{_lambda_.5} parent=5 // pred_fallthru
        _
      %p5487 = scmp.le.s32.totalorder 2, %s28
      // Predicated region
      $region77: #{_lambda_.5} parent=5 // pred_check
        %p5488 = pneg %p5487
      $region78: #{_lambda_.5} parent=5 // pred_check_branch
        %5490 = sbr.rel (%p5488) target = $region80
      $region79: #{_lambda_.5} parent=5 // pred_region
        %s5491 = ssub.s32 %s28, 2
        // Predicated region
        $region81: #{_lambda_.5} parent=79 // pred_check
          %p5492 = pneg %p234
        $region82: #{_lambda_.5} parent=79 // pred_check_branch
          %5494 = sbr.rel (%p5492) target = $region84
        $region83: #{_lambda_.5} parent=79 // pred_region
          %s5495 = sand.u32 %s219, 1
          %s5496 = scalar_lea.sflag [#allocation5], %s5495
          %s5497 = sand.u32 %s219, 1
          %s5498 = smul.addr %s5497, 128
          %s5499 = scalar_lea.vmem [#allocation14], %s5498
          %5500 = dma.done %s5496, 2048
        $region84: #{_lambda_.5} parent=79 // pred_fallthru
          _
        // Predicated region
        $region85: #{_lambda_.5} parent=79 // pred_check
          %p5501 = pneg %p262
        $region86: #{_lambda_.5} parent=79 // pred_check_branch
          %5503 = sbr.rel (%p5501) target = $region88
        $region87: #{_lambda_.5} parent=79 // pred_region
          %s5504 = sand.u32 %s247, 1
          %s5505 = scalar_lea.sflag [#allocation16], %s5504
          %s5506 = sand.u32 %s247, 1
          %s5507 = smul.addr %s5506, 2
          %s5508 = scalar_lea.vmem [#allocation15], %s5507
          %5509 = dma.done %s5505, 32
        $region88: #{_lambda_.5} parent=79 // pred_fallthru
          _
      $region80: #{_lambda_.5} parent=5 // pred_fallthru
        _
    $region6: #{_lambda_.5} parent=1 // loop_footer
      %s32 = sadd.s32 1, %s28
    $region7: #{_lambda_.5} parent=1 // loop_footer_branch
      %27 = sbr.rel target = $region3
    $region8: #{_lambda_.5} parent=1 // loop_exit
      _
    %5510 = vsyncpa [#allocation4], 1
    %s5511 = scalar_lea.sflag [#allocation4], 1
    %5512 = vsyncpa %s5511, 1
    %5513 = vsyncpa [#allocation7], 1
    %s5514 = scalar_lea.sflag [#allocation7], 1
    %5515 = vsyncpa %s5514, 1
    %5516 = vsyncpa [#allocation10], 1
    %5517 = vsyncpa [#allocation13], 1
    %5518 = vsyncpa [#allocation5], 1
    %s5519 = scalar_lea.sflag [#allocation5], 1
    %5520 = vsyncpa %s5519, 1
    %5521 = vsyncpa [#allocation16], 1
    %s5522 = scalar_lea.sflag [#allocation16], 1
    %5523 = vsyncpa %s5522, 1

</llo_original>
